<compile_context>
chip_gen: v7x
topology: tpu7x:2x2x1
jax: 0.10.0
libtpu: 0.0.40
codegen_flags: <defaults>
</compile_context>

<pallas_src>
import functools

import jax
import jax.numpy as jnp
from jax.experimental import pallas as pl
from jax.experimental.pallas import tpu as pltpu


# ----------------------------- Pallas kernels ------------------------------ #

def cnn_kernel(x_ref, w1_ref, b1_ref, w2_ref, b2_ref, w3_ref, b3_ref,
               o_ref, h1p_ref, h2p_ref):
    """Fused CNN stack; activations stay in VMEM between stages.

    x_ref : (B, L0)        input (Cin == 1 squeezed away)
    w1_ref: (3, C1)        per-tap conv1 weights;  b1_ref: (1, C1)
    w2_ref: (5, C1, C2)    per-tap conv2 weights;  b2_ref: (1, C2)
    w3_ref: (7, C2, C3)    per-tap conv3 weights;  b3_ref: (1, C3)
    o_ref : (B, L3, C3)    NLC output
    h1p_ref / h2p_ref      VMEM scratch holding the replication-padded activations
    """
    b, l0 = x_ref.shape
    c1 = w1_ref.shape[1]
    k2, _, c2 = w2_ref.shape
    k3, _, c3 = w3_ref.shape
    l1 = l0                              # (l0 + 2*1 - 3)//1 + 1
    l2 = (l1 + 2 * 2 - k2) // 2 + 1
    l3 = (l2 + 2 * 3 - k3) // 3 + 1

    # -- stage 1: RepPad(1,1) + Conv1d(1->C1, k=3, s=1) + ReLU  (VPU mul-adds) --
    x = x_ref[...]
    xp = jnp.concatenate([x[:, :1], x, x[:, -1:]], axis=1)           # (B, L0+2)
    w1 = w1_ref[...]
    h1 = jnp.zeros((b, l1, c1), jnp.float32) + b1_ref[...].reshape(1, 1, c1)
    for t in range(3):
        h1 = h1 + xp[:, t:t + l1][:, :, None] * w1[t].reshape(1, 1, c1)
    h1 = jnp.maximum(h1, 0.0)                                         # (B, L1, C1)

    # -- stage 2: RepPad(2,2) + Conv1d(C1->C2, k=5, s=2) + ReLU  (per-tap MXU) --
    pad2 = (h1p_ref.shape[1] - l1) // 2
    h1p_ref[:, pad2:pad2 + l1, :] = h1
    for p in range(pad2):                                             # replication pad
        h1p_ref[:, p:p + 1, :] = h1[:, 0:1, :]
        h1p_ref[:, pad2 + l1 + p:pad2 + l1 + p + 1, :] = h1[:, l1 - 1:l1, :]
    acc2 = jnp.zeros((b * l2, c2), jnp.float32) + b2_ref[...]
    for t in range(k2):
        win = h1p_ref[:, pl.ds(t, l2, 2), :].reshape(b * l2, c1)      # stride-2 taps
        acc2 = acc2 + jnp.dot(win, w2_ref[t], preferred_element_type=jnp.float32)
    h2 = jnp.maximum(acc2, 0.0).reshape(b, l2, c2)                    # (B, L2, C2)

    # -- stage 3: RepPad(3,3) + Conv1d(C2->C3, k=7, s=3) + ReLU  (per-tap MXU) --
    pad3 = (h2p_ref.shape[1] - l2) // 2
    h2p_ref[:, pad3:pad3 + l2, :] = h2
    for p in range(pad3):
        h2p_ref[:, p:p + 1, :] = h2[:, 0:1, :]
        h2p_ref[:, pad3 + l2 + p:pad3 + l2 + p + 1, :] = h2[:, l2 - 1:l2, :]
    acc3 = jnp.zeros((b * l3, c3), jnp.float32) + b3_ref[...]
    for t in range(k3):
        win = h2p_ref[:, pl.ds(t, l3, 3), :].reshape(b * l3, c2)      # stride-3 taps
        acc3 = acc3 + jnp.dot(win, w3_ref[t], preferred_element_type=jnp.float32)
    h3 = jnp.maximum(acc3, 0.0)                                        # (B*L3, C3)
    o_ref[...] = h3.reshape(b, l3, c3)


def heads_kernel(f_ref, w1_ref, b1_ref, w2_ref, b2_ref, out_ref, acc_ref, *, o_dim):
    """Both MLP heads fused + sigmoid gating, tiled over the combined 2*H hidden dim.

    Grid axis j walks hidden tiles: the bf16 W1 tile DMA is pipelined against the MXU
    matmuls of the previous tile; per-tile partial (clas, reg) results accumulate in
    acc_ref; the last step adds the second-layer bias, applies the sigmoid gate and
    writes one fused (B, 2*O) block.
    """
    j = pl.program_id(0)

    @pl.when(j == 0)
    def _init():
        acc_ref[...] = jnp.zeros_like(acc_ref)

    h = jnp.dot(f_ref[...].astype(jnp.bfloat16), w1_ref[...],
                preferred_element_type=jnp.float32) + b1_ref[...]
    h = jnp.maximum(h, 0.0)                                            # (B, TH)
    acc_ref[...] += jnp.dot(h, w2_ref[...], preferred_element_type=jnp.float32)

    @pl.when(j == pl.num_programs(0) - 1)
    def _finalize():
        pre = acc_ref[...] + b2_ref[...]                               # (B, 2*O)
        clas = pre[:, :o_dim]
        reg = pre[:, o_dim:] * jax.nn.sigmoid(clas)
        out_ref[...] = jnp.concatenate([clas, reg], axis=1)


# ------------------------------- wrappers ----------------------------------- #

def cnn_pallas(x, prep):
    """x: (B, L) f32.  Returns NLC activation (B, L3, C3)."""
    B, L = x.shape
    w1, b1 = prep["w1"], prep["b1"]
    w2, b2 = prep["w2"], prep["b2"]
    w3, b3 = prep["w3"], prep["b3"]
    k2, c1, c2 = w2.shape
    k3, _, c3 = w3.shape
    L1 = L
    L2 = (L1 + 4 - k2) // 2 + 1
    L3 = (L2 + 6 - k3) // 3 + 1

    spec2 = lambda shape: pl.BlockSpec(shape, lambda i: (0, 0))
    spec3 = lambda shape: pl.BlockSpec(shape, lambda i: (0, 0, 0))

    return pl.pallas_call(
        cnn_kernel,
        grid=(1,),
        in_specs=[spec2((B, L)),
                  spec2(w1.shape), spec2(b1.shape),
                  spec3(w2.shape), spec2(b2.shape),
                  spec3(w3.shape), spec2(b3.shape)],
        out_specs=spec3((B, L3, c3)),
        out_shape=jax.ShapeDtypeStruct((B, L3, c3), jnp.float32),
        scratch_shapes=[pltpu.VMEM((B, L1 + 4, c1), jnp.float32),
                        pltpu.VMEM((B, L2 + 6, c2), jnp.float32)],
        compiler_params=pltpu.CompilerParams(dimension_semantics=("arbitrary",)),
    )(x, w1, b1, w2, b2, w3, b3)


def heads_pallas(feat, prep, *, tile_h=256):
    """Fused clas/reg heads. feat: (B, F) in l-major flatten order."""
    B, F = feat.shape
    w1, b1 = prep["w1h"], prep["b1h"]        # (F, 2H) bf16, (1, 2H) f32
    w2, b2 = prep["w2h"], prep["b2h"]        # (2H, 2O) f32, (1, 2O) f32
    H2 = w1.shape[1]
    O2 = w2.shape[1]
    o_dim = O2 // 2
    if H2 % tile_h != 0:
        tile_h = H2                           # fallback: single step
    nh = H2 // tile_h

    out = pl.pallas_call(
        functools.partial(heads_kernel, o_dim=o_dim),
        grid=(nh,),
        in_specs=[
            pl.BlockSpec((B, F), lambda j: (0, 0)),         # feat (resident)
            pl.BlockSpec((F, tile_h), lambda j: (0, j)),    # bf16 W1 tile (streamed)
            pl.BlockSpec((1, tile_h), lambda j: (0, j)),    # b1 tile
            pl.BlockSpec((tile_h, O2), lambda j: (j, 0)),   # block-diag W2 tile
            pl.BlockSpec((1, O2), lambda j: (0, 0)),        # b2 (resident)
        ],
        out_specs=pl.BlockSpec((B, O2), lambda j: (0, 0)),
        out_shape=jax.ShapeDtypeStruct((B, O2), jnp.float32),
        scratch_shapes=[pltpu.VMEM((B, O2), jnp.float32)],
        compiler_params=pltpu.CompilerParams(dimension_semantics=("arbitrary",)),
    )(feat, w1, b1, w2, b2)
    return out[:, :o_dim], out[:, o_dim:]


# --------------------- one-time parameter repacking -------------------------- #

def prepare_params(p):
    """Repack torch-layout params into kernel layouts.  Done ONCE (not per forward)."""
    C3 = p["w3"].shape[0]                    # 524
    H = p["w1c"].shape[0]                    # 1024
    O = p["w2c"].shape[0]                    # out_seq_dim
    F = p["w1c"].shape[1]                    # C3 * L3
    L3 = F // C3

    # conv weights: (Cout, Cin, k) -> (k, Cin, Cout); conv1 has Cin == 1.
    w1 = jnp.transpose(p["w1"][:, 0, :], (1, 0))            # (3, 32)
    w2 = jnp.transpose(p["w2"], (2, 1, 0))                  # (5, 32, 128)
    w3 = jnp.transpose(p["w3"], (2, 1, 0))                  # (7, 128, 524)

    # heads: concat clas/reg hidden dims -> (F, 2H); permute the F axis from torch's
    # channel-major flatten (c*L3 + l) to the kernel's l-major flatten (l*C3 + c);
    # store in bf16 to halve the dominant HBM weight traffic.
    w1h = jnp.transpose(jnp.concatenate([p["w1c"], p["w1r"]], axis=0))   # (F, 2H)
    j = jnp.arange(F)
    torch_idx = (j % C3) * L3 + (j // C3)
    w1h = w1h[torch_idx, :].astype(jnp.bfloat16)
    b1h = jnp.concatenate([p["b1c"], p["b1r"]]).reshape(1, 2 * H)

    # second layers packed block-diagonally: (2H, 2O)
    z = jnp.zeros((H, O), jnp.float32)
    w2h = jnp.concatenate(
        [jnp.concatenate([jnp.transpose(p["w2c"]), z], axis=1),
         jnp.concatenate([z, jnp.transpose(p["w2r"])], axis=1)], axis=0)
    b2h = jnp.concatenate([p["b2c"], p["b2r"]]).reshape(1, 2 * O)

    return {"w1": w1, "b1": p["b1"].reshape(1, -1),
            "w2": w2, "b2": p["b2"].reshape(1, -1),
            "w3": w3, "b3": p["b3"].reshape(1, -1),
            "w1h": w1h, "b1h": b1h, "w2h": w2h, "b2h": b2h}


def forward(x_ncl, prep):
    """Full forward pass. x_ncl: (B, 1, L) float32 -> (clas, reg) each (B, O)."""
    B = x_ncl.shape[0]
    x = x_ncl.reshape(B, -1)                 # Cin == 1
    h3 = cnn_pallas(x, prep)                 # (B, L3, 524)  NLC
    feat = h3.reshape(B, -1)                 # l-major flatten (W1 rows pre-permuted)
    return heads_pallas(feat, prep)


# ------------------------- pure-JAX reference (check) ----------------------- #

def replication_pad_nlc(h, pad):
    left = jnp.repeat(h[:, :1, :], pad, axis=1)
    right = jnp.repeat(h[:, -1:, :], pad, axis=1)
    return jnp.concatenate([left, h, right], axis=1)


def im2col_nlc(hp, k, s, l_out):
    b, _, cin = hp.shape
    idx = (jnp.arange(l_out) * s)[:, None] + jnp.arange(k)[None, :]
    p = hp[:, idx, :]
    p = jnp.transpose(p, (0, 1, 3, 2))
    return p.reshape(b * l_out, cin * k)


def forward_ref(x_ncl, params):
    def conv(hp, w, b, k, s):
        B, Lpad, Cin = hp.shape
        Cout = w.shape[0]
        Lout = (Lpad - k) // s + 1
        patches = im2col_nlc(hp, k, s, Lout)
        w_mat = jnp.transpose(w.reshape(Cout, Cin * k))
        out = jnp.dot(patches, w_mat, preferred_element_type=jnp.float32) + b[None, :]
        return jnp.maximum(out, 0.0).reshape(B, Lout, Cout)

    B = x_ncl.shape[0]
    h = jnp.transpose(x_ncl, (0, 2, 1))
    h = conv(replication_pad_nlc(h, 1), params["w1"], params["b1"], 3, 1)
    h = conv(replication_pad_nlc(h, 2), params["w2"], params["b2"], 5, 2)
    h = conv(replication_pad_nlc(h, 3), params["w3"], params["b3"], 7, 3)
    feat = jnp.transpose(h, (0, 2, 1)).reshape(B, -1)

    def mlp(f, w1, b1, w2, b2):
        hdn = jnp.maximum(jnp.dot(f, w1.T, preferred_element_type=jnp.float32) + b1, 0.0)
        return jnp.dot(hdn, w2.T, preferred_element_type=jnp.float32) + b2

    clas = mlp(feat, params["w1c"], params["b1c"], params["w2c"], params["b2c"])
    reg = mlp(feat, params["w1r"], params["b1r"], params["w2r"], params["b2r"])
    return clas, reg * jax.nn.sigmoid(clas)


# ---------------------------------- main ------------------------------------ #

if __name__ == "__main__":
    B = 2
    IN_SEQ = 16          # in_seq_dim
    OUT_SEQ = 1          # out_seq_dim

    # Static shape bookkeeping (mirrors util_md.compute_output_shape).
    L1 = (IN_SEQ + 2 - 3) // 1 + 1
    L2 = (L1 + 4 - 5) // 2 + 1
    L3 = (L2 + 6 - 7) // 3 + 1
    FLAT = 524 * L3
    HID = 1024

    key = jax.random.PRNGKey(0)
    ks = jax.random.split(key, 15)
    init = lambda k, shape, s=0.05: s * jax.random.normal(k, shape, jnp.float32)

    params = {
        # conv weights in torch layout (Cout, Cin, k)
        "w1": init(ks[0], (32, 1, 3)),    "b1": init(ks[1], (32,)),
        "w2": init(ks[2], (128, 32, 5)),  "b2": init(ks[3], (128,)),
        "w3": init(ks[4], (524, 128, 7)), "b3": init(ks[5], (524,)),
        # linear weights in torch layout (out, in)
        "w1c": init(ks[6], (HID, FLAT)),  "b1c": init(ks[7], (HID,)),
        "w2c": init(ks[8], (OUT_SEQ, HID)), "b2c": init(ks[9], (OUT_SEQ,)),
        "w1r": init(ks[10], (HID, FLAT)), "b1r": init(ks[11], (HID,)),
        "w2r": init(ks[12], (OUT_SEQ, HID)), "b2r": init(ks[13], (OUT_SEQ,)),
    }

    x = jax.random.normal(ks[14], (B, 1, IN_SEQ), jnp.float32)

    prep = prepare_params(params)          # one-time repack (transposes, bf16 cast)
    fwd = jax.jit(forward)

    clas, reg = fwd(x, prep)
    clas, reg = jax.block_until_ready(clas), jax.block_until_ready(reg)

    clas_ref, reg_ref = forward_ref(x, params)
    assert clas.shape == (B, OUT_SEQ) and reg.shape == (B, OUT_SEQ)
    if not (jnp.allclose(clas, clas_ref, rtol=1e-2, atol=1e-3)
            and jnp.allclose(reg, reg_ref, rtol=1e-2, atol=1e-3)):
        raise AssertionError("Pallas output mismatch vs JAX reference")

    print("KERNEL_OK")
</pallas_src>

<mosaic_0001>
module attributes {stable_mosaic.version = 11 : i64} {
  func.func @cnn_kernel(%arg0: i32, %arg1: memref<2x16xf32, #tpu.memory_space<vmem>>, %arg2: memref<3x32xf32, #tpu.memory_space<vmem>>, %arg3: memref<1x32xf32, #tpu.memory_space<vmem>>, %arg4: memref<5x32x128xf32, #tpu.memory_space<vmem>>, %arg5: memref<1x128xf32, #tpu.memory_space<vmem>>, %arg6: memref<7x128x524xf32, #tpu.memory_space<vmem>>, %arg7: memref<1x524xf32, #tpu.memory_space<vmem>>, %arg8: memref<2x3x524xf32, #tpu.memory_space<vmem>>, %arg9: memref<2x20x32xf32, #tpu.memory_space<vmem>>, %arg10: memref<2x14x128xf32, #tpu.memory_space<vmem>>) attributes {dimension_semantics = [#tpu.dimension_semantics<arbitrary>], iteration_bounds = array<i64: 1>, scalar_prefetch = 0 : i64, scratch_operands = 2 : i64, tpu.core_type = #tpu.core_type<tc>, window_params = [{pipeline_mode = #tpu.pipeline_mode<synchronous>, transform_indices = @transform_0, window_bounds = array<i64: 2, 16>}, {pipeline_mode = #tpu.pipeline_mode<synchronous>, transform_indices = @transform_1, window_bounds = array<i64: 3, 32>}, {pipeline_mode = #tpu.pipeline_mode<synchronous>, transform_indices = @transform_2, window_bounds = array<i64: 1, 32>}, {pipeline_mode = #tpu.pipeline_mode<synchronous>, transform_indices = @transform_3, window_bounds = array<i64: 5, 32, 128>}, {pipeline_mode = #tpu.pipeline_mode<synchronous>, transform_indices = @transform_4, window_bounds = array<i64: 1, 128>}, {pipeline_mode = #tpu.pipeline_mode<synchronous>, transform_indices = @transform_5, window_bounds = array<i64: 7, 128, 524>}, {pipeline_mode = #tpu.pipeline_mode<synchronous>, transform_indices = @transform_6, window_bounds = array<i64: 1, 524>}, {pipeline_mode = #tpu.pipeline_mode<synchronous>, transform_indices = @transform_7, window_bounds = array<i64: 2, 3, 524>}]} {
    %c0 = arith.constant 0 : index
    %c0_0 = arith.constant 0 : index
    %0 = vector.load %arg1[%c0, %c0_0] : memref<2x16xf32, #tpu.memory_space<vmem>>, vector<2x16xf32>
    %1 = vector.extract_strided_slice %0 {offsets = [0, 0], sizes = [2, 1], strides = [1, 1]} : vector<2x16xf32> to vector<2x1xf32>
    %2 = vector.extract_strided_slice %0 {offsets = [0, 15], sizes = [2, 1], strides = [1, 1]} : vector<2x16xf32> to vector<2x1xf32>
    %3 = tpu.concatenate %1, %0, %2 in 1 : vector<2x1xf32>, vector<2x16xf32>, vector<2x1xf32> -> vector<2x18xf32>
    %c0_1 = arith.constant 0 : index
    %c0_2 = arith.constant 0 : index
    %4 = vector.load %arg2[%c0_1, %c0_2] : memref<3x32xf32, #tpu.memory_space<vmem>>, vector<3x32xf32>
    %cst = arith.constant 0.000000e+00 : f32
    %5 = vector.broadcast %cst : f32 to vector<2x16x32xf32>
    %c0_3 = arith.constant 0 : index
    %c0_4 = arith.constant 0 : index
    %6 = vector.load %arg3[%c0_3, %c0_4] : memref<1x32xf32, #tpu.memory_space<vmem>>, vector<1x32xf32>
    %7 = vector.shape_cast %6 : vector<1x32xf32> to vector<1x1x32xf32>
    %8 = vector.broadcast %7 : vector<1x1x32xf32> to vector<2x16x32xf32>
    %9 = arith.addf %5, %8 : vector<2x16x32xf32>
    %10 = vector.extract_strided_slice %3 {offsets = [0, 0], sizes = [2, 16], strides = [1, 1]} : vector<2x18xf32> to vector<2x16xf32>
    %11 = vector.shape_cast %10 : vector<2x16xf32> to vector<2x16x1xf32>
    %12 = vector.extract_strided_slice %4 {offsets = [0, 0], sizes = [1, 32], strides = [1, 1]} : vector<3x32xf32> to vector<1x32xf32>
    %13 = vector.shape_cast %12 : vector<1x32xf32> to vector<32xf32>
    %14 = vector.shape_cast %13 : vector<32xf32> to vector<1x1x32xf32>
    %15 = vector.broadcast %11 : vector<2x16x1xf32> to vector<2x16x32xf32>
    %16 = vector.broadcast %14 : vector<1x1x32xf32> to vector<2x16x32xf32>
    %17 = arith.mulf %15, %16 : vector<2x16x32xf32>
    %18 = arith.addf %9, %17 : vector<2x16x32xf32>
    %19 = vector.extract_strided_slice %3 {offsets = [0, 1], sizes = [2, 16], strides = [1, 1]} : vector<2x18xf32> to vector<2x16xf32>
    %20 = vector.shape_cast %19 : vector<2x16xf32> to vector<2x16x1xf32>
    %21 = vector.extract_strided_slice %4 {offsets = [1, 0], sizes = [1, 32], strides = [1, 1]} : vector<3x32xf32> to vector<1x32xf32>
    %22 = vector.shape_cast %21 : vector<1x32xf32> to vector<32xf32>
    %23 = vector.shape_cast %22 : vector<32xf32> to vector<1x1x32xf32>
    %24 = vector.broadcast %20 : vector<2x16x1xf32> to vector<2x16x32xf32>
    %25 = vector.broadcast %23 : vector<1x1x32xf32> to vector<2x16x32xf32>
    %26 = arith.mulf %24, %25 : vector<2x16x32xf32>
    %27 = arith.addf %18, %26 : vector<2x16x32xf32>
    %28 = vector.extract_strided_slice %3 {offsets = [0, 2], sizes = [2, 16], strides = [1, 1]} : vector<2x18xf32> to vector<2x16xf32>
    %29 = vector.shape_cast %28 : vector<2x16xf32> to vector<2x16x1xf32>
    %30 = vector.extract_strided_slice %4 {offsets = [2, 0], sizes = [1, 32], strides = [1, 1]} : vector<3x32xf32> to vector<1x32xf32>
    %31 = vector.shape_cast %30 : vector<1x32xf32> to vector<32xf32>
    %32 = vector.shape_cast %31 : vector<32xf32> to vector<1x1x32xf32>
    %33 = vector.broadcast %29 : vector<2x16x1xf32> to vector<2x16x32xf32>
    %34 = vector.broadcast %32 : vector<1x1x32xf32> to vector<2x16x32xf32>
    %35 = arith.mulf %33, %34 : vector<2x16x32xf32>
    %36 = arith.addf %27, %35 : vector<2x16x32xf32>
    %cst_5 = arith.constant 0.000000e+00 : f32
    %37 = vector.broadcast %cst_5 : f32 to vector<2x16x32xf32>
    %38 = arith.maximumf %36, %37 : vector<2x16x32xf32>
    %c0_6 = arith.constant 0 : index
    %c2 = arith.constant 2 : index
    %c0_7 = arith.constant 0 : index
    %39 = vector.load %arg9[%c0_6, %c2, %c0_7] : memref<2x20x32xf32, #tpu.memory_space<vmem>>, vector<2x16x32xf32>
    tpu.vector_store %arg9[%c0_6, %c2, %c0_7], %38 {strides = array<i32>} : memref<2x20x32xf32, #tpu.memory_space<vmem>>, vector<2x16x32xf32>,
    %40 = vector.extract_strided_slice %38 {offsets = [0, 0, 0], sizes = [2, 1, 32], strides = [1, 1, 1]} : vector<2x16x32xf32> to vector<2x1x32xf32>
    %c0_8 = arith.constant 0 : index
    %c0_9 = arith.constant 0 : index
    %c0_10 = arith.constant 0 : index
    %41 = vector.load %arg9[%c0_8, %c0_9, %c0_10] : memref<2x20x32xf32, #tpu.memory_space<vmem>>, vector<2x1x32xf32>
    tpu.vector_store %arg9[%c0_8, %c0_9, %c0_10], %40 {strides = array<i32>} : memref<2x20x32xf32, #tpu.memory_space<vmem>>, vector<2x1x32xf32>,
    %42 = vector.extract_strided_slice %38 {offsets = [0, 15, 0], sizes = [2, 1, 32], strides = [1, 1, 1]} : vector<2x16x32xf32> to vector<2x1x32xf32>
    %c0_11 = arith.constant 0 : index
    %c18 = arith.constant 18 : index
    %c0_12 = arith.constant 0 : index
    %43 = vector.load %arg9[%c0_11, %c18, %c0_12] : memref<2x20x32xf32, #tpu.memory_space<vmem>>, vector<2x1x32xf32>
    tpu.vector_store %arg9[%c0_11, %c18, %c0_12], %42 {strides = array<i32>} : memref<2x20x32xf32, #tpu.memory_space<vmem>>, vector<2x1x32xf32>,
    %44 = vector.extract_strided_slice %38 {offsets = [0, 0, 0], sizes = [2, 1, 32], strides = [1, 1, 1]} : vector<2x16x32xf32> to vector<2x1x32xf32>
    %c0_13 = arith.constant 0 : index
    %c1 = arith.constant 1 : index
    %c0_14 = arith.constant 0 : index
    %45 = vector.load %arg9[%c0_13, %c1, %c0_14] : memref<2x20x32xf32, #tpu.memory_space<vmem>>, vector<2x1x32xf32>
    tpu.vector_store %arg9[%c0_13, %c1, %c0_14], %44 {strides = array<i32>} : memref<2x20x32xf32, #tpu.memory_space<vmem>>, vector<2x1x32xf32>,
    %46 = vector.extract_strided_slice %38 {offsets = [0, 15, 0], sizes = [2, 1, 32], strides = [1, 1, 1]} : vector<2x16x32xf32> to vector<2x1x32xf32>
    %c0_15 = arith.constant 0 : index
    %c19 = arith.constant 19 : index
    %c0_16 = arith.constant 0 : index
    %47 = vector.load %arg9[%c0_15, %c19, %c0_16] : memref<2x20x32xf32, #tpu.memory_space<vmem>>, vector<2x1x32xf32>
    tpu.vector_store %arg9[%c0_15, %c19, %c0_16], %46 {strides = array<i32>} : memref<2x20x32xf32, #tpu.memory_space<vmem>>, vector<2x1x32xf32>,
    %cst_17 = arith.constant 0.000000e+00 : f32
    %48 = vector.broadcast %cst_17 : f32 to vector<16x128xf32>
    %c0_18 = arith.constant 0 : index
    %c0_19 = arith.constant 0 : index
    %49 = vector.load %arg5[%c0_18, %c0_19] : memref<1x128xf32, #tpu.memory_space<vmem>>, vector<1x128xf32>
    %50 = vector.broadcast %49 : vector<1x128xf32> to vector<16x128xf32>
    %51 = arith.addf %48, %50 : vector<16x128xf32>
    %c0_20 = arith.constant 0 : index
    %c0_21 = arith.constant 0 : index
    %c0_22 = arith.constant 0 : index
    %52 = tpu.strided_load %arg9[%c0_20, %c0_21, %c0_22] {strides = array<i32: 1, 2, 1>} : memref<2x20x32xf32, #tpu.memory_space<vmem>>, vector<2x8x32xf32>
    %53 = vector.shape_cast %52 : vector<2x8x32xf32> to vector<16x32xf32>
    %c0_23 = arith.constant 0 : index
    %c0_24 = arith.constant 0 : index
    %c0_25 = arith.constant 0 : index
    %54 = vector.load %arg4[%c0_23, %c0_24, %c0_25] : memref<5x32x128xf32, #tpu.memory_space<vmem>>, vector<1x32x128xf32>
    %55 = vector.shape_cast %54 : vector<1x32x128xf32> to vector<32x128xf32>
    %cst_26 = arith.constant dense<0.000000e+00> : vector<16x128xf32>
    %56 = tpu.matmul %53, %55, %cst_26 {dimension_numbers = #tpu.dot_dimension_numbers<[1], [0], [0], [1], [0, 0, 1, 1], [], []>} : vector<16x32xf32>, vector<32x128xf32>, vector<16x128xf32> -> vector<16x128xf32>
    %57 = arith.addf %51, %56 : vector<16x128xf32>
    %c0_27 = arith.constant 0 : index
    %c1_28 = arith.constant 1 : index
    %c0_29 = arith.constant 0 : index
    %58 = tpu.strided_load %arg9[%c0_27, %c1_28, %c0_29] {strides = array<i32: 1, 2, 1>} : memref<2x20x32xf32, #tpu.memory_space<vmem>>, vector<2x8x32xf32>
    %59 = vector.shape_cast %58 : vector<2x8x32xf32> to vector<16x32xf32>
    %c1_30 = arith.constant 1 : index
    %c0_31 = arith.constant 0 : index
    %c0_32 = arith.constant 0 : index
    %60 = vector.load %arg4[%c1_30, %c0_31, %c0_32] : memref<5x32x128xf32, #tpu.memory_space<vmem>>, vector<1x32x128xf32>
    %61 = vector.shape_cast %60 : vector<1x32x128xf32> to vector<32x128xf32>
    %cst_33 = arith.constant dense<0.000000e+00> : vector<16x128xf32>
    %62 = tpu.matmul %59, %61, %cst_33 {dimension_numbers = #tpu.dot_dimension_numbers<[1], [0], [0], [1], [0, 0, 1, 1], [], []>} : vector<16x32xf32>, vector<32x128xf32>, vector<16x128xf32> -> vector<16x128xf32>
    %63 = arith.addf %57, %62 : vector<16x128xf32>
    %c0_34 = arith.constant 0 : index
    %c2_35 = arith.constant 2 : index
    %c0_36 = arith.constant 0 : index
    %64 = tpu.strided_load %arg9[%c0_34, %c2_35, %c0_36] {strides = array<i32: 1, 2, 1>} : memref<2x20x32xf32, #tpu.memory_space<vmem>>, vector<2x8x32xf32>
    %65 = vector.shape_cast %64 : vector<2x8x32xf32> to vector<16x32xf32>
    %c2_37 = arith.constant 2 : index
    %c0_38 = arith.constant 0 : index
    %c0_39 = arith.constant 0 : index
    %66 = vector.load %arg4[%c2_37, %c0_38, %c0_39] : memref<5x32x128xf32, #tpu.memory_space<vmem>>, vector<1x32x128xf32>
    %67 = vector.shape_cast %66 : vector<1x32x128xf32> to vector<32x128xf32>
    %cst_40 = arith.constant dense<0.000000e+00> : vector<16x128xf32>
    %68 = tpu.matmul %65, %67, %cst_40 {dimension_numbers = #tpu.dot_dimension_numbers<[1], [0], [0], [1], [0, 0, 1, 1], [], []>} : vector<16x32xf32>, vector<32x128xf32>, vector<16x128xf32> -> vector<16x128xf32>
    %69 = arith.addf %63, %68 : vector<16x128xf32>
    %c0_41 = arith.constant 0 : index
    %c3 = arith.constant 3 : index
    %c0_42 = arith.constant 0 : index
    %70 = tpu.strided_load %arg9[%c0_41, %c3, %c0_42] {strides = array<i32: 1, 2, 1>} : memref<2x20x32xf32, #tpu.memory_space<vmem>>, vector<2x8x32xf32>
    %71 = vector.shape_cast %70 : vector<2x8x32xf32> to vector<16x32xf32>
    %c3_43 = arith.constant 3 : index
    %c0_44 = arith.constant 0 : index
    %c0_45 = arith.constant 0 : index
    %72 = vector.load %arg4[%c3_43, %c0_44, %c0_45] : memref<5x32x128xf32, #tpu.memory_space<vmem>>, vector<1x32x128xf32>
    %73 = vector.shape_cast %72 : vector<1x32x128xf32> to vector<32x128xf32>
    %cst_46 = arith.constant dense<0.000000e+00> : vector<16x128xf32>
    %74 = tpu.matmul %71, %73, %cst_46 {dimension_numbers = #tpu.dot_dimension_numbers<[1], [0], [0], [1], [0, 0, 1, 1], [], []>} : vector<16x32xf32>, vector<32x128xf32>, vector<16x128xf32> -> vector<16x128xf32>
    %75 = arith.addf %69, %74 : vector<16x128xf32>
    %c0_47 = arith.constant 0 : index
    %c4 = arith.constant 4 : index
    %c0_48 = arith.constant 0 : index
    %76 = tpu.strided_load %arg9[%c0_47, %c4, %c0_48] {strides = array<i32: 1, 2, 1>} : memref<2x20x32xf32, #tpu.memory_space<vmem>>, vector<2x8x32xf32>
    %77 = vector.shape_cast %76 : vector<2x8x32xf32> to vector<16x32xf32>
    %c4_49 = arith.constant 4 : index
    %c0_50 = arith.constant 0 : index
    %c0_51 = arith.constant 0 : index
    %78 = vector.load %arg4[%c4_49, %c0_50, %c0_51] : memref<5x32x128xf32, #tpu.memory_space<vmem>>, vector<1x32x128xf32>
    %79 = vector.shape_cast %78 : vector<1x32x128xf32> to vector<32x128xf32>
    %cst_52 = arith.constant dense<0.000000e+00> : vector<16x128xf32>
    %80 = tpu.matmul %77, %79, %cst_52 {dimension_numbers = #tpu.dot_dimension_numbers<[1], [0], [0], [1], [0, 0, 1, 1], [], []>} : vector<16x32xf32>, vector<32x128xf32>, vector<16x128xf32> -> vector<16x128xf32>
    %81 = arith.addf %75, %80 : vector<16x128xf32>
    %cst_53 = arith.constant 0.000000e+00 : f32
    %82 = vector.broadcast %cst_53 : f32 to vector<16x128xf32>
    %83 = arith.maximumf %81, %82 : vector<16x128xf32>
    %84 = vector.shape_cast %83 : vector<16x128xf32> to vector<2x8x128xf32>
    %c0_54 = arith.constant 0 : index
    %c3_55 = arith.constant 3 : index
    %c0_56 = arith.constant 0 : index
    %85 = vector.load %arg10[%c0_54, %c3_55, %c0_56] : memref<2x14x128xf32, #tpu.memory_space<vmem>>, vector<2x8x128xf32>
    tpu.vector_store %arg10[%c0_54, %c3_55, %c0_56], %84 {strides = array<i32>} : memref<2x14x128xf32, #tpu.memory_space<vmem>>, vector<2x8x128xf32>,
    %86 = vector.extract_strided_slice %84 {offsets = [0, 0, 0], sizes = [2, 1, 128], strides = [1, 1, 1]} : vector<2x8x128xf32> to vector<2x1x128xf32>
    %c0_57 = arith.constant 0 : index
    %c0_58 = arith.constant 0 : index
    %c0_59 = arith.constant 0 : index
    %87 = vector.load %arg10[%c0_57, %c0_58, %c0_59] : memref<2x14x128xf32, #tpu.memory_space<vmem>>, vector<2x1x128xf32>
    tpu.vector_store %arg10[%c0_57, %c0_58, %c0_59], %86 {strides = array<i32>} : memref<2x14x128xf32, #tpu.memory_space<vmem>>, vector<2x1x128xf32>,
    %88 = vector.extract_strided_slice %84 {offsets = [0, 7, 0], sizes = [2, 1, 128], strides = [1, 1, 1]} : vector<2x8x128xf32> to vector<2x1x128xf32>
    %c0_60 = arith.constant 0 : index
    %c11 = arith.constant 11 : index
    %c0_61 = arith.constant 0 : index
    %89 = vector.load %arg10[%c0_60, %c11, %c0_61] : memref<2x14x128xf32, #tpu.memory_space<vmem>>, vector<2x1x128xf32>
    tpu.vector_store %arg10[%c0_60, %c11, %c0_61], %88 {strides = array<i32>} : memref<2x14x128xf32, #tpu.memory_space<vmem>>, vector<2x1x128xf32>,
    %90 = vector.extract_strided_slice %84 {offsets = [0, 0, 0], sizes = [2, 1, 128], strides = [1, 1, 1]} : vector<2x8x128xf32> to vector<2x1x128xf32>
    %c0_62 = arith.constant 0 : index
    %c1_63 = arith.constant 1 : index
    %c0_64 = arith.constant 0 : index
    %91 = vector.load %arg10[%c0_62, %c1_63, %c0_64] : memref<2x14x128xf32, #tpu.memory_space<vmem>>, vector<2x1x128xf32>
    tpu.vector_store %arg10[%c0_62, %c1_63, %c0_64], %90 {strides = array<i32>} : memref<2x14x128xf32, #tpu.memory_space<vmem>>, vector<2x1x128xf32>,
    %92 = vector.extract_strided_slice %84 {offsets = [0, 7, 0], sizes = [2, 1, 128], strides = [1, 1, 1]} : vector<2x8x128xf32> to vector<2x1x128xf32>
    %c0_65 = arith.constant 0 : index
    %c12 = arith.constant 12 : index
    %c0_66 = arith.constant 0 : index
    %93 = vector.load %arg10[%c0_65, %c12, %c0_66] : memref<2x14x128xf32, #tpu.memory_space<vmem>>, vector<2x1x128xf32>
    tpu.vector_store %arg10[%c0_65, %c12, %c0_66], %92 {strides = array<i32>} : memref<2x14x128xf32, #tpu.memory_space<vmem>>, vector<2x1x128xf32>,
    %94 = vector.extract_strided_slice %84 {offsets = [0, 0, 0], sizes = [2, 1, 128], strides = [1, 1, 1]} : vector<2x8x128xf32> to vector<2x1x128xf32>
    %c0_67 = arith.constant 0 : index
    %c2_68 = arith.constant 2 : index
    %c0_69 = arith.constant 0 : index
    %95 = vector.load %arg10[%c0_67, %c2_68, %c0_69] : memref<2x14x128xf32, #tpu.memory_space<vmem>>, vector<2x1x128xf32>
    tpu.vector_store %arg10[%c0_67, %c2_68, %c0_69], %94 {strides = array<i32>} : memref<2x14x128xf32, #tpu.memory_space<vmem>>, vector<2x1x128xf32>,
    %96 = vector.extract_strided_slice %84 {offsets = [0, 7, 0], sizes = [2, 1, 128], strides = [1, 1, 1]} : vector<2x8x128xf32> to vector<2x1x128xf32>
    %c0_70 = arith.constant 0 : index
    %c13 = arith.constant 13 : index
    %c0_71 = arith.constant 0 : index
    %97 = vector.load %arg10[%c0_70, %c13, %c0_71] : memref<2x14x128xf32, #tpu.memory_space<vmem>>, vector<2x1x128xf32>
    tpu.vector_store %arg10[%c0_70, %c13, %c0_71], %96 {strides = array<i32>} : memref<2x14x128xf32, #tpu.memory_space<vmem>>, vector<2x1x128xf32>,
    %cst_72 = arith.constant 0.000000e+00 : f32
    %98 = vector.broadcast %cst_72 : f32 to vector<6x524xf32>
    %c0_73 = arith.constant 0 : index
    %c0_74 = arith.constant 0 : index
    %99 = vector.load %arg7[%c0_73, %c0_74] : memref<1x524xf32, #tpu.memory_space<vmem>>, vector<1x524xf32>
    %100 = vector.broadcast %99 : vector<1x524xf32> to vector<6x524xf32>
    %101 = arith.addf %98, %100 : vector<6x524xf32>
    %c0_75 = arith.constant 0 : index
    %c0_76 = arith.constant 0 : index
    %c0_77 = arith.constant 0 : index
    %102 = tpu.strided_load %arg10[%c0_75, %c0_76, %c0_77] {strides = array<i32: 1, 3, 1>} : memref<2x14x128xf32, #tpu.memory_space<vmem>>, vector<2x3x128xf32>
    %103 = vector.shape_cast %102 : vector<2x3x128xf32> to vector<6x128xf32>
    %c0_78 = arith.constant 0 : index
    %c0_79 = arith.constant 0 : index
    %c0_80 = arith.constant 0 : index
    %104 = vector.load %arg6[%c0_78, %c0_79, %c0_80] : memref<7x128x524xf32, #tpu.memory_space<vmem>>, vector<1x128x524xf32>
    %105 = vector.shape_cast %104 : vector<1x128x524xf32> to vector<128x524xf32>
    %cst_81 = arith.constant dense<0.000000e+00> : vector<6x524xf32>
    %106 = tpu.matmul %103, %105, %cst_81 {dimension_numbers = #tpu.dot_dimension_numbers<[1], [0], [0], [1], [0, 0, 1, 1], [], []>} : vector<6x128xf32>, vector<128x524xf32>, vector<6x524xf32> -> vector<6x524xf32>
    %107 = arith.addf %101, %106 : vector<6x524xf32>
    %c0_82 = arith.constant 0 : index
    %c1_83 = arith.constant 1 : index
    %c0_84 = arith.constant 0 : index
    %108 = tpu.strided_load %arg10[%c0_82, %c1_83, %c0_84] {strides = array<i32: 1, 3, 1>} : memref<2x14x128xf32, #tpu.memory_space<vmem>>, vector<2x3x128xf32>
    %109 = vector.shape_cast %108 : vector<2x3x128xf32> to vector<6x128xf32>
    %c1_85 = arith.constant 1 : index
    %c0_86 = arith.constant 0 : index
    %c0_87 = arith.constant 0 : index
    %110 = vector.load %arg6[%c1_85, %c0_86, %c0_87] : memref<7x128x524xf32, #tpu.memory_space<vmem>>, vector<1x128x524xf32>
    %111 = vector.shape_cast %110 : vector<1x128x524xf32> to vector<128x524xf32>
    %cst_88 = arith.constant dense<0.000000e+00> : vector<6x524xf32>
    %112 = tpu.matmul %109, %111, %cst_88 {dimension_numbers = #tpu.dot_dimension_numbers<[1], [0], [0], [1], [0, 0, 1, 1], [], []>} : vector<6x128xf32>, vector<128x524xf32>, vector<6x524xf32> -> vector<6x524xf32>
    %113 = arith.addf %107, %112 : vector<6x524xf32>
    %c0_89 = arith.constant 0 : index
    %c2_90 = arith.constant 2 : index
    %c0_91 = arith.constant 0 : index
    %114 = tpu.strided_load %arg10[%c0_89, %c2_90, %c0_91] {strides = array<i32: 1, 3, 1>} : memref<2x14x128xf32, #tpu.memory_space<vmem>>, vector<2x3x128xf32>
    %115 = vector.shape_cast %114 : vector<2x3x128xf32> to vector<6x128xf32>
    %c2_92 = arith.constant 2 : index
    %c0_93 = arith.constant 0 : index
    %c0_94 = arith.constant 0 : index
    %116 = vector.load %arg6[%c2_92, %c0_93, %c0_94] : memref<7x128x524xf32, #tpu.memory_space<vmem>>, vector<1x128x524xf32>
    %117 = vector.shape_cast %116 : vector<1x128x524xf32> to vector<128x524xf32>
    %cst_95 = arith.constant dense<0.000000e+00> : vector<6x524xf32>
    %118 = tpu.matmul %115, %117, %cst_95 {dimension_numbers = #tpu.dot_dimension_numbers<[1], [0], [0], [1], [0, 0, 1, 1], [], []>} : vector<6x128xf32>, vector<128x524xf32>, vector<6x524xf32> -> vector<6x524xf32>
    %119 = arith.addf %113, %118 : vector<6x524xf32>
    %c0_96 = arith.constant 0 : index
    %c3_97 = arith.constant 3 : index
    %c0_98 = arith.constant 0 : index
    %120 = tpu.strided_load %arg10[%c0_96, %c3_97, %c0_98] {strides = array<i32: 1, 3, 1>} : memref<2x14x128xf32, #tpu.memory_space<vmem>>, vector<2x3x128xf32>
    %121 = vector.shape_cast %120 : vector<2x3x128xf32> to vector<6x128xf32>
    %c3_99 = arith.constant 3 : index
    %c0_100 = arith.constant 0 : index
    %c0_101 = arith.constant 0 : index
    %122 = vector.load %arg6[%c3_99, %c0_100, %c0_101] : memref<7x128x524xf32, #tpu.memory_space<vmem>>, vector<1x128x524xf32>
    %123 = vector.shape_cast %122 : vector<1x128x524xf32> to vector<128x524xf32>
    %cst_102 = arith.constant dense<0.000000e+00> : vector<6x524xf32>
    %124 = tpu.matmul %121, %123, %cst_102 {dimension_numbers = #tpu.dot_dimension_numbers<[1], [0], [0], [1], [0, 0, 1, 1], [], []>} : vector<6x128xf32>, vector<128x524xf32>, vector<6x524xf32> -> vector<6x524xf32>
    %125 = arith.addf %119, %124 : vector<6x524xf32>
    %c0_103 = arith.constant 0 : index
    %c4_104 = arith.constant 4 : index
    %c0_105 = arith.constant 0 : index
    %126 = tpu.strided_load %arg10[%c0_103, %c4_104, %c0_105] {strides = array<i32: 1, 3, 1>} : memref<2x14x128xf32, #tpu.memory_space<vmem>>, vector<2x3x128xf32>
    %127 = vector.shape_cast %126 : vector<2x3x128xf32> to vector<6x128xf32>
    %c4_106 = arith.constant 4 : index
    %c0_107 = arith.constant 0 : index
    %c0_108 = arith.constant 0 : index
    %128 = vector.load %arg6[%c4_106, %c0_107, %c0_108] : memref<7x128x524xf32, #tpu.memory_space<vmem>>, vector<1x128x524xf32>
    %129 = vector.shape_cast %128 : vector<1x128x524xf32> to vector<128x524xf32>
    %cst_109 = arith.constant dense<0.000000e+00> : vector<6x524xf32>
    %130 = tpu.matmul %127, %129, %cst_109 {dimension_numbers = #tpu.dot_dimension_numbers<[1], [0], [0], [1], [0, 0, 1, 1], [], []>} : vector<6x128xf32>, vector<128x524xf32>, vector<6x524xf32> -> vector<6x524xf32>
    %131 = arith.addf %125, %130 : vector<6x524xf32>
    %c0_110 = arith.constant 0 : index
    %c5 = arith.constant 5 : index
    %c0_111 = arith.constant 0 : index
    %132 = tpu.strided_load %arg10[%c0_110, %c5, %c0_111] {strides = array<i32: 1, 3, 1>} : memref<2x14x128xf32, #tpu.memory_space<vmem>>, vector<2x3x128xf32>
    %133 = vector.shape_cast %132 : vector<2x3x128xf32> to vector<6x128xf32>
    %c5_112 = arith.constant 5 : index
    %c0_113 = arith.constant 0 : index
    %c0_114 = arith.constant 0 : index
    %134 = vector.load %arg6[%c5_112, %c0_113, %c0_114] : memref<7x128x524xf32, #tpu.memory_space<vmem>>, vector<1x128x524xf32>
    %135 = vector.shape_cast %134 : vector<1x128x524xf32> to vector<128x524xf32>
    %cst_115 = arith.constant dense<0.000000e+00> : vector<6x524xf32>
    %136 = tpu.matmul %133, %135, %cst_115 {dimension_numbers = #tpu.dot_dimension_numbers<[1], [0], [0], [1], [0, 0, 1, 1], [], []>} : vector<6x128xf32>, vector<128x524xf32>, vector<6x524xf32> -> vector<6x524xf32>
    %137 = arith.addf %131, %136 : vector<6x524xf32>
    %c0_116 = arith.constant 0 : index
    %c6 = arith.constant 6 : index
    %c0_117 = arith.constant 0 : index
    %138 = tpu.strided_load %arg10[%c0_116, %c6, %c0_117] {strides = array<i32: 1, 3, 1>} : memref<2x14x128xf32, #tpu.memory_space<vmem>>, vector<2x3x128xf32>
    %139 = vector.shape_cast %138 : vector<2x3x128xf32> to vector<6x128xf32>
    %c6_118 = arith.constant 6 : index
    %c0_119 = arith.constant 0 : index
    %c0_120 = arith.constant 0 : index
    %140 = vector.load %arg6[%c6_118, %c0_119, %c0_120] : memref<7x128x524xf32, #tpu.memory_space<vmem>>, vector<1x128x524xf32>
    %141 = vector.shape_cast %140 : vector<1x128x524xf32> to vector<128x524xf32>
    %cst_121 = arith.constant dense<0.000000e+00> : vector<6x524xf32>
    %142 = tpu.matmul %139, %141, %cst_121 {dimension_numbers = #tpu.dot_dimension_numbers<[1], [0], [0], [1], [0, 0, 1, 1], [], []>} : vector<6x128xf32>, vector<128x524xf32>, vector<6x524xf32> -> vector<6x524xf32>
    %143 = arith.addf %137, %142 : vector<6x524xf32>
    %cst_122 = arith.constant 0.000000e+00 : f32
    %144 = vector.broadcast %cst_122 : f32 to vector<6x524xf32>
    %145 = arith.maximumf %143, %144 : vector<6x524xf32>
    %146 = vector.shape_cast %145 : vector<6x524xf32> to vector<2x3x524xf32>
    %c0_123 = arith.constant 0 : index
    %c0_124 = arith.constant 0 : index
    %c0_125 = arith.constant 0 : index
    %147 = vector.load %arg8[%c0_123, %c0_124, %c0_125] : memref<2x3x524xf32, #tpu.memory_space<vmem>>, vector<2x3x524xf32>
    tpu.vector_store %arg8[%c0_123, %c0_124, %c0_125], %146 {strides = array<i32>} : memref<2x3x524xf32, #tpu.memory_space<vmem>>, vector<2x3x524xf32>,
    return
  }
  func.func @transform_0(%arg0: i32) -> (i32, i32) {
    %c0_i32 = arith.constant 0 : i32
    %c0_i32_0 = arith.constant 0 : i32
    %c0_i32_1 = arith.constant 0 : i32
    return %c0_i32, %c0_i32_0 : i32, i32
  }
  func.func @transform_1(%arg0: i32) -> (i32, i32) {
    %c0_i32 = arith.constant 0 : i32
    %c0_i32_0 = arith.constant 0 : i32
    %c0_i32_1 = arith.constant 0 : i32
    return %c0_i32, %c0_i32_0 : i32, i32
  }
  func.func @transform_2(%arg0: i32) -> (i32, i32) {
    %c0_i32 = arith.constant 0 : i32
    %c0_i32_0 = arith.constant 0 : i32
    %c0_i32_1 = arith.constant 0 : i32
    return %c0_i32, %c0_i32_0 : i32, i32
  }
  func.func @transform_3(%arg0: i32) -> (i32, i32, i32) {
    %c0_i32 = arith.constant 0 : i32
    %c0_i32_0 = arith.constant 0 : i32
    %c0_i32_1 = arith.constant 0 : i32
    %c0_i32_2 = arith.constant 0 : i32
    return %c0_i32, %c0_i32_0, %c0_i32_1 : i32, i32, i32
  }
  func.func @transform_4(%arg0: i32) -> (i32, i32) {
    %c0_i32 = arith.constant 0 : i32
    %c0_i32_0 = arith.constant 0 : i32
    %c0_i32_1 = arith.constant 0 : i32
    return %c0_i32, %c0_i32_0 : i32, i32
  }
  func.func @transform_5(%arg0: i32) -> (i32, i32, i32) {
    %c0_i32 = arith.constant 0 : i32
    %c0_i32_0 = arith.constant 0 : i32
    %c0_i32_1 = arith.constant 0 : i32
    %c0_i32_2 = arith.constant 0 : i32
    return %c0_i32, %c0_i32_0, %c0_i32_1 : i32, i32, i32
  }
  func.func @transform_6(%arg0: i32) -> (i32, i32) {
    %c0_i32 = arith.constant 0 : i32
    %c0_i32_0 = arith.constant 0 : i32
    %c0_i32_1 = arith.constant 0 : i32
    return %c0_i32, %c0_i32_0 : i32, i32
  }
  func.func @transform_7(%arg0: i32) -> (i32, i32, i32) {
    %c0_i32 = arith.constant 0 : i32
    %c0_i32_0 = arith.constant 0 : i32
    %c0_i32_1 = arith.constant 0 : i32
    %c0_i32_2 = arith.constant 0 : i32
    return %c0_i32, %c0_i32_0, %c0_i32_1 : i32, i32, i32
  }
}

module attributes {stable_mosaic.version = 11 : i64} {
  func.func @heads_kernel(%arg0: i32, %arg1: memref<2x1572xf32, #tpu.memory_space<vmem>>, %arg2: memref<1572x256xbf16, #tpu.memory_space<vmem>>, %arg3: memref<1x256xf32, #tpu.memory_space<vmem>>, %arg4: memref<256x2xf32, #tpu.memory_space<vmem>>, %arg5: memref<1x2xf32, #tpu.memory_space<vmem>>, %arg6: memref<2x2xf32, #tpu.memory_space<vmem>>, %arg7: memref<2x2xf32, #tpu.memory_space<vmem>>) attributes {dimension_semantics = [#tpu.dimension_semantics<arbitrary>], iteration_bounds = array<i64: 8>, scalar_prefetch = 0 : i64, scratch_operands = 1 : i64, tpu.core_type = #tpu.core_type<tc>, window_params = [{pipeline_mode = #tpu.pipeline_mode<synchronous>, transform_indices = @transform_0, window_bounds = array<i64: 2, 1572>}, {transform_indices = @transform_1, window_bounds = array<i64: 1572, 256>}, {transform_indices = @transform_2, window_bounds = array<i64: 1, 256>}, {transform_indices = @transform_3, window_bounds = array<i64: 256, 2>}, {pipeline_mode = #tpu.pipeline_mode<synchronous>, transform_indices = @transform_4, window_bounds = array<i64: 1, 2>}, {pipeline_mode = #tpu.pipeline_mode<synchronous>, transform_indices = @transform_5, window_bounds = array<i64: 2, 2>}]} {
    %c0_i32 = arith.constant 0 : i32
    %0 = arith.cmpi eq, %arg0, %c0_i32 : i32
    %1 = arith.extui %0 : i1 to i32
    %c0_i32_0 = arith.constant 0 : i32
    %2 = arith.cmpi ne, %1, %c0_i32_0 : i32
    scf.if %2 {
      %cst_15 = arith.constant 0.000000e+00 : f32
      %20 = vector.broadcast %cst_15 : f32 to vector<2x2xf32>
      %c0_16 = arith.constant 0 : index
      %c0_17 = arith.constant 0 : index
      %21 = vector.load %arg7[%c0_16, %c0_17] : memref<2x2xf32, #tpu.memory_space<vmem>>, vector<2x2xf32>
      tpu.vector_store %arg7[%c0_16, %c0_17], %20 {strides = array<i32>} : memref<2x2xf32, #tpu.memory_space<vmem>>, vector<2x2xf32>,
    } else {
    }
    %c0 = arith.constant 0 : index
    %c0_1 = arith.constant 0 : index
    %3 = vector.load %arg1[%c0, %c0_1] : memref<2x1572xf32, #tpu.memory_space<vmem>>, vector<2x1572xf32>
    %4 = arith.truncf %3 : vector<2x1572xf32> to vector<2x1572xbf16>
    %c0_2 = arith.constant 0 : index
    %c0_3 = arith.constant 0 : index
    %5 = vector.load %arg2[%c0_2, %c0_3] : memref<1572x256xbf16, #tpu.memory_space<vmem>>, vector<1572x256xbf16>
    %cst = arith.constant dense<0.000000e+00> : vector<2x256xf32>
    %6 = tpu.matmul %4, %5, %cst {dimension_numbers = #tpu.dot_dimension_numbers<[1], [0], [0], [1], [0, 0, 1, 1], [], []>} : vector<2x1572xbf16>, vector<1572x256xbf16>, vector<2x256xf32> -> vector<2x256xf32>
    %c0_4 = arith.constant 0 : index
    %c0_5 = arith.constant 0 : index
    %7 = vector.load %arg3[%c0_4, %c0_5] : memref<1x256xf32, #tpu.memory_space<vmem>>, vector<1x256xf32>
    %8 = vector.broadcast %7 : vector<1x256xf32> to vector<2x256xf32>
    %9 = arith.addf %6, %8 : vector<2x256xf32>
    %cst_6 = arith.constant 0.000000e+00 : f32
    %10 = vector.broadcast %cst_6 : f32 to vector<2x256xf32>
    %11 = arith.maximumf %9, %10 : vector<2x256xf32>
    %c0_7 = arith.constant 0 : index
    %c0_8 = arith.constant 0 : index
    %12 = vector.load %arg7[%c0_7, %c0_8] : memref<2x2xf32, #tpu.memory_space<vmem>>, vector<2x2xf32>
    %c0_9 = arith.constant 0 : index
    %c0_10 = arith.constant 0 : index
    %13 = vector.load %arg4[%c0_9, %c0_10] : memref<256x2xf32, #tpu.memory_space<vmem>>, vector<256x2xf32>
    %cst_11 = arith.constant dense<0.000000e+00> : vector<2x2xf32>
    %14 = tpu.matmul %11, %13, %cst_11 {dimension_numbers = #tpu.dot_dimension_numbers<[1], [0], [0], [1], [0, 0, 1, 1], [], []>} : vector<2x256xf32>, vector<256x2xf32>, vector<2x2xf32> -> vector<2x2xf32>
    %15 = arith.addf %12, %14 : vector<2x2xf32>
    %c0_12 = arith.constant 0 : index
    %c0_13 = arith.constant 0 : index
    %16 = vector.load %arg7[%c0_12, %c0_13] : memref<2x2xf32, #tpu.memory_space<vmem>>, vector<2x2xf32>
    tpu.vector_store %arg7[%c0_12, %c0_13], %15 {strides = array<i32>} : memref<2x2xf32, #tpu.memory_space<vmem>>, vector<2x2xf32>,
    %c7_i32 = arith.constant 7 : i32
    %17 = arith.cmpi eq, %arg0, %c7_i32 : i32
    %18 = arith.extui %17 : i1 to i32
    %c0_i32_14 = arith.constant 0 : i32
    %19 = arith.cmpi ne, %18, %c0_i32_14 : i32
    scf.if %19 {
      %c0_15 = arith.constant 0 : index
      %c0_16 = arith.constant 0 : index
      %20 = vector.load %arg7[%c0_15, %c0_16] : memref<2x2xf32, #tpu.memory_space<vmem>>, vector<2x2xf32>
      %c0_17 = arith.constant 0 : index
      %c0_18 = arith.constant 0 : index
      %21 = vector.load %arg5[%c0_17, %c0_18] : memref<1x2xf32, #tpu.memory_space<vmem>>, vector<1x2xf32>
      %22 = vector.broadcast %21 : vector<1x2xf32> to vector<2x2xf32>
      %23 = arith.addf %20, %22 : vector<2x2xf32>
      %24 = vector.extract_strided_slice %23 {offsets = [0, 0], sizes = [2, 1], strides = [1, 1]} : vector<2x2xf32> to vector<2x1xf32>
      %25 = vector.extract_strided_slice %23 {offsets = [0, 1], sizes = [2, 1], strides = [1, 1]} : vector<2x2xf32> to vector<2x1xf32>
      %26 = arith.negf %24 : vector<2x1xf32>
      %27 = math.exp %26 : vector<2x1xf32>
      %cst_19 = arith.constant 1.000000e+00 : f32
      %28 = vector.broadcast %cst_19 : f32 to vector<2x1xf32>
      %29 = arith.addf %28, %27 : vector<2x1xf32>
      %30 = arith.divf %28, %29 : vector<2x1xf32>
      %31 = arith.mulf %25, %30 : vector<2x1xf32>
      %32 = tpu.concatenate %24, %31 in 1 : vector<2x1xf32>, vector<2x1xf32> -> vector<2x2xf32>
      %c0_20 = arith.constant 0 : index
      %c0_21 = arith.constant 0 : index
      %33 = vector.load %arg6[%c0_20, %c0_21] : memref<2x2xf32, #tpu.memory_space<vmem>>, vector<2x2xf32>
      tpu.vector_store %arg6[%c0_20, %c0_21], %32 {strides = array<i32>} : memref<2x2xf32, #tpu.memory_space<vmem>>, vector<2x2xf32>,
    } else {
    }
    return
  }
  func.func @transform_0(%arg0: i32) -> (i32, i32) {
    %c0_i32 = arith.constant 0 : i32
    %c0_i32_0 = arith.constant 0 : i32
    %c0_i32_1 = arith.constant 0 : i32
    return %c0_i32, %c0_i32_0 : i32, i32
  }
  func.func @transform_1(%arg0: i32) -> (i32, i32) {
    %c0_i32 = arith.constant 0 : i32
    %c0_i32_0 = arith.constant 0 : i32
    return %c0_i32, %arg0 : i32, i32
  }
  func.func @transform_2(%arg0: i32) -> (i32, i32) {
    %c0_i32 = arith.constant 0 : i32
    %c0_i32_0 = arith.constant 0 : i32
    return %c0_i32, %arg0 : i32, i32
  }
  func.func @transform_3(%arg0: i32) -> (i32, i32) {
    %c0_i32 = arith.constant 0 : i32
    %c0_i32_0 = arith.constant 0 : i32
    return %arg0, %c0_i32 : i32, i32
  }
  func.func @transform_4(%arg0: i32) -> (i32, i32) {
    %c0_i32 = arith.constant 0 : i32
    %c0_i32_0 = arith.constant 0 : i32
    %c0_i32_1 = arith.constant 0 : i32
    return %c0_i32, %c0_i32_0 : i32, i32
  }
  func.func @transform_5(%arg0: i32) -> (i32, i32) {
    %c0_i32 = arith.constant 0 : i32
    %c0_i32_0 = arith.constant 0 : i32
    %c0_i32_1 = arith.constant 0 : i32
    return %c0_i32, %c0_i32_0 : i32, i32
  }
}

</mosaic_0001>

<llo_original>
// kernel: forward.3
$region0: #{forward.3}
  #allocation0 [shape = 'u32[]', space=smem, size = 0x4, offset = 0x4, fixed_abs, tag = 'smem constant byte address 0x4 - core index']
  #allocation1 [shape = 'u32[144,128]{1,0:T(1,128)}', space=vmem, size = 0x12000, scoped, tag = 'internal scratch']
  #allocation2 [shape = 'f32[2,2]{1,0:T(2,128)}', space=vmem, size = 0x400, scoped, tag = 'scratch operand']
  %s0 = inlined_call_operand.vmem [shape: f32[2,1572], index: 0, kind: input, shape index: {}]
  %s1 = inlined_call_operand.vmem [shape: bf16[1572,2048], index: 1, kind: input, shape index: {}]
  %s2 = inlined_call_operand.vmem [shape: f32[1,2048], index: 2, kind: input, shape index: {}]
  %s3 = inlined_call_operand.vmem [shape: f32[2048,2], index: 3, kind: input, shape index: {}]
  %s4 = inlined_call_operand.vmem [shape: f32[1,2], index: 4, kind: input, shape index: {}]
  %s5 = inlined_call_operand.vmem [shape: f32[2,2], index: 5, kind: output, shape index: {}]
  %s6 = sld [smem:[#allocation0]]
  $region99: #{forward.3} parent=0
    _
  %s8 = ssub.s32 1, %s6
  %s9 = scalar_select 0, %s8, %s6
  $region1: #{forward.3} parent=0
    #allocation3 [shape = 'u8[1613824]{0}', space=vmem, size = 0x18a000, scoped, tag = 'input window, operand 1']
    loop: start=0, step=1, limit=10
    $region2: #{forward.3} parent=1 // loop_pre_header
      _
    $region3: #{forward.3} parent=1 // loop_header
      %s11 = sphi 0, %s15
      %p12 = scmp.ge.s32.totalorder %s11, 10
      %s19 = sphi 0, %s19
      %s21 = sphi 0, %s19
      %s22 = sphi 0, %s21
      %s36 = sphi 0, %s22
      %s42 = sphi 0, %s44
      %s45 = sphi 0, %s42
      %s46 = sphi 0, %s45
      %s62 = sphi 0, %s46
      %s68 = sphi 0, %s70
      %s71 = sphi 0, %s68
      %s72 = sphi 0, %s71
      %s88 = sphi 0, %s72
      %s94 = sphi 0, %s96
      %s97 = sphi 0, %s94
      %s98 = sphi 0, %s97
      %s114 = sphi 0, %s98
      %s118 = sphi 0, %s118
      %s120 = sphi 0, %s118
      %s121 = sphi 0, %s120
      %s135 = sphi 0, %s121
      %s139 = sphi 0, %s139
      %s141 = sphi 0, %s139
      %s142 = sphi 0, %s141
      %s156 = sphi 0, %s142
    $region4: #{forward.3} parent=1 // loop_header_branch
      %14 = sbr.rel (%p12) target = $region8
    $region5: #{forward.3} parent=1 // loop_body
      %s16 = ssub.s32 %s11, 1
      %s17 = ssub.s32 %s11, 2
      %s18 = sadd.s32 %s11, 1
      %s20 = sadd.s32 %s19, 1
      %p23 = scmp.eq.s32.totalorder %s11, 7
      %p24 = scmp.ne.s32.totalorder %s19, %s21
      %p25 = scmp.eq.s32.totalorder %s11, 0
      %p26 = por %p24, %p25
      %p27 = scmp.ne.s32.totalorder %s19, %s21
      %p28 = scmp.eq.s32.totalorder %s16, 7
      %p29 = por %p27, %p28
      %p30 = scmp.ne.s32.totalorder %s21, %s22
      %p31 = scmp.eq.s32.totalorder %s16, 0
      %p32 = por %p30, %p31
      %p33 = scmp.ne.s32.totalorder %s21, %s22
      %p34 = scmp.eq.s32.totalorder %s17, 7
      %p35 = por %p33, %p34
      %p37 = scmp.ne.s32.totalorder %s22, %s36
      %p38 = scmp.eq.s32.totalorder %s17, 0
      %p39 = por %p37, %p38
      %s40 = ssub.s32 %s11, %s18
      %p41 = scmp.eq.s32.totalorder %s40, 0
      %s43 = sadd.s32 %s42, 1
      %s44 = scalar_select %p41, %s42, %s43
      %p47 = pneg %p41
      %p48 = scmp.eq.s32.totalorder %s11, 7
      %p49 = por %p47, %p48
      %p50 = scmp.ne.s32.totalorder %s42, %s45
      %p51 = scmp.eq.s32.totalorder %s11, 0
      %p52 = por %p50, %p51
      %p53 = scmp.ne.s32.totalorder %s42, %s45
      %p54 = scmp.eq.s32.totalorder %s16, 7
      %p55 = por %p53, %p54
      %p56 = scmp.ne.s32.totalorder %s45, %s46
      %p57 = scmp.eq.s32.totalorder %s16, 0
      %p58 = por %p56, %p57
      %p59 = scmp.ne.s32.totalorder %s45, %s46
      %p60 = scmp.eq.s32.totalorder %s17, 7
      %p61 = por %p59, %p60
      %p63 = scmp.ne.s32.totalorder %s46, %s62
      %p64 = scmp.eq.s32.totalorder %s17, 0
      %p65 = por %p63, %p64
      %s66 = ssub.s32 %s11, %s18
      %p67 = scmp.eq.s32.totalorder %s66, 0
      %s69 = sadd.s32 %s68, 1
      %s70 = scalar_select %p67, %s68, %s69
      %p73 = pneg %p67
      %p74 = scmp.eq.s32.totalorder %s11, 7
      %p75 = por %p73, %p74
      %p76 = scmp.ne.s32.totalorder %s68, %s71
      %p77 = scmp.eq.s32.totalorder %s11, 0
      %p78 = por %p76, %p77
      %p79 = scmp.ne.s32.totalorder %s68, %s71
      %p80 = scmp.eq.s32.totalorder %s16, 7
      %p81 = por %p79, %p80
      %p82 = scmp.ne.s32.totalorder %s71, %s72
      %p83 = scmp.eq.s32.totalorder %s16, 0
      %p84 = por %p82, %p83
      %p85 = scmp.ne.s32.totalorder %s71, %s72
      %p86 = scmp.eq.s32.totalorder %s17, 7
      %p87 = por %p85, %p86
      %p89 = scmp.ne.s32.totalorder %s72, %s88
      %p90 = scmp.eq.s32.totalorder %s17, 0
      %p91 = por %p89, %p90
      %s92 = ssub.s32 %s11, %s18
      %p93 = scmp.eq.s32.totalorder %s92, 0
      %s95 = sadd.s32 %s94, 1
      %s96 = scalar_select %p93, %s94, %s95
      %p99 = pneg %p93
      %p100 = scmp.eq.s32.totalorder %s11, 7
      %p101 = por %p99, %p100
      %p102 = scmp.ne.s32.totalorder %s94, %s97
      %p103 = scmp.eq.s32.totalorder %s11, 0
      %p104 = por %p102, %p103
      %p105 = scmp.ne.s32.totalorder %s94, %s97
      %p106 = scmp.eq.s32.totalorder %s16, 7
      %p107 = por %p105, %p106
      %p108 = scmp.ne.s32.totalorder %s97, %s98
      %p109 = scmp.eq.s32.totalorder %s16, 0
      %p110 = por %p108, %p109
      %p111 = scmp.ne.s32.totalorder %s97, %s98
      %p112 = scmp.eq.s32.totalorder %s17, 7
      %p113 = por %p111, %p112
      %p115 = scmp.ne.s32.totalorder %s98, %s114
      %p116 = scmp.eq.s32.totalorder %s17, 0
      %p117 = por %p115, %p116
      %s119 = sadd.s32 %s118, 1
      %p122 = scmp.eq.s32.totalorder %s11, 7
      %p123 = scmp.ne.s32.totalorder %s118, %s120
      %p124 = scmp.eq.s32.totalorder %s11, 0
      %p125 = por %p123, %p124
      %p126 = scmp.ne.s32.totalorder %s118, %s120
      %p127 = scmp.eq.s32.totalorder %s16, 7
      %p128 = por %p126, %p127
      %p129 = scmp.ne.s32.totalorder %s120, %s121
      %p130 = scmp.eq.s32.totalorder %s16, 0
      %p131 = por %p129, %p130
      %p132 = scmp.ne.s32.totalorder %s120, %s121
      %p133 = scmp.eq.s32.totalorder %s17, 7
      %p134 = por %p132, %p133
      %p136 = scmp.ne.s32.totalorder %s121, %s135
      %p137 = scmp.eq.s32.totalorder %s17, 0
      %p138 = por %p136, %p137
      %s140 = sadd.s32 %s139, 1
      %p143 = scmp.eq.s32.totalorder %s11, 7
      %p144 = scmp.ne.s32.totalorder %s139, %s141
      %p145 = scmp.eq.s32.totalorder %s11, 0
      %p146 = por %p144, %p145
      %p147 = scmp.ne.s32.totalorder %s139, %s141
      %p148 = scmp.eq.s32.totalorder %s16, 7
      %p149 = por %p147, %p148
      %p150 = scmp.ne.s32.totalorder %s141, %s142
      %p151 = scmp.eq.s32.totalorder %s16, 0
      %p152 = por %p150, %p151
      %p153 = scmp.ne.s32.totalorder %s141, %s142
      %p154 = scmp.eq.s32.totalorder %s17, 7
      %p155 = por %p153, %p154
      %p157 = scmp.ne.s32.totalorder %s142, %s156
      %p158 = scmp.eq.s32.totalorder %s17, 0
      %p159 = por %p157, %p158
      %p160 = scmp.le.s32.totalorder 1, %s11
      %p161 = scmp.lt.s32.totalorder %s11, 9
      %p162 = pnand %p160, %p161
      %p163 = pneg %p162
      // Predicated region
      $region9: #{forward.3} parent=5 // pred_check
        _
      $region10: #{forward.3} parent=5 // pred_check_branch
        %165 = sbr.rel (%p162) target = $region12
      $region11: #{forward.3} parent=5 // pred_region
        %s166 = ssub.s32 %s11, 1
        // Predicated region
        $region13: #{forward.3} parent=11 // pred_check
          %p167 = pneg %p32
        $region14: #{forward.3} parent=11 // pred_check_branch
          %169 = sbr.rel (%p167) target = $region16
        $region15: #{forward.3} parent=11 // pred_region
          _
        $region16: #{forward.3} parent=11 // pred_fallthru
          _
        // Predicated region
        $region17: #{forward.3} parent=11 // pred_check
          %p170 = pneg %p131
        $region18: #{forward.3} parent=11 // pred_check_branch
          %172 = sbr.rel (%p170) target = $region20
        $region19: #{forward.3} parent=11 // pred_region
          _
        $region20: #{forward.3} parent=11 // pred_fallthru
          _
      $region12: #{forward.3} parent=5 // pred_fallthru
        _
      %p173 = scmp.lt.s32.totalorder %s11, 8
      // Predicated region
      $region21: #{forward.3} parent=5 // pred_check
        %p174 = pneg %p173
      $region22: #{forward.3} parent=5 // pred_check_branch
        %176 = sbr.rel (%p174) target = $region24
      $region23: #{forward.3} parent=5 // pred_region
        // Predicated region
        $region25: #{forward.3} parent=23 // pred_check
          %p177 = pneg %p52
        $region26: #{forward.3} parent=23 // pred_check_branch
          %179 = sbr.rel (%p177) target = $region28
        $region27: #{forward.3} parent=23 // pred_region
          %s180 = sand.u32 %s42, 1
          %s181 = sand.u32 %s42, 1
          %s182 = smul.addr %s181, 1576
          %s183 = scalar_lea.vmem [#allocation3], %s182
          %s184 = smul.u32 2, %s11
          %s185 = smul.addr %s184, 4
          %s186 = scalar_lea.vmem %s1, %s185
          // Predicated region
          $region29: #{forward.3} parent=27 // pred_check
            _
          $region30: #{forward.3} parent=27 // pred_check_branch
            %188 = sbr.rel (0) target = $region32
          $region31: #{forward.3} parent=27 // pred_region
            // Predicated region
            $region33: #{forward.3} parent=31 // pred_check
              _
            $region34: #{forward.3} parent=31 // pred_check_branch
              %190 = sbr.rel (0) target = $region36
            $region35: #{forward.3} parent=31 // pred_region
              // Predicated region
              $region48: #{forward.3} parent=35 // pred_check
                _
              $region49: #{forward.3} parent=35 // pred_check_branch
                %597 = sbr.rel (0) target = $region51
              $region50: #{forward.3} parent=35 // pred_region
                loop: start=0, step=1, limit=1
                $region52: #{forward.3} parent=50 // loop_pre_header
                  _
                $region53: #{forward.3} parent=50 // loop_header
                  %s599 = sphi 0, %s603
                  %p600 = scmp.ge.s32.totalorder %s599, 1
                  %s604 = sphi %s186, %s186
                  %s605 = sphi %s183, %s183
                $region54: #{forward.3} parent=50 // loop_header_branch
                  %602 = sbr.rel (%p600) target = $region58
                $region55: #{forward.3} parent=50 // loop_body
                  %v606 = vld [vmem:[%s604] sm:$0xff]
                  %607 = vst [vmem:[%s605] sm:$0xff] %v606
                  %v608 = vld [vmem:[%s604 + $0x40] sm:$0xff]
                  %609 = vst [vmem:[%s605 + $0x8] sm:$0xff] %v608
                  %v610 = vld [vmem:[%s604 + $0x80] sm:$0xff]
                  %611 = vst [vmem:[%s605 + $0x10] sm:$0xff] %v610
                  %v612 = vld [vmem:[%s604 + $0xc0] sm:$0xff]
                  %613 = vst [vmem:[%s605 + $0x18] sm:$0xff] %v612
                  %v614 = vld [vmem:[%s604 + $0x100] sm:$0xff]
                  %615 = vst [vmem:[%s605 + $0x20] sm:$0xff] %v614
                  %v616 = vld [vmem:[%s604 + $0x140] sm:$0xff]
                  %617 = vst [vmem:[%s605 + $0x28] sm:$0xff] %v616
                  %v618 = vld [vmem:[%s604 + $0x180] sm:$0xff]
                  %619 = vst [vmem:[%s605 + $0x30] sm:$0xff] %v618
                  %v620 = vld [vmem:[%s604 + $0x1c0] sm:$0xff]
                  %621 = vst [vmem:[%s605 + $0x38] sm:$0xff] %v620
                  %v622 = vld [vmem:[%s604 + $0x200] sm:$0xff]
                  %623 = vst [vmem:[%s605 + $0x40] sm:$0xff] %v622
                  %v624 = vld [vmem:[%s604 + $0x240] sm:$0xff]
                  %625 = vst [vmem:[%s605 + $0x48] sm:$0xff] %v624
                  %v626 = vld [vmem:[%s604 + $0x280] sm:$0xff]
                  %627 = vst [vmem:[%s605 + $0x50] sm:$0xff] %v626
                  %v628 = vld [vmem:[%s604 + $0x2c0] sm:$0xff]
                  %629 = vst [vmem:[%s605 + $0x58] sm:$0xff] %v628
                  %v630 = vld [vmem:[%s604 + $0x300] sm:$0xff]
                  %631 = vst [vmem:[%s605 + $0x60] sm:$0xff] %v630
                  %v632 = vld [vmem:[%s604 + $0x340] sm:$0xff]
                  %633 = vst [vmem:[%s605 + $0x68] sm:$0xff] %v632
                  %v634 = vld [vmem:[%s604 + $0x380] sm:$0xff]
                  %635 = vst [vmem:[%s605 + $0x70] sm:$0xff] %v634
                  %v636 = vld [vmem:[%s604 + $0x3c0] sm:$0xff]
                  %637 = vst [vmem:[%s605 + $0x78] sm:$0xff] %v636
                  %v638 = vld [vmem:[%s604 + $0x400] sm:$0xff]
                  %639 = vst [vmem:[%s605 + $0x80] sm:$0xff] %v638
                  %v640 = vld [vmem:[%s604 + $0x440] sm:$0xff]
                  %641 = vst [vmem:[%s605 + $0x88] sm:$0xff] %v640
                  %v642 = vld [vmem:[%s604 + $0x480] sm:$0xff]
                  %643 = vst [vmem:[%s605 + $0x90] sm:$0xff] %v642
                  %v644 = vld [vmem:[%s604 + $0x4c0] sm:$0xff]
                  %645 = vst [vmem:[%s605 + $0x98] sm:$0xff] %v644
                  %v646 = vld [vmem:[%s604 + $0x500] sm:$0xff]
                  %647 = vst [vmem:[%s605 + $0xa0] sm:$0xff] %v646
                  %v648 = vld [vmem:[%s604 + $0x540] sm:$0xff]
                  %649 = vst [vmem:[%s605 + $0xa8] sm:$0xff] %v648
                  %v650 = vld [vmem:[%s604 + $0x580] sm:$0xff]
                  %651 = vst [vmem:[%s605 + $0xb0] sm:$0xff] %v650
                  %v652 = vld [vmem:[%s604 + $0x5c0] sm:$0xff]
                  %653 = vst [vmem:[%s605 + $0xb8] sm:$0xff] %v652
                  %v654 = vld [vmem:[%s604 + $0x600] sm:$0xff]
                  %655 = vst [vmem:[%s605 + $0xc0] sm:$0xff] %v654
                  %v656 = vld [vmem:[%s604 + $0x640] sm:$0xff]
                  %657 = vst [vmem:[%s605 + $0xc8] sm:$0xff] %v656
                  %v658 = vld [vmem:[%s604 + $0x680] sm:$0xff]
                  %659 = vst [vmem:[%s605 + $0xd0] sm:$0xff] %v658
                  %v660 = vld [vmem:[%s604 + $0x6c0] sm:$0xff]
                  %661 = vst [vmem:[%s605 + $0xd8] sm:$0xff] %v660
                  %v662 = vld [vmem:[%s604 + $0x700] sm:$0xff]
                  %663 = vst [vmem:[%s605 + $0xe0] sm:$0xff] %v662
                  %v664 = vld [vmem:[%s604 + $0x740] sm:$0xff]
                  %665 = vst [vmem:[%s605 + $0xe8] sm:$0xff] %v664
                  %v666 = vld [vmem:[%s604 + $0x780] sm:$0xff]
                  %667 = vst [vmem:[%s605 + $0xf0] sm:$0xff] %v666
                  %v668 = vld [vmem:[%s604 + $0x7c0] sm:$0xff]
                  %669 = vst [vmem:[%s605 + $0xf8] sm:$0xff] %v668
                  %v670 = vld [vmem:[%s604 + $0x800] sm:$0xff]
                  %671 = vst [vmem:[%s605 + $0x100] sm:$0xff] %v670
                  %v672 = vld [vmem:[%s604 + $0x840] sm:$0xff]
                  %673 = vst [vmem:[%s605 + $0x108] sm:$0xff] %v672
                  %v674 = vld [vmem:[%s604 + $0x880] sm:$0xff]
                  %675 = vst [vmem:[%s605 + $0x110] sm:$0xff] %v674
                  %v676 = vld [vmem:[%s604 + $0x8c0] sm:$0xff]
                  %677 = vst [vmem:[%s605 + $0x118] sm:$0xff] %v676
                  %v678 = vld [vmem:[%s604 + $0x900] sm:$0xff]
                  %679 = vst [vmem:[%s605 + $0x120] sm:$0xff] %v678
                  %v680 = vld [vmem:[%s604 + $0x940] sm:$0xff]
                  %681 = vst [vmem:[%s605 + $0x128] sm:$0xff] %v680
                  %v682 = vld [vmem:[%s604 + $0x980] sm:$0xff]
                  %683 = vst [vmem:[%s605 + $0x130] sm:$0xff] %v682
                  %v684 = vld [vmem:[%s604 + $0x9c0] sm:$0xff]
                  %685 = vst [vmem:[%s605 + $0x138] sm:$0xff] %v684
                  %v686 = vld [vmem:[%s604 + $0xa00] sm:$0xff]
                  %687 = vst [vmem:[%s605 + $0x140] sm:$0xff] %v686
                  %v688 = vld [vmem:[%s604 + $0xa40] sm:$0xff]
                  %689 = vst [vmem:[%s605 + $0x148] sm:$0xff] %v688
                  %v690 = vld [vmem:[%s604 + $0xa80] sm:$0xff]
                  %691 = vst [vmem:[%s605 + $0x150] sm:$0xff] %v690
                  %v692 = vld [vmem:[%s604 + $0xac0] sm:$0xff]
                  %693 = vst [vmem:[%s605 + $0x158] sm:$0xff] %v692
                  %v694 = vld [vmem:[%s604 + $0xb00] sm:$0xff]
                  %695 = vst [vmem:[%s605 + $0x160] sm:$0xff] %v694
                  %v696 = vld [vmem:[%s604 + $0xb40] sm:$0xff]
                  %697 = vst [vmem:[%s605 + $0x168] sm:$0xff] %v696
                  %v698 = vld [vmem:[%s604 + $0xb80] sm:$0xff]
                  %699 = vst [vmem:[%s605 + $0x170] sm:$0xff] %v698
                  %v700 = vld [vmem:[%s604 + $0xbc0] sm:$0xff]
                  %701 = vst [vmem:[%s605 + $0x178] sm:$0xff] %v700
                  %v702 = vld [vmem:[%s604 + $0xc00] sm:$0xff]
                  %703 = vst [vmem:[%s605 + $0x180] sm:$0xff] %v702
                  %v704 = vld [vmem:[%s604 + $0xc40] sm:$0xff]
                  %705 = vst [vmem:[%s605 + $0x188] sm:$0xff] %v704
                  %v706 = vld [vmem:[%s604 + $0xc80] sm:$0xff]
                  %707 = vst [vmem:[%s605 + $0x190] sm:$0xff] %v706
                  %v708 = vld [vmem:[%s604 + $0xcc0] sm:$0xff]
                  %709 = vst [vmem:[%s605 + $0x198] sm:$0xff] %v708
                  %v710 = vld [vmem:[%s604 + $0xd00] sm:$0xff]
                  %711 = vst [vmem:[%s605 + $0x1a0] sm:$0xff] %v710
                  %v712 = vld [vmem:[%s604 + $0xd40] sm:$0xff]
                  %713 = vst [vmem:[%s605 + $0x1a8] sm:$0xff] %v712
                  %v714 = vld [vmem:[%s604 + $0xd80] sm:$0xff]
                  %715 = vst [vmem:[%s605 + $0x1b0] sm:$0xff] %v714
                  %v716 = vld [vmem:[%s604 + $0xdc0] sm:$0xff]
                  %717 = vst [vmem:[%s605 + $0x1b8] sm:$0xff] %v716
                  %v718 = vld [vmem:[%s604 + $0xe00] sm:$0xff]
                  %719 = vst [vmem:[%s605 + $0x1c0] sm:$0xff] %v718
                  %v720 = vld [vmem:[%s604 + $0xe40] sm:$0xff]
                  %721 = vst [vmem:[%s605 + $0x1c8] sm:$0xff] %v720
                  %v722 = vld [vmem:[%s604 + $0xe80] sm:$0xff]
                  %723 = vst [vmem:[%s605 + $0x1d0] sm:$0xff] %v722
                  %v724 = vld [vmem:[%s604 + $0xec0] sm:$0xff]
                  %725 = vst [vmem:[%s605 + $0x1d8] sm:$0xff] %v724
                  %v726 = vld [vmem:[%s604 + $0xf00] sm:$0xff]
                  %727 = vst [vmem:[%s605 + $0x1e0] sm:$0xff] %v726
                  %v728 = vld [vmem:[%s604 + $0xf40] sm:$0xff]
                  %729 = vst [vmem:[%s605 + $0x1e8] sm:$0xff] %v728
                  %v730 = vld [vmem:[%s604 + $0xf80] sm:$0xff]
                  %731 = vst [vmem:[%s605 + $0x1f0] sm:$0xff] %v730
                  %v732 = vld [vmem:[%s604 + $0xfc0] sm:$0xff]
                  %733 = vst [vmem:[%s605 + $0x1f8] sm:$0xff] %v732
                  %v734 = vld [vmem:[%s604 + $0x1000] sm:$0xff]
                  %735 = vst [vmem:[%s605 + $0x200] sm:$0xff] %v734
                  %v736 = vld [vmem:[%s604 + $0x1040] sm:$0xff]
                  %737 = vst [vmem:[%s605 + $0x208] sm:$0xff] %v736
                  %v738 = vld [vmem:[%s604 + $0x1080] sm:$0xff]
                  %739 = vst [vmem:[%s605 + $0x210] sm:$0xff] %v738
                  %v740 = vld [vmem:[%s604 + $0x10c0] sm:$0xff]
                  %741 = vst [vmem:[%s605 + $0x218] sm:$0xff] %v740
                  %v742 = vld [vmem:[%s604 + $0x1100] sm:$0xff]
                  %743 = vst [vmem:[%s605 + $0x220] sm:$0xff] %v742
                  %v744 = vld [vmem:[%s604 + $0x1140] sm:$0xff]
                  %745 = vst [vmem:[%s605 + $0x228] sm:$0xff] %v744
                  %v746 = vld [vmem:[%s604 + $0x1180] sm:$0xff]
                  %747 = vst [vmem:[%s605 + $0x230] sm:$0xff] %v746
                  %v748 = vld [vmem:[%s604 + $0x11c0] sm:$0xff]
                  %749 = vst [vmem:[%s605 + $0x238] sm:$0xff] %v748
                  %v750 = vld [vmem:[%s604 + $0x1200] sm:$0xff]
                  %751 = vst [vmem:[%s605 + $0x240] sm:$0xff] %v750
                  %v752 = vld [vmem:[%s604 + $0x1240] sm:$0xff]
                  %753 = vst [vmem:[%s605 + $0x248] sm:$0xff] %v752
                  %v754 = vld [vmem:[%s604 + $0x1280] sm:$0xff]
                  %755 = vst [vmem:[%s605 + $0x250] sm:$0xff] %v754
                  %v756 = vld [vmem:[%s604 + $0x12c0] sm:$0xff]
                  %757 = vst [vmem:[%s605 + $0x258] sm:$0xff] %v756
                  %v758 = vld [vmem:[%s604 + $0x1300] sm:$0xff]
                  %759 = vst [vmem:[%s605 + $0x260] sm:$0xff] %v758
                  %v760 = vld [vmem:[%s604 + $0x1340] sm:$0xff]
                  %761 = vst [vmem:[%s605 + $0x268] sm:$0xff] %v760
                  %v762 = vld [vmem:[%s604 + $0x1380] sm:$0xff]
                  %763 = vst [vmem:[%s605 + $0x270] sm:$0xff] %v762
                  %v764 = vld [vmem:[%s604 + $0x13c0] sm:$0xff]
                  %765 = vst [vmem:[%s605 + $0x278] sm:$0xff] %v764
                  %v766 = vld [vmem:[%s604 + $0x1400] sm:$0xff]
                  %767 = vst [vmem:[%s605 + $0x280] sm:$0xff] %v766
                  %v768 = vld [vmem:[%s604 + $0x1440] sm:$0xff]
                  %769 = vst [vmem:[%s605 + $0x288] sm:$0xff] %v768
                  %v770 = vld [vmem:[%s604 + $0x1480] sm:$0xff]
                  %771 = vst [vmem:[%s605 + $0x290] sm:$0xff] %v770
                  %v772 = vld [vmem:[%s604 + $0x14c0] sm:$0xff]
                  %773 = vst [vmem:[%s605 + $0x298] sm:$0xff] %v772
                  %v774 = vld [vmem:[%s604 + $0x1500] sm:$0xff]
                  %775 = vst [vmem:[%s605 + $0x2a0] sm:$0xff] %v774
                  %v776 = vld [vmem:[%s604 + $0x1540] sm:$0xff]
                  %777 = vst [vmem:[%s605 + $0x2a8] sm:$0xff] %v776
                  %v778 = vld [vmem:[%s604 + $0x1580] sm:$0xff]
                  %779 = vst [vmem:[%s605 + $0x2b0] sm:$0xff] %v778
                  %v780 = vld [vmem:[%s604 + $0x15c0] sm:$0xff]
                  %781 = vst [vmem:[%s605 + $0x2b8] sm:$0xff] %v780
                  %v782 = vld [vmem:[%s604 + $0x1600] sm:$0xff]
                  %783 = vst [vmem:[%s605 + $0x2c0] sm:$0xff] %v782
                  %v784 = vld [vmem:[%s604 + $0x1640] sm:$0xff]
                  %785 = vst [vmem:[%s605 + $0x2c8] sm:$0xff] %v784
                  %v786 = vld [vmem:[%s604 + $0x1680] sm:$0xff]
                  %787 = vst [vmem:[%s605 + $0x2d0] sm:$0xff] %v786
                  %v788 = vld [vmem:[%s604 + $0x16c0] sm:$0xff]
                  %789 = vst [vmem:[%s605 + $0x2d8] sm:$0xff] %v788
                  %v790 = vld [vmem:[%s604 + $0x1700] sm:$0xff]
                  %791 = vst [vmem:[%s605 + $0x2e0] sm:$0xff] %v790
                  %v792 = vld [vmem:[%s604 + $0x1740] sm:$0xff]
                  %793 = vst [vmem:[%s605 + $0x2e8] sm:$0xff] %v792
                  %v794 = vld [vmem:[%s604 + $0x1780] sm:$0xff]
                  %795 = vst [vmem:[%s605 + $0x2f0] sm:$0xff] %v794
                  %v796 = vld [vmem:[%s604 + $0x17c0] sm:$0xff]
                  %797 = vst [vmem:[%s605 + $0x2f8] sm:$0xff] %v796
                  %v798 = vld [vmem:[%s604 + $0x1800] sm:$0xff]
                  %799 = vst [vmem:[%s605 + $0x300] sm:$0xff] %v798
                  %v800 = vld [vmem:[%s604 + $0x1840] sm:$0xff]
                  %801 = vst [vmem:[%s605 + $0x308] sm:$0xff] %v800
                  %v802 = vld [vmem:[%s604 + $0x1880] sm:$0xff]
                  %803 = vst [vmem:[%s605 + $0x310] sm:$0xff] %v802
                  %v804 = vld [vmem:[%s604 + $0x18c0] sm:$0xff]
                  %805 = vst [vmem:[%s605 + $0x318] sm:$0xff] %v804
                  %v806 = vld [vmem:[%s604 + $0x1900] sm:$0xff]
                  %807 = vst [vmem:[%s605 + $0x320] sm:$0xff] %v806
                  %v808 = vld [vmem:[%s604 + $0x1940] sm:$0xff]
                  %809 = vst [vmem:[%s605 + $0x328] sm:$0xff] %v808
                  %v810 = vld [vmem:[%s604 + $0x1980] sm:$0xff]
                  %811 = vst [vmem:[%s605 + $0x330] sm:$0xff] %v810
                  %v812 = vld [vmem:[%s604 + $0x19c0] sm:$0xff]
                  %813 = vst [vmem:[%s605 + $0x338] sm:$0xff] %v812
                  %v814 = vld [vmem:[%s604 + $0x1a00] sm:$0xff]
                  %815 = vst [vmem:[%s605 + $0x340] sm:$0xff] %v814
                  %v816 = vld [vmem:[%s604 + $0x1a40] sm:$0xff]
                  %817 = vst [vmem:[%s605 + $0x348] sm:$0xff] %v816
                  %v818 = vld [vmem:[%s604 + $0x1a80] sm:$0xff]
                  %819 = vst [vmem:[%s605 + $0x350] sm:$0xff] %v818
                  %v820 = vld [vmem:[%s604 + $0x1ac0] sm:$0xff]
                  %821 = vst [vmem:[%s605 + $0x358] sm:$0xff] %v820
                  %v822 = vld [vmem:[%s604 + $0x1b00] sm:$0xff]
                  %823 = vst [vmem:[%s605 + $0x360] sm:$0xff] %v822
                  %v824 = vld [vmem:[%s604 + $0x1b40] sm:$0xff]
                  %825 = vst [vmem:[%s605 + $0x368] sm:$0xff] %v824
                  %v826 = vld [vmem:[%s604 + $0x1b80] sm:$0xff]
                  %827 = vst [vmem:[%s605 + $0x370] sm:$0xff] %v826
                  %v828 = vld [vmem:[%s604 + $0x1bc0] sm:$0xff]
                  %829 = vst [vmem:[%s605 + $0x378] sm:$0xff] %v828
                  %v830 = vld [vmem:[%s604 + $0x1c00] sm:$0xff]
                  %831 = vst [vmem:[%s605 + $0x380] sm:$0xff] %v830
                  %v832 = vld [vmem:[%s604 + $0x1c40] sm:$0xff]
                  %833 = vst [vmem:[%s605 + $0x388] sm:$0xff] %v832
                  %v834 = vld [vmem:[%s604 + $0x1c80] sm:$0xff]
                  %835 = vst [vmem:[%s605 + $0x390] sm:$0xff] %v834
                  %v836 = vld [vmem:[%s604 + $0x1cc0] sm:$0xff]
                  %837 = vst [vmem:[%s605 + $0x398] sm:$0xff] %v836
                  %v838 = vld [vmem:[%s604 + $0x1d00] sm:$0xff]
                  %839 = vst [vmem:[%s605 + $0x3a0] sm:$0xff] %v838
                  %v840 = vld [vmem:[%s604 + $0x1d40] sm:$0xff]
                  %841 = vst [vmem:[%s605 + $0x3a8] sm:$0xff] %v840
                  %v842 = vld [vmem:[%s604 + $0x1d80] sm:$0xff]
                  %843 = vst [vmem:[%s605 + $0x3b0] sm:$0xff] %v842
                  %v844 = vld [vmem:[%s604 + $0x1dc0] sm:$0xff]
                  %845 = vst [vmem:[%s605 + $0x3b8] sm:$0xff] %v844
                  %v846 = vld [vmem:[%s604 + $0x1e00] sm:$0xff]
                  %847 = vst [vmem:[%s605 + $0x3c0] sm:$0xff] %v846
                  %v848 = vld [vmem:[%s604 + $0x1e40] sm:$0xff]
                  %849 = vst [vmem:[%s605 + $0x3c8] sm:$0xff] %v848
                  %v850 = vld [vmem:[%s604 + $0x1e80] sm:$0xff]
                  %851 = vst [vmem:[%s605 + $0x3d0] sm:$0xff] %v850
                  %v852 = vld [vmem:[%s604 + $0x1ec0] sm:$0xff]
                  %853 = vst [vmem:[%s605 + $0x3d8] sm:$0xff] %v852
                  %v854 = vld [vmem:[%s604 + $0x1f00] sm:$0xff]
                  %855 = vst [vmem:[%s605 + $0x3e0] sm:$0xff] %v854
                  %v856 = vld [vmem:[%s604 + $0x1f40] sm:$0xff]
                  %857 = vst [vmem:[%s605 + $0x3e8] sm:$0xff] %v856
                  %v858 = vld [vmem:[%s604 + $0x1f80] sm:$0xff]
                  %859 = vst [vmem:[%s605 + $0x3f0] sm:$0xff] %v858
                  %v860 = vld [vmem:[%s604 + $0x1fc0] sm:$0xff]
                  %861 = vst [vmem:[%s605 + $0x3f8] sm:$0xff] %v860
                  %v862 = vld [vmem:[%s604 + $0x2000] sm:$0xff]
                  %863 = vst [vmem:[%s605 + $0x400] sm:$0xff] %v862
                  %v864 = vld [vmem:[%s604 + $0x2040] sm:$0xff]
                  %865 = vst [vmem:[%s605 + $0x408] sm:$0xff] %v864
                  %v866 = vld [vmem:[%s604 + $0x2080] sm:$0xff]
                  %867 = vst [vmem:[%s605 + $0x410] sm:$0xff] %v866
                  %v868 = vld [vmem:[%s604 + $0x20c0] sm:$0xff]
                  %869 = vst [vmem:[%s605 + $0x418] sm:$0xff] %v868
                  %v870 = vld [vmem:[%s604 + $0x2100] sm:$0xff]
                  %871 = vst [vmem:[%s605 + $0x420] sm:$0xff] %v870
                  %v872 = vld [vmem:[%s604 + $0x2140] sm:$0xff]
                  %873 = vst [vmem:[%s605 + $0x428] sm:$0xff] %v872
                  %v874 = vld [vmem:[%s604 + $0x2180] sm:$0xff]
                  %875 = vst [vmem:[%s605 + $0x430] sm:$0xff] %v874
                  %v876 = vld [vmem:[%s604 + $0x21c0] sm:$0xff]
                  %877 = vst [vmem:[%s605 + $0x438] sm:$0xff] %v876
                  %v878 = vld [vmem:[%s604 + $0x2200] sm:$0xff]
                  %879 = vst [vmem:[%s605 + $0x440] sm:$0xff] %v878
                  %v880 = vld [vmem:[%s604 + $0x2240] sm:$0xff]
                  %881 = vst [vmem:[%s605 + $0x448] sm:$0xff] %v880
                  %v882 = vld [vmem:[%s604 + $0x2280] sm:$0xff]
                  %883 = vst [vmem:[%s605 + $0x450] sm:$0xff] %v882
                  %v884 = vld [vmem:[%s604 + $0x22c0] sm:$0xff]
                  %885 = vst [vmem:[%s605 + $0x458] sm:$0xff] %v884
                  %v886 = vld [vmem:[%s604 + $0x2300] sm:$0xff]
                  %887 = vst [vmem:[%s605 + $0x460] sm:$0xff] %v886
                  %v888 = vld [vmem:[%s604 + $0x2340] sm:$0xff]
                  %889 = vst [vmem:[%s605 + $0x468] sm:$0xff] %v888
                  %v890 = vld [vmem:[%s604 + $0x2380] sm:$0xff]
                  %891 = vst [vmem:[%s605 + $0x470] sm:$0xff] %v890
                  %v892 = vld [vmem:[%s604 + $0x23c0] sm:$0xff]
                  %893 = vst [vmem:[%s605 + $0x478] sm:$0xff] %v892
                  %v894 = vld [vmem:[%s604 + $0x2400] sm:$0xff]
                  %895 = vst [vmem:[%s605 + $0x480] sm:$0xff] %v894
                  %v896 = vld [vmem:[%s604 + $0x2440] sm:$0xff]
                  %897 = vst [vmem:[%s605 + $0x488] sm:$0xff] %v896
                  %v898 = vld [vmem:[%s604 + $0x2480] sm:$0xff]
                  %899 = vst [vmem:[%s605 + $0x490] sm:$0xff] %v898
                  %v900 = vld [vmem:[%s604 + $0x24c0] sm:$0xff]
                  %901 = vst [vmem:[%s605 + $0x498] sm:$0xff] %v900
                  %v902 = vld [vmem:[%s604 + $0x2500] sm:$0xff]
                  %903 = vst [vmem:[%s605 + $0x4a0] sm:$0xff] %v902
                  %v904 = vld [vmem:[%s604 + $0x2540] sm:$0xff]
                  %905 = vst [vmem:[%s605 + $0x4a8] sm:$0xff] %v904
                  %v906 = vld [vmem:[%s604 + $0x2580] sm:$0xff]
                  %907 = vst [vmem:[%s605 + $0x4b0] sm:$0xff] %v906
                  %v908 = vld [vmem:[%s604 + $0x25c0] sm:$0xff]
                  %909 = vst [vmem:[%s605 + $0x4b8] sm:$0xff] %v908
                  %v910 = vld [vmem:[%s604 + $0x2600] sm:$0xff]
                  %911 = vst [vmem:[%s605 + $0x4c0] sm:$0xff] %v910
                  %v912 = vld [vmem:[%s604 + $0x2640] sm:$0xff]
                  %913 = vst [vmem:[%s605 + $0x4c8] sm:$0xff] %v912
                  %v914 = vld [vmem:[%s604 + $0x2680] sm:$0xff]
                  %915 = vst [vmem:[%s605 + $0x4d0] sm:$0xff] %v914
                  %v916 = vld [vmem:[%s604 + $0x26c0] sm:$0xff]
                  %917 = vst [vmem:[%s605 + $0x4d8] sm:$0xff] %v916
                  %v918 = vld [vmem:[%s604 + $0x2700] sm:$0xff]
                  %919 = vst [vmem:[%s605 + $0x4e0] sm:$0xff] %v918
                  %v920 = vld [vmem:[%s604 + $0x2740] sm:$0xff]
                  %921 = vst [vmem:[%s605 + $0x4e8] sm:$0xff] %v920
                  %v922 = vld [vmem:[%s604 + $0x2780] sm:$0xff]
                  %923 = vst [vmem:[%s605 + $0x4f0] sm:$0xff] %v922
                  %v924 = vld [vmem:[%s604 + $0x27c0] sm:$0xff]
                  %925 = vst [vmem:[%s605 + $0x4f8] sm:$0xff] %v924
                  %v926 = vld [vmem:[%s604 + $0x2800] sm:$0xff]
                  %927 = vst [vmem:[%s605 + $0x500] sm:$0xff] %v926
                  %v928 = vld [vmem:[%s604 + $0x2840] sm:$0xff]
                  %929 = vst [vmem:[%s605 + $0x508] sm:$0xff] %v928
                  %v930 = vld [vmem:[%s604 + $0x2880] sm:$0xff]
                  %931 = vst [vmem:[%s605 + $0x510] sm:$0xff] %v930
                  %v932 = vld [vmem:[%s604 + $0x28c0] sm:$0xff]
                  %933 = vst [vmem:[%s605 + $0x518] sm:$0xff] %v932
                  %v934 = vld [vmem:[%s604 + $0x2900] sm:$0xff]
                  %935 = vst [vmem:[%s605 + $0x520] sm:$0xff] %v934
                  %v936 = vld [vmem:[%s604 + $0x2940] sm:$0xff]
                  %937 = vst [vmem:[%s605 + $0x528] sm:$0xff] %v936
                  %v938 = vld [vmem:[%s604 + $0x2980] sm:$0xff]
                  %939 = vst [vmem:[%s605 + $0x530] sm:$0xff] %v938
                  %v940 = vld [vmem:[%s604 + $0x29c0] sm:$0xff]
                  %941 = vst [vmem:[%s605 + $0x538] sm:$0xff] %v940
                  %v942 = vld [vmem:[%s604 + $0x2a00] sm:$0xff]
                  %943 = vst [vmem:[%s605 + $0x540] sm:$0xff] %v942
                  %v944 = vld [vmem:[%s604 + $0x2a40] sm:$0xff]
                  %945 = vst [vmem:[%s605 + $0x548] sm:$0xff] %v944
                  %v946 = vld [vmem:[%s604 + $0x2a80] sm:$0xff]
                  %947 = vst [vmem:[%s605 + $0x550] sm:$0xff] %v946
                  %v948 = vld [vmem:[%s604 + $0x2ac0] sm:$0xff]
                  %949 = vst [vmem:[%s605 + $0x558] sm:$0xff] %v948
                  %v950 = vld [vmem:[%s604 + $0x2b00] sm:$0xff]
                  %951 = vst [vmem:[%s605 + $0x560] sm:$0xff] %v950
                  %v952 = vld [vmem:[%s604 + $0x2b40] sm:$0xff]
                  %953 = vst [vmem:[%s605 + $0x568] sm:$0xff] %v952
                  %v954 = vld [vmem:[%s604 + $0x2b80] sm:$0xff]
                  %955 = vst [vmem:[%s605 + $0x570] sm:$0xff] %v954
                  %v956 = vld [vmem:[%s604 + $0x2bc0] sm:$0xff]
                  %957 = vst [vmem:[%s605 + $0x578] sm:$0xff] %v956
                  %v958 = vld [vmem:[%s604 + $0x2c00] sm:$0xff]
                  %959 = vst [vmem:[%s605 + $0x580] sm:$0xff] %v958
                  %v960 = vld [vmem:[%s604 + $0x2c40] sm:$0xff]
                  %961 = vst [vmem:[%s605 + $0x588] sm:$0xff] %v960
                  %v962 = vld [vmem:[%s604 + $0x2c80] sm:$0xff]
                  %963 = vst [vmem:[%s605 + $0x590] sm:$0xff] %v962
                  %v964 = vld [vmem:[%s604 + $0x2cc0] sm:$0xff]
                  %965 = vst [vmem:[%s605 + $0x598] sm:$0xff] %v964
                  %v966 = vld [vmem:[%s604 + $0x2d00] sm:$0xff]
                  %967 = vst [vmem:[%s605 + $0x5a0] sm:$0xff] %v966
                  %v968 = vld [vmem:[%s604 + $0x2d40] sm:$0xff]
                  %969 = vst [vmem:[%s605 + $0x5a8] sm:$0xff] %v968
                  %v970 = vld [vmem:[%s604 + $0x2d80] sm:$0xff]
                  %971 = vst [vmem:[%s605 + $0x5b0] sm:$0xff] %v970
                  %v972 = vld [vmem:[%s604 + $0x2dc0] sm:$0xff]
                  %973 = vst [vmem:[%s605 + $0x5b8] sm:$0xff] %v972
                  %v974 = vld [vmem:[%s604 + $0x2e00] sm:$0xff]
                  %975 = vst [vmem:[%s605 + $0x5c0] sm:$0xff] %v974
                  %v976 = vld [vmem:[%s604 + $0x2e40] sm:$0xff]
                  %977 = vst [vmem:[%s605 + $0x5c8] sm:$0xff] %v976
                  %v978 = vld [vmem:[%s604 + $0x2e80] sm:$0xff]
                  %979 = vst [vmem:[%s605 + $0x5d0] sm:$0xff] %v978
                  %v980 = vld [vmem:[%s604 + $0x2ec0] sm:$0xff]
                  %981 = vst [vmem:[%s605 + $0x5d8] sm:$0xff] %v980
                  %v982 = vld [vmem:[%s604 + $0x2f00] sm:$0xff]
                  %983 = vst [vmem:[%s605 + $0x5e0] sm:$0xff] %v982
                  %v984 = vld [vmem:[%s604 + $0x2f40] sm:$0xff]
                  %985 = vst [vmem:[%s605 + $0x5e8] sm:$0xff] %v984
                  %v986 = vld [vmem:[%s604 + $0x2f80] sm:$0xff]
                  %987 = vst [vmem:[%s605 + $0x5f0] sm:$0xff] %v986
                  %v988 = vld [vmem:[%s604 + $0x2fc0] sm:$0xff]
                  %989 = vst [vmem:[%s605 + $0x5f8] sm:$0xff] %v988
                  %v990 = vld [vmem:[%s604 + $0x3000] sm:$0xff]
                  %991 = vst [vmem:[%s605 + $0x600] sm:$0xff] %v990
                  %v992 = vld [vmem:[%s604 + $0x3040] sm:$0xff]
                  %993 = vst [vmem:[%s605 + $0x608] sm:$0xff] %v992
                  %v994 = vld [vmem:[%s604 + $0x3080] sm:$0xff]
                  %995 = vst [vmem:[%s605 + $0x610] sm:$0xff] %v994
                  %v996 = vld [vmem:[%s604 + $0x30c0] sm:$0xff]
                  %997 = vst [vmem:[%s605 + $0x618] sm:$0xff] %v996
                  %v998 = vld [vmem:[%s604 + $0x3100] sm:$0xff]
                  %999 = vst [vmem:[%s605 + $0x620] sm:$0xff] %v998
                $region56: #{forward.3} parent=50 // loop_footer
                  %s603 = sadd.s32 1, %s599
                $region57: #{forward.3} parent=50 // loop_footer_branch
                  %598 = sbr.rel target = $region53
                $region58: #{forward.3} parent=50 // loop_exit
                  _
              $region51: #{forward.3} parent=35 // pred_fallthru
                _
              // Predicated region
              $region59: #{forward.3} parent=35 // pred_check
                _
              $region60: #{forward.3} parent=35 // pred_check_branch
                %1001 = sbr.rel target = $region62
              $region61: #{forward.3} parent=35 // pred_region
                _
              $region62: #{forward.3} parent=35 // pred_fallthru
                _
            $region36: #{forward.3} parent=31 // pred_fallthru
              _
            // Predicated region
            $region37: #{forward.3} parent=31 // pred_check
              _
            $region38: #{forward.3} parent=31 // pred_check_branch
              %192 = sbr.rel target = $region40
            $region39: #{forward.3} parent=31 // pred_region
              loop: start=0, step=1, limit=1
              $region41: #{forward.3} parent=39 // loop_pre_header
                _
              $region42: #{forward.3} parent=39 // loop_header
                %s195 = sphi 0, %s199
                %p196 = scmp.ge.s32.totalorder %s195, 1
                %s200 = sphi %s186, %s186
                %s201 = sphi %s183, %s183
              $region43: #{forward.3} parent=39 // loop_header_branch
                %198 = sbr.rel (%p196) target = $region47
              $region44: #{forward.3} parent=39 // loop_body
                %v202 = vld [vmem:[%s200] sm:$0xff]
                %203 = vst [vmem:[%s201] sm:$0xff] %v202
                %v204 = vld [vmem:[%s200 + $0x40] sm:$0xff]
                %205 = vst [vmem:[%s201 + $0x8] sm:$0xff] %v204
                %v206 = vld [vmem:[%s200 + $0x80] sm:$0xff]
                %207 = vst [vmem:[%s201 + $0x10] sm:$0xff] %v206
                %v208 = vld [vmem:[%s200 + $0xc0] sm:$0xff]
                %209 = vst [vmem:[%s201 + $0x18] sm:$0xff] %v208
                %v210 = vld [vmem:[%s200 + $0x100] sm:$0xff]
                %211 = vst [vmem:[%s201 + $0x20] sm:$0xff] %v210
                %v212 = vld [vmem:[%s200 + $0x140] sm:$0xff]
                %213 = vst [vmem:[%s201 + $0x28] sm:$0xff] %v212
                %v214 = vld [vmem:[%s200 + $0x180] sm:$0xff]
                %215 = vst [vmem:[%s201 + $0x30] sm:$0xff] %v214
                %v216 = vld [vmem:[%s200 + $0x1c0] sm:$0xff]
                %217 = vst [vmem:[%s201 + $0x38] sm:$0xff] %v216
                %v218 = vld [vmem:[%s200 + $0x200] sm:$0xff]
                %219 = vst [vmem:[%s201 + $0x40] sm:$0xff] %v218
                %v220 = vld [vmem:[%s200 + $0x240] sm:$0xff]
                %221 = vst [vmem:[%s201 + $0x48] sm:$0xff] %v220
                %v222 = vld [vmem:[%s200 + $0x280] sm:$0xff]
                %223 = vst [vmem:[%s201 + $0x50] sm:$0xff] %v222
                %v224 = vld [vmem:[%s200 + $0x2c0] sm:$0xff]
                %225 = vst [vmem:[%s201 + $0x58] sm:$0xff] %v224
                %v226 = vld [vmem:[%s200 + $0x300] sm:$0xff]
                %227 = vst [vmem:[%s201 + $0x60] sm:$0xff] %v226
                %v228 = vld [vmem:[%s200 + $0x340] sm:$0xff]
                %229 = vst [vmem:[%s201 + $0x68] sm:$0xff] %v228
                %v230 = vld [vmem:[%s200 + $0x380] sm:$0xff]
                %231 = vst [vmem:[%s201 + $0x70] sm:$0xff] %v230
                %v232 = vld [vmem:[%s200 + $0x3c0] sm:$0xff]
                %233 = vst [vmem:[%s201 + $0x78] sm:$0xff] %v232
                %v234 = vld [vmem:[%s200 + $0x400] sm:$0xff]
                %235 = vst [vmem:[%s201 + $0x80] sm:$0xff] %v234
                %v236 = vld [vmem:[%s200 + $0x440] sm:$0xff]
                %237 = vst [vmem:[%s201 + $0x88] sm:$0xff] %v236
                %v238 = vld [vmem:[%s200 + $0x480] sm:$0xff]
                %239 = vst [vmem:[%s201 + $0x90] sm:$0xff] %v238
                %v240 = vld [vmem:[%s200 + $0x4c0] sm:$0xff]
                %241 = vst [vmem:[%s201 + $0x98] sm:$0xff] %v240
                %v242 = vld [vmem:[%s200 + $0x500] sm:$0xff]
                %243 = vst [vmem:[%s201 + $0xa0] sm:$0xff] %v242
                %v244 = vld [vmem:[%s200 + $0x540] sm:$0xff]
                %245 = vst [vmem:[%s201 + $0xa8] sm:$0xff] %v244
                %v246 = vld [vmem:[%s200 + $0x580] sm:$0xff]
                %247 = vst [vmem:[%s201 + $0xb0] sm:$0xff] %v246
                %v248 = vld [vmem:[%s200 + $0x5c0] sm:$0xff]
                %249 = vst [vmem:[%s201 + $0xb8] sm:$0xff] %v248
                %v250 = vld [vmem:[%s200 + $0x600] sm:$0xff]
                %251 = vst [vmem:[%s201 + $0xc0] sm:$0xff] %v250
                %v252 = vld [vmem:[%s200 + $0x640] sm:$0xff]
                %253 = vst [vmem:[%s201 + $0xc8] sm:$0xff] %v252
                %v254 = vld [vmem:[%s200 + $0x680] sm:$0xff]
                %255 = vst [vmem:[%s201 + $0xd0] sm:$0xff] %v254
                %v256 = vld [vmem:[%s200 + $0x6c0] sm:$0xff]
                %257 = vst [vmem:[%s201 + $0xd8] sm:$0xff] %v256
                %v258 = vld [vmem:[%s200 + $0x700] sm:$0xff]
                %259 = vst [vmem:[%s201 + $0xe0] sm:$0xff] %v258
                %v260 = vld [vmem:[%s200 + $0x740] sm:$0xff]
                %261 = vst [vmem:[%s201 + $0xe8] sm:$0xff] %v260
                %v262 = vld [vmem:[%s200 + $0x780] sm:$0xff]
                %263 = vst [vmem:[%s201 + $0xf0] sm:$0xff] %v262
                %v264 = vld [vmem:[%s200 + $0x7c0] sm:$0xff]
                %265 = vst [vmem:[%s201 + $0xf8] sm:$0xff] %v264
                %v266 = vld [vmem:[%s200 + $0x800] sm:$0xff]
                %267 = vst [vmem:[%s201 + $0x100] sm:$0xff] %v266
                %v268 = vld [vmem:[%s200 + $0x840] sm:$0xff]
                %269 = vst [vmem:[%s201 + $0x108] sm:$0xff] %v268
                %v270 = vld [vmem:[%s200 + $0x880] sm:$0xff]
                %271 = vst [vmem:[%s201 + $0x110] sm:$0xff] %v270
                %v272 = vld [vmem:[%s200 + $0x8c0] sm:$0xff]
                %273 = vst [vmem:[%s201 + $0x118] sm:$0xff] %v272
                %v274 = vld [vmem:[%s200 + $0x900] sm:$0xff]
                %275 = vst [vmem:[%s201 + $0x120] sm:$0xff] %v274
                %v276 = vld [vmem:[%s200 + $0x940] sm:$0xff]
                %277 = vst [vmem:[%s201 + $0x128] sm:$0xff] %v276
                %v278 = vld [vmem:[%s200 + $0x980] sm:$0xff]
                %279 = vst [vmem:[%s201 + $0x130] sm:$0xff] %v278
                %v280 = vld [vmem:[%s200 + $0x9c0] sm:$0xff]
                %281 = vst [vmem:[%s201 + $0x138] sm:$0xff] %v280
                %v282 = vld [vmem:[%s200 + $0xa00] sm:$0xff]
                %283 = vst [vmem:[%s201 + $0x140] sm:$0xff] %v282
                %v284 = vld [vmem:[%s200 + $0xa40] sm:$0xff]
                %285 = vst [vmem:[%s201 + $0x148] sm:$0xff] %v284
                %v286 = vld [vmem:[%s200 + $0xa80] sm:$0xff]
                %287 = vst [vmem:[%s201 + $0x150] sm:$0xff] %v286
                %v288 = vld [vmem:[%s200 + $0xac0] sm:$0xff]
                %289 = vst [vmem:[%s201 + $0x158] sm:$0xff] %v288
                %v290 = vld [vmem:[%s200 + $0xb00] sm:$0xff]
                %291 = vst [vmem:[%s201 + $0x160] sm:$0xff] %v290
                %v292 = vld [vmem:[%s200 + $0xb40] sm:$0xff]
                %293 = vst [vmem:[%s201 + $0x168] sm:$0xff] %v292
                %v294 = vld [vmem:[%s200 + $0xb80] sm:$0xff]
                %295 = vst [vmem:[%s201 + $0x170] sm:$0xff] %v294
                %v296 = vld [vmem:[%s200 + $0xbc0] sm:$0xff]
                %297 = vst [vmem:[%s201 + $0x178] sm:$0xff] %v296
                %v298 = vld [vmem:[%s200 + $0xc00] sm:$0xff]
                %299 = vst [vmem:[%s201 + $0x180] sm:$0xff] %v298
                %v300 = vld [vmem:[%s200 + $0xc40] sm:$0xff]
                %301 = vst [vmem:[%s201 + $0x188] sm:$0xff] %v300
                %v302 = vld [vmem:[%s200 + $0xc80] sm:$0xff]
                %303 = vst [vmem:[%s201 + $0x190] sm:$0xff] %v302
                %v304 = vld [vmem:[%s200 + $0xcc0] sm:$0xff]
                %305 = vst [vmem:[%s201 + $0x198] sm:$0xff] %v304
                %v306 = vld [vmem:[%s200 + $0xd00] sm:$0xff]
                %307 = vst [vmem:[%s201 + $0x1a0] sm:$0xff] %v306
                %v308 = vld [vmem:[%s200 + $0xd40] sm:$0xff]
                %309 = vst [vmem:[%s201 + $0x1a8] sm:$0xff] %v308
                %v310 = vld [vmem:[%s200 + $0xd80] sm:$0xff]
                %311 = vst [vmem:[%s201 + $0x1b0] sm:$0xff] %v310
                %v312 = vld [vmem:[%s200 + $0xdc0] sm:$0xff]
                %313 = vst [vmem:[%s201 + $0x1b8] sm:$0xff] %v312
                %v314 = vld [vmem:[%s200 + $0xe00] sm:$0xff]
                %315 = vst [vmem:[%s201 + $0x1c0] sm:$0xff] %v314
                %v316 = vld [vmem:[%s200 + $0xe40] sm:$0xff]
                %317 = vst [vmem:[%s201 + $0x1c8] sm:$0xff] %v316
                %v318 = vld [vmem:[%s200 + $0xe80] sm:$0xff]
                %319 = vst [vmem:[%s201 + $0x1d0] sm:$0xff] %v318
                %v320 = vld [vmem:[%s200 + $0xec0] sm:$0xff]
                %321 = vst [vmem:[%s201 + $0x1d8] sm:$0xff] %v320
                %v322 = vld [vmem:[%s200 + $0xf00] sm:$0xff]
                %323 = vst [vmem:[%s201 + $0x1e0] sm:$0xff] %v322
                %v324 = vld [vmem:[%s200 + $0xf40] sm:$0xff]
                %325 = vst [vmem:[%s201 + $0x1e8] sm:$0xff] %v324
                %v326 = vld [vmem:[%s200 + $0xf80] sm:$0xff]
                %327 = vst [vmem:[%s201 + $0x1f0] sm:$0xff] %v326
                %v328 = vld [vmem:[%s200 + $0xfc0] sm:$0xff]
                %329 = vst [vmem:[%s201 + $0x1f8] sm:$0xff] %v328
                %v330 = vld [vmem:[%s200 + $0x1000] sm:$0xff]
                %331 = vst [vmem:[%s201 + $0x200] sm:$0xff] %v330
                %v332 = vld [vmem:[%s200 + $0x1040] sm:$0xff]
                %333 = vst [vmem:[%s201 + $0x208] sm:$0xff] %v332
                %v334 = vld [vmem:[%s200 + $0x1080] sm:$0xff]
                %335 = vst [vmem:[%s201 + $0x210] sm:$0xff] %v334
                %v336 = vld [vmem:[%s200 + $0x10c0] sm:$0xff]
                %337 = vst [vmem:[%s201 + $0x218] sm:$0xff] %v336
                %v338 = vld [vmem:[%s200 + $0x1100] sm:$0xff]
                %339 = vst [vmem:[%s201 + $0x220] sm:$0xff] %v338
                %v340 = vld [vmem:[%s200 + $0x1140] sm:$0xff]
                %341 = vst [vmem:[%s201 + $0x228] sm:$0xff] %v340
                %v342 = vld [vmem:[%s200 + $0x1180] sm:$0xff]
                %343 = vst [vmem:[%s201 + $0x230] sm:$0xff] %v342
                %v344 = vld [vmem:[%s200 + $0x11c0] sm:$0xff]
                %345 = vst [vmem:[%s201 + $0x238] sm:$0xff] %v344
                %v346 = vld [vmem:[%s200 + $0x1200] sm:$0xff]
                %347 = vst [vmem:[%s201 + $0x240] sm:$0xff] %v346
                %v348 = vld [vmem:[%s200 + $0x1240] sm:$0xff]
                %349 = vst [vmem:[%s201 + $0x248] sm:$0xff] %v348
                %v350 = vld [vmem:[%s200 + $0x1280] sm:$0xff]
                %351 = vst [vmem:[%s201 + $0x250] sm:$0xff] %v350
                %v352 = vld [vmem:[%s200 + $0x12c0] sm:$0xff]
                %353 = vst [vmem:[%s201 + $0x258] sm:$0xff] %v352
                %v354 = vld [vmem:[%s200 + $0x1300] sm:$0xff]
                %355 = vst [vmem:[%s201 + $0x260] sm:$0xff] %v354
                %v356 = vld [vmem:[%s200 + $0x1340] sm:$0xff]
                %357 = vst [vmem:[%s201 + $0x268] sm:$0xff] %v356
                %v358 = vld [vmem:[%s200 + $0x1380] sm:$0xff]
                %359 = vst [vmem:[%s201 + $0x270] sm:$0xff] %v358
                %v360 = vld [vmem:[%s200 + $0x13c0] sm:$0xff]
                %361 = vst [vmem:[%s201 + $0x278] sm:$0xff] %v360
                %v362 = vld [vmem:[%s200 + $0x1400] sm:$0xff]
                %363 = vst [vmem:[%s201 + $0x280] sm:$0xff] %v362
                %v364 = vld [vmem:[%s200 + $0x1440] sm:$0xff]
                %365 = vst [vmem:[%s201 + $0x288] sm:$0xff] %v364
                %v366 = vld [vmem:[%s200 + $0x1480] sm:$0xff]
                %367 = vst [vmem:[%s201 + $0x290] sm:$0xff] %v366
                %v368 = vld [vmem:[%s200 + $0x14c0] sm:$0xff]
                %369 = vst [vmem:[%s201 + $0x298] sm:$0xff] %v368
                %v370 = vld [vmem:[%s200 + $0x1500] sm:$0xff]
                %371 = vst [vmem:[%s201 + $0x2a0] sm:$0xff] %v370
                %v372 = vld [vmem:[%s200 + $0x1540] sm:$0xff]
                %373 = vst [vmem:[%s201 + $0x2a8] sm:$0xff] %v372
                %v374 = vld [vmem:[%s200 + $0x1580] sm:$0xff]
                %375 = vst [vmem:[%s201 + $0x2b0] sm:$0xff] %v374
                %v376 = vld [vmem:[%s200 + $0x15c0] sm:$0xff]
                %377 = vst [vmem:[%s201 + $0x2b8] sm:$0xff] %v376
                %v378 = vld [vmem:[%s200 + $0x1600] sm:$0xff]
                %379 = vst [vmem:[%s201 + $0x2c0] sm:$0xff] %v378
                %v380 = vld [vmem:[%s200 + $0x1640] sm:$0xff]
                %381 = vst [vmem:[%s201 + $0x2c8] sm:$0xff] %v380
                %v382 = vld [vmem:[%s200 + $0x1680] sm:$0xff]
                %383 = vst [vmem:[%s201 + $0x2d0] sm:$0xff] %v382
                %v384 = vld [vmem:[%s200 + $0x16c0] sm:$0xff]
                %385 = vst [vmem:[%s201 + $0x2d8] sm:$0xff] %v384
                %v386 = vld [vmem:[%s200 + $0x1700] sm:$0xff]
                %387 = vst [vmem:[%s201 + $0x2e0] sm:$0xff] %v386
                %v388 = vld [vmem:[%s200 + $0x1740] sm:$0xff]
                %389 = vst [vmem:[%s201 + $0x2e8] sm:$0xff] %v388
                %v390 = vld [vmem:[%s200 + $0x1780] sm:$0xff]
                %391 = vst [vmem:[%s201 + $0x2f0] sm:$0xff] %v390
                %v392 = vld [vmem:[%s200 + $0x17c0] sm:$0xff]
                %393 = vst [vmem:[%s201 + $0x2f8] sm:$0xff] %v392
                %v394 = vld [vmem:[%s200 + $0x1800] sm:$0xff]
                %395 = vst [vmem:[%s201 + $0x300] sm:$0xff] %v394
                %v396 = vld [vmem:[%s200 + $0x1840] sm:$0xff]
                %397 = vst [vmem:[%s201 + $0x308] sm:$0xff] %v396
                %v398 = vld [vmem:[%s200 + $0x1880] sm:$0xff]
                %399 = vst [vmem:[%s201 + $0x310] sm:$0xff] %v398
                %v400 = vld [vmem:[%s200 + $0x18c0] sm:$0xff]
                %401 = vst [vmem:[%s201 + $0x318] sm:$0xff] %v400
                %v402 = vld [vmem:[%s200 + $0x1900] sm:$0xff]
                %403 = vst [vmem:[%s201 + $0x320] sm:$0xff] %v402
                %v404 = vld [vmem:[%s200 + $0x1940] sm:$0xff]
                %405 = vst [vmem:[%s201 + $0x328] sm:$0xff] %v404
                %v406 = vld [vmem:[%s200 + $0x1980] sm:$0xff]
                %407 = vst [vmem:[%s201 + $0x330] sm:$0xff] %v406
                %v408 = vld [vmem:[%s200 + $0x19c0] sm:$0xff]
                %409 = vst [vmem:[%s201 + $0x338] sm:$0xff] %v408
                %v410 = vld [vmem:[%s200 + $0x1a00] sm:$0xff]
                %411 = vst [vmem:[%s201 + $0x340] sm:$0xff] %v410
                %v412 = vld [vmem:[%s200 + $0x1a40] sm:$0xff]
                %413 = vst [vmem:[%s201 + $0x348] sm:$0xff] %v412
                %v414 = vld [vmem:[%s200 + $0x1a80] sm:$0xff]
                %415 = vst [vmem:[%s201 + $0x350] sm:$0xff] %v414
                %v416 = vld [vmem:[%s200 + $0x1ac0] sm:$0xff]
                %417 = vst [vmem:[%s201 + $0x358] sm:$0xff] %v416
                %v418 = vld [vmem:[%s200 + $0x1b00] sm:$0xff]
                %419 = vst [vmem:[%s201 + $0x360] sm:$0xff] %v418
                %v420 = vld [vmem:[%s200 + $0x1b40] sm:$0xff]
                %421 = vst [vmem:[%s201 + $0x368] sm:$0xff] %v420
                %v422 = vld [vmem:[%s200 + $0x1b80] sm:$0xff]
                %423 = vst [vmem:[%s201 + $0x370] sm:$0xff] %v422
                %v424 = vld [vmem:[%s200 + $0x1bc0] sm:$0xff]
                %425 = vst [vmem:[%s201 + $0x378] sm:$0xff] %v424
                %v426 = vld [vmem:[%s200 + $0x1c00] sm:$0xff]
                %427 = vst [vmem:[%s201 + $0x380] sm:$0xff] %v426
                %v428 = vld [vmem:[%s200 + $0x1c40] sm:$0xff]
                %429 = vst [vmem:[%s201 + $0x388] sm:$0xff] %v428
                %v430 = vld [vmem:[%s200 + $0x1c80] sm:$0xff]
                %431 = vst [vmem:[%s201 + $0x390] sm:$0xff] %v430
                %v432 = vld [vmem:[%s200 + $0x1cc0] sm:$0xff]
                %433 = vst [vmem:[%s201 + $0x398] sm:$0xff] %v432
                %v434 = vld [vmem:[%s200 + $0x1d00] sm:$0xff]
                %435 = vst [vmem:[%s201 + $0x3a0] sm:$0xff] %v434
                %v436 = vld [vmem:[%s200 + $0x1d40] sm:$0xff]
                %437 = vst [vmem:[%s201 + $0x3a8] sm:$0xff] %v436
                %v438 = vld [vmem:[%s200 + $0x1d80] sm:$0xff]
                %439 = vst [vmem:[%s201 + $0x3b0] sm:$0xff] %v438
                %v440 = vld [vmem:[%s200 + $0x1dc0] sm:$0xff]
                %441 = vst [vmem:[%s201 + $0x3b8] sm:$0xff] %v440
                %v442 = vld [vmem:[%s200 + $0x1e00] sm:$0xff]
                %443 = vst [vmem:[%s201 + $0x3c0] sm:$0xff] %v442
                %v444 = vld [vmem:[%s200 + $0x1e40] sm:$0xff]
                %445 = vst [vmem:[%s201 + $0x3c8] sm:$0xff] %v444
                %v446 = vld [vmem:[%s200 + $0x1e80] sm:$0xff]
                %447 = vst [vmem:[%s201 + $0x3d0] sm:$0xff] %v446
                %v448 = vld [vmem:[%s200 + $0x1ec0] sm:$0xff]
                %449 = vst [vmem:[%s201 + $0x3d8] sm:$0xff] %v448
                %v450 = vld [vmem:[%s200 + $0x1f00] sm:$0xff]
                %451 = vst [vmem:[%s201 + $0x3e0] sm:$0xff] %v450
                %v452 = vld [vmem:[%s200 + $0x1f40] sm:$0xff]
                %453 = vst [vmem:[%s201 + $0x3e8] sm:$0xff] %v452
                %v454 = vld [vmem:[%s200 + $0x1f80] sm:$0xff]
                %455 = vst [vmem:[%s201 + $0x3f0] sm:$0xff] %v454
                %v456 = vld [vmem:[%s200 + $0x1fc0] sm:$0xff]
                %457 = vst [vmem:[%s201 + $0x3f8] sm:$0xff] %v456
                %v458 = vld [vmem:[%s200 + $0x2000] sm:$0xff]
                %459 = vst [vmem:[%s201 + $0x400] sm:$0xff] %v458
                %v460 = vld [vmem:[%s200 + $0x2040] sm:$0xff]
                %461 = vst [vmem:[%s201 + $0x408] sm:$0xff] %v460
                %v462 = vld [vmem:[%s200 + $0x2080] sm:$0xff]
                %463 = vst [vmem:[%s201 + $0x410] sm:$0xff] %v462
                %v464 = vld [vmem:[%s200 + $0x20c0] sm:$0xff]
                %465 = vst [vmem:[%s201 + $0x418] sm:$0xff] %v464
                %v466 = vld [vmem:[%s200 + $0x2100] sm:$0xff]
                %467 = vst [vmem:[%s201 + $0x420] sm:$0xff] %v466
                %v468 = vld [vmem:[%s200 + $0x2140] sm:$0xff]
                %469 = vst [vmem:[%s201 + $0x428] sm:$0xff] %v468
                %v470 = vld [vmem:[%s200 + $0x2180] sm:$0xff]
                %471 = vst [vmem:[%s201 + $0x430] sm:$0xff] %v470
                %v472 = vld [vmem:[%s200 + $0x21c0] sm:$0xff]
                %473 = vst [vmem:[%s201 + $0x438] sm:$0xff] %v472
                %v474 = vld [vmem:[%s200 + $0x2200] sm:$0xff]
                %475 = vst [vmem:[%s201 + $0x440] sm:$0xff] %v474
                %v476 = vld [vmem:[%s200 + $0x2240] sm:$0xff]
                %477 = vst [vmem:[%s201 + $0x448] sm:$0xff] %v476
                %v478 = vld [vmem:[%s200 + $0x2280] sm:$0xff]
                %479 = vst [vmem:[%s201 + $0x450] sm:$0xff] %v478
                %v480 = vld [vmem:[%s200 + $0x22c0] sm:$0xff]
                %481 = vst [vmem:[%s201 + $0x458] sm:$0xff] %v480
                %v482 = vld [vmem:[%s200 + $0x2300] sm:$0xff]
                %483 = vst [vmem:[%s201 + $0x460] sm:$0xff] %v482
                %v484 = vld [vmem:[%s200 + $0x2340] sm:$0xff]
                %485 = vst [vmem:[%s201 + $0x468] sm:$0xff] %v484
                %v486 = vld [vmem:[%s200 + $0x2380] sm:$0xff]
                %487 = vst [vmem:[%s201 + $0x470] sm:$0xff] %v486
                %v488 = vld [vmem:[%s200 + $0x23c0] sm:$0xff]
                %489 = vst [vmem:[%s201 + $0x478] sm:$0xff] %v488
                %v490 = vld [vmem:[%s200 + $0x2400] sm:$0xff]
                %491 = vst [vmem:[%s201 + $0x480] sm:$0xff] %v490
                %v492 = vld [vmem:[%s200 + $0x2440] sm:$0xff]
                %493 = vst [vmem:[%s201 + $0x488] sm:$0xff] %v492
                %v494 = vld [vmem:[%s200 + $0x2480] sm:$0xff]
                %495 = vst [vmem:[%s201 + $0x490] sm:$0xff] %v494
                %v496 = vld [vmem:[%s200 + $0x24c0] sm:$0xff]
                %497 = vst [vmem:[%s201 + $0x498] sm:$0xff] %v496
                %v498 = vld [vmem:[%s200 + $0x2500] sm:$0xff]
                %499 = vst [vmem:[%s201 + $0x4a0] sm:$0xff] %v498
                %v500 = vld [vmem:[%s200 + $0x2540] sm:$0xff]
                %501 = vst [vmem:[%s201 + $0x4a8] sm:$0xff] %v500
                %v502 = vld [vmem:[%s200 + $0x2580] sm:$0xff]
                %503 = vst [vmem:[%s201 + $0x4b0] sm:$0xff] %v502
                %v504 = vld [vmem:[%s200 + $0x25c0] sm:$0xff]
                %505 = vst [vmem:[%s201 + $0x4b8] sm:$0xff] %v504
                %v506 = vld [vmem:[%s200 + $0x2600] sm:$0xff]
                %507 = vst [vmem:[%s201 + $0x4c0] sm:$0xff] %v506
                %v508 = vld [vmem:[%s200 + $0x2640] sm:$0xff]
                %509 = vst [vmem:[%s201 + $0x4c8] sm:$0xff] %v508
                %v510 = vld [vmem:[%s200 + $0x2680] sm:$0xff]
                %511 = vst [vmem:[%s201 + $0x4d0] sm:$0xff] %v510
                %v512 = vld [vmem:[%s200 + $0x26c0] sm:$0xff]
                %513 = vst [vmem:[%s201 + $0x4d8] sm:$0xff] %v512
                %v514 = vld [vmem:[%s200 + $0x2700] sm:$0xff]
                %515 = vst [vmem:[%s201 + $0x4e0] sm:$0xff] %v514
                %v516 = vld [vmem:[%s200 + $0x2740] sm:$0xff]
                %517 = vst [vmem:[%s201 + $0x4e8] sm:$0xff] %v516
                %v518 = vld [vmem:[%s200 + $0x2780] sm:$0xff]
                %519 = vst [vmem:[%s201 + $0x4f0] sm:$0xff] %v518
                %v520 = vld [vmem:[%s200 + $0x27c0] sm:$0xff]
                %521 = vst [vmem:[%s201 + $0x4f8] sm:$0xff] %v520
                %v522 = vld [vmem:[%s200 + $0x2800] sm:$0xff]
                %523 = vst [vmem:[%s201 + $0x500] sm:$0xff] %v522
                %v524 = vld [vmem:[%s200 + $0x2840] sm:$0xff]
                %525 = vst [vmem:[%s201 + $0x508] sm:$0xff] %v524
                %v526 = vld [vmem:[%s200 + $0x2880] sm:$0xff]
                %527 = vst [vmem:[%s201 + $0x510] sm:$0xff] %v526
                %v528 = vld [vmem:[%s200 + $0x28c0] sm:$0xff]
                %529 = vst [vmem:[%s201 + $0x518] sm:$0xff] %v528
                %v530 = vld [vmem:[%s200 + $0x2900] sm:$0xff]
                %531 = vst [vmem:[%s201 + $0x520] sm:$0xff] %v530
                %v532 = vld [vmem:[%s200 + $0x2940] sm:$0xff]
                %533 = vst [vmem:[%s201 + $0x528] sm:$0xff] %v532
                %v534 = vld [vmem:[%s200 + $0x2980] sm:$0xff]
                %535 = vst [vmem:[%s201 + $0x530] sm:$0xff] %v534
                %v536 = vld [vmem:[%s200 + $0x29c0] sm:$0xff]
                %537 = vst [vmem:[%s201 + $0x538] sm:$0xff] %v536
                %v538 = vld [vmem:[%s200 + $0x2a00] sm:$0xff]
                %539 = vst [vmem:[%s201 + $0x540] sm:$0xff] %v538
                %v540 = vld [vmem:[%s200 + $0x2a40] sm:$0xff]
                %541 = vst [vmem:[%s201 + $0x548] sm:$0xff] %v540
                %v542 = vld [vmem:[%s200 + $0x2a80] sm:$0xff]
                %543 = vst [vmem:[%s201 + $0x550] sm:$0xff] %v542
                %v544 = vld [vmem:[%s200 + $0x2ac0] sm:$0xff]
                %545 = vst [vmem:[%s201 + $0x558] sm:$0xff] %v544
                %v546 = vld [vmem:[%s200 + $0x2b00] sm:$0xff]
                %547 = vst [vmem:[%s201 + $0x560] sm:$0xff] %v546
                %v548 = vld [vmem:[%s200 + $0x2b40] sm:$0xff]
                %549 = vst [vmem:[%s201 + $0x568] sm:$0xff] %v548
                %v550 = vld [vmem:[%s200 + $0x2b80] sm:$0xff]
                %551 = vst [vmem:[%s201 + $0x570] sm:$0xff] %v550
                %v552 = vld [vmem:[%s200 + $0x2bc0] sm:$0xff]
                %553 = vst [vmem:[%s201 + $0x578] sm:$0xff] %v552
                %v554 = vld [vmem:[%s200 + $0x2c00] sm:$0xff]
                %555 = vst [vmem:[%s201 + $0x580] sm:$0xff] %v554
                %v556 = vld [vmem:[%s200 + $0x2c40] sm:$0xff]
                %557 = vst [vmem:[%s201 + $0x588] sm:$0xff] %v556
                %v558 = vld [vmem:[%s200 + $0x2c80] sm:$0xff]
                %559 = vst [vmem:[%s201 + $0x590] sm:$0xff] %v558
                %v560 = vld [vmem:[%s200 + $0x2cc0] sm:$0xff]
                %561 = vst [vmem:[%s201 + $0x598] sm:$0xff] %v560
                %v562 = vld [vmem:[%s200 + $0x2d00] sm:$0xff]
                %563 = vst [vmem:[%s201 + $0x5a0] sm:$0xff] %v562
                %v564 = vld [vmem:[%s200 + $0x2d40] sm:$0xff]
                %565 = vst [vmem:[%s201 + $0x5a8] sm:$0xff] %v564
                %v566 = vld [vmem:[%s200 + $0x2d80] sm:$0xff]
                %567 = vst [vmem:[%s201 + $0x5b0] sm:$0xff] %v566
                %v568 = vld [vmem:[%s200 + $0x2dc0] sm:$0xff]
                %569 = vst [vmem:[%s201 + $0x5b8] sm:$0xff] %v568
                %v570 = vld [vmem:[%s200 + $0x2e00] sm:$0xff]
                %571 = vst [vmem:[%s201 + $0x5c0] sm:$0xff] %v570
                %v572 = vld [vmem:[%s200 + $0x2e40] sm:$0xff]
                %573 = vst [vmem:[%s201 + $0x5c8] sm:$0xff] %v572
                %v574 = vld [vmem:[%s200 + $0x2e80] sm:$0xff]
                %575 = vst [vmem:[%s201 + $0x5d0] sm:$0xff] %v574
                %v576 = vld [vmem:[%s200 + $0x2ec0] sm:$0xff]
                %577 = vst [vmem:[%s201 + $0x5d8] sm:$0xff] %v576
                %v578 = vld [vmem:[%s200 + $0x2f00] sm:$0xff]
                %579 = vst [vmem:[%s201 + $0x5e0] sm:$0xff] %v578
                %v580 = vld [vmem:[%s200 + $0x2f40] sm:$0xff]
                %581 = vst [vmem:[%s201 + $0x5e8] sm:$0xff] %v580
                %v582 = vld [vmem:[%s200 + $0x2f80] sm:$0xff]
                %583 = vst [vmem:[%s201 + $0x5f0] sm:$0xff] %v582
                %v584 = vld [vmem:[%s200 + $0x2fc0] sm:$0xff]
                %585 = vst [vmem:[%s201 + $0x5f8] sm:$0xff] %v584
                %v586 = vld [vmem:[%s200 + $0x3000] sm:$0xff]
                %587 = vst [vmem:[%s201 + $0x600] sm:$0xff] %v586
                %v588 = vld [vmem:[%s200 + $0x3040] sm:$0xff]
                %589 = vst [vmem:[%s201 + $0x608] sm:$0xff] %v588
                %v590 = vld [vmem:[%s200 + $0x3080] sm:$0xff]
                %591 = vst [vmem:[%s201 + $0x610] sm:$0xff] %v590
                %v592 = vld [vmem:[%s200 + $0x30c0] sm:$0xff]
                %593 = vst [vmem:[%s201 + $0x618] sm:$0xff] %v592
                %v594 = vld [vmem:[%s200 + $0x3100] sm:$0xff]
                %595 = vst [vmem:[%s201 + $0x620] sm:$0xff] %v594
              $region45: #{forward.3} parent=39 // loop_footer
                %s199 = sadd.s32 1, %s195
              $region46: #{forward.3} parent=39 // loop_footer_branch
                %194 = sbr.rel target = $region42
              $region47: #{forward.3} parent=39 // loop_exit
                _
            $region40: #{forward.3} parent=31 // pred_fallthru
              _
          $region32: #{forward.3} parent=27 // pred_fallthru
            _
          %1002 = vnop
        $region28: #{forward.3} parent=23 // pred_fallthru
          _
        // Predicated region
        $region63: #{forward.3} parent=23 // pred_check
          %p1003 = pneg %p78
        $region64: #{forward.3} parent=23 // pred_check_branch
          %1005 = sbr.rel (%p1003) target = $region66
        $region65: #{forward.3} parent=23 // pred_region
          %s1006 = smul.u32 2, %s11
          %p1007 = scmp.lt.s32.totalorder %s1006, 15
          %s1008 = scalar_select %p1007, %s1006, 15
          %s1009 = scalar_lea.vmem %s2, %s1008
          %s1010 = smul.u32 2, %s11
        $region66: #{forward.3} parent=23 // pred_fallthru
          _
        // Predicated region
        $region67: #{forward.3} parent=23 // pred_check
          %p1011 = pneg %p104
        $region68: #{forward.3} parent=23 // pred_check_branch
          %1013 = sbr.rel (%p1011) target = $region70
        $region69: #{forward.3} parent=23 // pred_region
          %s1014 = smul.u32 32, %s11
          %p1015 = scmp.lt.s32.totalorder %s1014, 255
          %s1016 = scalar_select %p1015, %s1014, 255
          %s1017 = smul.addr %s1016, 8
          %s1018 = scalar_lea.vmem %s3, %s1017
          %s1019 = smul.u32 32, %s11
        $region70: #{forward.3} parent=23 // pred_fallthru
          _
      $region24: #{forward.3} parent=5 // pred_fallthru
        _
      %p1020 = scmp.le.s32.totalorder 1, %s11
      %p1021 = scmp.lt.s32.totalorder %s11, 9
      %p1022 = pnand %p1020, %p1021
      %p1023 = pneg %p1022
      // Predicated region
      $region71: #{forward.3} parent=5 // pred_check
        _
      $region72: #{forward.3} parent=5 // pred_check_branch
        %1025 = sbr.rel (%p1022) target = $region74
      $region73: #{forward.3} parent=5 // pred_region
        %s1026 = ssub.s32 %s11, 1
        %s1027 = sand.u32 %s45, 1
        %s1028 = sand.u32 %s45, 1
        %s1029 = smul.addr %s1028, 1576
        %s1030 = scalar_lea.vmem [#allocation3], %s1029
        // Predicated region
        $region75: #{forward.3} parent=73 // pred_check
          %p1031 = pneg %p58
        $region76: #{forward.3} parent=73 // pred_check_branch
          %1033 = sbr.rel (%p1031) target = $region78
        $region77: #{forward.3} parent=73 // pred_region
          _
        $region78: #{forward.3} parent=73 // pred_fallthru
          _
        %p1034 = pneg %p32
        %p1035 = pneg %p29
        %s1036 = sand.u32 %s45, 1
        %s1037 = sand.u32 %s45, 1
        %s1038 = smul.addr %s1037, 1576
        %s1039 = scalar_lea.vmem [#allocation3], %s1038
        %p1040 = pneg %p58
        %p1041 = pneg %p55
        %s1042 = smul.u32 2, %s16
        %p1043 = scmp.lt.s32.totalorder %s1042, 15
        %s1044 = scalar_select %p1043, %s1042, 15
        %s1045 = scalar_lea.vmem %s2, %s1044
        %p1046 = pneg %p84
        %p1047 = pneg %p81
        %s1048 = smul.u32 32, %s16
        %p1049 = scmp.lt.s32.totalorder %s1048, 255
        %s1050 = scalar_select %p1049, %s1048, 255
        %s1051 = smul.addr %s1050, 8
        %s1052 = scalar_lea.vmem %s3, %s1051
        %p1053 = pneg %p110
        %p1054 = pneg %p107
        %p1055 = pneg %p131
        %p1056 = pneg %p128
        %p1057 = pneg %p152
        %p1058 = pneg %p149
        %s1059 = smul.u32 2, %s16
        %s1060 = smul.u32 2, %s16
        %p1061 = scmp.lt.s32.totalorder %s1060, 15
        %s1062 = scalar_select %p1061, %s1060, 15
        %s1063 = scalar_lea.vmem %s2, %s1062
        %s1064 = smul.u32 2, %s16
        %s1065 = smul.u32 32, %s16
        %p1066 = scmp.lt.s32.totalorder %s1065, 255
        %s1067 = scalar_select %p1066, %s1065, 255
        %s1068 = smul.addr %s1067, 8
        %s1069 = scalar_lea.vmem %s3, %s1068
        %s1070 = smul.u32 32, %s16
        %p1072 = scmp.eq.s32.totalorder %s16, 0
        // Predicated region
        $region79: #{forward.3} parent=73 // pred_check
          %p1073 = pneg %p1072
        $region80: #{forward.3} parent=73 // pred_check_branch
          %1075 = sbr.rel (%p1073) target = $region82
        $region81: #{forward.3} parent=73 // pred_region
          %vm1076 = vcmask 9216
          %1077 = vst.msk [vmem:[#allocation2] sm:$0x3] %vm1076, 0.0
        $region82: #{forward.3} parent=73 // pred_fallthru
          _
        %v1078 = vld [vmem:[%s0] sm:$0xff]
        %v1079 = vld [vmem:[%s0 + $0x8] sm:$0xff]
        %v1080 = vld [vmem:[%s0 + $0x10] sm:$0xff]
        %v1081 = vld [vmem:[%s0 + $0x18] sm:$0x3]
        %v1086 = vcombine.high %v1078, %v1078
        %v1088 = vunpack.c.l.s4 1983009808
        %v1089 = vunpack.c.0.s8 %v1088
        %v1090 = vlaneseq
        %v1091 = vshrl.u32 %v1090, 7
        %v1092 = vsub.s32 %v1089, %v1091
        %v1093 = vrot.slane %v1078, %v1092
        %v1095 = vunpack.c.l.s4 1983009808
        %v1096 = vunpack.c.0.s8 %v1095
        %v1097 = vlaneseq
        %v1098 = vshrl.u32 %v1097, 7
        %v1099 = vsub.s32 %v1096, %v1098
        %v1100 = vrot.slane %v1086, %v1099
        %v1101 = vcombine.high %v1093, %v1093
        %v1102 = vcombine.high %v1100, %v1100
        %v1103 = vcombine.high %v1079, %v1079
        %v1105 = vunpack.c.l.s4 1983009808
        %v1106 = vunpack.c.0.s8 %v1105
        %v1107 = vlaneseq
        %v1108 = vshrl.u32 %v1107, 7
        %v1109 = vsub.s32 %v1106, %v1108
        %v1110 = vrot.slane %v1079, %v1109
        %v1112 = vunpack.c.l.s4 1983009808
        %v1113 = vunpack.c.0.s8 %v1112
        %v1114 = vlaneseq
        %v1115 = vshrl.u32 %v1114, 7
        %v1116 = vsub.s32 %v1113, %v1115
        %v1117 = vrot.slane %v1103, %v1116
        %v1118 = vcombine.high %v1110, %v1110
        %v1119 = vcombine.high %v1117, %v1117
        %v1120 = vcombine.high %v1080, %v1080
        %v1122 = vunpack.c.l.s4 1983009808
        %v1123 = vunpack.c.0.s8 %v1122
        %v1124 = vlaneseq
        %v1125 = vshrl.u32 %v1124, 7
        %v1126 = vsub.s32 %v1123, %v1125
        %v1127 = vrot.slane %v1080, %v1126
        %v1129 = vunpack.c.l.s4 1983009808
        %v1130 = vunpack.c.0.s8 %v1129
        %v1131 = vlaneseq
        %v1132 = vshrl.u32 %v1131, 7
        %v1133 = vsub.s32 %v1130, %v1132
        %v1134 = vrot.slane %v1120, %v1133
        %v1135 = vcombine.high %v1127, %v1127
        %v1136 = vcombine.high %v1134, %v1134
        %v1138 = vunpack.c.l.s4 1983009808
        %v1139 = vunpack.c.0.s8 %v1138
        %v1140 = vlaneseq
        %v1141 = vshrl.u32 %v1140, 7
        %v1142 = vsub.s32 %v1139, %v1141
        %v1143 = vrot.slane %v1081, %v1142
        %v1157 = vpack.c.bf16 %v1093, %v1093
        %v1158 = vpack.c.bf16 %v1101, %v1101
        %v1159 = vpack.c.bf16 %v1100, %v1100
        %v1160 = vpack.c.bf16 %v1102, %v1102
        %v1161 = vpack.c.bf16 %v1110, %v1110
        %v1162 = vpack.c.bf16 %v1118, %v1118
        %v1163 = vpack.c.bf16 %v1117, %v1117
        %v1164 = vpack.c.bf16 %v1119, %v1119
        %v1165 = vpack.c.bf16 %v1127, %v1127
        %v1166 = vpack.c.bf16 %v1135, %v1135
        %v1167 = vpack.c.bf16 %v1134, %v1134
        %v1168 = vpack.c.bf16 %v1136, %v1136
        %v1169 = vpack.c.bf16 %v1143, %v1143
        %v1170 = vld [vmem:[%s1030] sm:$0xff]
        %v1171 = vld [vmem:[%s1030 + $0x8] sm:$0xff]
        %v1172 = vld [vmem:[%s1030 + $0x10] sm:$0xff]
        %v1173 = vld [vmem:[%s1030 + $0x18] sm:$0xff]
        %v1174 = vld [vmem:[%s1030 + $0x20] sm:$0xff]
        %v1175 = vld [vmem:[%s1030 + $0x28] sm:$0xff]
        %v1176 = vld [vmem:[%s1030 + $0x30] sm:$0xff]
        %v1177 = vld [vmem:[%s1030 + $0x38] sm:$0xff]
        %v1178 = vld [vmem:[%s1030 + $0x40] sm:$0xff]
        %v1179 = vld [vmem:[%s1030 + $0x48] sm:$0xff]
        %v1180 = vld [vmem:[%s1030 + $0x50] sm:$0xff]
        %v1181 = vld [vmem:[%s1030 + $0x58] sm:$0xff]
        %v1182 = vld [vmem:[%s1030 + $0x60] sm:$0xff]
        %v1183 = vld [vmem:[%s1030 + $0x68] sm:$0xff]
        %v1184 = vld [vmem:[%s1030 + $0x70] sm:$0xff]
        %v1185 = vld [vmem:[%s1030 + $0x78] sm:$0xff]
        %v1186 = vld [vmem:[%s1030 + $0x80] sm:$0xff]
        %v1187 = vld [vmem:[%s1030 + $0x88] sm:$0xff]
        %v1188 = vld [vmem:[%s1030 + $0x90] sm:$0xff]
        %v1189 = vld [vmem:[%s1030 + $0x98] sm:$0xff]
        %v1190 = vld [vmem:[%s1030 + $0xa0] sm:$0xff]
        %v1191 = vld [vmem:[%s1030 + $0xa8] sm:$0xff]
        %v1192 = vld [vmem:[%s1030 + $0xb0] sm:$0xff]
        %v1193 = vld [vmem:[%s1030 + $0xb8] sm:$0xff]
        %v1194 = vld [vmem:[%s1030 + $0xc0] sm:$0xff]
        %v1195 = vld [vmem:[%s1030 + $0xc8] sm:$0xff]
        %v1196 = vld [vmem:[%s1030 + $0xd0] sm:$0xff]
        %v1197 = vld [vmem:[%s1030 + $0xd8] sm:$0xff]
        %v1198 = vld [vmem:[%s1030 + $0xe0] sm:$0xff]
        %v1199 = vld [vmem:[%s1030 + $0xe8] sm:$0xff]
        %v1200 = vld [vmem:[%s1030 + $0xf0] sm:$0xff]
        %v1201 = vld [vmem:[%s1030 + $0xf8] sm:$0xff]
        %v1202 = vld [vmem:[%s1030 + $0x100] sm:$0xff]
        %v1203 = vld [vmem:[%s1030 + $0x108] sm:$0xff]
        %v1204 = vld [vmem:[%s1030 + $0x110] sm:$0xff]
        %v1205 = vld [vmem:[%s1030 + $0x118] sm:$0xff]
        %v1206 = vld [vmem:[%s1030 + $0x120] sm:$0xff]
        %v1207 = vld [vmem:[%s1030 + $0x128] sm:$0xff]
        %v1208 = vld [vmem:[%s1030 + $0x130] sm:$0xff]
        %v1209 = vld [vmem:[%s1030 + $0x138] sm:$0xff]
        %v1210 = vld [vmem:[%s1030 + $0x140] sm:$0xff]
        %v1211 = vld [vmem:[%s1030 + $0x148] sm:$0xff]
        %v1212 = vld [vmem:[%s1030 + $0x150] sm:$0xff]
        %v1213 = vld [vmem:[%s1030 + $0x158] sm:$0xff]
        %v1214 = vld [vmem:[%s1030 + $0x160] sm:$0xff]
        %v1215 = vld [vmem:[%s1030 + $0x168] sm:$0xff]
        %v1216 = vld [vmem:[%s1030 + $0x170] sm:$0xff]
        %v1217 = vld [vmem:[%s1030 + $0x178] sm:$0xff]
        %v1218 = vld [vmem:[%s1030 + $0x180] sm:$0xff]
        %v1219 = vld [vmem:[%s1030 + $0x188] sm:$0xff]
        %v1220 = vld [vmem:[%s1030 + $0x190] sm:$0xff]
        %v1221 = vld [vmem:[%s1030 + $0x198] sm:$0xff]
        %v1222 = vld [vmem:[%s1030 + $0x1a0] sm:$0xff]
        %v1223 = vld [vmem:[%s1030 + $0x1a8] sm:$0xff]
        %v1224 = vld [vmem:[%s1030 + $0x1b0] sm:$0xff]
        %v1225 = vld [vmem:[%s1030 + $0x1b8] sm:$0xff]
        %v1226 = vld [vmem:[%s1030 + $0x1c0] sm:$0xff]
        %v1227 = vld [vmem:[%s1030 + $0x1c8] sm:$0xff]
        %v1228 = vld [vmem:[%s1030 + $0x1d0] sm:$0xff]
        %v1229 = vld [vmem:[%s1030 + $0x1d8] sm:$0xff]
        %v1230 = vld [vmem:[%s1030 + $0x1e0] sm:$0xff]
        %v1231 = vld [vmem:[%s1030 + $0x1e8] sm:$0xff]
        %v1232 = vld [vmem:[%s1030 + $0x1f0] sm:$0xff]
        %v1233 = vld [vmem:[%s1030 + $0x1f8] sm:$0xff]
        %v1234 = vld [vmem:[%s1030 + $0x200] sm:$0xff]
        %v1235 = vld [vmem:[%s1030 + $0x208] sm:$0xff]
        %v1236 = vld [vmem:[%s1030 + $0x210] sm:$0xff]
        %v1237 = vld [vmem:[%s1030 + $0x218] sm:$0xff]
        %v1238 = vld [vmem:[%s1030 + $0x220] sm:$0xff]
        %v1239 = vld [vmem:[%s1030 + $0x228] sm:$0xff]
        %v1240 = vld [vmem:[%s1030 + $0x230] sm:$0xff]
        %v1241 = vld [vmem:[%s1030 + $0x238] sm:$0xff]
        %v1242 = vld [vmem:[%s1030 + $0x240] sm:$0xff]
        %v1243 = vld [vmem:[%s1030 + $0x248] sm:$0xff]
        %v1244 = vld [vmem:[%s1030 + $0x250] sm:$0xff]
        %v1245 = vld [vmem:[%s1030 + $0x258] sm:$0xff]
        %v1246 = vld [vmem:[%s1030 + $0x260] sm:$0xff]
        %v1247 = vld [vmem:[%s1030 + $0x268] sm:$0xff]
        %v1248 = vld [vmem:[%s1030 + $0x270] sm:$0xff]
        %v1249 = vld [vmem:[%s1030 + $0x278] sm:$0xff]
        %v1250 = vld [vmem:[%s1030 + $0x280] sm:$0xff]
        %v1251 = vld [vmem:[%s1030 + $0x288] sm:$0xff]
        %v1252 = vld [vmem:[%s1030 + $0x290] sm:$0xff]
        %v1253 = vld [vmem:[%s1030 + $0x298] sm:$0xff]
        %v1254 = vld [vmem:[%s1030 + $0x2a0] sm:$0xff]
        %v1255 = vld [vmem:[%s1030 + $0x2a8] sm:$0xff]
        %v1256 = vld [vmem:[%s1030 + $0x2b0] sm:$0xff]
        %v1257 = vld [vmem:[%s1030 + $0x2b8] sm:$0xff]
        %v1258 = vld [vmem:[%s1030 + $0x2c0] sm:$0xff]
        %v1259 = vld [vmem:[%s1030 + $0x2c8] sm:$0xff]
        %v1260 = vld [vmem:[%s1030 + $0x2d0] sm:$0xff]
        %v1261 = vld [vmem:[%s1030 + $0x2d8] sm:$0xff]
        %v1262 = vld [vmem:[%s1030 + $0x2e0] sm:$0xff]
        %v1263 = vld [vmem:[%s1030 + $0x2e8] sm:$0xff]
        %v1264 = vld [vmem:[%s1030 + $0x2f0] sm:$0xff]
        %v1265 = vld [vmem:[%s1030 + $0x2f8] sm:$0xff]
        %v1266 = vld [vmem:[%s1030 + $0x300] sm:$0xff]
        %v1267 = vld [vmem:[%s1030 + $0x308] sm:$0xff]
        %v1268 = vld [vmem:[%s1030 + $0x310] sm:$0xff]
        %v1269 = vld [vmem:[%s1030 + $0x318] sm:$0xff]
        %v1270 = vld [vmem:[%s1030 + $0x320] sm:$0xff]
        %v1271 = vld [vmem:[%s1030 + $0x328] sm:$0xff]
        %v1272 = vld [vmem:[%s1030 + $0x330] sm:$0xff]
        %v1273 = vld [vmem:[%s1030 + $0x338] sm:$0xff]
        %v1274 = vld [vmem:[%s1030 + $0x340] sm:$0xff]
        %v1275 = vld [vmem:[%s1030 + $0x348] sm:$0xff]
        %v1276 = vld [vmem:[%s1030 + $0x350] sm:$0xff]
        %v1277 = vld [vmem:[%s1030 + $0x358] sm:$0xff]
        %v1278 = vld [vmem:[%s1030 + $0x360] sm:$0xff]
        %v1279 = vld [vmem:[%s1030 + $0x368] sm:$0xff]
        %v1280 = vld [vmem:[%s1030 + $0x370] sm:$0xff]
        %v1281 = vld [vmem:[%s1030 + $0x378] sm:$0xff]
        %v1282 = vld [vmem:[%s1030 + $0x380] sm:$0xff]
        %v1283 = vld [vmem:[%s1030 + $0x388] sm:$0xff]
        %v1284 = vld [vmem:[%s1030 + $0x390] sm:$0xff]
        %v1285 = vld [vmem:[%s1030 + $0x398] sm:$0xff]
        %v1286 = vld [vmem:[%s1030 + $0x3a0] sm:$0xff]
        %v1287 = vld [vmem:[%s1030 + $0x3a8] sm:$0xff]
        %v1288 = vld [vmem:[%s1030 + $0x3b0] sm:$0xff]
        %v1289 = vld [vmem:[%s1030 + $0x3b8] sm:$0xff]
        %v1290 = vld [vmem:[%s1030 + $0x3c0] sm:$0xff]
        %v1291 = vld [vmem:[%s1030 + $0x3c8] sm:$0xff]
        %v1292 = vld [vmem:[%s1030 + $0x3d0] sm:$0xff]
        %v1293 = vld [vmem:[%s1030 + $0x3d8] sm:$0xff]
        %v1294 = vld [vmem:[%s1030 + $0x3e0] sm:$0xff]
        %v1295 = vld [vmem:[%s1030 + $0x3e8] sm:$0xff]
        %v1296 = vld [vmem:[%s1030 + $0x3f0] sm:$0xff]
        %v1297 = vld [vmem:[%s1030 + $0x3f8] sm:$0xff]
        %v1298 = vld [vmem:[%s1030 + $0x400] sm:$0xff]
        %v1299 = vld [vmem:[%s1030 + $0x408] sm:$0xff]
        %v1300 = vld [vmem:[%s1030 + $0x410] sm:$0xff]
        %v1301 = vld [vmem:[%s1030 + $0x418] sm:$0xff]
        %v1302 = vld [vmem:[%s1030 + $0x420] sm:$0xff]
        %v1303 = vld [vmem:[%s1030 + $0x428] sm:$0xff]
        %v1304 = vld [vmem:[%s1030 + $0x430] sm:$0xff]
        %v1305 = vld [vmem:[%s1030 + $0x438] sm:$0xff]
        %v1306 = vld [vmem:[%s1030 + $0x440] sm:$0xff]
        %v1307 = vld [vmem:[%s1030 + $0x448] sm:$0xff]
        %v1308 = vld [vmem:[%s1030 + $0x450] sm:$0xff]
        %v1309 = vld [vmem:[%s1030 + $0x458] sm:$0xff]
        %v1310 = vld [vmem:[%s1030 + $0x460] sm:$0xff]
        %v1311 = vld [vmem:[%s1030 + $0x468] sm:$0xff]
        %v1312 = vld [vmem:[%s1030 + $0x470] sm:$0xff]
        %v1313 = vld [vmem:[%s1030 + $0x478] sm:$0xff]
        %v1314 = vld [vmem:[%s1030 + $0x480] sm:$0xff]
        %v1315 = vld [vmem:[%s1030 + $0x488] sm:$0xff]
        %v1316 = vld [vmem:[%s1030 + $0x490] sm:$0xff]
        %v1317 = vld [vmem:[%s1030 + $0x498] sm:$0xff]
        %v1318 = vld [vmem:[%s1030 + $0x4a0] sm:$0xff]
        %v1319 = vld [vmem:[%s1030 + $0x4a8] sm:$0xff]
        %v1320 = vld [vmem:[%s1030 + $0x4b0] sm:$0xff]
        %v1321 = vld [vmem:[%s1030 + $0x4b8] sm:$0xff]
        %v1322 = vld [vmem:[%s1030 + $0x4c0] sm:$0xff]
        %v1323 = vld [vmem:[%s1030 + $0x4c8] sm:$0xff]
        %v1324 = vld [vmem:[%s1030 + $0x4d0] sm:$0xff]
        %v1325 = vld [vmem:[%s1030 + $0x4d8] sm:$0xff]
        %v1326 = vld [vmem:[%s1030 + $0x4e0] sm:$0xff]
        %v1327 = vld [vmem:[%s1030 + $0x4e8] sm:$0xff]
        %v1328 = vld [vmem:[%s1030 + $0x4f0] sm:$0xff]
        %v1329 = vld [vmem:[%s1030 + $0x4f8] sm:$0xff]
        %v1330 = vld [vmem:[%s1030 + $0x500] sm:$0xff]
        %v1331 = vld [vmem:[%s1030 + $0x508] sm:$0xff]
        %v1332 = vld [vmem:[%s1030 + $0x510] sm:$0xff]
        %v1333 = vld [vmem:[%s1030 + $0x518] sm:$0xff]
        %v1334 = vld [vmem:[%s1030 + $0x520] sm:$0xff]
        %v1335 = vld [vmem:[%s1030 + $0x528] sm:$0xff]
        %v1336 = vld [vmem:[%s1030 + $0x530] sm:$0xff]
        %v1337 = vld [vmem:[%s1030 + $0x538] sm:$0xff]
        %v1338 = vld [vmem:[%s1030 + $0x540] sm:$0xff]
        %v1339 = vld [vmem:[%s1030 + $0x548] sm:$0xff]
        %v1340 = vld [vmem:[%s1030 + $0x550] sm:$0xff]
        %v1341 = vld [vmem:[%s1030 + $0x558] sm:$0xff]
        %v1342 = vld [vmem:[%s1030 + $0x560] sm:$0xff]
        %v1343 = vld [vmem:[%s1030 + $0x568] sm:$0xff]
        %v1344 = vld [vmem:[%s1030 + $0x570] sm:$0xff]
        %v1345 = vld [vmem:[%s1030 + $0x578] sm:$0xff]
        %v1346 = vld [vmem:[%s1030 + $0x580] sm:$0xff]
        %v1347 = vld [vmem:[%s1030 + $0x588] sm:$0xff]
        %v1348 = vld [vmem:[%s1030 + $0x590] sm:$0xff]
        %v1349 = vld [vmem:[%s1030 + $0x598] sm:$0xff]
        %v1350 = vld [vmem:[%s1030 + $0x5a0] sm:$0xff]
        %v1351 = vld [vmem:[%s1030 + $0x5a8] sm:$0xff]
        %v1352 = vld [vmem:[%s1030 + $0x5b0] sm:$0xff]
        %v1353 = vld [vmem:[%s1030 + $0x5b8] sm:$0xff]
        %v1354 = vld [vmem:[%s1030 + $0x5c0] sm:$0xff]
        %v1355 = vld [vmem:[%s1030 + $0x5c8] sm:$0xff]
        %v1356 = vld [vmem:[%s1030 + $0x5d0] sm:$0xff]
        %v1357 = vld [vmem:[%s1030 + $0x5d8] sm:$0xff]
        %v1358 = vld [vmem:[%s1030 + $0x5e0] sm:$0xff]
        %v1359 = vld [vmem:[%s1030 + $0x5e8] sm:$0xff]
        %v1360 = vld [vmem:[%s1030 + $0x5f0] sm:$0xff]
        %v1361 = vld [vmem:[%s1030 + $0x5f8] sm:$0xff]
        %v1362 = vld [vmem:[%s1030 + $0x600] sm:$0xff]
        %v1363 = vld [vmem:[%s1030 + $0x608] sm:$0xff]
        %v1364 = vld [vmem:[%s1030 + $0x610] sm:$0xff]
        %v1365 = vld [vmem:[%s1030 + $0x618] sm:$0xff]
        %v1366 = vld [vmem:[%s1030 + $0x620] sm:$0x33]
        %v1367 = vld [vmem:[%s1063] sm:$0x3]
        %v1369 = vlaneseq
        %v1370 = vshrl.u32 %v1369, 7
        %v1371 = vsub.s32 0, %v1370
        %v1372 = vrot.slane %v1367, %v1371
        %v1373 = vlaneseq
        %v1374 = vshrl.u32 %v1373, 7
        %v1375 = vsub.s32 1, %v1374
        %v1376 = vrot.slane %v1367, %v1375
        %v1576 = vunpack.c.l.b16 %v1170
        %v1577 = vunpack.c.h.b16 %v1170
        %v1578 = vunpack.c.l.b16 %v1171
        %v1579 = vunpack.c.h.b16 %v1171
        %v1580 = vunpack.c.l.b16 %v1172
        %v1581 = vunpack.c.h.b16 %v1172
        %v1582 = vunpack.c.l.b16 %v1173
        %v1583 = vunpack.c.h.b16 %v1173
        %v1584 = vunpack.c.l.b16 %v1174
        %v1585 = vunpack.c.h.b16 %v1174
        %v1586 = vunpack.c.l.b16 %v1175
        %v1587 = vunpack.c.h.b16 %v1175
        %v1588 = vunpack.c.l.b16 %v1176
        %v1589 = vunpack.c.h.b16 %v1176
        %v1590 = vunpack.c.l.b16 %v1177
        %v1591 = vunpack.c.h.b16 %v1177
        %v1592 = vunpack.c.l.b16 %v1178
        %v1593 = vunpack.c.h.b16 %v1178
        %v1594 = vunpack.c.l.b16 %v1179
        %v1595 = vunpack.c.h.b16 %v1179
        %v1596 = vunpack.c.l.b16 %v1180
        %v1597 = vunpack.c.h.b16 %v1180
        %v1598 = vunpack.c.l.b16 %v1181
        %v1599 = vunpack.c.h.b16 %v1181
        %v1600 = vunpack.c.l.b16 %v1182
        %v1601 = vunpack.c.h.b16 %v1182
        %v1602 = vunpack.c.l.b16 %v1183
        %v1603 = vunpack.c.h.b16 %v1183
        %v1604 = vunpack.c.l.b16 %v1184
        %v1605 = vunpack.c.h.b16 %v1184
        %v1606 = vunpack.c.l.b16 %v1185
        %v1607 = vunpack.c.h.b16 %v1185
        %v1608 = vunpack.c.l.b16 %v1186
        %v1609 = vunpack.c.h.b16 %v1186
        %v1610 = vunpack.c.l.b16 %v1187
        %v1611 = vunpack.c.h.b16 %v1187
        %v1612 = vunpack.c.l.b16 %v1188
        %v1613 = vunpack.c.h.b16 %v1188
        %v1614 = vunpack.c.l.b16 %v1189
        %v1615 = vunpack.c.h.b16 %v1189
        %v1616 = vunpack.c.l.b16 %v1190
        %v1617 = vunpack.c.h.b16 %v1190
        %v1618 = vunpack.c.l.b16 %v1191
        %v1619 = vunpack.c.h.b16 %v1191
        %v1620 = vunpack.c.l.b16 %v1192
        %v1621 = vunpack.c.h.b16 %v1192
        %v1622 = vunpack.c.l.b16 %v1193
        %v1623 = vunpack.c.h.b16 %v1193
        %v1624 = vunpack.c.l.b16 %v1194
        %v1625 = vunpack.c.h.b16 %v1194
        %v1626 = vunpack.c.l.b16 %v1195
        %v1627 = vunpack.c.h.b16 %v1195
        %v1628 = vunpack.c.l.b16 %v1196
        %v1629 = vunpack.c.h.b16 %v1196
        %v1630 = vunpack.c.l.b16 %v1197
        %v1631 = vunpack.c.h.b16 %v1197
        %v1632 = vunpack.c.l.b16 %v1198
        %v1633 = vunpack.c.h.b16 %v1198
        %v1634 = vunpack.c.l.b16 %v1199
        %v1635 = vunpack.c.h.b16 %v1199
        %v1636 = vunpack.c.l.b16 %v1200
        %v1637 = vunpack.c.h.b16 %v1200
        %v1638 = vunpack.c.l.b16 %v1201
        %v1639 = vunpack.c.h.b16 %v1201
        %v1640 = vunpack.c.l.b16 %v1202
        %v1641 = vunpack.c.h.b16 %v1202
        %v1642 = vunpack.c.l.b16 %v1203
        %v1643 = vunpack.c.h.b16 %v1203
        %v1644 = vunpack.c.l.b16 %v1204
        %v1645 = vunpack.c.h.b16 %v1204
        %v1646 = vunpack.c.l.b16 %v1205
        %v1647 = vunpack.c.h.b16 %v1205
        %v1648 = vunpack.c.l.b16 %v1206
        %v1649 = vunpack.c.h.b16 %v1206
        %v1650 = vunpack.c.l.b16 %v1207
        %v1651 = vunpack.c.h.b16 %v1207
        %v1652 = vunpack.c.l.b16 %v1208
        %v1653 = vunpack.c.h.b16 %v1208
        %v1654 = vunpack.c.l.b16 %v1209
        %v1655 = vunpack.c.h.b16 %v1209
        %v1656 = vunpack.c.l.b16 %v1210
        %v1657 = vunpack.c.h.b16 %v1210
        %v1658 = vunpack.c.l.b16 %v1211
        %v1659 = vunpack.c.h.b16 %v1211
        %v1660 = vunpack.c.l.b16 %v1212
        %v1661 = vunpack.c.h.b16 %v1212
        %v1662 = vunpack.c.l.b16 %v1213
        %v1663 = vunpack.c.h.b16 %v1213
        %v1664 = vunpack.c.l.b16 %v1214
        %v1665 = vunpack.c.h.b16 %v1214
        %v1666 = vunpack.c.l.b16 %v1215
        %v1667 = vunpack.c.h.b16 %v1215
        %v1668 = vunpack.c.l.b16 %v1216
        %v1669 = vunpack.c.h.b16 %v1216
        %v1670 = vunpack.c.l.b16 %v1217
        %v1671 = vunpack.c.h.b16 %v1217
        %v1672 = vunpack.c.l.b16 %v1218
        %v1673 = vunpack.c.h.b16 %v1218
        %v1674 = vunpack.c.l.b16 %v1219
        %v1675 = vunpack.c.h.b16 %v1219
        %v1676 = vunpack.c.l.b16 %v1220
        %v1677 = vunpack.c.h.b16 %v1220
        %v1678 = vunpack.c.l.b16 %v1221
        %v1679 = vunpack.c.h.b16 %v1221
        %v1680 = vunpack.c.l.b16 %v1222
        %v1681 = vunpack.c.h.b16 %v1222
        %v1682 = vunpack.c.l.b16 %v1223
        %v1683 = vunpack.c.h.b16 %v1223
        %v1684 = vunpack.c.l.b16 %v1224
        %v1685 = vunpack.c.h.b16 %v1224
        %v1686 = vunpack.c.l.b16 %v1225
        %v1687 = vunpack.c.h.b16 %v1225
        %v1688 = vunpack.c.l.b16 %v1226
        %v1689 = vunpack.c.h.b16 %v1226
        %v1690 = vunpack.c.l.b16 %v1227
        %v1691 = vunpack.c.h.b16 %v1227
        %v1692 = vunpack.c.l.b16 %v1228
        %v1693 = vunpack.c.h.b16 %v1228
        %v1694 = vunpack.c.l.b16 %v1229
        %v1695 = vunpack.c.h.b16 %v1229
        %v1696 = vunpack.c.l.b16 %v1230
        %v1697 = vunpack.c.h.b16 %v1230
        %v1698 = vunpack.c.l.b16 %v1231
        %v1699 = vunpack.c.h.b16 %v1231
        %v1700 = vunpack.c.l.b16 %v1232
        %v1701 = vunpack.c.h.b16 %v1232
        %v1702 = vunpack.c.l.b16 %v1233
        %v1703 = vunpack.c.h.b16 %v1233
        %v1704 = vunpack.c.l.b16 %v1234
        %v1705 = vunpack.c.h.b16 %v1234
        %v1706 = vunpack.c.l.b16 %v1235
        %v1707 = vunpack.c.h.b16 %v1235
        %v1708 = vunpack.c.l.b16 %v1236
        %v1709 = vunpack.c.h.b16 %v1236
        %v1710 = vunpack.c.l.b16 %v1237
        %v1711 = vunpack.c.h.b16 %v1237
        %v1712 = vunpack.c.l.b16 %v1238
        %v1713 = vunpack.c.h.b16 %v1238
        %v1714 = vunpack.c.l.b16 %v1239
        %v1715 = vunpack.c.h.b16 %v1239
        %v1716 = vunpack.c.l.b16 %v1240
        %v1717 = vunpack.c.h.b16 %v1240
        %v1718 = vunpack.c.l.b16 %v1241
        %v1719 = vunpack.c.h.b16 %v1241
        %v1720 = vunpack.c.l.b16 %v1242
        %v1721 = vunpack.c.h.b16 %v1242
        %v1722 = vunpack.c.l.b16 %v1243
        %v1723 = vunpack.c.h.b16 %v1243
        %v1724 = vunpack.c.l.b16 %v1244
        %v1725 = vunpack.c.h.b16 %v1244
        %v1726 = vunpack.c.l.b16 %v1245
        %v1727 = vunpack.c.h.b16 %v1245
        %v1728 = vunpack.c.l.b16 %v1246
        %v1729 = vunpack.c.h.b16 %v1246
        %v1730 = vunpack.c.l.b16 %v1247
        %v1731 = vunpack.c.h.b16 %v1247
        %v1732 = vunpack.c.l.b16 %v1248
        %v1733 = vunpack.c.h.b16 %v1248
        %v1734 = vunpack.c.l.b16 %v1249
        %v1735 = vunpack.c.h.b16 %v1249
        %v1736 = vunpack.c.l.b16 %v1250
        %v1737 = vunpack.c.h.b16 %v1250
        %v1738 = vunpack.c.l.b16 %v1251
        %v1739 = vunpack.c.h.b16 %v1251
        %v1740 = vunpack.c.l.b16 %v1252
        %v1741 = vunpack.c.h.b16 %v1252
        %v1742 = vunpack.c.l.b16 %v1253
        %v1743 = vunpack.c.h.b16 %v1253
        %v1744 = vunpack.c.l.b16 %v1254
        %v1745 = vunpack.c.h.b16 %v1254
        %v1746 = vunpack.c.l.b16 %v1255
        %v1747 = vunpack.c.h.b16 %v1255
        %v1748 = vunpack.c.l.b16 %v1256
        %v1749 = vunpack.c.h.b16 %v1256
        %v1750 = vunpack.c.l.b16 %v1257
        %v1751 = vunpack.c.h.b16 %v1257
        %v1752 = vunpack.c.l.b16 %v1258
        %v1753 = vunpack.c.h.b16 %v1258
        %v1754 = vunpack.c.l.b16 %v1259
        %v1755 = vunpack.c.h.b16 %v1259
        %v1756 = vunpack.c.l.b16 %v1260
        %v1757 = vunpack.c.h.b16 %v1260
        %v1758 = vunpack.c.l.b16 %v1261
        %v1759 = vunpack.c.h.b16 %v1261
        %v1760 = vunpack.c.l.b16 %v1262
        %v1761 = vunpack.c.h.b16 %v1262
        %v1762 = vunpack.c.l.b16 %v1263
        %v1763 = vunpack.c.h.b16 %v1263
        %v1764 = vunpack.c.l.b16 %v1264
        %v1765 = vunpack.c.h.b16 %v1264
        %v1766 = vunpack.c.l.b16 %v1265
        %v1767 = vunpack.c.h.b16 %v1265
        %v1768 = vunpack.c.l.b16 %v1266
        %v1769 = vunpack.c.h.b16 %v1266
        %v1770 = vunpack.c.l.b16 %v1267
        %v1771 = vunpack.c.h.b16 %v1267
        %v1772 = vunpack.c.l.b16 %v1268
        %v1773 = vunpack.c.h.b16 %v1268
        %v1774 = vunpack.c.l.b16 %v1269
        %v1775 = vunpack.c.h.b16 %v1269
        %v1776 = vunpack.c.l.b16 %v1270
        %v1777 = vunpack.c.h.b16 %v1270
        %v1778 = vunpack.c.l.b16 %v1271
        %v1779 = vunpack.c.h.b16 %v1271
        %v1780 = vunpack.c.l.b16 %v1272
        %v1781 = vunpack.c.h.b16 %v1272
        %v1782 = vunpack.c.l.b16 %v1273
        %v1783 = vunpack.c.h.b16 %v1273
        %v1784 = vunpack.c.l.b16 %v1274
        %v1785 = vunpack.c.h.b16 %v1274
        %v1786 = vunpack.c.l.b16 %v1275
        %v1787 = vunpack.c.h.b16 %v1275
        %v1788 = vunpack.c.l.b16 %v1276
        %v1789 = vunpack.c.h.b16 %v1276
        %v1790 = vunpack.c.l.b16 %v1277
        %v1791 = vunpack.c.h.b16 %v1277
        %v1792 = vunpack.c.l.b16 %v1278
        %v1793 = vunpack.c.h.b16 %v1278
        %v1794 = vunpack.c.l.b16 %v1279
        %v1795 = vunpack.c.h.b16 %v1279
        %v1796 = vunpack.c.l.b16 %v1280
        %v1797 = vunpack.c.h.b16 %v1280
        %v1798 = vunpack.c.l.b16 %v1281
        %v1799 = vunpack.c.h.b16 %v1281
        %v1800 = vunpack.c.l.b16 %v1282
        %v1801 = vunpack.c.h.b16 %v1282
        %v1802 = vunpack.c.l.b16 %v1283
        %v1803 = vunpack.c.h.b16 %v1283
        %v1804 = vunpack.c.l.b16 %v1284
        %v1805 = vunpack.c.h.b16 %v1284
        %v1806 = vunpack.c.l.b16 %v1285
        %v1807 = vunpack.c.h.b16 %v1285
        %v1808 = vunpack.c.l.b16 %v1286
        %v1809 = vunpack.c.h.b16 %v1286
        %v1810 = vunpack.c.l.b16 %v1287
        %v1811 = vunpack.c.h.b16 %v1287
        %v1812 = vunpack.c.l.b16 %v1288
        %v1813 = vunpack.c.h.b16 %v1288
        %v1814 = vunpack.c.l.b16 %v1289
        %v1815 = vunpack.c.h.b16 %v1289
        %v1816 = vunpack.c.l.b16 %v1290
        %v1817 = vunpack.c.h.b16 %v1290
        %v1818 = vunpack.c.l.b16 %v1291
        %v1819 = vunpack.c.h.b16 %v1291
        %v1820 = vunpack.c.l.b16 %v1292
        %v1821 = vunpack.c.h.b16 %v1292
        %v1822 = vunpack.c.l.b16 %v1293
        %v1823 = vunpack.c.h.b16 %v1293
        %v1824 = vunpack.c.l.b16 %v1294
        %v1825 = vunpack.c.h.b16 %v1294
        %v1826 = vunpack.c.l.b16 %v1295
        %v1827 = vunpack.c.h.b16 %v1295
        %v1828 = vunpack.c.l.b16 %v1296
        %v1829 = vunpack.c.h.b16 %v1296
        %v1830 = vunpack.c.l.b16 %v1297
        %v1831 = vunpack.c.h.b16 %v1297
        %v1832 = vunpack.c.l.b16 %v1298
        %v1833 = vunpack.c.h.b16 %v1298
        %v1834 = vunpack.c.l.b16 %v1299
        %v1835 = vunpack.c.h.b16 %v1299
        %v1836 = vunpack.c.l.b16 %v1300
        %v1837 = vunpack.c.h.b16 %v1300
        %v1838 = vunpack.c.l.b16 %v1301
        %v1839 = vunpack.c.h.b16 %v1301
        %v1840 = vunpack.c.l.b16 %v1302
        %v1841 = vunpack.c.h.b16 %v1302
        %v1842 = vunpack.c.l.b16 %v1303
        %v1843 = vunpack.c.h.b16 %v1303
        %v1844 = vunpack.c.l.b16 %v1304
        %v1845 = vunpack.c.h.b16 %v1304
        %v1846 = vunpack.c.l.b16 %v1305
        %v1847 = vunpack.c.h.b16 %v1305
        %v1848 = vunpack.c.l.b16 %v1306
        %v1849 = vunpack.c.h.b16 %v1306
        %v1850 = vunpack.c.l.b16 %v1307
        %v1851 = vunpack.c.h.b16 %v1307
        %v1852 = vunpack.c.l.b16 %v1308
        %v1853 = vunpack.c.h.b16 %v1308
        %v1854 = vunpack.c.l.b16 %v1309
        %v1855 = vunpack.c.h.b16 %v1309
        %v1856 = vunpack.c.l.b16 %v1310
        %v1857 = vunpack.c.h.b16 %v1310
        %v1858 = vunpack.c.l.b16 %v1311
        %v1859 = vunpack.c.h.b16 %v1311
        %v1860 = vunpack.c.l.b16 %v1312
        %v1861 = vunpack.c.h.b16 %v1312
        %v1862 = vunpack.c.l.b16 %v1313
        %v1863 = vunpack.c.h.b16 %v1313
        %v1864 = vunpack.c.l.b16 %v1314
        %v1865 = vunpack.c.h.b16 %v1314
        %v1866 = vunpack.c.l.b16 %v1315
        %v1867 = vunpack.c.h.b16 %v1315
        %v1868 = vunpack.c.l.b16 %v1316
        %v1869 = vunpack.c.h.b16 %v1316
        %v1870 = vunpack.c.l.b16 %v1317
        %v1871 = vunpack.c.h.b16 %v1317
        %v1872 = vunpack.c.l.b16 %v1318
        %v1873 = vunpack.c.h.b16 %v1318
        %v1874 = vunpack.c.l.b16 %v1319
        %v1875 = vunpack.c.h.b16 %v1319
        %v1876 = vunpack.c.l.b16 %v1320
        %v1877 = vunpack.c.h.b16 %v1320
        %v1878 = vunpack.c.l.b16 %v1321
        %v1879 = vunpack.c.h.b16 %v1321
        %v1880 = vunpack.c.l.b16 %v1322
        %v1881 = vunpack.c.h.b16 %v1322
        %v1882 = vunpack.c.l.b16 %v1323
        %v1883 = vunpack.c.h.b16 %v1323
        %v1884 = vunpack.c.l.b16 %v1324
        %v1885 = vunpack.c.h.b16 %v1324
        %v1886 = vunpack.c.l.b16 %v1325
        %v1887 = vunpack.c.h.b16 %v1325
        %v1888 = vunpack.c.l.b16 %v1326
        %v1889 = vunpack.c.h.b16 %v1326
        %v1890 = vunpack.c.l.b16 %v1327
        %v1891 = vunpack.c.h.b16 %v1327
        %v1892 = vunpack.c.l.b16 %v1328
        %v1893 = vunpack.c.h.b16 %v1328
        %v1894 = vunpack.c.l.b16 %v1329
        %v1895 = vunpack.c.h.b16 %v1329
        %v1896 = vunpack.c.l.b16 %v1330
        %v1897 = vunpack.c.h.b16 %v1330
        %v1898 = vunpack.c.l.b16 %v1331
        %v1899 = vunpack.c.h.b16 %v1331
        %v1900 = vunpack.c.l.b16 %v1332
        %v1901 = vunpack.c.h.b16 %v1332
        %v1902 = vunpack.c.l.b16 %v1333
        %v1903 = vunpack.c.h.b16 %v1333
        %v1904 = vunpack.c.l.b16 %v1334
        %v1905 = vunpack.c.h.b16 %v1334
        %v1906 = vunpack.c.l.b16 %v1335
        %v1907 = vunpack.c.h.b16 %v1335
        %v1908 = vunpack.c.l.b16 %v1336
        %v1909 = vunpack.c.h.b16 %v1336
        %v1910 = vunpack.c.l.b16 %v1337
        %v1911 = vunpack.c.h.b16 %v1337
        %v1912 = vunpack.c.l.b16 %v1338
        %v1913 = vunpack.c.h.b16 %v1338
        %v1914 = vunpack.c.l.b16 %v1339
        %v1915 = vunpack.c.h.b16 %v1339
        %v1916 = vunpack.c.l.b16 %v1340
        %v1917 = vunpack.c.h.b16 %v1340
        %v1918 = vunpack.c.l.b16 %v1341
        %v1919 = vunpack.c.h.b16 %v1341
        %v1920 = vunpack.c.l.b16 %v1342
        %v1921 = vunpack.c.h.b16 %v1342
        %v1922 = vunpack.c.l.b16 %v1343
        %v1923 = vunpack.c.h.b16 %v1343
        %v1924 = vunpack.c.l.b16 %v1344
        %v1925 = vunpack.c.h.b16 %v1344
        %v1926 = vunpack.c.l.b16 %v1345
        %v1927 = vunpack.c.h.b16 %v1345
        %v1928 = vunpack.c.l.b16 %v1346
        %v1929 = vunpack.c.h.b16 %v1346
        %v1930 = vunpack.c.l.b16 %v1347
        %v1931 = vunpack.c.h.b16 %v1347
        %v1932 = vunpack.c.l.b16 %v1348
        %v1933 = vunpack.c.h.b16 %v1348
        %v1934 = vunpack.c.l.b16 %v1349
        %v1935 = vunpack.c.h.b16 %v1349
        %v1936 = vunpack.c.l.b16 %v1350
        %v1937 = vunpack.c.h.b16 %v1350
        %v1938 = vunpack.c.l.b16 %v1351
        %v1939 = vunpack.c.h.b16 %v1351
        %v1940 = vunpack.c.l.b16 %v1352
        %v1941 = vunpack.c.h.b16 %v1352
        %v1942 = vunpack.c.l.b16 %v1353
        %v1943 = vunpack.c.h.b16 %v1353
        %v1944 = vunpack.c.l.b16 %v1354
        %v1945 = vunpack.c.h.b16 %v1354
        %v1946 = vunpack.c.l.b16 %v1355
        %v1947 = vunpack.c.h.b16 %v1355
        %v1948 = vunpack.c.l.b16 %v1356
        %v1949 = vunpack.c.h.b16 %v1356
        %v1950 = vunpack.c.l.b16 %v1357
        %v1951 = vunpack.c.h.b16 %v1357
        %v1952 = vunpack.c.l.b16 %v1358
        %v1953 = vunpack.c.h.b16 %v1358
        %v1954 = vunpack.c.l.b16 %v1359
        %v1955 = vunpack.c.h.b16 %v1359
        %v1956 = vunpack.c.l.b16 %v1360
        %v1957 = vunpack.c.h.b16 %v1360
        %v1958 = vunpack.c.l.b16 %v1361
        %v1959 = vunpack.c.h.b16 %v1361
        %v1960 = vunpack.c.l.b16 %v1362
        %v1961 = vunpack.c.h.b16 %v1362
        %v1962 = vunpack.c.l.b16 %v1363
        %v1963 = vunpack.c.h.b16 %v1363
        %v1964 = vunpack.c.l.b16 %v1364
        %v1965 = vunpack.c.h.b16 %v1364
        %v1966 = vunpack.c.l.b16 %v1365
        %v1967 = vunpack.c.h.b16 %v1365
        %v1968 = vunpack.c.l.b16 %v1366
        %v1969 = vunpack.c.h.b16 %v1366
        %v1970 = vpack.c.b16 %v1578, %v1576
        %v1971 = vpack.c.b16 %v1579, %v1577
        %v1972 = vpack.c.b16 %v1582, %v1580
        %v1973 = vpack.c.b16 %v1583, %v1581
        %v1974 = vpack.c.b16 %v1586, %v1584
        %v1975 = vpack.c.b16 %v1587, %v1585
        %v1976 = vpack.c.b16 %v1590, %v1588
        %v1977 = vpack.c.b16 %v1591, %v1589
        %v1978 = vpack.c.b16 %v1594, %v1592
        %v1979 = vpack.c.b16 %v1595, %v1593
        %v1980 = vpack.c.b16 %v1598, %v1596
        %v1981 = vpack.c.b16 %v1599, %v1597
        %v1982 = vpack.c.b16 %v1602, %v1600
        %v1983 = vpack.c.b16 %v1603, %v1601
        %v1984 = vpack.c.b16 %v1606, %v1604
        %v1985 = vpack.c.b16 %v1607, %v1605
        %v1986 = vpack.c.b16 %v1610, %v1608
        %v1987 = vpack.c.b16 %v1611, %v1609
        %v1988 = vpack.c.b16 %v1614, %v1612
        %v1989 = vpack.c.b16 %v1615, %v1613
        %v1990 = vpack.c.b16 %v1618, %v1616
        %v1991 = vpack.c.b16 %v1619, %v1617
        %v1992 = vpack.c.b16 %v1622, %v1620
        %v1993 = vpack.c.b16 %v1623, %v1621
        %v1994 = vpack.c.b16 %v1626, %v1624
        %v1995 = vpack.c.b16 %v1627, %v1625
        %v1996 = vpack.c.b16 %v1630, %v1628
        %v1997 = vpack.c.b16 %v1631, %v1629
        %v1998 = vpack.c.b16 %v1634, %v1632
        %v1999 = vpack.c.b16 %v1635, %v1633
        %v2000 = vpack.c.b16 %v1638, %v1636
        %v2001 = vpack.c.b16 %v1639, %v1637
        %v2002 = vpack.c.b16 %v1642, %v1640
        %v2003 = vpack.c.b16 %v1643, %v1641
        %v2004 = vpack.c.b16 %v1646, %v1644
        %v2005 = vpack.c.b16 %v1647, %v1645
        %v2006 = vpack.c.b16 %v1650, %v1648
        %v2007 = vpack.c.b16 %v1651, %v1649
        %v2008 = vpack.c.b16 %v1654, %v1652
        %v2009 = vpack.c.b16 %v1655, %v1653
        %v2010 = vpack.c.b16 %v1658, %v1656
        %v2011 = vpack.c.b16 %v1659, %v1657
        %v2012 = vpack.c.b16 %v1662, %v1660
        %v2013 = vpack.c.b16 %v1663, %v1661
        %v2014 = vpack.c.b16 %v1666, %v1664
        %v2015 = vpack.c.b16 %v1667, %v1665
        %v2016 = vpack.c.b16 %v1670, %v1668
        %v2017 = vpack.c.b16 %v1671, %v1669
        %v2018 = vpack.c.b16 %v1674, %v1672
        %v2019 = vpack.c.b16 %v1675, %v1673
        %v2020 = vpack.c.b16 %v1678, %v1676
        %v2021 = vpack.c.b16 %v1679, %v1677
        %v2022 = vpack.c.b16 %v1682, %v1680
        %v2023 = vpack.c.b16 %v1683, %v1681
        %v2024 = vpack.c.b16 %v1686, %v1684
        %v2025 = vpack.c.b16 %v1687, %v1685
        %v2026 = vpack.c.b16 %v1690, %v1688
        %v2027 = vpack.c.b16 %v1691, %v1689
        %v2028 = vpack.c.b16 %v1694, %v1692
        %v2029 = vpack.c.b16 %v1695, %v1693
        %v2030 = vpack.c.b16 %v1698, %v1696
        %v2031 = vpack.c.b16 %v1699, %v1697
        %v2032 = vpack.c.b16 %v1702, %v1700
        %v2033 = vpack.c.b16 %v1703, %v1701
        %v2034 = vpack.c.b16 %v1706, %v1704
        %v2035 = vpack.c.b16 %v1707, %v1705
        %v2036 = vpack.c.b16 %v1710, %v1708
        %v2037 = vpack.c.b16 %v1711, %v1709
        %v2038 = vpack.c.b16 %v1714, %v1712
        %v2039 = vpack.c.b16 %v1715, %v1713
        %v2040 = vpack.c.b16 %v1718, %v1716
        %v2041 = vpack.c.b16 %v1719, %v1717
        %v2042 = vpack.c.b16 %v1722, %v1720
        %v2043 = vpack.c.b16 %v1723, %v1721
        %v2044 = vpack.c.b16 %v1726, %v1724
        %v2045 = vpack.c.b16 %v1727, %v1725
        %v2046 = vpack.c.b16 %v1730, %v1728
        %v2047 = vpack.c.b16 %v1731, %v1729
        %v2048 = vpack.c.b16 %v1734, %v1732
        %v2049 = vpack.c.b16 %v1735, %v1733
        %v2050 = vpack.c.b16 %v1738, %v1736
        %v2051 = vpack.c.b16 %v1739, %v1737
        %v2052 = vpack.c.b16 %v1742, %v1740
        %v2053 = vpack.c.b16 %v1743, %v1741
        %v2054 = vpack.c.b16 %v1746, %v1744
        %v2055 = vpack.c.b16 %v1747, %v1745
        %v2056 = vpack.c.b16 %v1750, %v1748
        %v2057 = vpack.c.b16 %v1751, %v1749
        %v2058 = vpack.c.b16 %v1754, %v1752
        %v2059 = vpack.c.b16 %v1755, %v1753
        %v2060 = vpack.c.b16 %v1758, %v1756
        %v2061 = vpack.c.b16 %v1759, %v1757
        %v2062 = vpack.c.b16 %v1762, %v1760
        %v2063 = vpack.c.b16 %v1763, %v1761
        %v2064 = vpack.c.b16 %v1766, %v1764
        %v2065 = vpack.c.b16 %v1767, %v1765
        %v2066 = vpack.c.b16 %v1770, %v1768
        %v2067 = vpack.c.b16 %v1771, %v1769
        %v2068 = vpack.c.b16 %v1774, %v1772
        %v2069 = vpack.c.b16 %v1775, %v1773
        %v2070 = vpack.c.b16 %v1778, %v1776
        %v2071 = vpack.c.b16 %v1779, %v1777
        %v2072 = vpack.c.b16 %v1782, %v1780
        %v2073 = vpack.c.b16 %v1783, %v1781
        %v2074 = vpack.c.b16 %v1786, %v1784
        %v2075 = vpack.c.b16 %v1787, %v1785
        %v2076 = vpack.c.b16 %v1790, %v1788
        %v2077 = vpack.c.b16 %v1791, %v1789
        %v2078 = vpack.c.b16 %v1794, %v1792
        %v2079 = vpack.c.b16 %v1795, %v1793
        %v2080 = vpack.c.b16 %v1798, %v1796
        %v2081 = vpack.c.b16 %v1799, %v1797
        %v2082 = vpack.c.b16 %v1802, %v1800
        %v2083 = vpack.c.b16 %v1803, %v1801
        %v2084 = vpack.c.b16 %v1806, %v1804
        %v2085 = vpack.c.b16 %v1807, %v1805
        %v2086 = vpack.c.b16 %v1810, %v1808
        %v2087 = vpack.c.b16 %v1811, %v1809
        %v2088 = vpack.c.b16 %v1814, %v1812
        %v2089 = vpack.c.b16 %v1815, %v1813
        %v2090 = vpack.c.b16 %v1818, %v1816
        %v2091 = vpack.c.b16 %v1819, %v1817
        %v2092 = vpack.c.b16 %v1822, %v1820
        %v2093 = vpack.c.b16 %v1823, %v1821
        %v2094 = vpack.c.b16 %v1826, %v1824
        %v2095 = vpack.c.b16 %v1827, %v1825
        %v2096 = vpack.c.b16 %v1830, %v1828
        %v2097 = vpack.c.b16 %v1831, %v1829
        %v2098 = vpack.c.b16 %v1834, %v1832
        %v2099 = vpack.c.b16 %v1835, %v1833
        %v2100 = vpack.c.b16 %v1838, %v1836
        %v2101 = vpack.c.b16 %v1839, %v1837
        %v2102 = vpack.c.b16 %v1842, %v1840
        %v2103 = vpack.c.b16 %v1843, %v1841
        %v2104 = vpack.c.b16 %v1846, %v1844
        %v2105 = vpack.c.b16 %v1847, %v1845
        %v2106 = vpack.c.b16 %v1850, %v1848
        %v2107 = vpack.c.b16 %v1851, %v1849
        %v2108 = vpack.c.b16 %v1854, %v1852
        %v2109 = vpack.c.b16 %v1855, %v1853
        %v2110 = vpack.c.b16 %v1858, %v1856
        %v2111 = vpack.c.b16 %v1859, %v1857
        %v2112 = vpack.c.b16 %v1862, %v1860
        %v2113 = vpack.c.b16 %v1863, %v1861
        %v2114 = vpack.c.b16 %v1866, %v1864
        %v2115 = vpack.c.b16 %v1867, %v1865
        %v2116 = vpack.c.b16 %v1870, %v1868
        %v2117 = vpack.c.b16 %v1871, %v1869
        %v2118 = vpack.c.b16 %v1874, %v1872
        %v2119 = vpack.c.b16 %v1875, %v1873
        %v2120 = vpack.c.b16 %v1878, %v1876
        %v2121 = vpack.c.b16 %v1879, %v1877
        %v2122 = vpack.c.b16 %v1882, %v1880
        %v2123 = vpack.c.b16 %v1883, %v1881
        %v2124 = vpack.c.b16 %v1886, %v1884
        %v2125 = vpack.c.b16 %v1887, %v1885
        %v2126 = vpack.c.b16 %v1890, %v1888
        %v2127 = vpack.c.b16 %v1891, %v1889
        %v2128 = vpack.c.b16 %v1894, %v1892
        %v2129 = vpack.c.b16 %v1895, %v1893
        %v2130 = vpack.c.b16 %v1898, %v1896
        %v2131 = vpack.c.b16 %v1899, %v1897
        %v2132 = vpack.c.b16 %v1902, %v1900
        %v2133 = vpack.c.b16 %v1903, %v1901
        %v2134 = vpack.c.b16 %v1906, %v1904
        %v2135 = vpack.c.b16 %v1907, %v1905
        %v2136 = vpack.c.b16 %v1910, %v1908
        %v2137 = vpack.c.b16 %v1911, %v1909
        %v2138 = vpack.c.b16 %v1914, %v1912
        %v2139 = vpack.c.b16 %v1915, %v1913
        %v2140 = vpack.c.b16 %v1918, %v1916
        %v2141 = vpack.c.b16 %v1919, %v1917
        %v2142 = vpack.c.b16 %v1922, %v1920
        %v2143 = vpack.c.b16 %v1923, %v1921
        %v2144 = vpack.c.b16 %v1926, %v1924
        %v2145 = vpack.c.b16 %v1927, %v1925
        %v2146 = vpack.c.b16 %v1930, %v1928
        %v2147 = vpack.c.b16 %v1931, %v1929
        %v2148 = vpack.c.b16 %v1934, %v1932
        %v2149 = vpack.c.b16 %v1935, %v1933
        %v2150 = vpack.c.b16 %v1938, %v1936
        %v2151 = vpack.c.b16 %v1939, %v1937
        %v2152 = vpack.c.b16 %v1942, %v1940
        %v2153 = vpack.c.b16 %v1943, %v1941
        %v2154 = vpack.c.b16 %v1946, %v1944
        %v2155 = vpack.c.b16 %v1947, %v1945
        %v2156 = vpack.c.b16 %v1950, %v1948
        %v2157 = vpack.c.b16 %v1951, %v1949
        %v2158 = vpack.c.b16 %v1954, %v1952
        %v2159 = vpack.c.b16 %v1955, %v1953
        %v2160 = vpack.c.b16 %v1958, %v1956
        %v2161 = vpack.c.b16 %v1959, %v1957
        %v2162 = vpack.c.b16 %v1962, %v1960
        %v2163 = vpack.c.b16 %v1963, %v1961
        %v2164 = vpack.c.b16 %v1966, %v1964
        %v2165 = vpack.c.b16 %v1967, %v1965
        %v2166 = vpack.c.b16 %v1968, %v1968
        %v2167 = vpack.c.b16 %v1969, %v1969
        %vm2364 = vcmask 293888
        %v2366 = vsel %vm2364, %v1169, 0
        %vm2368 = vcmask 1041408
        %v2370 = vsel %vm2368, %v2166, 0
        %v2373 = vsel %vm2368, %v2167, 0
        %2375 = vmatprep.subr.bf16.mxu0 %v1971
        %2376 = vmatpush1.bf16.msra.mxu0 %v1970
        %2377 = vmatprep.subr.bf16.mxu0 %v1973
        %2378 = vmatpush1.bf16.msra.mxu0 %v1972
        %2379 = vmatprep.subr.bf16.mxu0 %v1975
        %2380 = vmatpush1.bf16.msra.mxu0 %v1974
        %2381 = vmatprep.subr.bf16.mxu0 %v1977
        %2382 = vmatpush1.bf16.msra.mxu0 %v1976
        %2383 = vmatprep.subr.bf16.mxu0 %v1979
        %2384 = vmatpush1.bf16.msra.mxu0 %v1978
        %2385 = vmatprep.subr.bf16.mxu0 %v1981
        %2386 = vmatpush1.bf16.msra.mxu0 %v1980
        %2387 = vmatprep.subr.bf16.mxu0 %v1983
        %2388 = vmatpush1.bf16.msra.mxu0 %v1982
        %2389 = vmatprep.subr.bf16.mxu0 %v1985
        %2390 = vmatpush1.bf16.msra.mxu0 %v1984
        %2391 = vmatprep.subr.bf16.mxu0 %v1987
        %2392 = vmatpush1.bf16.msra.mxu0 %v1986
        %2393 = vmatprep.subr.bf16.mxu0 %v1989
        %2394 = vmatpush1.bf16.msra.mxu0 %v1988
        %2395 = vmatprep.subr.bf16.mxu0 %v1991
        %2396 = vmatpush1.bf16.msra.mxu0 %v1990
        %2397 = vmatprep.subr.bf16.mxu0 %v1993
        %2398 = vmatpush1.bf16.msra.mxu0 %v1992
        %2399 = vmatprep.subr.bf16.mxu0 %v1995
        %2400 = vmatpush1.bf16.msra.mxu0 %v1994
        %2401 = vmatprep.subr.bf16.mxu0 %v1997
        %2402 = vmatpush1.bf16.msra.mxu0 %v1996
        %2403 = vmatprep.subr.bf16.mxu0 %v1999
        %2404 = vmatpush1.bf16.msra.mxu0 %v1998
        %2405 = vmatprep.subr.bf16.mxu0 %v2001
        %2406 = vmatpush1.bf16.msra.mxu0 %v2000
        %2407 = vmatprep.mubr.bf16.mxu0 %v1158
        %2408 = vmatmul.mubr.bf16.gmra.mrb[0].mxu0 %v1157
        %v2409 = vpop.f32.mrb[0].mxu0
        %v2410 = vadd.f32 %v1372, %v2409
        %v2411 = vpop.f32.mrb[0].mxu0
        %v2412 = vadd.f32 %v1376, %v2411
        %v2413 = vpop.f32.mrb[0].mxu0
        %v2414 = vpop.f32.mrb[0].mxu0
        %2415 = vdwg.mxu0
        %2416 = vmatprep.subr.bf16.mxu0 %v2003
        %2417 = vmatpush1.bf16.msra.mxu0 %v2002
        %2418 = vmatprep.subr.bf16.mxu0 %v2005
        %2419 = vmatpush1.bf16.msra.mxu0 %v2004
        %2420 = vmatprep.subr.bf16.mxu0 %v2007
        %2421 = vmatpush1.bf16.msra.mxu0 %v2006
        %2422 = vmatprep.subr.bf16.mxu0 %v2009
        %2423 = vmatpush1.bf16.msra.mxu0 %v2008
        %2424 = vmatprep.subr.bf16.mxu0 %v2011
        %2425 = vmatpush1.bf16.msra.mxu0 %v2010
        %2426 = vmatprep.subr.bf16.mxu0 %v2013
        %2427 = vmatpush1.bf16.msra.mxu0 %v2012
        %2428 = vmatprep.subr.bf16.mxu0 %v2015
        %2429 = vmatpush1.bf16.msra.mxu0 %v2014
        %2430 = vmatprep.subr.bf16.mxu0 %v2017
        %2431 = vmatpush1.bf16.msra.mxu0 %v2016
        %2432 = vmatprep.subr.bf16.mxu0 %v2019
        %2433 = vmatpush1.bf16.msra.mxu0 %v2018
        %2434 = vmatprep.subr.bf16.mxu0 %v2021
        %2435 = vmatpush1.bf16.msra.mxu0 %v2020
        %2436 = vmatprep.subr.bf16.mxu0 %v2023
        %2437 = vmatpush1.bf16.msra.mxu0 %v2022
        %2438 = vmatprep.subr.bf16.mxu0 %v2025
        %2439 = vmatpush1.bf16.msra.mxu0 %v2024
        %2440 = vmatprep.subr.bf16.mxu0 %v2027
        %2441 = vmatpush1.bf16.msra.mxu0 %v2026
        %2442 = vmatprep.subr.bf16.mxu0 %v2029
        %2443 = vmatpush1.bf16.msra.mxu0 %v2028
        %2444 = vmatprep.subr.bf16.mxu0 %v2031
        %2445 = vmatpush1.bf16.msra.mxu0 %v2030
        %2446 = vmatprep.subr.bf16.mxu0 %v2033
        %2447 = vmatpush1.bf16.msra.mxu0 %v2032
        %2448 = vmatprep.mubr.bf16.mxu0 %v1160
        %2449 = vmatmul.mubr.bf16.gmra.mrb[0].mxu0 %v1159
        %v2450 = vpop.f32.mrb[0].mxu0
        %v2451 = vadd.f32 %v2410, %v2450
        %v2452 = vpop.f32.mrb[0].mxu0
        %v2453 = vadd.f32 %v2412, %v2452
        %v2454 = vpop.f32.mrb[0].mxu0
        %v2455 = vpop.f32.mrb[0].mxu0
        %2456 = vdwg.mxu0
        %2457 = vmatprep.subr.bf16.mxu0 %v2035
        %2458 = vmatpush1.bf16.msra.mxu0 %v2034
        %2459 = vmatprep.subr.bf16.mxu0 %v2037
        %2460 = vmatpush1.bf16.msra.mxu0 %v2036
        %2461 = vmatprep.subr.bf16.mxu0 %v2039
        %2462 = vmatpush1.bf16.msra.mxu0 %v2038
        %2463 = vmatprep.subr.bf16.mxu0 %v2041
        %2464 = vmatpush1.bf16.msra.mxu0 %v2040
        %2465 = vmatprep.subr.bf16.mxu0 %v2043
        %2466 = vmatpush1.bf16.msra.mxu0 %v2042
        %2467 = vmatprep.subr.bf16.mxu0 %v2045
        %2468 = vmatpush1.bf16.msra.mxu0 %v2044
        %2469 = vmatprep.subr.bf16.mxu0 %v2047
        %2470 = vmatpush1.bf16.msra.mxu0 %v2046
        %2471 = vmatprep.subr.bf16.mxu0 %v2049
        %2472 = vmatpush1.bf16.msra.mxu0 %v2048
        %2473 = vmatprep.subr.bf16.mxu0 %v2051
        %2474 = vmatpush1.bf16.msra.mxu0 %v2050
        %2475 = vmatprep.subr.bf16.mxu0 %v2053
        %2476 = vmatpush1.bf16.msra.mxu0 %v2052
        %2477 = vmatprep.subr.bf16.mxu0 %v2055
        %2478 = vmatpush1.bf16.msra.mxu0 %v2054
        %2479 = vmatprep.subr.bf16.mxu0 %v2057
        %2480 = vmatpush1.bf16.msra.mxu0 %v2056
        %2481 = vmatprep.subr.bf16.mxu0 %v2059
        %2482 = vmatpush1.bf16.msra.mxu0 %v2058
        %2483 = vmatprep.subr.bf16.mxu0 %v2061
        %2484 = vmatpush1.bf16.msra.mxu0 %v2060
        %2485 = vmatprep.subr.bf16.mxu0 %v2063
        %2486 = vmatpush1.bf16.msra.mxu0 %v2062
        %2487 = vmatprep.subr.bf16.mxu0 %v2065
        %2488 = vmatpush1.bf16.msra.mxu0 %v2064
        %2489 = vmatprep.mubr.bf16.mxu0 %v1162
        %2490 = vmatmul.mubr.bf16.gmra.mrb[0].mxu0 %v1161
        %v2491 = vpop.f32.mrb[0].mxu0
        %v2492 = vadd.f32 %v2451, %v2491
        %v2493 = vpop.f32.mrb[0].mxu0
        %v2494 = vadd.f32 %v2453, %v2493
        %v2495 = vpop.f32.mrb[0].mxu0
        %v2496 = vpop.f32.mrb[0].mxu0
        %2497 = vdwg.mxu0
        %2498 = vmatprep.subr.bf16.mxu0 %v2067
        %2499 = vmatpush1.bf16.msra.mxu0 %v2066
        %2500 = vmatprep.subr.bf16.mxu0 %v2069
        %2501 = vmatpush1.bf16.msra.mxu0 %v2068
        %2502 = vmatprep.subr.bf16.mxu0 %v2071
        %2503 = vmatpush1.bf16.msra.mxu0 %v2070
        %2504 = vmatprep.subr.bf16.mxu0 %v2073
        %2505 = vmatpush1.bf16.msra.mxu0 %v2072
        %2506 = vmatprep.subr.bf16.mxu0 %v2075
        %2507 = vmatpush1.bf16.msra.mxu0 %v2074
        %2508 = vmatprep.subr.bf16.mxu0 %v2077
        %2509 = vmatpush1.bf16.msra.mxu0 %v2076
        %2510 = vmatprep.subr.bf16.mxu0 %v2079
        %2511 = vmatpush1.bf16.msra.mxu0 %v2078
        %2512 = vmatprep.subr.bf16.mxu0 %v2081
        %2513 = vmatpush1.bf16.msra.mxu0 %v2080
        %2514 = vmatprep.subr.bf16.mxu0 %v2083
        %2515 = vmatpush1.bf16.msra.mxu0 %v2082
        %2516 = vmatprep.subr.bf16.mxu0 %v2085
        %2517 = vmatpush1.bf16.msra.mxu0 %v2084
        %2518 = vmatprep.subr.bf16.mxu0 %v2087
        %2519 = vmatpush1.bf16.msra.mxu0 %v2086
        %2520 = vmatprep.subr.bf16.mxu0 %v2089
        %2521 = vmatpush1.bf16.msra.mxu0 %v2088
        %2522 = vmatprep.subr.bf16.mxu0 %v2091
        %2523 = vmatpush1.bf16.msra.mxu0 %v2090
        %2524 = vmatprep.subr.bf16.mxu0 %v2093
        %2525 = vmatpush1.bf16.msra.mxu0 %v2092
        %2526 = vmatprep.subr.bf16.mxu0 %v2095
        %2527 = vmatpush1.bf16.msra.mxu0 %v2094
        %2528 = vmatprep.subr.bf16.mxu0 %v2097
        %2529 = vmatpush1.bf16.msra.mxu0 %v2096
        %2530 = vmatprep.mubr.bf16.mxu0 %v1164
        %2531 = vmatmul.mubr.bf16.gmra.mrb[0].mxu0 %v1163
        %v2532 = vpop.f32.mrb[0].mxu0
        %v2533 = vadd.f32 %v2492, %v2532
        %v2534 = vpop.f32.mrb[0].mxu0
        %v2535 = vadd.f32 %v2494, %v2534
        %v2536 = vpop.f32.mrb[0].mxu0
        %v2537 = vpop.f32.mrb[0].mxu0
        %2538 = vdwg.mxu0
        %2539 = vmatprep.subr.bf16.mxu0 %v2099
        %2540 = vmatpush1.bf16.msra.mxu0 %v2098
        %2541 = vmatprep.subr.bf16.mxu0 %v2101
        %2542 = vmatpush1.bf16.msra.mxu0 %v2100
        %2543 = vmatprep.subr.bf16.mxu0 %v2103
        %2544 = vmatpush1.bf16.msra.mxu0 %v2102
        %2545 = vmatprep.subr.bf16.mxu0 %v2105
        %2546 = vmatpush1.bf16.msra.mxu0 %v2104
        %2547 = vmatprep.subr.bf16.mxu0 %v2107
        %2548 = vmatpush1.bf16.msra.mxu0 %v2106
        %2549 = vmatprep.subr.bf16.mxu0 %v2109
        %2550 = vmatpush1.bf16.msra.mxu0 %v2108
        %2551 = vmatprep.subr.bf16.mxu0 %v2111
        %2552 = vmatpush1.bf16.msra.mxu0 %v2110
        %2553 = vmatprep.subr.bf16.mxu0 %v2113
        %2554 = vmatpush1.bf16.msra.mxu0 %v2112
        %2555 = vmatprep.subr.bf16.mxu0 %v2115
        %2556 = vmatpush1.bf16.msra.mxu0 %v2114
        %2557 = vmatprep.subr.bf16.mxu0 %v2117
        %2558 = vmatpush1.bf16.msra.mxu0 %v2116
        %2559 = vmatprep.subr.bf16.mxu0 %v2119
        %2560 = vmatpush1.bf16.msra.mxu0 %v2118
        %2561 = vmatprep.subr.bf16.mxu0 %v2121
        %2562 = vmatpush1.bf16.msra.mxu0 %v2120
        %2563 = vmatprep.subr.bf16.mxu0 %v2123
        %2564 = vmatpush1.bf16.msra.mxu0 %v2122
        %2565 = vmatprep.subr.bf16.mxu0 %v2125
        %2566 = vmatpush1.bf16.msra.mxu0 %v2124
        %2567 = vmatprep.subr.bf16.mxu0 %v2127
        %2568 = vmatpush1.bf16.msra.mxu0 %v2126
        %2569 = vmatprep.subr.bf16.mxu0 %v2129
        %2570 = vmatpush1.bf16.msra.mxu0 %v2128
        %2571 = vmatprep.mubr.bf16.mxu0 %v1166
        %2572 = vmatmul.mubr.bf16.gmra.mrb[0].mxu0 %v1165
        %v2573 = vpop.f32.mrb[0].mxu0
        %v2574 = vadd.f32 %v2533, %v2573
        %v2575 = vpop.f32.mrb[0].mxu0
        %v2576 = vadd.f32 %v2535, %v2575
        %v2577 = vpop.f32.mrb[0].mxu0
        %v2578 = vpop.f32.mrb[0].mxu0
        %2579 = vdwg.mxu0
        %2580 = vmatprep.subr.bf16.mxu0 %v2131
        %2581 = vmatpush1.bf16.msra.mxu0 %v2130
        %2582 = vmatprep.subr.bf16.mxu0 %v2133
        %2583 = vmatpush1.bf16.msra.mxu0 %v2132
        %2584 = vmatprep.subr.bf16.mxu0 %v2135
        %2585 = vmatpush1.bf16.msra.mxu0 %v2134
        %2586 = vmatprep.subr.bf16.mxu0 %v2137
        %2587 = vmatpush1.bf16.msra.mxu0 %v2136
        %2588 = vmatprep.subr.bf16.mxu0 %v2139
        %2589 = vmatpush1.bf16.msra.mxu0 %v2138
        %2590 = vmatprep.subr.bf16.mxu0 %v2141
        %2591 = vmatpush1.bf16.msra.mxu0 %v2140
        %2592 = vmatprep.subr.bf16.mxu0 %v2143
        %2593 = vmatpush1.bf16.msra.mxu0 %v2142
        %2594 = vmatprep.subr.bf16.mxu0 %v2145
        %2595 = vmatpush1.bf16.msra.mxu0 %v2144
        %2596 = vmatprep.subr.bf16.mxu0 %v2147
        %2597 = vmatpush1.bf16.msra.mxu0 %v2146
        %2598 = vmatprep.subr.bf16.mxu0 %v2149
        %2599 = vmatpush1.bf16.msra.mxu0 %v2148
        %2600 = vmatprep.subr.bf16.mxu0 %v2151
        %2601 = vmatpush1.bf16.msra.mxu0 %v2150
        %2602 = vmatprep.subr.bf16.mxu0 %v2153
        %2603 = vmatpush1.bf16.msra.mxu0 %v2152
        %2604 = vmatprep.subr.bf16.mxu0 %v2155
        %2605 = vmatpush1.bf16.msra.mxu0 %v2154
        %2606 = vmatprep.subr.bf16.mxu0 %v2157
        %2607 = vmatpush1.bf16.msra.mxu0 %v2156
        %2608 = vmatprep.subr.bf16.mxu0 %v2159
        %2609 = vmatpush1.bf16.msra.mxu0 %v2158
        %2610 = vmatprep.subr.bf16.mxu0 %v2161
        %2611 = vmatpush1.bf16.msra.mxu0 %v2160
        %2612 = vmatprep.mubr.bf16.mxu0 %v1168
        %2613 = vmatmul.mubr.bf16.gmra.mrb[0].mxu0 %v1167
        %v2614 = vpop.f32.mrb[0].mxu0
        %v2615 = vadd.f32 %v2574, %v2614
        %v2616 = vpop.f32.mrb[0].mxu0
        %v2617 = vadd.f32 %v2576, %v2616
        %v2618 = vpop.f32.mrb[0].mxu0
        %v2619 = vpop.f32.mrb[0].mxu0
        %2620 = vdwg.mxu0
        %2621 = vmatprep.subr.bf16.mxu0 %v2163
        %2622 = vmatpush1.bf16.msra.mxu0 %v2162
        %2623 = vmatprep.subr.bf16.mxu0 %v2165
        %2624 = vmatpush1.bf16.msra.mxu0 %v2164
        %2625 = vmatprep.subr.bf16.mxu0 %v2373
        %2626 = vmatpush1.bf16.msra.mxu0 %v2370
        %2627 = vmatprep.subr.bf16.mxu0 0
        %2628 = vmatpush1.bf16.msra.mxu0 0
        %2629 = vmatprep.subr.bf16.mxu0 0
        %2630 = vmatpush1.bf16.msra.mxu0 0
        %2631 = vmatprep.subr.bf16.mxu0 0
        %2632 = vmatpush1.bf16.msra.mxu0 0
        %2633 = vmatprep.subr.bf16.mxu0 0
        %2634 = vmatpush1.bf16.msra.mxu0 0
        %2635 = vmatprep.subr.bf16.mxu0 0
        %2636 = vmatpush1.bf16.msra.mxu0 0
        %2637 = vmatprep.subr.bf16.mxu0 0
        %2638 = vmatpush1.bf16.msra.mxu0 0
        %2639 = vmatprep.subr.bf16.mxu0 0
        %2640 = vmatpush1.bf16.msra.mxu0 0
        %2641 = vmatprep.subr.bf16.mxu0 0
        %2642 = vmatpush1.bf16.msra.mxu0 0
        %2643 = vmatprep.subr.bf16.mxu0 0
        %2644 = vmatpush1.bf16.msra.mxu0 0
        %2645 = vmatprep.subr.bf16.mxu0 0
        %2646 = vmatpush1.bf16.msra.mxu0 0
        %2647 = vmatprep.subr.bf16.mxu0 0
        %2648 = vmatpush1.bf16.msra.mxu0 0
        %2649 = vmatprep.subr.bf16.mxu0 0
        %2650 = vmatpush1.bf16.msra.mxu0 0
        %2651 = vmatprep.subr.bf16.mxu0 0
        %2652 = vmatpush1.bf16.msra.mxu0 0
        %2653 = vmatprep.mubr.bf16.mxu0 0
        %2654 = vmatmul.mubr.bf16.gmra.mrb[0].mxu0 %v2366
        %v2655 = vpop.f32.mrb[0].mxu0
        %v2656 = vadd.f32 %v2615, %v2655
        %v2657 = vpop.f32.mrb[0].mxu0
        %v2658 = vadd.f32 %v2617, %v2657
        %v2659 = vpop.f32.mrb[0].mxu0
        %v2660 = vpop.f32.mrb[0].mxu0
        %2661 = vdwg.mxu0
        %v2662 = vmax.f32 %v2656, 0.0
        %v2663 = vmax.f32 %v2658, 0.0
        %v2664 = vld [vmem:[#allocation2] sm:$0x3]
        %v2665 = vld [vmem:[%s1069] sm:$0xff]
        %v2666 = vld [vmem:[%s1069 + $0x8] sm:$0xff]
        %v2667 = vld [vmem:[%s1069 + $0x10] sm:$0xff]
        %v2668 = vld [vmem:[%s1069 + $0x18] sm:$0xff]
        %v2669 = vld [vmem:[%s1069 + $0x20] sm:$0xff]
        %v2670 = vld [vmem:[%s1069 + $0x28] sm:$0xff]
        %v2671 = vld [vmem:[%s1069 + $0x30] sm:$0xff]
        %v2672 = vld [vmem:[%s1069 + $0x38] sm:$0xff]
        %v2673 = vld [vmem:[%s1069 + $0x40] sm:$0xff]
        %v2674 = vld [vmem:[%s1069 + $0x48] sm:$0xff]
        %v2675 = vld [vmem:[%s1069 + $0x50] sm:$0xff]
        %v2676 = vld [vmem:[%s1069 + $0x58] sm:$0xff]
        %v2677 = vld [vmem:[%s1069 + $0x60] sm:$0xff]
        %v2678 = vld [vmem:[%s1069 + $0x68] sm:$0xff]
        %v2679 = vld [vmem:[%s1069 + $0x70] sm:$0xff]
        %v2680 = vld [vmem:[%s1069 + $0x78] sm:$0xff]
        %v2681 = vld [vmem:[%s1069 + $0x80] sm:$0xff]
        %v2682 = vld [vmem:[%s1069 + $0x88] sm:$0xff]
        %v2683 = vld [vmem:[%s1069 + $0x90] sm:$0xff]
        %v2684 = vld [vmem:[%s1069 + $0x98] sm:$0xff]
        %v2685 = vld [vmem:[%s1069 + $0xa0] sm:$0xff]
        %v2686 = vld [vmem:[%s1069 + $0xa8] sm:$0xff]
        %v2687 = vld [vmem:[%s1069 + $0xb0] sm:$0xff]
        %v2688 = vld [vmem:[%s1069 + $0xb8] sm:$0xff]
        %v2689 = vld [vmem:[%s1069 + $0xc0] sm:$0xff]
        %v2690 = vld [vmem:[%s1069 + $0xc8] sm:$0xff]
        %v2691 = vld [vmem:[%s1069 + $0xd0] sm:$0xff]
        %v2692 = vld [vmem:[%s1069 + $0xd8] sm:$0xff]
        %v2693 = vld [vmem:[%s1069 + $0xe0] sm:$0xff]
        %v2694 = vld [vmem:[%s1069 + $0xe8] sm:$0xff]
        %v2695 = vld [vmem:[%s1069 + $0xf0] sm:$0xff]
        %v2696 = vld [vmem:[%s1069 + $0xf8] sm:$0xff]
        %2697 = vmatprep.subr.mxu0 0.0
        %2698 = vmatpush1.msra.mxu0 %v2665
        %2699 = vmatprep.subr.mxu0 0.0
        %2700 = vmatpush1.msra.mxu0 %v2666
        %2701 = vmatprep.subr.mxu0 0.0
        %2702 = vmatpush1.msra.mxu0 %v2667
        %2703 = vmatprep.subr.mxu0 0.0
        %2704 = vmatpush1.msra.mxu0 %v2668
        %2705 = vmatprep.subr.mxu0 0.0
        %2706 = vmatpush1.msra.mxu0 %v2669
        %2707 = vmatprep.subr.mxu0 0.0
        %2708 = vmatpush1.msra.mxu0 %v2670
        %2709 = vmatprep.subr.mxu0 0.0
        %2710 = vmatpush1.msra.mxu0 %v2671
        %2711 = vmatprep.subr.mxu0 0.0
        %2712 = vmatpush1.msra.mxu0 %v2672
        %2713 = vmatprep.subr.mxu0 0.0
        %2714 = vmatpush1.msra.mxu0 %v2673
        %2715 = vmatprep.subr.mxu0 0.0
        %2716 = vmatpush1.msra.mxu0 %v2674
        %2717 = vmatprep.subr.mxu0 0.0
        %2718 = vmatpush1.msra.mxu0 %v2675
        %2719 = vmatprep.subr.mxu0 0.0
        %2720 = vmatpush1.msra.mxu0 %v2676
        %2721 = vmatprep.subr.mxu0 0.0
        %2722 = vmatpush1.msra.mxu0 %v2677
        %2723 = vmatprep.subr.mxu0 0.0
        %2724 = vmatpush1.msra.mxu0 %v2678
        %2725 = vmatprep.subr.mxu0 0.0
        %2726 = vmatpush1.msra.mxu0 %v2679
        %2727 = vmatprep.subr.mxu0 0.0
        %2728 = vmatpush1.msra.mxu0 %v2680
        %2729 = vmatprep.subr.mxu0 0.0
        %2730 = vmatpush1.msra.mxu0 %v2681
        %2731 = vmatprep.subr.mxu0 0.0
        %2732 = vmatpush1.msra.mxu0 %v2682
        %2733 = vmatprep.subr.mxu0 0.0
        %2734 = vmatpush1.msra.mxu0 %v2683
        %2735 = vmatprep.subr.mxu0 0.0
        %2736 = vmatpush1.msra.mxu0 %v2684
        %2737 = vmatprep.subr.mxu0 0.0
        %2738 = vmatpush1.msra.mxu0 %v2685
        %2739 = vmatprep.subr.mxu0 0.0
        %2740 = vmatpush1.msra.mxu0 %v2686
        %2741 = vmatprep.subr.mxu0 0.0
        %2742 = vmatpush1.msra.mxu0 %v2687
        %2743 = vmatprep.subr.mxu0 0.0
        %2744 = vmatpush1.msra.mxu0 %v2688
        %2745 = vmatprep.subr.mxu0 0.0
        %2746 = vmatpush1.msra.mxu0 %v2689
        %2747 = vmatprep.subr.mxu0 0.0
        %2748 = vmatpush1.msra.mxu0 %v2690
        %2749 = vmatprep.subr.mxu0 0.0
        %2750 = vmatpush1.msra.mxu0 %v2691
        %2751 = vmatprep.subr.mxu0 0.0
        %2752 = vmatpush1.msra.mxu0 %v2692
        %2753 = vmatprep.subr.mxu0 0.0
        %2754 = vmatpush1.msra.mxu0 %v2693
        %2755 = vmatprep.subr.mxu0 0.0
        %2756 = vmatpush1.msra.mxu0 %v2694
        %2757 = vmatprep.subr.mxu0 0.0
        %2758 = vmatpush1.msra.mxu0 %v2695
        %2759 = vmatprep.subr.mxu0 0.0
        %2760 = vmatpush1.msra.mxu0 %v2696
        %2761 = vmatprep.mubr.f32.mxu0 %v2663
        %2762 = vmatmul.mubr.f32.gmra.mrb[0].mxu0 %v2662
        %v2763 = vpop.f32.mrb[0].mxu0
        %v2764 = vadd.f32 0.0, %v2763
        %v2765 = vpop.f32.mrb[0].mxu0
        %2766 = vdwg.mxu0
        %v2767 = vadd.f32 %v2664, %v2764
        %vm2768 = vcmask 9216
        %2769 = vst.msk [vmem:[#allocation2] sm:$0x3] %vm2768, %v2767
        %p2770 = scmp.eq.s32.totalorder %s16, 7
        // Predicated region
        $region83: #{forward.3} parent=73 // pred_check
          %p2771 = pneg %p2770
        $region84: #{forward.3} parent=73 // pred_check_branch
          %2773 = sbr.rel (%p2771) target = $region86
        $region85: #{forward.3} parent=73 // pred_region
          %v2774 = vld [vmem:[#allocation2] sm:$0x3]
          %v2775 = vld [vmem:[%s4] sm:$0x1]
          %v2777 = vlaneseq
          %v2778 = vshrl.u32 %v2777, 7
          %v2779 = vsub.s32 0, %v2778
          %v2780 = vrot.slane %v2775, %v2779
          %v2782 = vadd.f32 %v2774, %v2780
          %v2783 = vxor.u32 %v2782, 2147483648
          %v2784 = vmul.f32 %v2783, 1.442695
          %v2785 = vpow.pop %v2784
          %v2786 = vadd.f32 %v2785, 1.0
          %v2787 = vrcp.pop %v2786
          %v2788 = vmul.f32 1.0, %v2787
          %2790 = vrot.lane.b32.xlu0 %v2788, 1
          %v2791 = vpop.permute.xlu0 %2790
          %v2793 = vmul.f32 %v2782, %v2791
          %vm2794 = vcmask 7168
          %v2795 = vsel %vm2794, %v2782, %v2793
          %2796 = vst.msk [vmem:[%s5] sm:$0x3] %vm2768, %v2795
        $region86: #{forward.3} parent=73 // pred_fallthru
          _
        // Predicated region
        $region87: #{forward.3} parent=73 // pred_check
          %p2797 = pneg %p149
        $region88: #{forward.3} parent=73 // pred_check_branch
          %2799 = sbr.rel (%p2797) target = $region90
        $region89: #{forward.3} parent=73 // pred_region
          _
        $region90: #{forward.3} parent=73 // pred_fallthru
          _
        // Predicated region
        $region91: #{forward.3} parent=73 // pred_check
          %p2800 = pneg %p149
        $region92: #{forward.3} parent=73 // pred_check_branch
          %2802 = sbr.rel (%p2800) target = $region94
        $region93: #{forward.3} parent=73 // pred_region
          _
        $region94: #{forward.3} parent=73 // pred_fallthru
          _
      $region74: #{forward.3} parent=5 // pred_fallthru
        _
      %p2803 = scmp.le.s32.totalorder 2, %s11
      // Predicated region
      $region95: #{forward.3} parent=5 // pred_check
        %p2804 = pneg %p2803
      $region96: #{forward.3} parent=5 // pred_check_branch
        %2806 = sbr.rel (%p2804) target = $region98
      $region97: #{forward.3} parent=5 // pred_region
        %s2807 = ssub.s32 %s11, 2
      $region98: #{forward.3} parent=5 // pred_fallthru
        _
    $region6: #{forward.3} parent=1 // loop_footer
      %s15 = sadd.s32 1, %s11
    $region7: #{forward.3} parent=1 // loop_footer_branch
      %10 = sbr.rel target = $region3
    $region8: #{forward.3} parent=1 // loop_exit
      _

// kernel: forward.2
$region0: #{forward.2}
  #allocation0 [shape = 'u32[]', space=smem, size = 0x4, offset = 0x4, fixed_abs, tag = 'smem constant byte address 0x4 - core index']
  #allocation1 [shape = 'u32[144,128]{1,0:T(1,128)}', space=vmem, size = 0x12000, scoped, tag = 'internal scratch']
  #allocation2 [shape = 'f32[2,20,32]{2,1,0:T(8,128)}', space=vmem, size = 0x6000, scoped, tag = 'scratch operand']
  #allocation3 [shape = 'f32[2,14,128]{2,1,0:T(8,128)}', space=vmem, size = 0x4000, scoped, tag = 'scratch operand']
  %s0 = inlined_call_operand.vmem [shape: f32[2,16], index: 0, kind: input, shape index: {}]
  %s1 = inlined_call_operand.vmem [shape: f32[3,32], index: 1, kind: input, shape index: {}]
  %s2 = inlined_call_operand.vmem [shape: f32[1,32], index: 2, kind: input, shape index: {}]
  %s3 = inlined_call_operand.vmem [shape: f32[5,32,128], index: 3, kind: input, shape index: {}]
  %s4 = inlined_call_operand.vmem [shape: f32[1,128], index: 4, kind: input, shape index: {}]
  %s5 = inlined_call_operand.vmem [shape: f32[7,128,524], index: 5, kind: input, shape index: {}]
  %s6 = inlined_call_operand.vmem [shape: f32[1,524], index: 6, kind: input, shape index: {}]
  %s7 = inlined_call_operand.vmem [shape: f32[2,3,524], index: 7, kind: output, shape index: {}]
  %s8 = sld [smem:[#allocation0]]
  $region38: #{forward.2} parent=0
    _
  %s10 = ssub.s32 1, %s8
  %s11 = scalar_select 0, %s10, %s8
  // Predicated region
  $region2: #{forward.2} parent=0 // pred_check
    _
  $region3: #{forward.2} parent=0 // pred_check_branch
    %13 = sbr.rel (0) target = $region5
  $region4: #{forward.2} parent=0 // pred_region
    _
  $region5: #{forward.2} parent=0 // pred_fallthru
    _
  // Predicated region
  $region6: #{forward.2} parent=0 // pred_check
    _
  $region7: #{forward.2} parent=0 // pred_check_branch
    %15 = sbr.rel (0) target = $region9
  $region8: #{forward.2} parent=0 // pred_region
    _
  $region9: #{forward.2} parent=0 // pred_fallthru
    _
  // Predicated region
  $region10: #{forward.2} parent=0 // pred_check
    _
  $region11: #{forward.2} parent=0 // pred_check_branch
    %17 = sbr.rel (0) target = $region13
  $region12: #{forward.2} parent=0 // pred_region
    _
  $region13: #{forward.2} parent=0 // pred_fallthru
    _
  // Predicated region
  $region14: #{forward.2} parent=0 // pred_check
    _
  $region15: #{forward.2} parent=0 // pred_check_branch
    %19 = sbr.rel (0) target = $region17
  $region16: #{forward.2} parent=0 // pred_region
    _
  $region17: #{forward.2} parent=0 // pred_fallthru
    _
  // Predicated region
  $region18: #{forward.2} parent=0 // pred_check
    _
  $region19: #{forward.2} parent=0 // pred_check_branch
    %21 = sbr.rel (0) target = $region21
  $region20: #{forward.2} parent=0 // pred_region
    _
  $region21: #{forward.2} parent=0 // pred_fallthru
    _
  // Predicated region
  $region22: #{forward.2} parent=0 // pred_check
    _
  $region23: #{forward.2} parent=0 // pred_check_branch
    %23 = sbr.rel (0) target = $region25
  $region24: #{forward.2} parent=0 // pred_region
    _
  $region25: #{forward.2} parent=0 // pred_fallthru
    _
  // Predicated region
  $region26: #{forward.2} parent=0 // pred_check
    _
  $region27: #{forward.2} parent=0 // pred_check_branch
    %25 = sbr.rel (0) target = $region29
  $region28: #{forward.2} parent=0 // pred_region
    _
  $region29: #{forward.2} parent=0 // pred_fallthru
    _
  %v26 = vld [vmem:[%s0] sm:$0x3]
  %28 = vrot.lane.b32.xlu0 %v26, 1
  %v29 = vpop.permute.xlu0 %28
  %31 = vrot.lane.b32.xlu0 %v26, 2
  %v32 = vpop.permute.xlu0 %31
  %vm34 = vcmask 7168
  %v35 = vsel %vm34, %v26, %v29
  %vm36 = vcmask 138240
  %v37 = vsel %vm36, %v35, %v32
  %v38 = vld [vmem:[%s1] sm:$0x7]
  %v39 = vld [vmem:[%s2] sm:$0x1]
  %v41 = vlaneseq
  %v42 = vshrl.u32 %v41, 7
  %v43 = vsub.s32 0, %v42
  %v44 = vrot.slane %v39, %v43
  %v46 = vadd.f32 %v44, 0.0
  %v47 = vlaneseq
  %v48 = vshrl.u32 %v47, 7
  %v49 = vsub.s32 0, %v48
  %v50 = vrot.slane %v37, %v49
  %52 = vbcast.lane.b32.xlu0 %v50, 256
  %v53 = vpop.permute.xlu0 %52
  %s55 = sor.u32 256, 8
  %56 = vbcast.lane.b32.xlu0 %v50, %s55
  %v57 = vpop.permute.xlu0 %56
  %v58 = vlaneseq
  %v59 = vshrl.u32 %v58, 7
  %v60 = vsub.s32 1, %v59
  %v61 = vrot.slane %v37, %v60
  %63 = vbcast.lane.b32.xlu0 %v61, 256
  %v64 = vpop.permute.xlu0 %63
  %s66 = sor.u32 256, 8
  %67 = vbcast.lane.b32.xlu0 %v61, %s66
  %v68 = vpop.permute.xlu0 %67
  %v69 = vlaneseq
  %v70 = vshrl.u32 %v69, 7
  %v71 = vsub.s32 0, %v70
  %v72 = vrot.slane %v38, %v71
  %v73 = vmul.f32 %v53, %v72
  %v74 = vmul.f32 %v57, %v72
  %v75 = vmul.f32 %v64, %v72
  %v76 = vmul.f32 %v68, %v72
  %v77 = vadd.f32 %v46, %v73
  %v78 = vadd.f32 %v46, %v74
  %v79 = vadd.f32 %v46, %v75
  %v80 = vadd.f32 %v46, %v76
  %s82 = sor.u32 256, 1
  %83 = vbcast.lane.b32.xlu0 %v50, %s82
  %v84 = vpop.permute.xlu0 %83
  %s86 = sor.u32 256, 9
  %87 = vbcast.lane.b32.xlu0 %v50, %s86
  %v88 = vpop.permute.xlu0 %87
  %s90 = sor.u32 256, 1
  %91 = vbcast.lane.b32.xlu0 %v61, %s90
  %v92 = vpop.permute.xlu0 %91
  %s94 = sor.u32 256, 9
  %95 = vbcast.lane.b32.xlu0 %v61, %s94
  %v96 = vpop.permute.xlu0 %95
  %v97 = vlaneseq
  %v98 = vshrl.u32 %v97, 7
  %v99 = vsub.s32 1, %v98
  %v100 = vrot.slane %v38, %v99
  %v101 = vmul.f32 %v84, %v100
  %v102 = vmul.f32 %v88, %v100
  %v103 = vmul.f32 %v92, %v100
  %v104 = vmul.f32 %v96, %v100
  %v105 = vadd.f32 %v77, %v101
  %v106 = vadd.f32 %v78, %v102
  %v107 = vadd.f32 %v79, %v103
  %v108 = vadd.f32 %v80, %v104
  %s110 = sor.u32 256, 2
  %111 = vbcast.lane.b32.xlu0 %v50, %s110
  %v112 = vpop.permute.xlu0 %111
  %s114 = sor.u32 256, 10
  %115 = vbcast.lane.b32.xlu0 %v50, %s114
  %v116 = vpop.permute.xlu0 %115
  %s118 = sor.u32 256, 2
  %119 = vbcast.lane.b32.xlu0 %v61, %s118
  %v120 = vpop.permute.xlu0 %119
  %s122 = sor.u32 256, 10
  %123 = vbcast.lane.b32.xlu0 %v61, %s122
  %v124 = vpop.permute.xlu0 %123
  %v125 = vlaneseq
  %v126 = vshrl.u32 %v125, 7
  %v127 = vsub.s32 2, %v126
  %v128 = vrot.slane %v38, %v127
  %v129 = vmul.f32 %v112, %v128
  %v130 = vmul.f32 %v116, %v128
  %v131 = vmul.f32 %v120, %v128
  %v132 = vmul.f32 %v124, %v128
  %v133 = vadd.f32 %v105, %v129
  %v134 = vadd.f32 %v106, %v130
  %v135 = vadd.f32 %v107, %v131
  %v136 = vadd.f32 %v108, %v132
  %v137 = vmax.f32 %v133, 0.0
  %v138 = vmax.f32 %v134, 0.0
  %v139 = vmax.f32 %v135, 0.0
  %v140 = vmax.f32 %v136, 0.0
  %vm141 = vcmask 261120
  %142 = vst.msk [vmem:[#allocation2 + $0x2] sm:$0xff] %vm141, %v137
  %143 = vst.msk [vmem:[#allocation2 + $0xa] sm:$0xff] %vm141, %v138
  %144 = vst.msk [vmem:[#allocation2 + $0x1a] sm:$0xff] %vm141, %v139
  %145 = vst.msk [vmem:[#allocation2 + $0x22] sm:$0xff] %vm141, %v140
  %vm146 = vcmask 253952
  %147 = vst.msk [vmem:[#allocation2] sm:$0x1] %vm146, %v137
  %148 = vst.msk [vmem:[#allocation2 + $0x18] sm:$0x1] %vm146, %v139
  %vm149 = vcmask 261127
  %150 = vst.msk [vmem:[#allocation2 + $0xb] sm:$0x80] %vm149, %v138
  %151 = vst.msk [vmem:[#allocation2 + $0x23] sm:$0x80] %vm149, %v140
  %152 = vst.msk [vmem:[#allocation2 + $0x1] sm:$0x1] %vm146, %v137
  %153 = vst.msk [vmem:[#allocation2 + $0x19] sm:$0x1] %vm146, %v139
  %154 = vst.msk [vmem:[#allocation2 + $0xc] sm:$0x80] %vm149, %v138
  %155 = vst.msk [vmem:[#allocation2 + $0x24] sm:$0x80] %vm149, %v140
  %v156 = vld [vmem:[%s4] sm:$0x1]
  %v158 = vlaneseq
  %v159 = vshrl.u32 %v158, 7
  %v160 = vsub.s32 0, %v159
  %v161 = vrot.slane %v156, %v160
  %v163 = vadd.f32 %v161, 0.0
  %v164 = vld [vmem:[#allocation2] ss:$2 sm:$0xff]
  %s165 = scalar_lea.vmem [#allocation2], 24
  %v166 = vld [vmem:[%s165] ss:$2 sm:$0xff]
  %v167 = vld [vmem:[%s3] sm:$0xff]
  %v168 = vld [vmem:[%s3 + $0x8] sm:$0xff]
  %v169 = vld [vmem:[%s3 + $0x10] sm:$0xff]
  %v170 = vld [vmem:[%s3 + $0x18] sm:$0xff]
  %v172 = vsel %vm141, %v164, 0
  %v175 = vsel %vm141, %v166, 0
  %177 = vmatprep.subr.mxu0 0.0
  %178 = vmatpush1.msra.mxu0 %v167
  %179 = vmatprep.subr.mxu0 0.0
  %180 = vmatpush1.msra.mxu0 %v168
  %181 = vmatprep.subr.mxu0 0.0
  %182 = vmatpush1.msra.mxu0 %v169
  %183 = vmatprep.subr.mxu0 0.0
  %184 = vmatpush1.msra.mxu0 %v170
  %185 = vmatprep.subr.mxu0 0.0
  %186 = vmatpush1.msra.mxu0 0.0
  %187 = vmatprep.subr.mxu0 0.0
  %188 = vmatpush1.msra.mxu0 0.0
  %189 = vmatprep.subr.mxu0 0.0
  %190 = vmatpush1.msra.mxu0 0.0
  %191 = vmatprep.subr.mxu0 0.0
  %192 = vmatpush1.msra.mxu0 0.0
  %193 = vmatprep.subr.mxu0 0.0
  %194 = vmatpush1.msra.mxu0 0.0
  %195 = vmatprep.subr.mxu0 0.0
  %196 = vmatpush1.msra.mxu0 0.0
  %197 = vmatprep.subr.mxu0 0.0
  %198 = vmatpush1.msra.mxu0 0.0
  %199 = vmatprep.subr.mxu0 0.0
  %200 = vmatpush1.msra.mxu0 0.0
  %201 = vmatprep.subr.mxu0 0.0
  %202 = vmatpush1.msra.mxu0 0.0
  %203 = vmatprep.subr.mxu0 0.0
  %204 = vmatpush1.msra.mxu0 0.0
  %205 = vmatprep.subr.mxu0 0.0
  %206 = vmatpush1.msra.mxu0 0.0
  %207 = vmatprep.subr.mxu0 0.0
  %208 = vmatpush1.msra.mxu0 0.0
  %209 = vmatprep.subr.mxu0 0.0
  %210 = vmatpush1.msra.mxu0 0.0
  %211 = vmatprep.subr.mxu0 0.0
  %212 = vmatpush1.msra.mxu0 0.0
  %213 = vmatprep.subr.mxu0 0.0
  %214 = vmatpush1.msra.mxu0 0.0
  %215 = vmatprep.subr.mxu0 0.0
  %216 = vmatpush1.msra.mxu0 0.0
  %217 = vmatprep.subr.mxu0 0.0
  %218 = vmatpush1.msra.mxu0 0.0
  %219 = vmatprep.subr.mxu0 0.0
  %220 = vmatpush1.msra.mxu0 0.0
  %221 = vmatprep.subr.mxu0 0.0
  %222 = vmatpush1.msra.mxu0 0.0
  %223 = vmatprep.subr.mxu0 0.0
  %224 = vmatpush1.msra.mxu0 0.0
  %225 = vmatprep.subr.mxu0 0.0
  %226 = vmatpush1.msra.mxu0 0.0
  %227 = vmatprep.subr.mxu0 0.0
  %228 = vmatpush1.msra.mxu0 0.0
  %229 = vmatprep.subr.mxu0 0.0
  %230 = vmatpush1.msra.mxu0 0.0
  %231 = vmatprep.subr.mxu0 0.0
  %232 = vmatpush1.msra.mxu0 0.0
  %233 = vmatprep.subr.mxu0 0.0
  %234 = vmatpush1.msra.mxu0 0.0
  %235 = vmatprep.subr.mxu0 0.0
  %236 = vmatpush1.msra.mxu0 0.0
  %237 = vmatprep.subr.mxu0 0.0
  %238 = vmatpush1.msra.mxu0 0.0
  %239 = vmatprep.subr.mxu0 0.0
  %240 = vmatpush1.msra.mxu0 0.0
  %241 = vmatprep.mubr.f32.mxu0 0.0
  %242 = vmatmul.mubr.f32.gmra.mrb[0].mxu0 %v172
  %v243 = vpop.f32.mrb[0].mxu0
  %v244 = vadd.f32 0.0, %v243
  %v245 = vpop.f32.mrb[0].mxu0
  %246 = vmatprep.mubr.f32.mxu0 0.0
  %247 = vmatmul.mubr.f32.gmra.mrb[0].mxu0 %v175
  %v248 = vpop.f32.mrb[0].mxu0
  %v249 = vadd.f32 0.0, %v248
  %v250 = vpop.f32.mrb[0].mxu0
  %251 = vdwg.mxu0
  %v252 = vadd.f32 %v163, %v244
  %v253 = vadd.f32 %v163, %v249
  %s254 = scalar_lea.vmem [#allocation2], 1
  %v255 = vld [vmem:[%s254] ss:$2 sm:$0xff]
  %s256 = scalar_lea.vmem [#allocation2], 25
  %v257 = vld [vmem:[%s256] ss:$2 sm:$0xff]
  %s258 = scalar_lea.vmem %s3, 32
  %v259 = vld [vmem:[%s258] sm:$0xff]
  %v260 = vld [vmem:[%s258 + $0x8] sm:$0xff]
  %v261 = vld [vmem:[%s258 + $0x10] sm:$0xff]
  %v262 = vld [vmem:[%s258 + $0x18] sm:$0xff]
  %v264 = vsel %vm141, %v255, 0
  %v267 = vsel %vm141, %v257, 0
  %269 = vmatprep.subr.mxu0 0.0
  %270 = vmatpush1.msra.mxu0 %v259
  %271 = vmatprep.subr.mxu0 0.0
  %272 = vmatpush1.msra.mxu0 %v260
  %273 = vmatprep.subr.mxu0 0.0
  %274 = vmatpush1.msra.mxu0 %v261
  %275 = vmatprep.subr.mxu0 0.0
  %276 = vmatpush1.msra.mxu0 %v262
  %277 = vmatprep.subr.mxu0 0.0
  %278 = vmatpush1.msra.mxu0 0.0
  %279 = vmatprep.subr.mxu0 0.0
  %280 = vmatpush1.msra.mxu0 0.0
  %281 = vmatprep.subr.mxu0 0.0
  %282 = vmatpush1.msra.mxu0 0.0
  %283 = vmatprep.subr.mxu0 0.0
  %284 = vmatpush1.msra.mxu0 0.0
  %285 = vmatprep.subr.mxu0 0.0
  %286 = vmatpush1.msra.mxu0 0.0
  %287 = vmatprep.subr.mxu0 0.0
  %288 = vmatpush1.msra.mxu0 0.0
  %289 = vmatprep.subr.mxu0 0.0
  %290 = vmatpush1.msra.mxu0 0.0
  %291 = vmatprep.subr.mxu0 0.0
  %292 = vmatpush1.msra.mxu0 0.0
  %293 = vmatprep.subr.mxu0 0.0
  %294 = vmatpush1.msra.mxu0 0.0
  %295 = vmatprep.subr.mxu0 0.0
  %296 = vmatpush1.msra.mxu0 0.0
  %297 = vmatprep.subr.mxu0 0.0
  %298 = vmatpush1.msra.mxu0 0.0
  %299 = vmatprep.subr.mxu0 0.0
  %300 = vmatpush1.msra.mxu0 0.0
  %301 = vmatprep.subr.mxu0 0.0
  %302 = vmatpush1.msra.mxu0 0.0
  %303 = vmatprep.subr.mxu0 0.0
  %304 = vmatpush1.msra.mxu0 0.0
  %305 = vmatprep.subr.mxu0 0.0
  %306 = vmatpush1.msra.mxu0 0.0
  %307 = vmatprep.subr.mxu0 0.0
  %308 = vmatpush1.msra.mxu0 0.0
  %309 = vmatprep.subr.mxu0 0.0
  %310 = vmatpush1.msra.mxu0 0.0
  %311 = vmatprep.subr.mxu0 0.0
  %312 = vmatpush1.msra.mxu0 0.0
  %313 = vmatprep.subr.mxu0 0.0
  %314 = vmatpush1.msra.mxu0 0.0
  %315 = vmatprep.subr.mxu0 0.0
  %316 = vmatpush1.msra.mxu0 0.0
  %317 = vmatprep.subr.mxu0 0.0
  %318 = vmatpush1.msra.mxu0 0.0
  %319 = vmatprep.subr.mxu0 0.0
  %320 = vmatpush1.msra.mxu0 0.0
  %321 = vmatprep.subr.mxu0 0.0
  %322 = vmatpush1.msra.mxu0 0.0
  %323 = vmatprep.subr.mxu0 0.0
  %324 = vmatpush1.msra.mxu0 0.0
  %325 = vmatprep.subr.mxu0 0.0
  %326 = vmatpush1.msra.mxu0 0.0
  %327 = vmatprep.subr.mxu0 0.0
  %328 = vmatpush1.msra.mxu0 0.0
  %329 = vmatprep.subr.mxu0 0.0
  %330 = vmatpush1.msra.mxu0 0.0
  %331 = vmatprep.subr.mxu0 0.0
  %332 = vmatpush1.msra.mxu0 0.0
  %333 = vmatprep.mubr.f32.mxu0 0.0
  %334 = vmatmul.mubr.f32.gmra.mrb[0].mxu0 %v264
  %v335 = vpop.f32.mrb[0].mxu0
  %v336 = vadd.f32 0.0, %v335
  %v337 = vpop.f32.mrb[0].mxu0
  %338 = vmatprep.mubr.f32.mxu0 0.0
  %339 = vmatmul.mubr.f32.gmra.mrb[0].mxu0 %v267
  %v340 = vpop.f32.mrb[0].mxu0
  %v341 = vadd.f32 0.0, %v340
  %v342 = vpop.f32.mrb[0].mxu0
  %343 = vdwg.mxu0
  %v344 = vadd.f32 %v252, %v336
  %v345 = vadd.f32 %v253, %v341
  %s346 = scalar_lea.vmem [#allocation2], 2
  %v347 = vld [vmem:[%s346] ss:$2 sm:$0xff]
  %s348 = scalar_lea.vmem [#allocation2], 26
  %v349 = vld [vmem:[%s348] ss:$2 sm:$0xff]
  %s350 = scalar_lea.vmem %s3, 64
  %v351 = vld [vmem:[%s350] sm:$0xff]
  %v352 = vld [vmem:[%s350 + $0x8] sm:$0xff]
  %v353 = vld [vmem:[%s350 + $0x10] sm:$0xff]
  %v354 = vld [vmem:[%s350 + $0x18] sm:$0xff]
  %v356 = vsel %vm141, %v347, 0
  %v359 = vsel %vm141, %v349, 0
  %361 = vmatprep.subr.mxu0 0.0
  %362 = vmatpush1.msra.mxu0 %v351
  %363 = vmatprep.subr.mxu0 0.0
  %364 = vmatpush1.msra.mxu0 %v352
  %365 = vmatprep.subr.mxu0 0.0
  %366 = vmatpush1.msra.mxu0 %v353
  %367 = vmatprep.subr.mxu0 0.0
  %368 = vmatpush1.msra.mxu0 %v354
  %369 = vmatprep.subr.mxu0 0.0
  %370 = vmatpush1.msra.mxu0 0.0
  %371 = vmatprep.subr.mxu0 0.0
  %372 = vmatpush1.msra.mxu0 0.0
  %373 = vmatprep.subr.mxu0 0.0
  %374 = vmatpush1.msra.mxu0 0.0
  %375 = vmatprep.subr.mxu0 0.0
  %376 = vmatpush1.msra.mxu0 0.0
  %377 = vmatprep.subr.mxu0 0.0
  %378 = vmatpush1.msra.mxu0 0.0
  %379 = vmatprep.subr.mxu0 0.0
  %380 = vmatpush1.msra.mxu0 0.0
  %381 = vmatprep.subr.mxu0 0.0
  %382 = vmatpush1.msra.mxu0 0.0
  %383 = vmatprep.subr.mxu0 0.0
  %384 = vmatpush1.msra.mxu0 0.0
  %385 = vmatprep.subr.mxu0 0.0
  %386 = vmatpush1.msra.mxu0 0.0
  %387 = vmatprep.subr.mxu0 0.0
  %388 = vmatpush1.msra.mxu0 0.0
  %389 = vmatprep.subr.mxu0 0.0
  %390 = vmatpush1.msra.mxu0 0.0
  %391 = vmatprep.subr.mxu0 0.0
  %392 = vmatpush1.msra.mxu0 0.0
  %393 = vmatprep.subr.mxu0 0.0
  %394 = vmatpush1.msra.mxu0 0.0
  %395 = vmatprep.subr.mxu0 0.0
  %396 = vmatpush1.msra.mxu0 0.0
  %397 = vmatprep.subr.mxu0 0.0
  %398 = vmatpush1.msra.mxu0 0.0
  %399 = vmatprep.subr.mxu0 0.0
  %400 = vmatpush1.msra.mxu0 0.0
  %401 = vmatprep.subr.mxu0 0.0
  %402 = vmatpush1.msra.mxu0 0.0
  %403 = vmatprep.subr.mxu0 0.0
  %404 = vmatpush1.msra.mxu0 0.0
  %405 = vmatprep.subr.mxu0 0.0
  %406 = vmatpush1.msra.mxu0 0.0
  %407 = vmatprep.subr.mxu0 0.0
  %408 = vmatpush1.msra.mxu0 0.0
  %409 = vmatprep.subr.mxu0 0.0
  %410 = vmatpush1.msra.mxu0 0.0
  %411 = vmatprep.subr.mxu0 0.0
  %412 = vmatpush1.msra.mxu0 0.0
  %413 = vmatprep.subr.mxu0 0.0
  %414 = vmatpush1.msra.mxu0 0.0
  %415 = vmatprep.subr.mxu0 0.0
  %416 = vmatpush1.msra.mxu0 0.0
  %417 = vmatprep.subr.mxu0 0.0
  %418 = vmatpush1.msra.mxu0 0.0
  %419 = vmatprep.subr.mxu0 0.0
  %420 = vmatpush1.msra.mxu0 0.0
  %421 = vmatprep.subr.mxu0 0.0
  %422 = vmatpush1.msra.mxu0 0.0
  %423 = vmatprep.subr.mxu0 0.0
  %424 = vmatpush1.msra.mxu0 0.0
  %425 = vmatprep.mubr.f32.mxu0 0.0
  %426 = vmatmul.mubr.f32.gmra.mrb[0].mxu0 %v356
  %v427 = vpop.f32.mrb[0].mxu0
  %v428 = vadd.f32 0.0, %v427
  %v429 = vpop.f32.mrb[0].mxu0
  %430 = vmatprep.mubr.f32.mxu0 0.0
  %431 = vmatmul.mubr.f32.gmra.mrb[0].mxu0 %v359
  %v432 = vpop.f32.mrb[0].mxu0
  %v433 = vadd.f32 0.0, %v432
  %v434 = vpop.f32.mrb[0].mxu0
  %435 = vdwg.mxu0
  %v436 = vadd.f32 %v344, %v428
  %v437 = vadd.f32 %v345, %v433
  %s438 = scalar_lea.vmem [#allocation2], 3
  %v439 = vld [vmem:[%s438] ss:$2 sm:$0xff]
  %s440 = scalar_lea.vmem [#allocation2], 27
  %v441 = vld [vmem:[%s440] ss:$2 sm:$0xff]
  %s442 = scalar_lea.vmem %s3, 96
  %v443 = vld [vmem:[%s442] sm:$0xff]
  %v444 = vld [vmem:[%s442 + $0x8] sm:$0xff]
  %v445 = vld [vmem:[%s442 + $0x10] sm:$0xff]
  %v446 = vld [vmem:[%s442 + $0x18] sm:$0xff]
  %v448 = vsel %vm141, %v439, 0
  %v451 = vsel %vm141, %v441, 0
  %453 = vmatprep.subr.mxu0 0.0
  %454 = vmatpush1.msra.mxu0 %v443
  %455 = vmatprep.subr.mxu0 0.0
  %456 = vmatpush1.msra.mxu0 %v444
  %457 = vmatprep.subr.mxu0 0.0
  %458 = vmatpush1.msra.mxu0 %v445
  %459 = vmatprep.subr.mxu0 0.0
  %460 = vmatpush1.msra.mxu0 %v446
  %461 = vmatprep.subr.mxu0 0.0
  %462 = vmatpush1.msra.mxu0 0.0
  %463 = vmatprep.subr.mxu0 0.0
  %464 = vmatpush1.msra.mxu0 0.0
  %465 = vmatprep.subr.mxu0 0.0
  %466 = vmatpush1.msra.mxu0 0.0
  %467 = vmatprep.subr.mxu0 0.0
  %468 = vmatpush1.msra.mxu0 0.0
  %469 = vmatprep.subr.mxu0 0.0
  %470 = vmatpush1.msra.mxu0 0.0
  %471 = vmatprep.subr.mxu0 0.0
  %472 = vmatpush1.msra.mxu0 0.0
  %473 = vmatprep.subr.mxu0 0.0
  %474 = vmatpush1.msra.mxu0 0.0
  %475 = vmatprep.subr.mxu0 0.0
  %476 = vmatpush1.msra.mxu0 0.0
  %477 = vmatprep.subr.mxu0 0.0
  %478 = vmatpush1.msra.mxu0 0.0
  %479 = vmatprep.subr.mxu0 0.0
  %480 = vmatpush1.msra.mxu0 0.0
  %481 = vmatprep.subr.mxu0 0.0
  %482 = vmatpush1.msra.mxu0 0.0
  %483 = vmatprep.subr.mxu0 0.0
  %484 = vmatpush1.msra.mxu0 0.0
  %485 = vmatprep.subr.mxu0 0.0
  %486 = vmatpush1.msra.mxu0 0.0
  %487 = vmatprep.subr.mxu0 0.0
  %488 = vmatpush1.msra.mxu0 0.0
  %489 = vmatprep.subr.mxu0 0.0
  %490 = vmatpush1.msra.mxu0 0.0
  %491 = vmatprep.subr.mxu0 0.0
  %492 = vmatpush1.msra.mxu0 0.0
  %493 = vmatprep.subr.mxu0 0.0
  %494 = vmatpush1.msra.mxu0 0.0
  %495 = vmatprep.subr.mxu0 0.0
  %496 = vmatpush1.msra.mxu0 0.0
  %497 = vmatprep.subr.mxu0 0.0
  %498 = vmatpush1.msra.mxu0 0.0
  %499 = vmatprep.subr.mxu0 0.0
  %500 = vmatpush1.msra.mxu0 0.0
  %501 = vmatprep.subr.mxu0 0.0
  %502 = vmatpush1.msra.mxu0 0.0
  %503 = vmatprep.subr.mxu0 0.0
  %504 = vmatpush1.msra.mxu0 0.0
  %505 = vmatprep.subr.mxu0 0.0
  %506 = vmatpush1.msra.mxu0 0.0
  %507 = vmatprep.subr.mxu0 0.0
  %508 = vmatpush1.msra.mxu0 0.0
  %509 = vmatprep.subr.mxu0 0.0
  %510 = vmatpush1.msra.mxu0 0.0
  %511 = vmatprep.subr.mxu0 0.0
  %512 = vmatpush1.msra.mxu0 0.0
  %513 = vmatprep.subr.mxu0 0.0
  %514 = vmatpush1.msra.mxu0 0.0
  %515 = vmatprep.subr.mxu0 0.0
  %516 = vmatpush1.msra.mxu0 0.0
  %517 = vmatprep.mubr.f32.mxu0 0.0
  %518 = vmatmul.mubr.f32.gmra.mrb[0].mxu0 %v448
  %v519 = vpop.f32.mrb[0].mxu0
  %v520 = vadd.f32 0.0, %v519
  %v521 = vpop.f32.mrb[0].mxu0
  %522 = vmatprep.mubr.f32.mxu0 0.0
  %523 = vmatmul.mubr.f32.gmra.mrb[0].mxu0 %v451
  %v524 = vpop.f32.mrb[0].mxu0
  %v525 = vadd.f32 0.0, %v524
  %v526 = vpop.f32.mrb[0].mxu0
  %527 = vdwg.mxu0
  %v528 = vadd.f32 %v436, %v520
  %v529 = vadd.f32 %v437, %v525
  %s530 = scalar_lea.vmem [#allocation2], 4
  %v531 = vld [vmem:[%s530] ss:$2 sm:$0xff]
  %s532 = scalar_lea.vmem [#allocation2], 28
  %v533 = vld [vmem:[%s532] ss:$2 sm:$0xff]
  %s534 = scalar_lea.vmem %s3, 128
  %v535 = vld [vmem:[%s534] sm:$0xff]
  %v536 = vld [vmem:[%s534 + $0x8] sm:$0xff]
  %v537 = vld [vmem:[%s534 + $0x10] sm:$0xff]
  %v538 = vld [vmem:[%s534 + $0x18] sm:$0xff]
  %v540 = vsel %vm141, %v531, 0
  %v543 = vsel %vm141, %v533, 0
  %545 = vmatprep.subr.mxu0 0.0
  %546 = vmatpush1.msra.mxu0 %v535
  %547 = vmatprep.subr.mxu0 0.0
  %548 = vmatpush1.msra.mxu0 %v536
  %549 = vmatprep.subr.mxu0 0.0
  %550 = vmatpush1.msra.mxu0 %v537
  %551 = vmatprep.subr.mxu0 0.0
  %552 = vmatpush1.msra.mxu0 %v538
  %553 = vmatprep.subr.mxu0 0.0
  %554 = vmatpush1.msra.mxu0 0.0
  %555 = vmatprep.subr.mxu0 0.0
  %556 = vmatpush1.msra.mxu0 0.0
  %557 = vmatprep.subr.mxu0 0.0
  %558 = vmatpush1.msra.mxu0 0.0
  %559 = vmatprep.subr.mxu0 0.0
  %560 = vmatpush1.msra.mxu0 0.0
  %561 = vmatprep.subr.mxu0 0.0
  %562 = vmatpush1.msra.mxu0 0.0
  %563 = vmatprep.subr.mxu0 0.0
  %564 = vmatpush1.msra.mxu0 0.0
  %565 = vmatprep.subr.mxu0 0.0
  %566 = vmatpush1.msra.mxu0 0.0
  %567 = vmatprep.subr.mxu0 0.0
  %568 = vmatpush1.msra.mxu0 0.0
  %569 = vmatprep.subr.mxu0 0.0
  %570 = vmatpush1.msra.mxu0 0.0
  %571 = vmatprep.subr.mxu0 0.0
  %572 = vmatpush1.msra.mxu0 0.0
  %573 = vmatprep.subr.mxu0 0.0
  %574 = vmatpush1.msra.mxu0 0.0
  %575 = vmatprep.subr.mxu0 0.0
  %576 = vmatpush1.msra.mxu0 0.0
  %577 = vmatprep.subr.mxu0 0.0
  %578 = vmatpush1.msra.mxu0 0.0
  %579 = vmatprep.subr.mxu0 0.0
  %580 = vmatpush1.msra.mxu0 0.0
  %581 = vmatprep.subr.mxu0 0.0
  %582 = vmatpush1.msra.mxu0 0.0
  %583 = vmatprep.subr.mxu0 0.0
  %584 = vmatpush1.msra.mxu0 0.0
  %585 = vmatprep.subr.mxu0 0.0
  %586 = vmatpush1.msra.mxu0 0.0
  %587 = vmatprep.subr.mxu0 0.0
  %588 = vmatpush1.msra.mxu0 0.0
  %589 = vmatprep.subr.mxu0 0.0
  %590 = vmatpush1.msra.mxu0 0.0
  %591 = vmatprep.subr.mxu0 0.0
  %592 = vmatpush1.msra.mxu0 0.0
  %593 = vmatprep.subr.mxu0 0.0
  %594 = vmatpush1.msra.mxu0 0.0
  %595 = vmatprep.subr.mxu0 0.0
  %596 = vmatpush1.msra.mxu0 0.0
  %597 = vmatprep.subr.mxu0 0.0
  %598 = vmatpush1.msra.mxu0 0.0
  %599 = vmatprep.subr.mxu0 0.0
  %600 = vmatpush1.msra.mxu0 0.0
  %601 = vmatprep.subr.mxu0 0.0
  %602 = vmatpush1.msra.mxu0 0.0
  %603 = vmatprep.subr.mxu0 0.0
  %604 = vmatpush1.msra.mxu0 0.0
  %605 = vmatprep.subr.mxu0 0.0
  %606 = vmatpush1.msra.mxu0 0.0
  %607 = vmatprep.subr.mxu0 0.0
  %608 = vmatpush1.msra.mxu0 0.0
  %609 = vmatprep.mubr.f32.mxu0 0.0
  %610 = vmatmul.mubr.f32.gmra.mrb[0].mxu0 %v540
  %v611 = vpop.f32.mrb[0].mxu0
  %v612 = vadd.f32 0.0, %v611
  %v613 = vpop.f32.mrb[0].mxu0
  %614 = vmatprep.mubr.f32.mxu0 0.0
  %615 = vmatmul.mubr.f32.gmra.mrb[0].mxu0 %v543
  %v616 = vpop.f32.mrb[0].mxu0
  %v617 = vadd.f32 0.0, %v616
  %v618 = vpop.f32.mrb[0].mxu0
  %619 = vdwg.mxu0
  %v620 = vadd.f32 %v528, %v612
  %v621 = vadd.f32 %v529, %v617
  %v622 = vmax.f32 %v620, 0.0
  %v623 = vmax.f32 %v621, 0.0
  %624 = vst [vmem:[#allocation3 + $0x3] sm:$0xff] %v622
  %625 = vst [vmem:[#allocation3 + $0x13] sm:$0xff] %v623
  %626 = vst [vmem:[#allocation3] sm:$0x1] %v622
  %627 = vst [vmem:[#allocation3 + $0x10] sm:$0x1] %v623
  %628 = vst [vmem:[#allocation3 + $0x4] sm:$0x80] %v622
  %629 = vst [vmem:[#allocation3 + $0x14] sm:$0x80] %v623
  %630 = vst [vmem:[#allocation3 + $0x1] sm:$0x1] %v622
  %631 = vst [vmem:[#allocation3 + $0x11] sm:$0x1] %v623
  %632 = vst [vmem:[#allocation3 + $0x5] sm:$0x80] %v622
  %633 = vst [vmem:[#allocation3 + $0x15] sm:$0x80] %v623
  %634 = vst [vmem:[#allocation3 + $0x2] sm:$0x1] %v622
  %635 = vst [vmem:[#allocation3 + $0x12] sm:$0x1] %v623
  %636 = vst [vmem:[#allocation3 + $0x6] sm:$0x80] %v622
  %637 = vst [vmem:[#allocation3 + $0x16] sm:$0x80] %v623
  %v638 = vld [vmem:[%s6] sm:$0x1f]
  %v640 = vlaneseq
  %v641 = vshrl.u32 %v640, 7
  %v642 = vsub.s32 0, %v641
  %v643 = vrot.slane %v638, %v642
  %v644 = vlaneseq
  %v645 = vshrl.u32 %v644, 7
  %v646 = vsub.s32 1, %v645
  %v647 = vrot.slane %v638, %v646
  %v648 = vlaneseq
  %v649 = vshrl.u32 %v648, 7
  %v650 = vsub.s32 2, %v649
  %v651 = vrot.slane %v638, %v650
  %v652 = vlaneseq
  %v653 = vshrl.u32 %v652, 7
  %v654 = vsub.s32 3, %v653
  %v655 = vrot.slane %v638, %v654
  %v656 = vlaneseq
  %v657 = vshrl.u32 %v656, 7
  %v658 = vsub.s32 4, %v657
  %v659 = vrot.slane %v638, %v658
  %v665 = vadd.f32 %v643, 0.0
  %v666 = vadd.f32 %v647, 0.0
  %v667 = vadd.f32 %v651, 0.0
  %v668 = vadd.f32 %v655, 0.0
  %v669 = vadd.f32 %v659, 0.0
  %v670 = vld [vmem:[#allocation3] ss:$3 sm:$0x7]
  %s671 = scalar_lea.vmem [#allocation3], 16
  %v672 = vld [vmem:[%s671] ss:$3 sm:$0x7]
  %v676 = vunpack.c.l.s4 1966171168
  %v677 = vunpack.c.0.s8 %v676
  %v678 = vlaneseq
  %v679 = vshrl.u32 %v678, 7
  %v680 = vsub.s32 %v677, %v679
  %v681 = vrot.slane %v670, %v680
  %v682 = vcombine.high %v681, %v681
  %v684 = vunpack.c.l.s4 1966171168
  %v685 = vunpack.c.0.s8 %v684
  %v686 = vlaneseq
  %v687 = vshrl.u32 %v686, 7
  %v688 = vsub.s32 %v685, %v687
  %v689 = vrot.slane %v681, %v688
  %v691 = vunpack.c.l.s4 1966171168
  %v692 = vunpack.c.0.s8 %v691
  %v693 = vlaneseq
  %v694 = vshrl.u32 %v693, 7
  %v695 = vsub.s32 %v692, %v694
  %v696 = vrot.slane %v682, %v695
  %v697 = vcombine.high %v689, %v689
  %v699 = vunpack.c.l.s4 1966171168
  %v700 = vunpack.c.0.s8 %v699
  %v701 = vlaneseq
  %v702 = vshrl.u32 %v701, 7
  %v703 = vsub.s32 %v700, %v702
  %v704 = vrot.slane %v672, %v703
  %v705 = vcombine.high %v704, %v704
  %v707 = vunpack.c.l.s4 1966171168
  %v708 = vunpack.c.0.s8 %v707
  %v709 = vlaneseq
  %v710 = vshrl.u32 %v709, 7
  %v711 = vsub.s32 %v708, %v710
  %v712 = vrot.slane %v704, %v711
  %v714 = vunpack.c.l.s4 1966171168
  %v715 = vunpack.c.0.s8 %v714
  %v716 = vlaneseq
  %v717 = vshrl.u32 %v716, 7
  %v718 = vsub.s32 %v715, %v717
  %v719 = vrot.slane %v705, %v718
  %v720 = vcombine.high %v712, %v712
  %v721 = vld [vmem:[%s5] sm:$0xff]
  %v722 = vld [vmem:[%s5 + $0x8] sm:$0xff]
  %v723 = vld [vmem:[%s5 + $0x10] sm:$0xff]
  %v724 = vld [vmem:[%s5 + $0x18] sm:$0xff]
  %v725 = vld [vmem:[%s5 + $0x20] sm:$0xff]
  %v726 = vld [vmem:[%s5 + $0x28] sm:$0xff]
  %v727 = vld [vmem:[%s5 + $0x30] sm:$0xff]
  %v728 = vld [vmem:[%s5 + $0x38] sm:$0xff]
  %v729 = vld [vmem:[%s5 + $0x40] sm:$0xff]
  %v730 = vld [vmem:[%s5 + $0x48] sm:$0xff]
  %v731 = vld [vmem:[%s5 + $0x50] sm:$0xff]
  %v732 = vld [vmem:[%s5 + $0x58] sm:$0xff]
  %v733 = vld [vmem:[%s5 + $0x60] sm:$0xff]
  %v734 = vld [vmem:[%s5 + $0x68] sm:$0xff]
  %v735 = vld [vmem:[%s5 + $0x70] sm:$0xff]
  %v736 = vld [vmem:[%s5 + $0x78] sm:$0xff]
  %v737 = vld [vmem:[%s5 + $0x80] sm:$0xff]
  %v738 = vld [vmem:[%s5 + $0x88] sm:$0xff]
  %v739 = vld [vmem:[%s5 + $0x90] sm:$0xff]
  %v740 = vld [vmem:[%s5 + $0x98] sm:$0xff]
  %v741 = vld [vmem:[%s5 + $0xa0] sm:$0xff]
  %v742 = vld [vmem:[%s5 + $0xa8] sm:$0xff]
  %v743 = vld [vmem:[%s5 + $0xb0] sm:$0xff]
  %v744 = vld [vmem:[%s5 + $0xb8] sm:$0xff]
  %v745 = vld [vmem:[%s5 + $0xc0] sm:$0xff]
  %v746 = vld [vmem:[%s5 + $0xc8] sm:$0xff]
  %v747 = vld [vmem:[%s5 + $0xd0] sm:$0xff]
  %v748 = vld [vmem:[%s5 + $0xd8] sm:$0xff]
  %v749 = vld [vmem:[%s5 + $0xe0] sm:$0xff]
  %v750 = vld [vmem:[%s5 + $0xe8] sm:$0xff]
  %v751 = vld [vmem:[%s5 + $0xf0] sm:$0xff]
  %v752 = vld [vmem:[%s5 + $0xf8] sm:$0xff]
  %v753 = vld [vmem:[%s5 + $0x100] sm:$0xff]
  %v754 = vld [vmem:[%s5 + $0x108] sm:$0xff]
  %v755 = vld [vmem:[%s5 + $0x110] sm:$0xff]
  %v756 = vld [vmem:[%s5 + $0x118] sm:$0xff]
  %v757 = vld [vmem:[%s5 + $0x120] sm:$0xff]
  %v758 = vld [vmem:[%s5 + $0x128] sm:$0xff]
  %v759 = vld [vmem:[%s5 + $0x130] sm:$0xff]
  %v760 = vld [vmem:[%s5 + $0x138] sm:$0xff]
  %v761 = vld [vmem:[%s5 + $0x140] sm:$0xff]
  %v762 = vld [vmem:[%s5 + $0x148] sm:$0xff]
  %v763 = vld [vmem:[%s5 + $0x150] sm:$0xff]
  %v764 = vld [vmem:[%s5 + $0x158] sm:$0xff]
  %v765 = vld [vmem:[%s5 + $0x160] sm:$0xff]
  %v766 = vld [vmem:[%s5 + $0x168] sm:$0xff]
  %v767 = vld [vmem:[%s5 + $0x170] sm:$0xff]
  %v768 = vld [vmem:[%s5 + $0x178] sm:$0xff]
  %v769 = vld [vmem:[%s5 + $0x180] sm:$0xff]
  %v770 = vld [vmem:[%s5 + $0x188] sm:$0xff]
  %v771 = vld [vmem:[%s5 + $0x190] sm:$0xff]
  %v772 = vld [vmem:[%s5 + $0x198] sm:$0xff]
  %v773 = vld [vmem:[%s5 + $0x1a0] sm:$0xff]
  %v774 = vld [vmem:[%s5 + $0x1a8] sm:$0xff]
  %v775 = vld [vmem:[%s5 + $0x1b0] sm:$0xff]
  %v776 = vld [vmem:[%s5 + $0x1b8] sm:$0xff]
  %v777 = vld [vmem:[%s5 + $0x1c0] sm:$0xff]
  %v778 = vld [vmem:[%s5 + $0x1c8] sm:$0xff]
  %v779 = vld [vmem:[%s5 + $0x1d0] sm:$0xff]
  %v780 = vld [vmem:[%s5 + $0x1d8] sm:$0xff]
  %v781 = vld [vmem:[%s5 + $0x1e0] sm:$0xff]
  %v782 = vld [vmem:[%s5 + $0x1e8] sm:$0xff]
  %v783 = vld [vmem:[%s5 + $0x1f0] sm:$0xff]
  %v784 = vld [vmem:[%s5 + $0x1f8] sm:$0xff]
  %v785 = vld [vmem:[%s5 + $0x200] sm:$0xff]
  %v786 = vld [vmem:[%s5 + $0x208] sm:$0xff]
  %v787 = vld [vmem:[%s5 + $0x210] sm:$0xff]
  %v788 = vld [vmem:[%s5 + $0x218] sm:$0xff]
  %v789 = vld [vmem:[%s5 + $0x220] sm:$0xff]
  %v790 = vld [vmem:[%s5 + $0x228] sm:$0xff]
  %v791 = vld [vmem:[%s5 + $0x230] sm:$0xff]
  %v792 = vld [vmem:[%s5 + $0x238] sm:$0xff]
  %v793 = vld [vmem:[%s5 + $0x240] sm:$0xff]
  %v794 = vld [vmem:[%s5 + $0x248] sm:$0xff]
  %v795 = vld [vmem:[%s5 + $0x250] sm:$0xff]
  %v796 = vld [vmem:[%s5 + $0x258] sm:$0xff]
  %v797 = vld [vmem:[%s5 + $0x260] sm:$0xff]
  %v798 = vld [vmem:[%s5 + $0x268] sm:$0xff]
  %v799 = vld [vmem:[%s5 + $0x270] sm:$0xff]
  %v800 = vld [vmem:[%s5 + $0x278] sm:$0xff]
  %v801 = vcombine.low %v689, %v696
  %v802 = vcombine.low %v697, %v712
  %v803 = vcombine.low %v719, %v720
  %v805 = vunpack.c.l.s4 1966171168
  %v806 = vunpack.c.0.s8 %v805
  %v807 = vlaneseq
  %v808 = vshrl.u32 %v807, 7
  %v809 = vsub.s32 %v806, %v808
  %v810 = vrot.slane %v801, %v809
  %v812 = vunpack.c.l.s4 1966171168
  %v813 = vunpack.c.0.s8 %v812
  %v814 = vlaneseq
  %v815 = vshrl.u32 %v814, 7
  %v816 = vsub.s32 %v813, %v815
  %v817 = vrot.slane %v802, %v816
  %v819 = vunpack.c.l.s4 1966171168
  %v820 = vunpack.c.0.s8 %v819
  %v821 = vlaneseq
  %v822 = vshrl.u32 %v821, 7
  %v823 = vsub.s32 %v820, %v822
  %v824 = vrot.slane %v803, %v823
  %v825 = vcombine.low %v810, %v817
  %v827 = vunpack.c.l.s4 1966171168
  %v828 = vunpack.c.0.s8 %v827
  %v829 = vlaneseq
  %v830 = vshrl.u32 %v829, 7
  %v831 = vsub.s32 %v828, %v830
  %v832 = vrot.slane %v825, %v831
  %v834 = vunpack.c.l.s4 1966171168
  %v835 = vunpack.c.0.s8 %v834
  %v836 = vlaneseq
  %v837 = vshrl.u32 %v836, 7
  %v838 = vsub.s32 %v835, %v837
  %v839 = vrot.slane %v824, %v838
  %v840 = vcombine.low %v832, %v839
  %842 = vmatprep.subr.mxu0 %v722
  %843 = vmatpush1.msra.mxu0 %v721
  %844 = vmatprep.subr.mxu0 %v727
  %845 = vmatpush1.msra.mxu0 %v726
  %846 = vmatprep.subr.mxu0 %v732
  %847 = vmatpush1.msra.mxu0 %v731
  %848 = vmatprep.subr.mxu0 %v737
  %849 = vmatpush1.msra.mxu0 %v736
  %850 = vmatprep.subr.mxu0 %v742
  %851 = vmatpush1.msra.mxu0 %v741
  %852 = vmatprep.subr.mxu0 %v747
  %853 = vmatpush1.msra.mxu0 %v746
  %854 = vmatprep.subr.mxu0 %v752
  %855 = vmatpush1.msra.mxu0 %v751
  %856 = vmatprep.subr.mxu0 %v757
  %857 = vmatpush1.msra.mxu0 %v756
  %858 = vmatprep.subr.mxu0 %v762
  %859 = vmatpush1.msra.mxu0 %v761
  %860 = vmatprep.subr.mxu0 %v767
  %861 = vmatpush1.msra.mxu0 %v766
  %862 = vmatprep.subr.mxu0 %v772
  %863 = vmatpush1.msra.mxu0 %v771
  %864 = vmatprep.subr.mxu0 %v777
  %865 = vmatpush1.msra.mxu0 %v776
  %866 = vmatprep.subr.mxu0 %v782
  %867 = vmatpush1.msra.mxu0 %v781
  %868 = vmatprep.subr.mxu0 %v787
  %869 = vmatpush1.msra.mxu0 %v786
  %870 = vmatprep.subr.mxu0 %v792
  %871 = vmatpush1.msra.mxu0 %v791
  %872 = vmatprep.subr.mxu0 %v797
  %873 = vmatpush1.msra.mxu0 %v796
  %874 = vmatprep.subr.mxu0 0.0
  %875 = vmatpush1.msra.mxu0 0.0
  %876 = vmatprep.subr.mxu0 0.0
  %877 = vmatpush1.msra.mxu0 0.0
  %878 = vmatprep.subr.mxu0 0.0
  %879 = vmatpush1.msra.mxu0 0.0
  %880 = vmatprep.subr.mxu0 0.0
  %881 = vmatpush1.msra.mxu0 0.0
  %882 = vmatprep.subr.mxu0 0.0
  %883 = vmatpush1.msra.mxu0 0.0
  %884 = vmatprep.subr.mxu0 0.0
  %885 = vmatpush1.msra.mxu0 0.0
  %886 = vmatprep.subr.mxu0 0.0
  %887 = vmatpush1.msra.mxu0 0.0
  %888 = vmatprep.subr.mxu0 0.0
  %889 = vmatpush1.msra.mxu0 0.0
  %890 = vmatprep.subr.mxu0 0.0
  %891 = vmatpush1.msra.mxu0 0.0
  %892 = vmatprep.subr.mxu0 0.0
  %893 = vmatpush1.msra.mxu0 0.0
  %894 = vmatprep.subr.mxu0 0.0
  %895 = vmatpush1.msra.mxu0 0.0
  %896 = vmatprep.subr.mxu0 0.0
  %897 = vmatpush1.msra.mxu0 0.0
  %898 = vmatprep.subr.mxu0 0.0
  %899 = vmatpush1.msra.mxu0 0.0
  %900 = vmatprep.subr.mxu0 0.0
  %901 = vmatpush1.msra.mxu0 0.0
  %902 = vmatprep.subr.mxu0 0.0
  %903 = vmatpush1.msra.mxu0 0.0
  %904 = vmatprep.subr.mxu0 0.0
  %905 = vmatpush1.msra.mxu0 0.0
  %906 = vmatprep.mubr.f32.mxu0 0.0
  %907 = vmatmul.mubr.f32.gmra.mrb[0].mxu0 %v840
  %v908 = vpop.f32.mrb[0].mxu0
  %v909 = vadd.f32 0.0, %v908
  %v910 = vpop.f32.mrb[0].mxu0
  %v911 = vadd.f32 0.0, %v910
  %912 = vdwg.mxu0
  %913 = vmatprep.subr.mxu0 %v724
  %914 = vmatpush1.msra.mxu0 %v723
  %915 = vmatprep.subr.mxu0 %v729
  %916 = vmatpush1.msra.mxu0 %v728
  %917 = vmatprep.subr.mxu0 %v734
  %918 = vmatpush1.msra.mxu0 %v733
  %919 = vmatprep.subr.mxu0 %v739
  %920 = vmatpush1.msra.mxu0 %v738
  %921 = vmatprep.subr.mxu0 %v744
  %922 = vmatpush1.msra.mxu0 %v743
  %923 = vmatprep.subr.mxu0 %v749
  %924 = vmatpush1.msra.mxu0 %v748
  %925 = vmatprep.subr.mxu0 %v754
  %926 = vmatpush1.msra.mxu0 %v753
  %927 = vmatprep.subr.mxu0 %v759
  %928 = vmatpush1.msra.mxu0 %v758
  %929 = vmatprep.subr.mxu0 %v764
  %930 = vmatpush1.msra.mxu0 %v763
  %931 = vmatprep.subr.mxu0 %v769
  %932 = vmatpush1.msra.mxu0 %v768
  %933 = vmatprep.subr.mxu0 %v774
  %934 = vmatpush1.msra.mxu0 %v773
  %935 = vmatprep.subr.mxu0 %v779
  %936 = vmatpush1.msra.mxu0 %v778
  %937 = vmatprep.subr.mxu0 %v784
  %938 = vmatpush1.msra.mxu0 %v783
  %939 = vmatprep.subr.mxu0 %v789
  %940 = vmatpush1.msra.mxu0 %v788
  %941 = vmatprep.subr.mxu0 %v794
  %942 = vmatpush1.msra.mxu0 %v793
  %943 = vmatprep.subr.mxu0 %v799
  %944 = vmatpush1.msra.mxu0 %v798
  %945 = vmatprep.subr.mxu0 0.0
  %946 = vmatpush1.msra.mxu0 0.0
  %947 = vmatprep.subr.mxu0 0.0
  %948 = vmatpush1.msra.mxu0 0.0
  %949 = vmatprep.subr.mxu0 0.0
  %950 = vmatpush1.msra.mxu0 0.0
  %951 = vmatprep.subr.mxu0 0.0
  %952 = vmatpush1.msra.mxu0 0.0
  %953 = vmatprep.subr.mxu0 0.0
  %954 = vmatpush1.msra.mxu0 0.0
  %955 = vmatprep.subr.mxu0 0.0
  %956 = vmatpush1.msra.mxu0 0.0
  %957 = vmatprep.subr.mxu0 0.0
  %958 = vmatpush1.msra.mxu0 0.0
  %959 = vmatprep.subr.mxu0 0.0
  %960 = vmatpush1.msra.mxu0 0.0
  %961 = vmatprep.subr.mxu0 0.0
  %962 = vmatpush1.msra.mxu0 0.0
  %963 = vmatprep.subr.mxu0 0.0
  %964 = vmatpush1.msra.mxu0 0.0
  %965 = vmatprep.subr.mxu0 0.0
  %966 = vmatpush1.msra.mxu0 0.0
  %967 = vmatprep.subr.mxu0 0.0
  %968 = vmatpush1.msra.mxu0 0.0
  %969 = vmatprep.subr.mxu0 0.0
  %970 = vmatpush1.msra.mxu0 0.0
  %971 = vmatprep.subr.mxu0 0.0
  %972 = vmatpush1.msra.mxu0 0.0
  %973 = vmatprep.subr.mxu0 0.0
  %974 = vmatpush1.msra.mxu0 0.0
  %975 = vmatprep.subr.mxu0 0.0
  %976 = vmatpush1.msra.mxu0 0.0
  %977 = vmatprep.mubr.f32.mxu0 0.0
  %978 = vmatmul.mubr.f32.gmra.mrb[0].mxu0 %v840
  %v979 = vpop.f32.mrb[0].mxu0
  %v980 = vadd.f32 0.0, %v979
  %v981 = vpop.f32.mrb[0].mxu0
  %v982 = vadd.f32 0.0, %v981
  %983 = vdwg.mxu0
  %984 = vmatprep.subr.mxu0 0.0
  %985 = vmatpush1.msra.mxu0 %v725
  %986 = vmatprep.subr.mxu0 0.0
  %987 = vmatpush1.msra.mxu0 %v730
  %988 = vmatprep.subr.mxu0 0.0
  %989 = vmatpush1.msra.mxu0 %v735
  %990 = vmatprep.subr.mxu0 0.0
  %991 = vmatpush1.msra.mxu0 %v740
  %992 = vmatprep.subr.mxu0 0.0
  %993 = vmatpush1.msra.mxu0 %v745
  %994 = vmatprep.subr.mxu0 0.0
  %995 = vmatpush1.msra.mxu0 %v750
  %996 = vmatprep.subr.mxu0 0.0
  %997 = vmatpush1.msra.mxu0 %v755
  %998 = vmatprep.subr.mxu0 0.0
  %999 = vmatpush1.msra.mxu0 %v760
  %1000 = vmatprep.subr.mxu0 0.0
  %1001 = vmatpush1.msra.mxu0 %v765
  %1002 = vmatprep.subr.mxu0 0.0
  %1003 = vmatpush1.msra.mxu0 %v770
  %1004 = vmatprep.subr.mxu0 0.0
  %1005 = vmatpush1.msra.mxu0 %v775
  %1006 = vmatprep.subr.mxu0 0.0
  %1007 = vmatpush1.msra.mxu0 %v780
  %1008 = vmatprep.subr.mxu0 0.0
  %1009 = vmatpush1.msra.mxu0 %v785
  %1010 = vmatprep.subr.mxu0 0.0
  %1011 = vmatpush1.msra.mxu0 %v790
  %1012 = vmatprep.subr.mxu0 0.0
  %1013 = vmatpush1.msra.mxu0 %v795
  %1014 = vmatprep.subr.mxu0 0.0
  %1015 = vmatpush1.msra.mxu0 %v800
  %1016 = vmatprep.subr.mxu0 0.0
  %1017 = vmatpush1.msra.mxu0 0.0
  %1018 = vmatprep.subr.mxu0 0.0
  %1019 = vmatpush1.msra.mxu0 0.0
  %1020 = vmatprep.subr.mxu0 0.0
  %1021 = vmatpush1.msra.mxu0 0.0
  %1022 = vmatprep.subr.mxu0 0.0
  %1023 = vmatpush1.msra.mxu0 0.0
  %1024 = vmatprep.subr.mxu0 0.0
  %1025 = vmatpush1.msra.mxu0 0.0
  %1026 = vmatprep.subr.mxu0 0.0
  %1027 = vmatpush1.msra.mxu0 0.0
  %1028 = vmatprep.subr.mxu0 0.0
  %1029 = vmatpush1.msra.mxu0 0.0
  %1030 = vmatprep.subr.mxu0 0.0
  %1031 = vmatpush1.msra.mxu0 0.0
  %1032 = vmatprep.subr.mxu0 0.0
  %1033 = vmatpush1.msra.mxu0 0.0
  %1034 = vmatprep.subr.mxu0 0.0
  %1035 = vmatpush1.msra.mxu0 0.0
  %1036 = vmatprep.subr.mxu0 0.0
  %1037 = vmatpush1.msra.mxu0 0.0
  %1038 = vmatprep.subr.mxu0 0.0
  %1039 = vmatpush1.msra.mxu0 0.0
  %1040 = vmatprep.subr.mxu0 0.0
  %1041 = vmatpush1.msra.mxu0 0.0
  %1042 = vmatprep.subr.mxu0 0.0
  %1043 = vmatpush1.msra.mxu0 0.0
  %1044 = vmatprep.subr.mxu0 0.0
  %1045 = vmatpush1.msra.mxu0 0.0
  %1046 = vmatprep.subr.mxu0 0.0
  %1047 = vmatpush1.msra.mxu0 0.0
  %1048 = vmatprep.mubr.f32.mxu0 0.0
  %1049 = vmatmul.mubr.f32.gmra.mrb[0].mxu0 %v840
  %v1050 = vpop.f32.mrb[0].mxu0
  %v1051 = vadd.f32 0.0, %v1050
  %v1052 = vpop.f32.mrb[0].mxu0
  %1053 = vdwg.mxu0
  %v1054 = vadd.f32 %v665, %v909
  %v1055 = vadd.f32 %v666, %v911
  %v1056 = vadd.f32 %v667, %v980
  %v1057 = vadd.f32 %v668, %v982
  %v1058 = vadd.f32 %v669, %v1051
  %s1059 = scalar_lea.vmem [#allocation3], 1
  %v1060 = vld [vmem:[%s1059] ss:$3 sm:$0x7]
  %s1061 = scalar_lea.vmem [#allocation3], 17
  %v1062 = vld [vmem:[%s1061] ss:$3 sm:$0x7]
  %v1066 = vunpack.c.l.s4 1966171168
  %v1067 = vunpack.c.0.s8 %v1066
  %v1068 = vlaneseq
  %v1069 = vshrl.u32 %v1068, 7
  %v1070 = vsub.s32 %v1067, %v1069
  %v1071 = vrot.slane %v1060, %v1070
  %v1072 = vcombine.high %v1071, %v1071
  %v1074 = vunpack.c.l.s4 1966171168
  %v1075 = vunpack.c.0.s8 %v1074
  %v1076 = vlaneseq
  %v1077 = vshrl.u32 %v1076, 7
  %v1078 = vsub.s32 %v1075, %v1077
  %v1079 = vrot.slane %v1071, %v1078
  %v1081 = vunpack.c.l.s4 1966171168
  %v1082 = vunpack.c.0.s8 %v1081
  %v1083 = vlaneseq
  %v1084 = vshrl.u32 %v1083, 7
  %v1085 = vsub.s32 %v1082, %v1084
  %v1086 = vrot.slane %v1072, %v1085
  %v1087 = vcombine.high %v1079, %v1079
  %v1089 = vunpack.c.l.s4 1966171168
  %v1090 = vunpack.c.0.s8 %v1089
  %v1091 = vlaneseq
  %v1092 = vshrl.u32 %v1091, 7
  %v1093 = vsub.s32 %v1090, %v1092
  %v1094 = vrot.slane %v1062, %v1093
  %v1095 = vcombine.high %v1094, %v1094
  %v1097 = vunpack.c.l.s4 1966171168
  %v1098 = vunpack.c.0.s8 %v1097
  %v1099 = vlaneseq
  %v1100 = vshrl.u32 %v1099, 7
  %v1101 = vsub.s32 %v1098, %v1100
  %v1102 = vrot.slane %v1094, %v1101
  %v1104 = vunpack.c.l.s4 1966171168
  %v1105 = vunpack.c.0.s8 %v1104
  %v1106 = vlaneseq
  %v1107 = vshrl.u32 %v1106, 7
  %v1108 = vsub.s32 %v1105, %v1107
  %v1109 = vrot.slane %v1095, %v1108
  %v1110 = vcombine.high %v1102, %v1102
  %s1111 = scalar_lea.vmem %s5, 640
  %v1112 = vld [vmem:[%s1111] sm:$0xff]
  %v1113 = vld [vmem:[%s1111 + $0x8] sm:$0xff]
  %v1114 = vld [vmem:[%s1111 + $0x10] sm:$0xff]
  %v1115 = vld [vmem:[%s1111 + $0x18] sm:$0xff]
  %v1116 = vld [vmem:[%s1111 + $0x20] sm:$0xff]
  %v1117 = vld [vmem:[%s1111 + $0x28] sm:$0xff]
  %v1118 = vld [vmem:[%s1111 + $0x30] sm:$0xff]
  %v1119 = vld [vmem:[%s1111 + $0x38] sm:$0xff]
  %v1120 = vld [vmem:[%s1111 + $0x40] sm:$0xff]
  %v1121 = vld [vmem:[%s1111 + $0x48] sm:$0xff]
  %v1122 = vld [vmem:[%s1111 + $0x50] sm:$0xff]
  %v1123 = vld [vmem:[%s1111 + $0x58] sm:$0xff]
  %v1124 = vld [vmem:[%s1111 + $0x60] sm:$0xff]
  %v1125 = vld [vmem:[%s1111 + $0x68] sm:$0xff]
  %v1126 = vld [vmem:[%s1111 + $0x70] sm:$0xff]
  %v1127 = vld [vmem:[%s1111 + $0x78] sm:$0xff]
  %v1128 = vld [vmem:[%s1111 + $0x80] sm:$0xff]
  %v1129 = vld [vmem:[%s1111 + $0x88] sm:$0xff]
  %v1130 = vld [vmem:[%s1111 + $0x90] sm:$0xff]
  %v1131 = vld [vmem:[%s1111 + $0x98] sm:$0xff]
  %v1132 = vld [vmem:[%s1111 + $0xa0] sm:$0xff]
  %v1133 = vld [vmem:[%s1111 + $0xa8] sm:$0xff]
  %v1134 = vld [vmem:[%s1111 + $0xb0] sm:$0xff]
  %v1135 = vld [vmem:[%s1111 + $0xb8] sm:$0xff]
  %v1136 = vld [vmem:[%s1111 + $0xc0] sm:$0xff]
  %v1137 = vld [vmem:[%s1111 + $0xc8] sm:$0xff]
  %v1138 = vld [vmem:[%s1111 + $0xd0] sm:$0xff]
  %v1139 = vld [vmem:[%s1111 + $0xd8] sm:$0xff]
  %v1140 = vld [vmem:[%s1111 + $0xe0] sm:$0xff]
  %v1141 = vld [vmem:[%s1111 + $0xe8] sm:$0xff]
  %v1142 = vld [vmem:[%s1111 + $0xf0] sm:$0xff]
  %v1143 = vld [vmem:[%s1111 + $0xf8] sm:$0xff]
  %v1144 = vld [vmem:[%s1111 + $0x100] sm:$0xff]
  %v1145 = vld [vmem:[%s1111 + $0x108] sm:$0xff]
  %v1146 = vld [vmem:[%s1111 + $0x110] sm:$0xff]
  %v1147 = vld [vmem:[%s1111 + $0x118] sm:$0xff]
  %v1148 = vld [vmem:[%s1111 + $0x120] sm:$0xff]
  %v1149 = vld [vmem:[%s1111 + $0x128] sm:$0xff]
  %v1150 = vld [vmem:[%s1111 + $0x130] sm:$0xff]
  %v1151 = vld [vmem:[%s1111 + $0x138] sm:$0xff]
  %v1152 = vld [vmem:[%s1111 + $0x140] sm:$0xff]
  %v1153 = vld [vmem:[%s1111 + $0x148] sm:$0xff]
  %v1154 = vld [vmem:[%s1111 + $0x150] sm:$0xff]
  %v1155 = vld [vmem:[%s1111 + $0x158] sm:$0xff]
  %v1156 = vld [vmem:[%s1111 + $0x160] sm:$0xff]
  %v1157 = vld [vmem:[%s1111 + $0x168] sm:$0xff]
  %v1158 = vld [vmem:[%s1111 + $0x170] sm:$0xff]
  %v1159 = vld [vmem:[%s1111 + $0x178] sm:$0xff]
  %v1160 = vld [vmem:[%s1111 + $0x180] sm:$0xff]
  %v1161 = vld [vmem:[%s1111 + $0x188] sm:$0xff]
  %v1162 = vld [vmem:[%s1111 + $0x190] sm:$0xff]
  %v1163 = vld [vmem:[%s1111 + $0x198] sm:$0xff]
  %v1164 = vld [vmem:[%s1111 + $0x1a0] sm:$0xff]
  %v1165 = vld [vmem:[%s1111 + $0x1a8] sm:$0xff]
  %v1166 = vld [vmem:[%s1111 + $0x1b0] sm:$0xff]
  %v1167 = vld [vmem:[%s1111 + $0x1b8] sm:$0xff]
  %v1168 = vld [vmem:[%s1111 + $0x1c0] sm:$0xff]
  %v1169 = vld [vmem:[%s1111 + $0x1c8] sm:$0xff]
  %v1170 = vld [vmem:[%s1111 + $0x1d0] sm:$0xff]
  %v1171 = vld [vmem:[%s1111 + $0x1d8] sm:$0xff]
  %v1172 = vld [vmem:[%s1111 + $0x1e0] sm:$0xff]
  %v1173 = vld [vmem:[%s1111 + $0x1e8] sm:$0xff]
  %v1174 = vld [vmem:[%s1111 + $0x1f0] sm:$0xff]
  %v1175 = vld [vmem:[%s1111 + $0x1f8] sm:$0xff]
  %v1176 = vld [vmem:[%s1111 + $0x200] sm:$0xff]
  %v1177 = vld [vmem:[%s1111 + $0x208] sm:$0xff]
  %v1178 = vld [vmem:[%s1111 + $0x210] sm:$0xff]
  %v1179 = vld [vmem:[%s1111 + $0x218] sm:$0xff]
  %v1180 = vld [vmem:[%s1111 + $0x220] sm:$0xff]
  %v1181 = vld [vmem:[%s1111 + $0x228] sm:$0xff]
  %v1182 = vld [vmem:[%s1111 + $0x230] sm:$0xff]
  %v1183 = vld [vmem:[%s1111 + $0x238] sm:$0xff]
  %v1184 = vld [vmem:[%s1111 + $0x240] sm:$0xff]
  %v1185 = vld [vmem:[%s1111 + $0x248] sm:$0xff]
  %v1186 = vld [vmem:[%s1111 + $0x250] sm:$0xff]
  %v1187 = vld [vmem:[%s1111 + $0x258] sm:$0xff]
  %v1188 = vld [vmem:[%s1111 + $0x260] sm:$0xff]
  %v1189 = vld [vmem:[%s1111 + $0x268] sm:$0xff]
  %v1190 = vld [vmem:[%s1111 + $0x270] sm:$0xff]
  %v1191 = vld [vmem:[%s1111 + $0x278] sm:$0xff]
  %v1192 = vcombine.low %v1079, %v1086
  %v1193 = vcombine.low %v1087, %v1102
  %v1194 = vcombine.low %v1109, %v1110
  %v1196 = vunpack.c.l.s4 1966171168
  %v1197 = vunpack.c.0.s8 %v1196
  %v1198 = vlaneseq
  %v1199 = vshrl.u32 %v1198, 7
  %v1200 = vsub.s32 %v1197, %v1199
  %v1201 = vrot.slane %v1192, %v1200
  %v1203 = vunpack.c.l.s4 1966171168
  %v1204 = vunpack.c.0.s8 %v1203
  %v1205 = vlaneseq
  %v1206 = vshrl.u32 %v1205, 7
  %v1207 = vsub.s32 %v1204, %v1206
  %v1208 = vrot.slane %v1193, %v1207
  %v1210 = vunpack.c.l.s4 1966171168
  %v1211 = vunpack.c.0.s8 %v1210
  %v1212 = vlaneseq
  %v1213 = vshrl.u32 %v1212, 7
  %v1214 = vsub.s32 %v1211, %v1213
  %v1215 = vrot.slane %v1194, %v1214
  %v1216 = vcombine.low %v1201, %v1208
  %v1218 = vunpack.c.l.s4 1966171168
  %v1219 = vunpack.c.0.s8 %v1218
  %v1220 = vlaneseq
  %v1221 = vshrl.u32 %v1220, 7
  %v1222 = vsub.s32 %v1219, %v1221
  %v1223 = vrot.slane %v1216, %v1222
  %v1225 = vunpack.c.l.s4 1966171168
  %v1226 = vunpack.c.0.s8 %v1225
  %v1227 = vlaneseq
  %v1228 = vshrl.u32 %v1227, 7
  %v1229 = vsub.s32 %v1226, %v1228
  %v1230 = vrot.slane %v1215, %v1229
  %v1231 = vcombine.low %v1223, %v1230
  %1233 = vmatprep.subr.mxu0 %v1113
  %1234 = vmatpush1.msra.mxu0 %v1112
  %1235 = vmatprep.subr.mxu0 %v1118
  %1236 = vmatpush1.msra.mxu0 %v1117
  %1237 = vmatprep.subr.mxu0 %v1123
  %1238 = vmatpush1.msra.mxu0 %v1122
  %1239 = vmatprep.subr.mxu0 %v1128
  %1240 = vmatpush1.msra.mxu0 %v1127
  %1241 = vmatprep.subr.mxu0 %v1133
  %1242 = vmatpush1.msra.mxu0 %v1132
  %1243 = vmatprep.subr.mxu0 %v1138
  %1244 = vmatpush1.msra.mxu0 %v1137
  %1245 = vmatprep.subr.mxu0 %v1143
  %1246 = vmatpush1.msra.mxu0 %v1142
  %1247 = vmatprep.subr.mxu0 %v1148
  %1248 = vmatpush1.msra.mxu0 %v1147
  %1249 = vmatprep.subr.mxu0 %v1153
  %1250 = vmatpush1.msra.mxu0 %v1152
  %1251 = vmatprep.subr.mxu0 %v1158
  %1252 = vmatpush1.msra.mxu0 %v1157
  %1253 = vmatprep.subr.mxu0 %v1163
  %1254 = vmatpush1.msra.mxu0 %v1162
  %1255 = vmatprep.subr.mxu0 %v1168
  %1256 = vmatpush1.msra.mxu0 %v1167
  %1257 = vmatprep.subr.mxu0 %v1173
  %1258 = vmatpush1.msra.mxu0 %v1172
  %1259 = vmatprep.subr.mxu0 %v1178
  %1260 = vmatpush1.msra.mxu0 %v1177
  %1261 = vmatprep.subr.mxu0 %v1183
  %1262 = vmatpush1.msra.mxu0 %v1182
  %1263 = vmatprep.subr.mxu0 %v1188
  %1264 = vmatpush1.msra.mxu0 %v1187
  %1265 = vmatprep.subr.mxu0 0.0
  %1266 = vmatpush1.msra.mxu0 0.0
  %1267 = vmatprep.subr.mxu0 0.0
  %1268 = vmatpush1.msra.mxu0 0.0
  %1269 = vmatprep.subr.mxu0 0.0
  %1270 = vmatpush1.msra.mxu0 0.0
  %1271 = vmatprep.subr.mxu0 0.0
  %1272 = vmatpush1.msra.mxu0 0.0
  %1273 = vmatprep.subr.mxu0 0.0
  %1274 = vmatpush1.msra.mxu0 0.0
  %1275 = vmatprep.subr.mxu0 0.0
  %1276 = vmatpush1.msra.mxu0 0.0
  %1277 = vmatprep.subr.mxu0 0.0
  %1278 = vmatpush1.msra.mxu0 0.0
  %1279 = vmatprep.subr.mxu0 0.0
  %1280 = vmatpush1.msra.mxu0 0.0
  %1281 = vmatprep.subr.mxu0 0.0
  %1282 = vmatpush1.msra.mxu0 0.0
  %1283 = vmatprep.subr.mxu0 0.0
  %1284 = vmatpush1.msra.mxu0 0.0
  %1285 = vmatprep.subr.mxu0 0.0
  %1286 = vmatpush1.msra.mxu0 0.0
  %1287 = vmatprep.subr.mxu0 0.0
  %1288 = vmatpush1.msra.mxu0 0.0
  %1289 = vmatprep.subr.mxu0 0.0
  %1290 = vmatpush1.msra.mxu0 0.0
  %1291 = vmatprep.subr.mxu0 0.0
  %1292 = vmatpush1.msra.mxu0 0.0
  %1293 = vmatprep.subr.mxu0 0.0
  %1294 = vmatpush1.msra.mxu0 0.0
  %1295 = vmatprep.subr.mxu0 0.0
  %1296 = vmatpush1.msra.mxu0 0.0
  %1297 = vmatprep.mubr.f32.mxu0 0.0
  %1298 = vmatmul.mubr.f32.gmra.mrb[0].mxu0 %v1231
  %v1299 = vpop.f32.mrb[0].mxu0
  %v1300 = vadd.f32 0.0, %v1299
  %v1301 = vpop.f32.mrb[0].mxu0
  %v1302 = vadd.f32 0.0, %v1301
  %1303 = vdwg.mxu0
  %1304 = vmatprep.subr.mxu0 %v1115
  %1305 = vmatpush1.msra.mxu0 %v1114
  %1306 = vmatprep.subr.mxu0 %v1120
  %1307 = vmatpush1.msra.mxu0 %v1119
  %1308 = vmatprep.subr.mxu0 %v1125
  %1309 = vmatpush1.msra.mxu0 %v1124
  %1310 = vmatprep.subr.mxu0 %v1130
  %1311 = vmatpush1.msra.mxu0 %v1129
  %1312 = vmatprep.subr.mxu0 %v1135
  %1313 = vmatpush1.msra.mxu0 %v1134
  %1314 = vmatprep.subr.mxu0 %v1140
  %1315 = vmatpush1.msra.mxu0 %v1139
  %1316 = vmatprep.subr.mxu0 %v1145
  %1317 = vmatpush1.msra.mxu0 %v1144
  %1318 = vmatprep.subr.mxu0 %v1150
  %1319 = vmatpush1.msra.mxu0 %v1149
  %1320 = vmatprep.subr.mxu0 %v1155
  %1321 = vmatpush1.msra.mxu0 %v1154
  %1322 = vmatprep.subr.mxu0 %v1160
  %1323 = vmatpush1.msra.mxu0 %v1159
  %1324 = vmatprep.subr.mxu0 %v1165
  %1325 = vmatpush1.msra.mxu0 %v1164
  %1326 = vmatprep.subr.mxu0 %v1170
  %1327 = vmatpush1.msra.mxu0 %v1169
  %1328 = vmatprep.subr.mxu0 %v1175
  %1329 = vmatpush1.msra.mxu0 %v1174
  %1330 = vmatprep.subr.mxu0 %v1180
  %1331 = vmatpush1.msra.mxu0 %v1179
  %1332 = vmatprep.subr.mxu0 %v1185
  %1333 = vmatpush1.msra.mxu0 %v1184
  %1334 = vmatprep.subr.mxu0 %v1190
  %1335 = vmatpush1.msra.mxu0 %v1189
  %1336 = vmatprep.subr.mxu0 0.0
  %1337 = vmatpush1.msra.mxu0 0.0
  %1338 = vmatprep.subr.mxu0 0.0
  %1339 = vmatpush1.msra.mxu0 0.0
  %1340 = vmatprep.subr.mxu0 0.0
  %1341 = vmatpush1.msra.mxu0 0.0
  %1342 = vmatprep.subr.mxu0 0.0
  %1343 = vmatpush1.msra.mxu0 0.0
  %1344 = vmatprep.subr.mxu0 0.0
  %1345 = vmatpush1.msra.mxu0 0.0
  %1346 = vmatprep.subr.mxu0 0.0
  %1347 = vmatpush1.msra.mxu0 0.0
  %1348 = vmatprep.subr.mxu0 0.0
  %1349 = vmatpush1.msra.mxu0 0.0
  %1350 = vmatprep.subr.mxu0 0.0
  %1351 = vmatpush1.msra.mxu0 0.0
  %1352 = vmatprep.subr.mxu0 0.0
  %1353 = vmatpush1.msra.mxu0 0.0
  %1354 = vmatprep.subr.mxu0 0.0
  %1355 = vmatpush1.msra.mxu0 0.0
  %1356 = vmatprep.subr.mxu0 0.0
  %1357 = vmatpush1.msra.mxu0 0.0
  %1358 = vmatprep.subr.mxu0 0.0
  %1359 = vmatpush1.msra.mxu0 0.0
  %1360 = vmatprep.subr.mxu0 0.0
  %1361 = vmatpush1.msra.mxu0 0.0
  %1362 = vmatprep.subr.mxu0 0.0
  %1363 = vmatpush1.msra.mxu0 0.0
  %1364 = vmatprep.subr.mxu0 0.0
  %1365 = vmatpush1.msra.mxu0 0.0
  %1366 = vmatprep.subr.mxu0 0.0
  %1367 = vmatpush1.msra.mxu0 0.0
  %1368 = vmatprep.mubr.f32.mxu0 0.0
  %1369 = vmatmul.mubr.f32.gmra.mrb[0].mxu0 %v1231
  %v1370 = vpop.f32.mrb[0].mxu0
  %v1371 = vadd.f32 0.0, %v1370
  %v1372 = vpop.f32.mrb[0].mxu0
  %v1373 = vadd.f32 0.0, %v1372
  %1374 = vdwg.mxu0
  %1375 = vmatprep.subr.mxu0 0.0
  %1376 = vmatpush1.msra.mxu0 %v1116
  %1377 = vmatprep.subr.mxu0 0.0
  %1378 = vmatpush1.msra.mxu0 %v1121
  %1379 = vmatprep.subr.mxu0 0.0
  %1380 = vmatpush1.msra.mxu0 %v1126
  %1381 = vmatprep.subr.mxu0 0.0
  %1382 = vmatpush1.msra.mxu0 %v1131
  %1383 = vmatprep.subr.mxu0 0.0
  %1384 = vmatpush1.msra.mxu0 %v1136
  %1385 = vmatprep.subr.mxu0 0.0
  %1386 = vmatpush1.msra.mxu0 %v1141
  %1387 = vmatprep.subr.mxu0 0.0
  %1388 = vmatpush1.msra.mxu0 %v1146
  %1389 = vmatprep.subr.mxu0 0.0
  %1390 = vmatpush1.msra.mxu0 %v1151
  %1391 = vmatprep.subr.mxu0 0.0
  %1392 = vmatpush1.msra.mxu0 %v1156
  %1393 = vmatprep.subr.mxu0 0.0
  %1394 = vmatpush1.msra.mxu0 %v1161
  %1395 = vmatprep.subr.mxu0 0.0
  %1396 = vmatpush1.msra.mxu0 %v1166
  %1397 = vmatprep.subr.mxu0 0.0
  %1398 = vmatpush1.msra.mxu0 %v1171
  %1399 = vmatprep.subr.mxu0 0.0
  %1400 = vmatpush1.msra.mxu0 %v1176
  %1401 = vmatprep.subr.mxu0 0.0
  %1402 = vmatpush1.msra.mxu0 %v1181
  %1403 = vmatprep.subr.mxu0 0.0
  %1404 = vmatpush1.msra.mxu0 %v1186
  %1405 = vmatprep.subr.mxu0 0.0
  %1406 = vmatpush1.msra.mxu0 %v1191
  %1407 = vmatprep.subr.mxu0 0.0
  %1408 = vmatpush1.msra.mxu0 0.0
  %1409 = vmatprep.subr.mxu0 0.0
  %1410 = vmatpush1.msra.mxu0 0.0
  %1411 = vmatprep.subr.mxu0 0.0
  %1412 = vmatpush1.msra.mxu0 0.0
  %1413 = vmatprep.subr.mxu0 0.0
  %1414 = vmatpush1.msra.mxu0 0.0
  %1415 = vmatprep.subr.mxu0 0.0
  %1416 = vmatpush1.msra.mxu0 0.0
  %1417 = vmatprep.subr.mxu0 0.0
  %1418 = vmatpush1.msra.mxu0 0.0
  %1419 = vmatprep.subr.mxu0 0.0
  %1420 = vmatpush1.msra.mxu0 0.0
  %1421 = vmatprep.subr.mxu0 0.0
  %1422 = vmatpush1.msra.mxu0 0.0
  %1423 = vmatprep.subr.mxu0 0.0
  %1424 = vmatpush1.msra.mxu0 0.0
  %1425 = vmatprep.subr.mxu0 0.0
  %1426 = vmatpush1.msra.mxu0 0.0
  %1427 = vmatprep.subr.mxu0 0.0
  %1428 = vmatpush1.msra.mxu0 0.0
  %1429 = vmatprep.subr.mxu0 0.0
  %1430 = vmatpush1.msra.mxu0 0.0
  %1431 = vmatprep.subr.mxu0 0.0
  %1432 = vmatpush1.msra.mxu0 0.0
  %1433 = vmatprep.subr.mxu0 0.0
  %1434 = vmatpush1.msra.mxu0 0.0
  %1435 = vmatprep.subr.mxu0 0.0
  %1436 = vmatpush1.msra.mxu0 0.0
  %1437 = vmatprep.subr.mxu0 0.0
  %1438 = vmatpush1.msra.mxu0 0.0
  %1439 = vmatprep.mubr.f32.mxu0 0.0
  %1440 = vmatmul.mubr.f32.gmra.mrb[0].mxu0 %v1231
  %v1441 = vpop.f32.mrb[0].mxu0
  %v1442 = vadd.f32 0.0, %v1441
  %v1443 = vpop.f32.mrb[0].mxu0
  %1444 = vdwg.mxu0
  %v1445 = vadd.f32 %v1054, %v1300
  %v1446 = vadd.f32 %v1055, %v1302
  %v1447 = vadd.f32 %v1056, %v1371
  %v1448 = vadd.f32 %v1057, %v1373
  %v1449 = vadd.f32 %v1058, %v1442
  %s1450 = scalar_lea.vmem [#allocation3], 2
  %v1451 = vld [vmem:[%s1450] ss:$3 sm:$0x7]
  %s1452 = scalar_lea.vmem [#allocation3], 18
  %v1453 = vld [vmem:[%s1452] ss:$3 sm:$0x7]
  %v1457 = vunpack.c.l.s4 1966171168
  %v1458 = vunpack.c.0.s8 %v1457
  %v1459 = vlaneseq
  %v1460 = vshrl.u32 %v1459, 7
  %v1461 = vsub.s32 %v1458, %v1460
  %v1462 = vrot.slane %v1451, %v1461
  %v1463 = vcombine.high %v1462, %v1462
  %v1465 = vunpack.c.l.s4 1966171168
  %v1466 = vunpack.c.0.s8 %v1465
  %v1467 = vlaneseq
  %v1468 = vshrl.u32 %v1467, 7
  %v1469 = vsub.s32 %v1466, %v1468
  %v1470 = vrot.slane %v1462, %v1469
  %v1472 = vunpack.c.l.s4 1966171168
  %v1473 = vunpack.c.0.s8 %v1472
  %v1474 = vlaneseq
  %v1475 = vshrl.u32 %v1474, 7
  %v1476 = vsub.s32 %v1473, %v1475
  %v1477 = vrot.slane %v1463, %v1476
  %v1478 = vcombine.high %v1470, %v1470
  %v1480 = vunpack.c.l.s4 1966171168
  %v1481 = vunpack.c.0.s8 %v1480
  %v1482 = vlaneseq
  %v1483 = vshrl.u32 %v1482, 7
  %v1484 = vsub.s32 %v1481, %v1483
  %v1485 = vrot.slane %v1453, %v1484
  %v1486 = vcombine.high %v1485, %v1485
  %v1488 = vunpack.c.l.s4 1966171168
  %v1489 = vunpack.c.0.s8 %v1488
  %v1490 = vlaneseq
  %v1491 = vshrl.u32 %v1490, 7
  %v1492 = vsub.s32 %v1489, %v1491
  %v1493 = vrot.slane %v1485, %v1492
  %v1495 = vunpack.c.l.s4 1966171168
  %v1496 = vunpack.c.0.s8 %v1495
  %v1497 = vlaneseq
  %v1498 = vshrl.u32 %v1497, 7
  %v1499 = vsub.s32 %v1496, %v1498
  %v1500 = vrot.slane %v1486, %v1499
  %v1501 = vcombine.high %v1493, %v1493
  %s1502 = scalar_lea.vmem %s5, 1280
  %v1503 = vld [vmem:[%s1502] sm:$0xff]
  %v1504 = vld [vmem:[%s1502 + $0x8] sm:$0xff]
  %v1505 = vld [vmem:[%s1502 + $0x10] sm:$0xff]
  %v1506 = vld [vmem:[%s1502 + $0x18] sm:$0xff]
  %v1507 = vld [vmem:[%s1502 + $0x20] sm:$0xff]
  %v1508 = vld [vmem:[%s1502 + $0x28] sm:$0xff]
  %v1509 = vld [vmem:[%s1502 + $0x30] sm:$0xff]
  %v1510 = vld [vmem:[%s1502 + $0x38] sm:$0xff]
  %v1511 = vld [vmem:[%s1502 + $0x40] sm:$0xff]
  %v1512 = vld [vmem:[%s1502 + $0x48] sm:$0xff]
  %v1513 = vld [vmem:[%s1502 + $0x50] sm:$0xff]
  %v1514 = vld [vmem:[%s1502 + $0x58] sm:$0xff]
  %v1515 = vld [vmem:[%s1502 + $0x60] sm:$0xff]
  %v1516 = vld [vmem:[%s1502 + $0x68] sm:$0xff]
  %v1517 = vld [vmem:[%s1502 + $0x70] sm:$0xff]
  %v1518 = vld [vmem:[%s1502 + $0x78] sm:$0xff]
  %v1519 = vld [vmem:[%s1502 + $0x80] sm:$0xff]
  %v1520 = vld [vmem:[%s1502 + $0x88] sm:$0xff]
  %v1521 = vld [vmem:[%s1502 + $0x90] sm:$0xff]
  %v1522 = vld [vmem:[%s1502 + $0x98] sm:$0xff]
  %v1523 = vld [vmem:[%s1502 + $0xa0] sm:$0xff]
  %v1524 = vld [vmem:[%s1502 + $0xa8] sm:$0xff]
  %v1525 = vld [vmem:[%s1502 + $0xb0] sm:$0xff]
  %v1526 = vld [vmem:[%s1502 + $0xb8] sm:$0xff]
  %v1527 = vld [vmem:[%s1502 + $0xc0] sm:$0xff]
  %v1528 = vld [vmem:[%s1502 + $0xc8] sm:$0xff]
  %v1529 = vld [vmem:[%s1502 + $0xd0] sm:$0xff]
  %v1530 = vld [vmem:[%s1502 + $0xd8] sm:$0xff]
  %v1531 = vld [vmem:[%s1502 + $0xe0] sm:$0xff]
  %v1532 = vld [vmem:[%s1502 + $0xe8] sm:$0xff]
  %v1533 = vld [vmem:[%s1502 + $0xf0] sm:$0xff]
  %v1534 = vld [vmem:[%s1502 + $0xf8] sm:$0xff]
  %v1535 = vld [vmem:[%s1502 + $0x100] sm:$0xff]
  %v1536 = vld [vmem:[%s1502 + $0x108] sm:$0xff]
  %v1537 = vld [vmem:[%s1502 + $0x110] sm:$0xff]
  %v1538 = vld [vmem:[%s1502 + $0x118] sm:$0xff]
  %v1539 = vld [vmem:[%s1502 + $0x120] sm:$0xff]
  %v1540 = vld [vmem:[%s1502 + $0x128] sm:$0xff]
  %v1541 = vld [vmem:[%s1502 + $0x130] sm:$0xff]
  %v1542 = vld [vmem:[%s1502 + $0x138] sm:$0xff]
  %v1543 = vld [vmem:[%s1502 + $0x140] sm:$0xff]
  %v1544 = vld [vmem:[%s1502 + $0x148] sm:$0xff]
  %v1545 = vld [vmem:[%s1502 + $0x150] sm:$0xff]
  %v1546 = vld [vmem:[%s1502 + $0x158] sm:$0xff]
  %v1547 = vld [vmem:[%s1502 + $0x160] sm:$0xff]
  %v1548 = vld [vmem:[%s1502 + $0x168] sm:$0xff]
  %v1549 = vld [vmem:[%s1502 + $0x170] sm:$0xff]
  %v1550 = vld [vmem:[%s1502 + $0x178] sm:$0xff]
  %v1551 = vld [vmem:[%s1502 + $0x180] sm:$0xff]
  %v1552 = vld [vmem:[%s1502 + $0x188] sm:$0xff]
  %v1553 = vld [vmem:[%s1502 + $0x190] sm:$0xff]
  %v1554 = vld [vmem:[%s1502 + $0x198] sm:$0xff]
  %v1555 = vld [vmem:[%s1502 + $0x1a0] sm:$0xff]
  %v1556 = vld [vmem:[%s1502 + $0x1a8] sm:$0xff]
  %v1557 = vld [vmem:[%s1502 + $0x1b0] sm:$0xff]
  %v1558 = vld [vmem:[%s1502 + $0x1b8] sm:$0xff]
  %v1559 = vld [vmem:[%s1502 + $0x1c0] sm:$0xff]
  %v1560 = vld [vmem:[%s1502 + $0x1c8] sm:$0xff]
  %v1561 = vld [vmem:[%s1502 + $0x1d0] sm:$0xff]
  %v1562 = vld [vmem:[%s1502 + $0x1d8] sm:$0xff]
  %v1563 = vld [vmem:[%s1502 + $0x1e0] sm:$0xff]
  %v1564 = vld [vmem:[%s1502 + $0x1e8] sm:$0xff]
  %v1565 = vld [vmem:[%s1502 + $0x1f0] sm:$0xff]
  %v1566 = vld [vmem:[%s1502 + $0x1f8] sm:$0xff]
  %v1567 = vld [vmem:[%s1502 + $0x200] sm:$0xff]
  %v1568 = vld [vmem:[%s1502 + $0x208] sm:$0xff]
  %v1569 = vld [vmem:[%s1502 + $0x210] sm:$0xff]
  %v1570 = vld [vmem:[%s1502 + $0x218] sm:$0xff]
  %v1571 = vld [vmem:[%s1502 + $0x220] sm:$0xff]
  %v1572 = vld [vmem:[%s1502 + $0x228] sm:$0xff]
  %v1573 = vld [vmem:[%s1502 + $0x230] sm:$0xff]
  %v1574 = vld [vmem:[%s1502 + $0x238] sm:$0xff]
  %v1575 = vld [vmem:[%s1502 + $0x240] sm:$0xff]
  %v1576 = vld [vmem:[%s1502 + $0x248] sm:$0xff]
  %v1577 = vld [vmem:[%s1502 + $0x250] sm:$0xff]
  %v1578 = vld [vmem:[%s1502 + $0x258] sm:$0xff]
  %v1579 = vld [vmem:[%s1502 + $0x260] sm:$0xff]
  %v1580 = vld [vmem:[%s1502 + $0x268] sm:$0xff]
  %v1581 = vld [vmem:[%s1502 + $0x270] sm:$0xff]
  %v1582 = vld [vmem:[%s1502 + $0x278] sm:$0xff]
  %v1583 = vcombine.low %v1470, %v1477
  %v1584 = vcombine.low %v1478, %v1493
  %v1585 = vcombine.low %v1500, %v1501
  %v1587 = vunpack.c.l.s4 1966171168
  %v1588 = vunpack.c.0.s8 %v1587
  %v1589 = vlaneseq
  %v1590 = vshrl.u32 %v1589, 7
  %v1591 = vsub.s32 %v1588, %v1590
  %v1592 = vrot.slane %v1583, %v1591
  %v1594 = vunpack.c.l.s4 1966171168
  %v1595 = vunpack.c.0.s8 %v1594
  %v1596 = vlaneseq
  %v1597 = vshrl.u32 %v1596, 7
  %v1598 = vsub.s32 %v1595, %v1597
  %v1599 = vrot.slane %v1584, %v1598
  %v1601 = vunpack.c.l.s4 1966171168
  %v1602 = vunpack.c.0.s8 %v1601
  %v1603 = vlaneseq
  %v1604 = vshrl.u32 %v1603, 7
  %v1605 = vsub.s32 %v1602, %v1604
  %v1606 = vrot.slane %v1585, %v1605
  %v1607 = vcombine.low %v1592, %v1599
  %v1609 = vunpack.c.l.s4 1966171168
  %v1610 = vunpack.c.0.s8 %v1609
  %v1611 = vlaneseq
  %v1612 = vshrl.u32 %v1611, 7
  %v1613 = vsub.s32 %v1610, %v1612
  %v1614 = vrot.slane %v1607, %v1613
  %v1616 = vunpack.c.l.s4 1966171168
  %v1617 = vunpack.c.0.s8 %v1616
  %v1618 = vlaneseq
  %v1619 = vshrl.u32 %v1618, 7
  %v1620 = vsub.s32 %v1617, %v1619
  %v1621 = vrot.slane %v1606, %v1620
  %v1622 = vcombine.low %v1614, %v1621
  %1624 = vmatprep.subr.mxu0 %v1504
  %1625 = vmatpush1.msra.mxu0 %v1503
  %1626 = vmatprep.subr.mxu0 %v1509
  %1627 = vmatpush1.msra.mxu0 %v1508
  %1628 = vmatprep.subr.mxu0 %v1514
  %1629 = vmatpush1.msra.mxu0 %v1513
  %1630 = vmatprep.subr.mxu0 %v1519
  %1631 = vmatpush1.msra.mxu0 %v1518
  %1632 = vmatprep.subr.mxu0 %v1524
  %1633 = vmatpush1.msra.mxu0 %v1523
  %1634 = vmatprep.subr.mxu0 %v1529
  %1635 = vmatpush1.msra.mxu0 %v1528
  %1636 = vmatprep.subr.mxu0 %v1534
  %1637 = vmatpush1.msra.mxu0 %v1533
  %1638 = vmatprep.subr.mxu0 %v1539
  %1639 = vmatpush1.msra.mxu0 %v1538
  %1640 = vmatprep.subr.mxu0 %v1544
  %1641 = vmatpush1.msra.mxu0 %v1543
  %1642 = vmatprep.subr.mxu0 %v1549
  %1643 = vmatpush1.msra.mxu0 %v1548
  %1644 = vmatprep.subr.mxu0 %v1554
  %1645 = vmatpush1.msra.mxu0 %v1553
  %1646 = vmatprep.subr.mxu0 %v1559
  %1647 = vmatpush1.msra.mxu0 %v1558
  %1648 = vmatprep.subr.mxu0 %v1564
  %1649 = vmatpush1.msra.mxu0 %v1563
  %1650 = vmatprep.subr.mxu0 %v1569
  %1651 = vmatpush1.msra.mxu0 %v1568
  %1652 = vmatprep.subr.mxu0 %v1574
  %1653 = vmatpush1.msra.mxu0 %v1573
  %1654 = vmatprep.subr.mxu0 %v1579
  %1655 = vmatpush1.msra.mxu0 %v1578
  %1656 = vmatprep.subr.mxu0 0.0
  %1657 = vmatpush1.msra.mxu0 0.0
  %1658 = vmatprep.subr.mxu0 0.0
  %1659 = vmatpush1.msra.mxu0 0.0
  %1660 = vmatprep.subr.mxu0 0.0
  %1661 = vmatpush1.msra.mxu0 0.0
  %1662 = vmatprep.subr.mxu0 0.0
  %1663 = vmatpush1.msra.mxu0 0.0
  %1664 = vmatprep.subr.mxu0 0.0
  %1665 = vmatpush1.msra.mxu0 0.0
  %1666 = vmatprep.subr.mxu0 0.0
  %1667 = vmatpush1.msra.mxu0 0.0
  %1668 = vmatprep.subr.mxu0 0.0
  %1669 = vmatpush1.msra.mxu0 0.0
  %1670 = vmatprep.subr.mxu0 0.0
  %1671 = vmatpush1.msra.mxu0 0.0
  %1672 = vmatprep.subr.mxu0 0.0
  %1673 = vmatpush1.msra.mxu0 0.0
  %1674 = vmatprep.subr.mxu0 0.0
  %1675 = vmatpush1.msra.mxu0 0.0
  %1676 = vmatprep.subr.mxu0 0.0
  %1677 = vmatpush1.msra.mxu0 0.0
  %1678 = vmatprep.subr.mxu0 0.0
  %1679 = vmatpush1.msra.mxu0 0.0
  %1680 = vmatprep.subr.mxu0 0.0
  %1681 = vmatpush1.msra.mxu0 0.0
  %1682 = vmatprep.subr.mxu0 0.0
  %1683 = vmatpush1.msra.mxu0 0.0
  %1684 = vmatprep.subr.mxu0 0.0
  %1685 = vmatpush1.msra.mxu0 0.0
  %1686 = vmatprep.subr.mxu0 0.0
  %1687 = vmatpush1.msra.mxu0 0.0
  %1688 = vmatprep.mubr.f32.mxu0 0.0
  %1689 = vmatmul.mubr.f32.gmra.mrb[0].mxu0 %v1622
  %v1690 = vpop.f32.mrb[0].mxu0
  %v1691 = vadd.f32 0.0, %v1690
  %v1692 = vpop.f32.mrb[0].mxu0
  %v1693 = vadd.f32 0.0, %v1692
  %1694 = vdwg.mxu0
  %1695 = vmatprep.subr.mxu0 %v1506
  %1696 = vmatpush1.msra.mxu0 %v1505
  %1697 = vmatprep.subr.mxu0 %v1511
  %1698 = vmatpush1.msra.mxu0 %v1510
  %1699 = vmatprep.subr.mxu0 %v1516
  %1700 = vmatpush1.msra.mxu0 %v1515
  %1701 = vmatprep.subr.mxu0 %v1521
  %1702 = vmatpush1.msra.mxu0 %v1520
  %1703 = vmatprep.subr.mxu0 %v1526
  %1704 = vmatpush1.msra.mxu0 %v1525
  %1705 = vmatprep.subr.mxu0 %v1531
  %1706 = vmatpush1.msra.mxu0 %v1530
  %1707 = vmatprep.subr.mxu0 %v1536
  %1708 = vmatpush1.msra.mxu0 %v1535
  %1709 = vmatprep.subr.mxu0 %v1541
  %1710 = vmatpush1.msra.mxu0 %v1540
  %1711 = vmatprep.subr.mxu0 %v1546
  %1712 = vmatpush1.msra.mxu0 %v1545
  %1713 = vmatprep.subr.mxu0 %v1551
  %1714 = vmatpush1.msra.mxu0 %v1550
  %1715 = vmatprep.subr.mxu0 %v1556
  %1716 = vmatpush1.msra.mxu0 %v1555
  %1717 = vmatprep.subr.mxu0 %v1561
  %1718 = vmatpush1.msra.mxu0 %v1560
  %1719 = vmatprep.subr.mxu0 %v1566
  %1720 = vmatpush1.msra.mxu0 %v1565
  %1721 = vmatprep.subr.mxu0 %v1571
  %1722 = vmatpush1.msra.mxu0 %v1570
  %1723 = vmatprep.subr.mxu0 %v1576
  %1724 = vmatpush1.msra.mxu0 %v1575
  %1725 = vmatprep.subr.mxu0 %v1581
  %1726 = vmatpush1.msra.mxu0 %v1580
  %1727 = vmatprep.subr.mxu0 0.0
  %1728 = vmatpush1.msra.mxu0 0.0
  %1729 = vmatprep.subr.mxu0 0.0
  %1730 = vmatpush1.msra.mxu0 0.0
  %1731 = vmatprep.subr.mxu0 0.0
  %1732 = vmatpush1.msra.mxu0 0.0
  %1733 = vmatprep.subr.mxu0 0.0
  %1734 = vmatpush1.msra.mxu0 0.0
  %1735 = vmatprep.subr.mxu0 0.0
  %1736 = vmatpush1.msra.mxu0 0.0
  %1737 = vmatprep.subr.mxu0 0.0
  %1738 = vmatpush1.msra.mxu0 0.0
  %1739 = vmatprep.subr.mxu0 0.0
  %1740 = vmatpush1.msra.mxu0 0.0
  %1741 = vmatprep.subr.mxu0 0.0
  %1742 = vmatpush1.msra.mxu0 0.0
  %1743 = vmatprep.subr.mxu0 0.0
  %1744 = vmatpush1.msra.mxu0 0.0
  %1745 = vmatprep.subr.mxu0 0.0
  %1746 = vmatpush1.msra.mxu0 0.0
  %1747 = vmatprep.subr.mxu0 0.0
  %1748 = vmatpush1.msra.mxu0 0.0
  %1749 = vmatprep.subr.mxu0 0.0
  %1750 = vmatpush1.msra.mxu0 0.0
  %1751 = vmatprep.subr.mxu0 0.0
  %1752 = vmatpush1.msra.mxu0 0.0
  %1753 = vmatprep.subr.mxu0 0.0
  %1754 = vmatpush1.msra.mxu0 0.0
  %1755 = vmatprep.subr.mxu0 0.0
  %1756 = vmatpush1.msra.mxu0 0.0
  %1757 = vmatprep.subr.mxu0 0.0
  %1758 = vmatpush1.msra.mxu0 0.0
  %1759 = vmatprep.mubr.f32.mxu0 0.0
  %1760 = vmatmul.mubr.f32.gmra.mrb[0].mxu0 %v1622
  %v1761 = vpop.f32.mrb[0].mxu0
  %v1762 = vadd.f32 0.0, %v1761
  %v1763 = vpop.f32.mrb[0].mxu0
  %v1764 = vadd.f32 0.0, %v1763
  %1765 = vdwg.mxu0
  %1766 = vmatprep.subr.mxu0 0.0
  %1767 = vmatpush1.msra.mxu0 %v1507
  %1768 = vmatprep.subr.mxu0 0.0
  %1769 = vmatpush1.msra.mxu0 %v1512
  %1770 = vmatprep.subr.mxu0 0.0
  %1771 = vmatpush1.msra.mxu0 %v1517
  %1772 = vmatprep.subr.mxu0 0.0
  %1773 = vmatpush1.msra.mxu0 %v1522
  %1774 = vmatprep.subr.mxu0 0.0
  %1775 = vmatpush1.msra.mxu0 %v1527
  %1776 = vmatprep.subr.mxu0 0.0
  %1777 = vmatpush1.msra.mxu0 %v1532
  %1778 = vmatprep.subr.mxu0 0.0
  %1779 = vmatpush1.msra.mxu0 %v1537
  %1780 = vmatprep.subr.mxu0 0.0
  %1781 = vmatpush1.msra.mxu0 %v1542
  %1782 = vmatprep.subr.mxu0 0.0
  %1783 = vmatpush1.msra.mxu0 %v1547
  %1784 = vmatprep.subr.mxu0 0.0
  %1785 = vmatpush1.msra.mxu0 %v1552
  %1786 = vmatprep.subr.mxu0 0.0
  %1787 = vmatpush1.msra.mxu0 %v1557
  %1788 = vmatprep.subr.mxu0 0.0
  %1789 = vmatpush1.msra.mxu0 %v1562
  %1790 = vmatprep.subr.mxu0 0.0
  %1791 = vmatpush1.msra.mxu0 %v1567
  %1792 = vmatprep.subr.mxu0 0.0
  %1793 = vmatpush1.msra.mxu0 %v1572
  %1794 = vmatprep.subr.mxu0 0.0
  %1795 = vmatpush1.msra.mxu0 %v1577
  %1796 = vmatprep.subr.mxu0 0.0
  %1797 = vmatpush1.msra.mxu0 %v1582
  %1798 = vmatprep.subr.mxu0 0.0
  %1799 = vmatpush1.msra.mxu0 0.0
  %1800 = vmatprep.subr.mxu0 0.0
  %1801 = vmatpush1.msra.mxu0 0.0
  %1802 = vmatprep.subr.mxu0 0.0
  %1803 = vmatpush1.msra.mxu0 0.0
  %1804 = vmatprep.subr.mxu0 0.0
  %1805 = vmatpush1.msra.mxu0 0.0
  %1806 = vmatprep.subr.mxu0 0.0
  %1807 = vmatpush1.msra.mxu0 0.0
  %1808 = vmatprep.subr.mxu0 0.0
  %1809 = vmatpush1.msra.mxu0 0.0
  %1810 = vmatprep.subr.mxu0 0.0
  %1811 = vmatpush1.msra.mxu0 0.0
  %1812 = vmatprep.subr.mxu0 0.0
  %1813 = vmatpush1.msra.mxu0 0.0
  %1814 = vmatprep.subr.mxu0 0.0
  %1815 = vmatpush1.msra.mxu0 0.0
  %1816 = vmatprep.subr.mxu0 0.0
  %1817 = vmatpush1.msra.mxu0 0.0
  %1818 = vmatprep.subr.mxu0 0.0
  %1819 = vmatpush1.msra.mxu0 0.0
  %1820 = vmatprep.subr.mxu0 0.0
  %1821 = vmatpush1.msra.mxu0 0.0
  %1822 = vmatprep.subr.mxu0 0.0
  %1823 = vmatpush1.msra.mxu0 0.0
  %1824 = vmatprep.subr.mxu0 0.0
  %1825 = vmatpush1.msra.mxu0 0.0
  %1826 = vmatprep.subr.mxu0 0.0
  %1827 = vmatpush1.msra.mxu0 0.0
  %1828 = vmatprep.subr.mxu0 0.0
  %1829 = vmatpush1.msra.mxu0 0.0
  %1830 = vmatprep.mubr.f32.mxu0 0.0
  %1831 = vmatmul.mubr.f32.gmra.mrb[0].mxu0 %v1622
  %v1832 = vpop.f32.mrb[0].mxu0
  %v1833 = vadd.f32 0.0, %v1832
  %v1834 = vpop.f32.mrb[0].mxu0
  %1835 = vdwg.mxu0
  %v1836 = vadd.f32 %v1445, %v1691
  %v1837 = vadd.f32 %v1446, %v1693
  %v1838 = vadd.f32 %v1447, %v1762
  %v1839 = vadd.f32 %v1448, %v1764
  %v1840 = vadd.f32 %v1449, %v1833
  %s1841 = scalar_lea.vmem [#allocation3], 3
  %v1842 = vld [vmem:[%s1841] ss:$3 sm:$0x7]
  %s1843 = scalar_lea.vmem [#allocation3], 19
  %v1844 = vld [vmem:[%s1843] ss:$3 sm:$0x7]
  %v1848 = vunpack.c.l.s4 1966171168
  %v1849 = vunpack.c.0.s8 %v1848
  %v1850 = vlaneseq
  %v1851 = vshrl.u32 %v1850, 7
  %v1852 = vsub.s32 %v1849, %v1851
  %v1853 = vrot.slane %v1842, %v1852
  %v1854 = vcombine.high %v1853, %v1853
  %v1856 = vunpack.c.l.s4 1966171168
  %v1857 = vunpack.c.0.s8 %v1856
  %v1858 = vlaneseq
  %v1859 = vshrl.u32 %v1858, 7
  %v1860 = vsub.s32 %v1857, %v1859
  %v1861 = vrot.slane %v1853, %v1860
  %v1863 = vunpack.c.l.s4 1966171168
  %v1864 = vunpack.c.0.s8 %v1863
  %v1865 = vlaneseq
  %v1866 = vshrl.u32 %v1865, 7
  %v1867 = vsub.s32 %v1864, %v1866
  %v1868 = vrot.slane %v1854, %v1867
  %v1869 = vcombine.high %v1861, %v1861
  %v1871 = vunpack.c.l.s4 1966171168
  %v1872 = vunpack.c.0.s8 %v1871
  %v1873 = vlaneseq
  %v1874 = vshrl.u32 %v1873, 7
  %v1875 = vsub.s32 %v1872, %v1874
  %v1876 = vrot.slane %v1844, %v1875
  %v1877 = vcombine.high %v1876, %v1876
  %v1879 = vunpack.c.l.s4 1966171168
  %v1880 = vunpack.c.0.s8 %v1879
  %v1881 = vlaneseq
  %v1882 = vshrl.u32 %v1881, 7
  %v1883 = vsub.s32 %v1880, %v1882
  %v1884 = vrot.slane %v1876, %v1883
  %v1886 = vunpack.c.l.s4 1966171168
  %v1887 = vunpack.c.0.s8 %v1886
  %v1888 = vlaneseq
  %v1889 = vshrl.u32 %v1888, 7
  %v1890 = vsub.s32 %v1887, %v1889
  %v1891 = vrot.slane %v1877, %v1890
  %v1892 = vcombine.high %v1884, %v1884
  %s1893 = scalar_lea.vmem %s5, 1920
  %v1894 = vld [vmem:[%s1893] sm:$0xff]
  %v1895 = vld [vmem:[%s1893 + $0x8] sm:$0xff]
  %v1896 = vld [vmem:[%s1893 + $0x10] sm:$0xff]
  %v1897 = vld [vmem:[%s1893 + $0x18] sm:$0xff]
  %v1898 = vld [vmem:[%s1893 + $0x20] sm:$0xff]
  %v1899 = vld [vmem:[%s1893 + $0x28] sm:$0xff]
  %v1900 = vld [vmem:[%s1893 + $0x30] sm:$0xff]
  %v1901 = vld [vmem:[%s1893 + $0x38] sm:$0xff]
  %v1902 = vld [vmem:[%s1893 + $0x40] sm:$0xff]
  %v1903 = vld [vmem:[%s1893 + $0x48] sm:$0xff]
  %v1904 = vld [vmem:[%s1893 + $0x50] sm:$0xff]
  %v1905 = vld [vmem:[%s1893 + $0x58] sm:$0xff]
  %v1906 = vld [vmem:[%s1893 + $0x60] sm:$0xff]
  %v1907 = vld [vmem:[%s1893 + $0x68] sm:$0xff]
  %v1908 = vld [vmem:[%s1893 + $0x70] sm:$0xff]
  %v1909 = vld [vmem:[%s1893 + $0x78] sm:$0xff]
  %v1910 = vld [vmem:[%s1893 + $0x80] sm:$0xff]
  %v1911 = vld [vmem:[%s1893 + $0x88] sm:$0xff]
  %v1912 = vld [vmem:[%s1893 + $0x90] sm:$0xff]
  %v1913 = vld [vmem:[%s1893 + $0x98] sm:$0xff]
  %v1914 = vld [vmem:[%s1893 + $0xa0] sm:$0xff]
  %v1915 = vld [vmem:[%s1893 + $0xa8] sm:$0xff]
  %v1916 = vld [vmem:[%s1893 + $0xb0] sm:$0xff]
  %v1917 = vld [vmem:[%s1893 + $0xb8] sm:$0xff]
  %v1918 = vld [vmem:[%s1893 + $0xc0] sm:$0xff]
  %v1919 = vld [vmem:[%s1893 + $0xc8] sm:$0xff]
  %v1920 = vld [vmem:[%s1893 + $0xd0] sm:$0xff]
  %v1921 = vld [vmem:[%s1893 + $0xd8] sm:$0xff]
  %v1922 = vld [vmem:[%s1893 + $0xe0] sm:$0xff]
  %v1923 = vld [vmem:[%s1893 + $0xe8] sm:$0xff]
  %v1924 = vld [vmem:[%s1893 + $0xf0] sm:$0xff]
  %v1925 = vld [vmem:[%s1893 + $0xf8] sm:$0xff]
  %v1926 = vld [vmem:[%s1893 + $0x100] sm:$0xff]
  %v1927 = vld [vmem:[%s1893 + $0x108] sm:$0xff]
  %v1928 = vld [vmem:[%s1893 + $0x110] sm:$0xff]
  %v1929 = vld [vmem:[%s1893 + $0x118] sm:$0xff]
  %v1930 = vld [vmem:[%s1893 + $0x120] sm:$0xff]
  %v1931 = vld [vmem:[%s1893 + $0x128] sm:$0xff]
  %v1932 = vld [vmem:[%s1893 + $0x130] sm:$0xff]
  %v1933 = vld [vmem:[%s1893 + $0x138] sm:$0xff]
  %v1934 = vld [vmem:[%s1893 + $0x140] sm:$0xff]
  %v1935 = vld [vmem:[%s1893 + $0x148] sm:$0xff]
  %v1936 = vld [vmem:[%s1893 + $0x150] sm:$0xff]
  %v1937 = vld [vmem:[%s1893 + $0x158] sm:$0xff]
  %v1938 = vld [vmem:[%s1893 + $0x160] sm:$0xff]
  %v1939 = vld [vmem:[%s1893 + $0x168] sm:$0xff]
  %v1940 = vld [vmem:[%s1893 + $0x170] sm:$0xff]
  %v1941 = vld [vmem:[%s1893 + $0x178] sm:$0xff]
  %v1942 = vld [vmem:[%s1893 + $0x180] sm:$0xff]
  %v1943 = vld [vmem:[%s1893 + $0x188] sm:$0xff]
  %v1944 = vld [vmem:[%s1893 + $0x190] sm:$0xff]
  %v1945 = vld [vmem:[%s1893 + $0x198] sm:$0xff]
  %v1946 = vld [vmem:[%s1893 + $0x1a0] sm:$0xff]
  %v1947 = vld [vmem:[%s1893 + $0x1a8] sm:$0xff]
  %v1948 = vld [vmem:[%s1893 + $0x1b0] sm:$0xff]
  %v1949 = vld [vmem:[%s1893 + $0x1b8] sm:$0xff]
  %v1950 = vld [vmem:[%s1893 + $0x1c0] sm:$0xff]
  %v1951 = vld [vmem:[%s1893 + $0x1c8] sm:$0xff]
  %v1952 = vld [vmem:[%s1893 + $0x1d0] sm:$0xff]
  %v1953 = vld [vmem:[%s1893 + $0x1d8] sm:$0xff]
  %v1954 = vld [vmem:[%s1893 + $0x1e0] sm:$0xff]
  %v1955 = vld [vmem:[%s1893 + $0x1e8] sm:$0xff]
  %v1956 = vld [vmem:[%s1893 + $0x1f0] sm:$0xff]
  %v1957 = vld [vmem:[%s1893 + $0x1f8] sm:$0xff]
  %v1958 = vld [vmem:[%s1893 + $0x200] sm:$0xff]
  %v1959 = vld [vmem:[%s1893 + $0x208] sm:$0xff]
  %v1960 = vld [vmem:[%s1893 + $0x210] sm:$0xff]
  %v1961 = vld [vmem:[%s1893 + $0x218] sm:$0xff]
  %v1962 = vld [vmem:[%s1893 + $0x220] sm:$0xff]
  %v1963 = vld [vmem:[%s1893 + $0x228] sm:$0xff]
  %v1964 = vld [vmem:[%s1893 + $0x230] sm:$0xff]
  %v1965 = vld [vmem:[%s1893 + $0x238] sm:$0xff]
  %v1966 = vld [vmem:[%s1893 + $0x240] sm:$0xff]
  %v1967 = vld [vmem:[%s1893 + $0x248] sm:$0xff]
  %v1968 = vld [vmem:[%s1893 + $0x250] sm:$0xff]
  %v1969 = vld [vmem:[%s1893 + $0x258] sm:$0xff]
  %v1970 = vld [vmem:[%s1893 + $0x260] sm:$0xff]
  %v1971 = vld [vmem:[%s1893 + $0x268] sm:$0xff]
  %v1972 = vld [vmem:[%s1893 + $0x270] sm:$0xff]
  %v1973 = vld [vmem:[%s1893 + $0x278] sm:$0xff]
  %v1974 = vcombine.low %v1861, %v1868
  %v1975 = vcombine.low %v1869, %v1884
  %v1976 = vcombine.low %v1891, %v1892
  %v1978 = vunpack.c.l.s4 1966171168
  %v1979 = vunpack.c.0.s8 %v1978
  %v1980 = vlaneseq
  %v1981 = vshrl.u32 %v1980, 7
  %v1982 = vsub.s32 %v1979, %v1981
  %v1983 = vrot.slane %v1974, %v1982
  %v1985 = vunpack.c.l.s4 1966171168
  %v1986 = vunpack.c.0.s8 %v1985
  %v1987 = vlaneseq
  %v1988 = vshrl.u32 %v1987, 7
  %v1989 = vsub.s32 %v1986, %v1988
  %v1990 = vrot.slane %v1975, %v1989
  %v1992 = vunpack.c.l.s4 1966171168
  %v1993 = vunpack.c.0.s8 %v1992
  %v1994 = vlaneseq
  %v1995 = vshrl.u32 %v1994, 7
  %v1996 = vsub.s32 %v1993, %v1995
  %v1997 = vrot.slane %v1976, %v1996
  %v1998 = vcombine.low %v1983, %v1990
  %v2000 = vunpack.c.l.s4 1966171168
  %v2001 = vunpack.c.0.s8 %v2000
  %v2002 = vlaneseq
  %v2003 = vshrl.u32 %v2002, 7
  %v2004 = vsub.s32 %v2001, %v2003
  %v2005 = vrot.slane %v1998, %v2004
  %v2007 = vunpack.c.l.s4 1966171168
  %v2008 = vunpack.c.0.s8 %v2007
  %v2009 = vlaneseq
  %v2010 = vshrl.u32 %v2009, 7
  %v2011 = vsub.s32 %v2008, %v2010
  %v2012 = vrot.slane %v1997, %v2011
  %v2013 = vcombine.low %v2005, %v2012
  %2015 = vmatprep.subr.mxu0 %v1895
  %2016 = vmatpush1.msra.mxu0 %v1894
  %2017 = vmatprep.subr.mxu0 %v1900
  %2018 = vmatpush1.msra.mxu0 %v1899
  %2019 = vmatprep.subr.mxu0 %v1905
  %2020 = vmatpush1.msra.mxu0 %v1904
  %2021 = vmatprep.subr.mxu0 %v1910
  %2022 = vmatpush1.msra.mxu0 %v1909
  %2023 = vmatprep.subr.mxu0 %v1915
  %2024 = vmatpush1.msra.mxu0 %v1914
  %2025 = vmatprep.subr.mxu0 %v1920
  %2026 = vmatpush1.msra.mxu0 %v1919
  %2027 = vmatprep.subr.mxu0 %v1925
  %2028 = vmatpush1.msra.mxu0 %v1924
  %2029 = vmatprep.subr.mxu0 %v1930
  %2030 = vmatpush1.msra.mxu0 %v1929
  %2031 = vmatprep.subr.mxu0 %v1935
  %2032 = vmatpush1.msra.mxu0 %v1934
  %2033 = vmatprep.subr.mxu0 %v1940
  %2034 = vmatpush1.msra.mxu0 %v1939
  %2035 = vmatprep.subr.mxu0 %v1945
  %2036 = vmatpush1.msra.mxu0 %v1944
  %2037 = vmatprep.subr.mxu0 %v1950
  %2038 = vmatpush1.msra.mxu0 %v1949
  %2039 = vmatprep.subr.mxu0 %v1955
  %2040 = vmatpush1.msra.mxu0 %v1954
  %2041 = vmatprep.subr.mxu0 %v1960
  %2042 = vmatpush1.msra.mxu0 %v1959
  %2043 = vmatprep.subr.mxu0 %v1965
  %2044 = vmatpush1.msra.mxu0 %v1964
  %2045 = vmatprep.subr.mxu0 %v1970
  %2046 = vmatpush1.msra.mxu0 %v1969
  %2047 = vmatprep.subr.mxu0 0.0
  %2048 = vmatpush1.msra.mxu0 0.0
  %2049 = vmatprep.subr.mxu0 0.0
  %2050 = vmatpush1.msra.mxu0 0.0
  %2051 = vmatprep.subr.mxu0 0.0
  %2052 = vmatpush1.msra.mxu0 0.0
  %2053 = vmatprep.subr.mxu0 0.0
  %2054 = vmatpush1.msra.mxu0 0.0
  %2055 = vmatprep.subr.mxu0 0.0
  %2056 = vmatpush1.msra.mxu0 0.0
  %2057 = vmatprep.subr.mxu0 0.0
  %2058 = vmatpush1.msra.mxu0 0.0
  %2059 = vmatprep.subr.mxu0 0.0
  %2060 = vmatpush1.msra.mxu0 0.0
  %2061 = vmatprep.subr.mxu0 0.0
  %2062 = vmatpush1.msra.mxu0 0.0
  %2063 = vmatprep.subr.mxu0 0.0
  %2064 = vmatpush1.msra.mxu0 0.0
  %2065 = vmatprep.subr.mxu0 0.0
  %2066 = vmatpush1.msra.mxu0 0.0
  %2067 = vmatprep.subr.mxu0 0.0
  %2068 = vmatpush1.msra.mxu0 0.0
  %2069 = vmatprep.subr.mxu0 0.0
  %2070 = vmatpush1.msra.mxu0 0.0
  %2071 = vmatprep.subr.mxu0 0.0
  %2072 = vmatpush1.msra.mxu0 0.0
  %2073 = vmatprep.subr.mxu0 0.0
  %2074 = vmatpush1.msra.mxu0 0.0
  %2075 = vmatprep.subr.mxu0 0.0
  %2076 = vmatpush1.msra.mxu0 0.0
  %2077 = vmatprep.subr.mxu0 0.0
  %2078 = vmatpush1.msra.mxu0 0.0
  %2079 = vmatprep.mubr.f32.mxu0 0.0
  %2080 = vmatmul.mubr.f32.gmra.mrb[0].mxu0 %v2013
  %v2081 = vpop.f32.mrb[0].mxu0
  %v2082 = vadd.f32 0.0, %v2081
  %v2083 = vpop.f32.mrb[0].mxu0
  %v2084 = vadd.f32 0.0, %v2083
  %2085 = vdwg.mxu0
  %2086 = vmatprep.subr.mxu0 %v1897
  %2087 = vmatpush1.msra.mxu0 %v1896
  %2088 = vmatprep.subr.mxu0 %v1902
  %2089 = vmatpush1.msra.mxu0 %v1901
  %2090 = vmatprep.subr.mxu0 %v1907
  %2091 = vmatpush1.msra.mxu0 %v1906
  %2092 = vmatprep.subr.mxu0 %v1912
  %2093 = vmatpush1.msra.mxu0 %v1911
  %2094 = vmatprep.subr.mxu0 %v1917
  %2095 = vmatpush1.msra.mxu0 %v1916
  %2096 = vmatprep.subr.mxu0 %v1922
  %2097 = vmatpush1.msra.mxu0 %v1921
  %2098 = vmatprep.subr.mxu0 %v1927
  %2099 = vmatpush1.msra.mxu0 %v1926
  %2100 = vmatprep.subr.mxu0 %v1932
  %2101 = vmatpush1.msra.mxu0 %v1931
  %2102 = vmatprep.subr.mxu0 %v1937
  %2103 = vmatpush1.msra.mxu0 %v1936
  %2104 = vmatprep.subr.mxu0 %v1942
  %2105 = vmatpush1.msra.mxu0 %v1941
  %2106 = vmatprep.subr.mxu0 %v1947
  %2107 = vmatpush1.msra.mxu0 %v1946
  %2108 = vmatprep.subr.mxu0 %v1952
  %2109 = vmatpush1.msra.mxu0 %v1951
  %2110 = vmatprep.subr.mxu0 %v1957
  %2111 = vmatpush1.msra.mxu0 %v1956
  %2112 = vmatprep.subr.mxu0 %v1962
  %2113 = vmatpush1.msra.mxu0 %v1961
  %2114 = vmatprep.subr.mxu0 %v1967
  %2115 = vmatpush1.msra.mxu0 %v1966
  %2116 = vmatprep.subr.mxu0 %v1972
  %2117 = vmatpush1.msra.mxu0 %v1971
  %2118 = vmatprep.subr.mxu0 0.0
  %2119 = vmatpush1.msra.mxu0 0.0
  %2120 = vmatprep.subr.mxu0 0.0
  %2121 = vmatpush1.msra.mxu0 0.0
  %2122 = vmatprep.subr.mxu0 0.0
  %2123 = vmatpush1.msra.mxu0 0.0
  %2124 = vmatprep.subr.mxu0 0.0
  %2125 = vmatpush1.msra.mxu0 0.0
  %2126 = vmatprep.subr.mxu0 0.0
  %2127 = vmatpush1.msra.mxu0 0.0
  %2128 = vmatprep.subr.mxu0 0.0
  %2129 = vmatpush1.msra.mxu0 0.0
  %2130 = vmatprep.subr.mxu0 0.0
  %2131 = vmatpush1.msra.mxu0 0.0
  %2132 = vmatprep.subr.mxu0 0.0
  %2133 = vmatpush1.msra.mxu0 0.0
  %2134 = vmatprep.subr.mxu0 0.0
  %2135 = vmatpush1.msra.mxu0 0.0
  %2136 = vmatprep.subr.mxu0 0.0
  %2137 = vmatpush1.msra.mxu0 0.0
  %2138 = vmatprep.subr.mxu0 0.0
  %2139 = vmatpush1.msra.mxu0 0.0
  %2140 = vmatprep.subr.mxu0 0.0
  %2141 = vmatpush1.msra.mxu0 0.0
  %2142 = vmatprep.subr.mxu0 0.0
  %2143 = vmatpush1.msra.mxu0 0.0
  %2144 = vmatprep.subr.mxu0 0.0
  %2145 = vmatpush1.msra.mxu0 0.0
  %2146 = vmatprep.subr.mxu0 0.0
  %2147 = vmatpush1.msra.mxu0 0.0
  %2148 = vmatprep.subr.mxu0 0.0
  %2149 = vmatpush1.msra.mxu0 0.0
  %2150 = vmatprep.mubr.f32.mxu0 0.0
  %2151 = vmatmul.mubr.f32.gmra.mrb[0].mxu0 %v2013
  %v2152 = vpop.f32.mrb[0].mxu0
  %v2153 = vadd.f32 0.0, %v2152
  %v2154 = vpop.f32.mrb[0].mxu0
  %v2155 = vadd.f32 0.0, %v2154
  %2156 = vdwg.mxu0
  %2157 = vmatprep.subr.mxu0 0.0
  %2158 = vmatpush1.msra.mxu0 %v1898
  %2159 = vmatprep.subr.mxu0 0.0
  %2160 = vmatpush1.msra.mxu0 %v1903
  %2161 = vmatprep.subr.mxu0 0.0
  %2162 = vmatpush1.msra.mxu0 %v1908
  %2163 = vmatprep.subr.mxu0 0.0
  %2164 = vmatpush1.msra.mxu0 %v1913
  %2165 = vmatprep.subr.mxu0 0.0
  %2166 = vmatpush1.msra.mxu0 %v1918
  %2167 = vmatprep.subr.mxu0 0.0
  %2168 = vmatpush1.msra.mxu0 %v1923
  %2169 = vmatprep.subr.mxu0 0.0
  %2170 = vmatpush1.msra.mxu0 %v1928
  %2171 = vmatprep.subr.mxu0 0.0
  %2172 = vmatpush1.msra.mxu0 %v1933
  %2173 = vmatprep.subr.mxu0 0.0
  %2174 = vmatpush1.msra.mxu0 %v1938
  %2175 = vmatprep.subr.mxu0 0.0
  %2176 = vmatpush1.msra.mxu0 %v1943
  %2177 = vmatprep.subr.mxu0 0.0
  %2178 = vmatpush1.msra.mxu0 %v1948
  %2179 = vmatprep.subr.mxu0 0.0
  %2180 = vmatpush1.msra.mxu0 %v1953
  %2181 = vmatprep.subr.mxu0 0.0
  %2182 = vmatpush1.msra.mxu0 %v1958
  %2183 = vmatprep.subr.mxu0 0.0
  %2184 = vmatpush1.msra.mxu0 %v1963
  %2185 = vmatprep.subr.mxu0 0.0
  %2186 = vmatpush1.msra.mxu0 %v1968
  %2187 = vmatprep.subr.mxu0 0.0
  %2188 = vmatpush1.msra.mxu0 %v1973
  %2189 = vmatprep.subr.mxu0 0.0
  %2190 = vmatpush1.msra.mxu0 0.0
  %2191 = vmatprep.subr.mxu0 0.0
  %2192 = vmatpush1.msra.mxu0 0.0
  %2193 = vmatprep.subr.mxu0 0.0
  %2194 = vmatpush1.msra.mxu0 0.0
  %2195 = vmatprep.subr.mxu0 0.0
  %2196 = vmatpush1.msra.mxu0 0.0
  %2197 = vmatprep.subr.mxu0 0.0
  %2198 = vmatpush1.msra.mxu0 0.0
  %2199 = vmatprep.subr.mxu0 0.0
  %2200 = vmatpush1.msra.mxu0 0.0
  %2201 = vmatprep.subr.mxu0 0.0
  %2202 = vmatpush1.msra.mxu0 0.0
  %2203 = vmatprep.subr.mxu0 0.0
  %2204 = vmatpush1.msra.mxu0 0.0
  %2205 = vmatprep.subr.mxu0 0.0
  %2206 = vmatpush1.msra.mxu0 0.0
  %2207 = vmatprep.subr.mxu0 0.0
  %2208 = vmatpush1.msra.mxu0 0.0
  %2209 = vmatprep.subr.mxu0 0.0
  %2210 = vmatpush1.msra.mxu0 0.0
  %2211 = vmatprep.subr.mxu0 0.0
  %2212 = vmatpush1.msra.mxu0 0.0
  %2213 = vmatprep.subr.mxu0 0.0
  %2214 = vmatpush1.msra.mxu0 0.0
  %2215 = vmatprep.subr.mxu0 0.0
  %2216 = vmatpush1.msra.mxu0 0.0
  %2217 = vmatprep.subr.mxu0 0.0
  %2218 = vmatpush1.msra.mxu0 0.0
  %2219 = vmatprep.subr.mxu0 0.0
  %2220 = vmatpush1.msra.mxu0 0.0
  %2221 = vmatprep.mubr.f32.mxu0 0.0
  %2222 = vmatmul.mubr.f32.gmra.mrb[0].mxu0 %v2013
  %v2223 = vpop.f32.mrb[0].mxu0
  %v2224 = vadd.f32 0.0, %v2223
  %v2225 = vpop.f32.mrb[0].mxu0
  %2226 = vdwg.mxu0
  %v2227 = vadd.f32 %v1836, %v2082
  %v2228 = vadd.f32 %v1837, %v2084
  %v2229 = vadd.f32 %v1838, %v2153
  %v2230 = vadd.f32 %v1839, %v2155
  %v2231 = vadd.f32 %v1840, %v2224
  %s2232 = scalar_lea.vmem [#allocation3], 4
  %v2233 = vld [vmem:[%s2232] ss:$3 sm:$0x7]
  %s2234 = scalar_lea.vmem [#allocation3], 20
  %v2235 = vld [vmem:[%s2234] ss:$3 sm:$0x7]
  %v2239 = vunpack.c.l.s4 1966171168
  %v2240 = vunpack.c.0.s8 %v2239
  %v2241 = vlaneseq
  %v2242 = vshrl.u32 %v2241, 7
  %v2243 = vsub.s32 %v2240, %v2242
  %v2244 = vrot.slane %v2233, %v2243
  %v2245 = vcombine.high %v2244, %v2244
  %v2247 = vunpack.c.l.s4 1966171168
  %v2248 = vunpack.c.0.s8 %v2247
  %v2249 = vlaneseq
  %v2250 = vshrl.u32 %v2249, 7
  %v2251 = vsub.s32 %v2248, %v2250
  %v2252 = vrot.slane %v2244, %v2251
  %v2254 = vunpack.c.l.s4 1966171168
  %v2255 = vunpack.c.0.s8 %v2254
  %v2256 = vlaneseq
  %v2257 = vshrl.u32 %v2256, 7
  %v2258 = vsub.s32 %v2255, %v2257
  %v2259 = vrot.slane %v2245, %v2258
  %v2260 = vcombine.high %v2252, %v2252
  %v2262 = vunpack.c.l.s4 1966171168
  %v2263 = vunpack.c.0.s8 %v2262
  %v2264 = vlaneseq
  %v2265 = vshrl.u32 %v2264, 7
  %v2266 = vsub.s32 %v2263, %v2265
  %v2267 = vrot.slane %v2235, %v2266
  %v2268 = vcombine.high %v2267, %v2267
  %v2270 = vunpack.c.l.s4 1966171168
  %v2271 = vunpack.c.0.s8 %v2270
  %v2272 = vlaneseq
  %v2273 = vshrl.u32 %v2272, 7
  %v2274 = vsub.s32 %v2271, %v2273
  %v2275 = vrot.slane %v2267, %v2274
  %v2277 = vunpack.c.l.s4 1966171168
  %v2278 = vunpack.c.0.s8 %v2277
  %v2279 = vlaneseq
  %v2280 = vshrl.u32 %v2279, 7
  %v2281 = vsub.s32 %v2278, %v2280
  %v2282 = vrot.slane %v2268, %v2281
  %v2283 = vcombine.high %v2275, %v2275
  %s2284 = scalar_lea.vmem %s5, 2560
  %v2285 = vld [vmem:[%s2284] sm:$0xff]
  %v2286 = vld [vmem:[%s2284 + $0x8] sm:$0xff]
  %v2287 = vld [vmem:[%s2284 + $0x10] sm:$0xff]
  %v2288 = vld [vmem:[%s2284 + $0x18] sm:$0xff]
  %v2289 = vld [vmem:[%s2284 + $0x20] sm:$0xff]
  %v2290 = vld [vmem:[%s2284 + $0x28] sm:$0xff]
  %v2291 = vld [vmem:[%s2284 + $0x30] sm:$0xff]
  %v2292 = vld [vmem:[%s2284 + $0x38] sm:$0xff]
  %v2293 = vld [vmem:[%s2284 + $0x40] sm:$0xff]
  %v2294 = vld [vmem:[%s2284 + $0x48] sm:$0xff]
  %v2295 = vld [vmem:[%s2284 + $0x50] sm:$0xff]
  %v2296 = vld [vmem:[%s2284 + $0x58] sm:$0xff]
  %v2297 = vld [vmem:[%s2284 + $0x60] sm:$0xff]
  %v2298 = vld [vmem:[%s2284 + $0x68] sm:$0xff]
  %v2299 = vld [vmem:[%s2284 + $0x70] sm:$0xff]
  %v2300 = vld [vmem:[%s2284 + $0x78] sm:$0xff]
  %v2301 = vld [vmem:[%s2284 + $0x80] sm:$0xff]
  %v2302 = vld [vmem:[%s2284 + $0x88] sm:$0xff]
  %v2303 = vld [vmem:[%s2284 + $0x90] sm:$0xff]
  %v2304 = vld [vmem:[%s2284 + $0x98] sm:$0xff]
  %v2305 = vld [vmem:[%s2284 + $0xa0] sm:$0xff]
  %v2306 = vld [vmem:[%s2284 + $0xa8] sm:$0xff]
  %v2307 = vld [vmem:[%s2284 + $0xb0] sm:$0xff]
  %v2308 = vld [vmem:[%s2284 + $0xb8] sm:$0xff]
  %v2309 = vld [vmem:[%s2284 + $0xc0] sm:$0xff]
  %v2310 = vld [vmem:[%s2284 + $0xc8] sm:$0xff]
  %v2311 = vld [vmem:[%s2284 + $0xd0] sm:$0xff]
  %v2312 = vld [vmem:[%s2284 + $0xd8] sm:$0xff]
  %v2313 = vld [vmem:[%s2284 + $0xe0] sm:$0xff]
  %v2314 = vld [vmem:[%s2284 + $0xe8] sm:$0xff]
  %v2315 = vld [vmem:[%s2284 + $0xf0] sm:$0xff]
  %v2316 = vld [vmem:[%s2284 + $0xf8] sm:$0xff]
  %v2317 = vld [vmem:[%s2284 + $0x100] sm:$0xff]
  %v2318 = vld [vmem:[%s2284 + $0x108] sm:$0xff]
  %v2319 = vld [vmem:[%s2284 + $0x110] sm:$0xff]
  %v2320 = vld [vmem:[%s2284 + $0x118] sm:$0xff]
  %v2321 = vld [vmem:[%s2284 + $0x120] sm:$0xff]
  %v2322 = vld [vmem:[%s2284 + $0x128] sm:$0xff]
  %v2323 = vld [vmem:[%s2284 + $0x130] sm:$0xff]
  %v2324 = vld [vmem:[%s2284 + $0x138] sm:$0xff]
  %v2325 = vld [vmem:[%s2284 + $0x140] sm:$0xff]
  %v2326 = vld [vmem:[%s2284 + $0x148] sm:$0xff]
  %v2327 = vld [vmem:[%s2284 + $0x150] sm:$0xff]
  %v2328 = vld [vmem:[%s2284 + $0x158] sm:$0xff]
  %v2329 = vld [vmem:[%s2284 + $0x160] sm:$0xff]
  %v2330 = vld [vmem:[%s2284 + $0x168] sm:$0xff]
  %v2331 = vld [vmem:[%s2284 + $0x170] sm:$0xff]
  %v2332 = vld [vmem:[%s2284 + $0x178] sm:$0xff]
  %v2333 = vld [vmem:[%s2284 + $0x180] sm:$0xff]
  %v2334 = vld [vmem:[%s2284 + $0x188] sm:$0xff]
  %v2335 = vld [vmem:[%s2284 + $0x190] sm:$0xff]
  %v2336 = vld [vmem:[%s2284 + $0x198] sm:$0xff]
  %v2337 = vld [vmem:[%s2284 + $0x1a0] sm:$0xff]
  %v2338 = vld [vmem:[%s2284 + $0x1a8] sm:$0xff]
  %v2339 = vld [vmem:[%s2284 + $0x1b0] sm:$0xff]
  %v2340 = vld [vmem:[%s2284 + $0x1b8] sm:$0xff]
  %v2341 = vld [vmem:[%s2284 + $0x1c0] sm:$0xff]
  %v2342 = vld [vmem:[%s2284 + $0x1c8] sm:$0xff]
  %v2343 = vld [vmem:[%s2284 + $0x1d0] sm:$0xff]
  %v2344 = vld [vmem:[%s2284 + $0x1d8] sm:$0xff]
  %v2345 = vld [vmem:[%s2284 + $0x1e0] sm:$0xff]
  %v2346 = vld [vmem:[%s2284 + $0x1e8] sm:$0xff]
  %v2347 = vld [vmem:[%s2284 + $0x1f0] sm:$0xff]
  %v2348 = vld [vmem:[%s2284 + $0x1f8] sm:$0xff]
  %v2349 = vld [vmem:[%s2284 + $0x200] sm:$0xff]
  %v2350 = vld [vmem:[%s2284 + $0x208] sm:$0xff]
  %v2351 = vld [vmem:[%s2284 + $0x210] sm:$0xff]
  %v2352 = vld [vmem:[%s2284 + $0x218] sm:$0xff]
  %v2353 = vld [vmem:[%s2284 + $0x220] sm:$0xff]
  %v2354 = vld [vmem:[%s2284 + $0x228] sm:$0xff]
  %v2355 = vld [vmem:[%s2284 + $0x230] sm:$0xff]
  %v2356 = vld [vmem:[%s2284 + $0x238] sm:$0xff]
  %v2357 = vld [vmem:[%s2284 + $0x240] sm:$0xff]
  %v2358 = vld [vmem:[%s2284 + $0x248] sm:$0xff]
  %v2359 = vld [vmem:[%s2284 + $0x250] sm:$0xff]
  %v2360 = vld [vmem:[%s2284 + $0x258] sm:$0xff]
  %v2361 = vld [vmem:[%s2284 + $0x260] sm:$0xff]
  %v2362 = vld [vmem:[%s2284 + $0x268] sm:$0xff]
  %v2363 = vld [vmem:[%s2284 + $0x270] sm:$0xff]
  %v2364 = vld [vmem:[%s2284 + $0x278] sm:$0xff]
  %v2365 = vcombine.low %v2252, %v2259
  %v2366 = vcombine.low %v2260, %v2275
  %v2367 = vcombine.low %v2282, %v2283
  %v2369 = vunpack.c.l.s4 1966171168
  %v2370 = vunpack.c.0.s8 %v2369
  %v2371 = vlaneseq
  %v2372 = vshrl.u32 %v2371, 7
  %v2373 = vsub.s32 %v2370, %v2372
  %v2374 = vrot.slane %v2365, %v2373
  %v2376 = vunpack.c.l.s4 1966171168
  %v2377 = vunpack.c.0.s8 %v2376
  %v2378 = vlaneseq
  %v2379 = vshrl.u32 %v2378, 7
  %v2380 = vsub.s32 %v2377, %v2379
  %v2381 = vrot.slane %v2366, %v2380
  %v2383 = vunpack.c.l.s4 1966171168
  %v2384 = vunpack.c.0.s8 %v2383
  %v2385 = vlaneseq
  %v2386 = vshrl.u32 %v2385, 7
  %v2387 = vsub.s32 %v2384, %v2386
  %v2388 = vrot.slane %v2367, %v2387
  %v2389 = vcombine.low %v2374, %v2381
  %v2391 = vunpack.c.l.s4 1966171168
  %v2392 = vunpack.c.0.s8 %v2391
  %v2393 = vlaneseq
  %v2394 = vshrl.u32 %v2393, 7
  %v2395 = vsub.s32 %v2392, %v2394
  %v2396 = vrot.slane %v2389, %v2395
  %v2398 = vunpack.c.l.s4 1966171168
  %v2399 = vunpack.c.0.s8 %v2398
  %v2400 = vlaneseq
  %v2401 = vshrl.u32 %v2400, 7
  %v2402 = vsub.s32 %v2399, %v2401
  %v2403 = vrot.slane %v2388, %v2402
  %v2404 = vcombine.low %v2396, %v2403
  %2406 = vmatprep.subr.mxu0 %v2286
  %2407 = vmatpush1.msra.mxu0 %v2285
  %2408 = vmatprep.subr.mxu0 %v2291
  %2409 = vmatpush1.msra.mxu0 %v2290
  %2410 = vmatprep.subr.mxu0 %v2296
  %2411 = vmatpush1.msra.mxu0 %v2295
  %2412 = vmatprep.subr.mxu0 %v2301
  %2413 = vmatpush1.msra.mxu0 %v2300
  %2414 = vmatprep.subr.mxu0 %v2306
  %2415 = vmatpush1.msra.mxu0 %v2305
  %2416 = vmatprep.subr.mxu0 %v2311
  %2417 = vmatpush1.msra.mxu0 %v2310
  %2418 = vmatprep.subr.mxu0 %v2316
  %2419 = vmatpush1.msra.mxu0 %v2315
  %2420 = vmatprep.subr.mxu0 %v2321
  %2421 = vmatpush1.msra.mxu0 %v2320
  %2422 = vmatprep.subr.mxu0 %v2326
  %2423 = vmatpush1.msra.mxu0 %v2325
  %2424 = vmatprep.subr.mxu0 %v2331
  %2425 = vmatpush1.msra.mxu0 %v2330
  %2426 = vmatprep.subr.mxu0 %v2336
  %2427 = vmatpush1.msra.mxu0 %v2335
  %2428 = vmatprep.subr.mxu0 %v2341
  %2429 = vmatpush1.msra.mxu0 %v2340
  %2430 = vmatprep.subr.mxu0 %v2346
  %2431 = vmatpush1.msra.mxu0 %v2345
  %2432 = vmatprep.subr.mxu0 %v2351
  %2433 = vmatpush1.msra.mxu0 %v2350
  %2434 = vmatprep.subr.mxu0 %v2356
  %2435 = vmatpush1.msra.mxu0 %v2355
  %2436 = vmatprep.subr.mxu0 %v2361
  %2437 = vmatpush1.msra.mxu0 %v2360
  %2438 = vmatprep.subr.mxu0 0.0
  %2439 = vmatpush1.msra.mxu0 0.0
  %2440 = vmatprep.subr.mxu0 0.0
  %2441 = vmatpush1.msra.mxu0 0.0
  %2442 = vmatprep.subr.mxu0 0.0
  %2443 = vmatpush1.msra.mxu0 0.0
  %2444 = vmatprep.subr.mxu0 0.0
  %2445 = vmatpush1.msra.mxu0 0.0
  %2446 = vmatprep.subr.mxu0 0.0
  %2447 = vmatpush1.msra.mxu0 0.0
  %2448 = vmatprep.subr.mxu0 0.0
  %2449 = vmatpush1.msra.mxu0 0.0
  %2450 = vmatprep.subr.mxu0 0.0
  %2451 = vmatpush1.msra.mxu0 0.0
  %2452 = vmatprep.subr.mxu0 0.0
  %2453 = vmatpush1.msra.mxu0 0.0
  %2454 = vmatprep.subr.mxu0 0.0
  %2455 = vmatpush1.msra.mxu0 0.0
  %2456 = vmatprep.subr.mxu0 0.0
  %2457 = vmatpush1.msra.mxu0 0.0
  %2458 = vmatprep.subr.mxu0 0.0
  %2459 = vmatpush1.msra.mxu0 0.0
  %2460 = vmatprep.subr.mxu0 0.0
  %2461 = vmatpush1.msra.mxu0 0.0
  %2462 = vmatprep.subr.mxu0 0.0
  %2463 = vmatpush1.msra.mxu0 0.0
  %2464 = vmatprep.subr.mxu0 0.0
  %2465 = vmatpush1.msra.mxu0 0.0
  %2466 = vmatprep.subr.mxu0 0.0
  %2467 = vmatpush1.msra.mxu0 0.0
  %2468 = vmatprep.subr.mxu0 0.0
  %2469 = vmatpush1.msra.mxu0 0.0
  %2470 = vmatprep.mubr.f32.mxu0 0.0
  %2471 = vmatmul.mubr.f32.gmra.mrb[0].mxu0 %v2404
  %v2472 = vpop.f32.mrb[0].mxu0
  %v2473 = vadd.f32 0.0, %v2472
  %v2474 = vpop.f32.mrb[0].mxu0
  %v2475 = vadd.f32 0.0, %v2474
  %2476 = vdwg.mxu0
  %2477 = vmatprep.subr.mxu0 %v2288
  %2478 = vmatpush1.msra.mxu0 %v2287
  %2479 = vmatprep.subr.mxu0 %v2293
  %2480 = vmatpush1.msra.mxu0 %v2292
  %2481 = vmatprep.subr.mxu0 %v2298
  %2482 = vmatpush1.msra.mxu0 %v2297
  %2483 = vmatprep.subr.mxu0 %v2303
  %2484 = vmatpush1.msra.mxu0 %v2302
  %2485 = vmatprep.subr.mxu0 %v2308
  %2486 = vmatpush1.msra.mxu0 %v2307
  %2487 = vmatprep.subr.mxu0 %v2313
  %2488 = vmatpush1.msra.mxu0 %v2312
  %2489 = vmatprep.subr.mxu0 %v2318
  %2490 = vmatpush1.msra.mxu0 %v2317
  %2491 = vmatprep.subr.mxu0 %v2323
  %2492 = vmatpush1.msra.mxu0 %v2322
  %2493 = vmatprep.subr.mxu0 %v2328
  %2494 = vmatpush1.msra.mxu0 %v2327
  %2495 = vmatprep.subr.mxu0 %v2333
  %2496 = vmatpush1.msra.mxu0 %v2332
  %2497 = vmatprep.subr.mxu0 %v2338
  %2498 = vmatpush1.msra.mxu0 %v2337
  %2499 = vmatprep.subr.mxu0 %v2343
  %2500 = vmatpush1.msra.mxu0 %v2342
  %2501 = vmatprep.subr.mxu0 %v2348
  %2502 = vmatpush1.msra.mxu0 %v2347
  %2503 = vmatprep.subr.mxu0 %v2353
  %2504 = vmatpush1.msra.mxu0 %v2352
  %2505 = vmatprep.subr.mxu0 %v2358
  %2506 = vmatpush1.msra.mxu0 %v2357
  %2507 = vmatprep.subr.mxu0 %v2363
  %2508 = vmatpush1.msra.mxu0 %v2362
  %2509 = vmatprep.subr.mxu0 0.0
  %2510 = vmatpush1.msra.mxu0 0.0
  %2511 = vmatprep.subr.mxu0 0.0
  %2512 = vmatpush1.msra.mxu0 0.0
  %2513 = vmatprep.subr.mxu0 0.0
  %2514 = vmatpush1.msra.mxu0 0.0
  %2515 = vmatprep.subr.mxu0 0.0
  %2516 = vmatpush1.msra.mxu0 0.0
  %2517 = vmatprep.subr.mxu0 0.0
  %2518 = vmatpush1.msra.mxu0 0.0
  %2519 = vmatprep.subr.mxu0 0.0
  %2520 = vmatpush1.msra.mxu0 0.0
  %2521 = vmatprep.subr.mxu0 0.0
  %2522 = vmatpush1.msra.mxu0 0.0
  %2523 = vmatprep.subr.mxu0 0.0
  %2524 = vmatpush1.msra.mxu0 0.0
  %2525 = vmatprep.subr.mxu0 0.0
  %2526 = vmatpush1.msra.mxu0 0.0
  %2527 = vmatprep.subr.mxu0 0.0
  %2528 = vmatpush1.msra.mxu0 0.0
  %2529 = vmatprep.subr.mxu0 0.0
  %2530 = vmatpush1.msra.mxu0 0.0
  %2531 = vmatprep.subr.mxu0 0.0
  %2532 = vmatpush1.msra.mxu0 0.0
  %2533 = vmatprep.subr.mxu0 0.0
  %2534 = vmatpush1.msra.mxu0 0.0
  %2535 = vmatprep.subr.mxu0 0.0
  %2536 = vmatpush1.msra.mxu0 0.0
  %2537 = vmatprep.subr.mxu0 0.0
  %2538 = vmatpush1.msra.mxu0 0.0
  %2539 = vmatprep.subr.mxu0 0.0
  %2540 = vmatpush1.msra.mxu0 0.0
  %2541 = vmatprep.mubr.f32.mxu0 0.0
  %2542 = vmatmul.mubr.f32.gmra.mrb[0].mxu0 %v2404
  %v2543 = vpop.f32.mrb[0].mxu0
  %v2544 = vadd.f32 0.0, %v2543
  %v2545 = vpop.f32.mrb[0].mxu0
  %v2546 = vadd.f32 0.0, %v2545
  %2547 = vdwg.mxu0
  %2548 = vmatprep.subr.mxu0 0.0
  %2549 = vmatpush1.msra.mxu0 %v2289
  %2550 = vmatprep.subr.mxu0 0.0
  %2551 = vmatpush1.msra.mxu0 %v2294
  %2552 = vmatprep.subr.mxu0 0.0
  %2553 = vmatpush1.msra.mxu0 %v2299
  %2554 = vmatprep.subr.mxu0 0.0
  %2555 = vmatpush1.msra.mxu0 %v2304
  %2556 = vmatprep.subr.mxu0 0.0
  %2557 = vmatpush1.msra.mxu0 %v2309
  %2558 = vmatprep.subr.mxu0 0.0
  %2559 = vmatpush1.msra.mxu0 %v2314
  %2560 = vmatprep.subr.mxu0 0.0
  %2561 = vmatpush1.msra.mxu0 %v2319
  %2562 = vmatprep.subr.mxu0 0.0
  %2563 = vmatpush1.msra.mxu0 %v2324
  %2564 = vmatprep.subr.mxu0 0.0
  %2565 = vmatpush1.msra.mxu0 %v2329
  %2566 = vmatprep.subr.mxu0 0.0
  %2567 = vmatpush1.msra.mxu0 %v2334
  %2568 = vmatprep.subr.mxu0 0.0
  %2569 = vmatpush1.msra.mxu0 %v2339
  %2570 = vmatprep.subr.mxu0 0.0
  %2571 = vmatpush1.msra.mxu0 %v2344
  %2572 = vmatprep.subr.mxu0 0.0
  %2573 = vmatpush1.msra.mxu0 %v2349
  %2574 = vmatprep.subr.mxu0 0.0
  %2575 = vmatpush1.msra.mxu0 %v2354
  %2576 = vmatprep.subr.mxu0 0.0
  %2577 = vmatpush1.msra.mxu0 %v2359
  %2578 = vmatprep.subr.mxu0 0.0
  %2579 = vmatpush1.msra.mxu0 %v2364
  %2580 = vmatprep.subr.mxu0 0.0
  %2581 = vmatpush1.msra.mxu0 0.0
  %2582 = vmatprep.subr.mxu0 0.0
  %2583 = vmatpush1.msra.mxu0 0.0
  %2584 = vmatprep.subr.mxu0 0.0
  %2585 = vmatpush1.msra.mxu0 0.0
  %2586 = vmatprep.subr.mxu0 0.0
  %2587 = vmatpush1.msra.mxu0 0.0
  %2588 = vmatprep.subr.mxu0 0.0
  %2589 = vmatpush1.msra.mxu0 0.0
  %2590 = vmatprep.subr.mxu0 0.0
  %2591 = vmatpush1.msra.mxu0 0.0
  %2592 = vmatprep.subr.mxu0 0.0
  %2593 = vmatpush1.msra.mxu0 0.0
  %2594 = vmatprep.subr.mxu0 0.0
  %2595 = vmatpush1.msra.mxu0 0.0
  %2596 = vmatprep.subr.mxu0 0.0
  %2597 = vmatpush1.msra.mxu0 0.0
  %2598 = vmatprep.subr.mxu0 0.0
  %2599 = vmatpush1.msra.mxu0 0.0
  %2600 = vmatprep.subr.mxu0 0.0
  %2601 = vmatpush1.msra.mxu0 0.0
  %2602 = vmatprep.subr.mxu0 0.0
  %2603 = vmatpush1.msra.mxu0 0.0
  %2604 = vmatprep.subr.mxu0 0.0
  %2605 = vmatpush1.msra.mxu0 0.0
  %2606 = vmatprep.subr.mxu0 0.0
  %2607 = vmatpush1.msra.mxu0 0.0
  %2608 = vmatprep.subr.mxu0 0.0
  %2609 = vmatpush1.msra.mxu0 0.0
  %2610 = vmatprep.subr.mxu0 0.0
  %2611 = vmatpush1.msra.mxu0 0.0
  %2612 = vmatprep.mubr.f32.mxu0 0.0
  %2613 = vmatmul.mubr.f32.gmra.mrb[0].mxu0 %v2404
  %v2614 = vpop.f32.mrb[0].mxu0
  %v2615 = vadd.f32 0.0, %v2614
  %v2616 = vpop.f32.mrb[0].mxu0
  %2617 = vdwg.mxu0
  %v2618 = vadd.f32 %v2227, %v2473
  %v2619 = vadd.f32 %v2228, %v2475
  %v2620 = vadd.f32 %v2229, %v2544
  %v2621 = vadd.f32 %v2230, %v2546
  %v2622 = vadd.f32 %v2231, %v2615
  %s2623 = scalar_lea.vmem [#allocation3], 5
  %v2624 = vld [vmem:[%s2623] ss:$3 sm:$0x7]
  %s2625 = scalar_lea.vmem [#allocation3], 21
  %v2626 = vld [vmem:[%s2625] ss:$3 sm:$0x7]
  %v2630 = vunpack.c.l.s4 1966171168
  %v2631 = vunpack.c.0.s8 %v2630
  %v2632 = vlaneseq
  %v2633 = vshrl.u32 %v2632, 7
  %v2634 = vsub.s32 %v2631, %v2633
  %v2635 = vrot.slane %v2624, %v2634
  %v2636 = vcombine.high %v2635, %v2635
  %v2638 = vunpack.c.l.s4 1966171168
  %v2639 = vunpack.c.0.s8 %v2638
  %v2640 = vlaneseq
  %v2641 = vshrl.u32 %v2640, 7
  %v2642 = vsub.s32 %v2639, %v2641
  %v2643 = vrot.slane %v2635, %v2642
  %v2645 = vunpack.c.l.s4 1966171168
  %v2646 = vunpack.c.0.s8 %v2645
  %v2647 = vlaneseq
  %v2648 = vshrl.u32 %v2647, 7
  %v2649 = vsub.s32 %v2646, %v2648
  %v2650 = vrot.slane %v2636, %v2649
  %v2651 = vcombine.high %v2643, %v2643
  %v2653 = vunpack.c.l.s4 1966171168
  %v2654 = vunpack.c.0.s8 %v2653
  %v2655 = vlaneseq
  %v2656 = vshrl.u32 %v2655, 7
  %v2657 = vsub.s32 %v2654, %v2656
  %v2658 = vrot.slane %v2626, %v2657
  %v2659 = vcombine.high %v2658, %v2658
  %v2661 = vunpack.c.l.s4 1966171168
  %v2662 = vunpack.c.0.s8 %v2661
  %v2663 = vlaneseq
  %v2664 = vshrl.u32 %v2663, 7
  %v2665 = vsub.s32 %v2662, %v2664
  %v2666 = vrot.slane %v2658, %v2665
  %v2668 = vunpack.c.l.s4 1966171168
  %v2669 = vunpack.c.0.s8 %v2668
  %v2670 = vlaneseq
  %v2671 = vshrl.u32 %v2670, 7
  %v2672 = vsub.s32 %v2669, %v2671
  %v2673 = vrot.slane %v2659, %v2672
  %v2674 = vcombine.high %v2666, %v2666
  %s2675 = scalar_lea.vmem %s5, 3200
  %v2676 = vld [vmem:[%s2675] sm:$0xff]
  %v2677 = vld [vmem:[%s2675 + $0x8] sm:$0xff]
  %v2678 = vld [vmem:[%s2675 + $0x10] sm:$0xff]
  %v2679 = vld [vmem:[%s2675 + $0x18] sm:$0xff]
  %v2680 = vld [vmem:[%s2675 + $0x20] sm:$0xff]
  %v2681 = vld [vmem:[%s2675 + $0x28] sm:$0xff]
  %v2682 = vld [vmem:[%s2675 + $0x30] sm:$0xff]
  %v2683 = vld [vmem:[%s2675 + $0x38] sm:$0xff]
  %v2684 = vld [vmem:[%s2675 + $0x40] sm:$0xff]
  %v2685 = vld [vmem:[%s2675 + $0x48] sm:$0xff]
  %v2686 = vld [vmem:[%s2675 + $0x50] sm:$0xff]
  %v2687 = vld [vmem:[%s2675 + $0x58] sm:$0xff]
  %v2688 = vld [vmem:[%s2675 + $0x60] sm:$0xff]
  %v2689 = vld [vmem:[%s2675 + $0x68] sm:$0xff]
  %v2690 = vld [vmem:[%s2675 + $0x70] sm:$0xff]
  %v2691 = vld [vmem:[%s2675 + $0x78] sm:$0xff]
  %v2692 = vld [vmem:[%s2675 + $0x80] sm:$0xff]
  %v2693 = vld [vmem:[%s2675 + $0x88] sm:$0xff]
  %v2694 = vld [vmem:[%s2675 + $0x90] sm:$0xff]
  %v2695 = vld [vmem:[%s2675 + $0x98] sm:$0xff]
  %v2696 = vld [vmem:[%s2675 + $0xa0] sm:$0xff]
  %v2697 = vld [vmem:[%s2675 + $0xa8] sm:$0xff]
  %v2698 = vld [vmem:[%s2675 + $0xb0] sm:$0xff]
  %v2699 = vld [vmem:[%s2675 + $0xb8] sm:$0xff]
  %v2700 = vld [vmem:[%s2675 + $0xc0] sm:$0xff]
  %v2701 = vld [vmem:[%s2675 + $0xc8] sm:$0xff]
  %v2702 = vld [vmem:[%s2675 + $0xd0] sm:$0xff]
  %v2703 = vld [vmem:[%s2675 + $0xd8] sm:$0xff]
  %v2704 = vld [vmem:[%s2675 + $0xe0] sm:$0xff]
  %v2705 = vld [vmem:[%s2675 + $0xe8] sm:$0xff]
  %v2706 = vld [vmem:[%s2675 + $0xf0] sm:$0xff]
  %v2707 = vld [vmem:[%s2675 + $0xf8] sm:$0xff]
  %v2708 = vld [vmem:[%s2675 + $0x100] sm:$0xff]
  %v2709 = vld [vmem:[%s2675 + $0x108] sm:$0xff]
  %v2710 = vld [vmem:[%s2675 + $0x110] sm:$0xff]
  %v2711 = vld [vmem:[%s2675 + $0x118] sm:$0xff]
  %v2712 = vld [vmem:[%s2675 + $0x120] sm:$0xff]
  %v2713 = vld [vmem:[%s2675 + $0x128] sm:$0xff]
  %v2714 = vld [vmem:[%s2675 + $0x130] sm:$0xff]
  %v2715 = vld [vmem:[%s2675 + $0x138] sm:$0xff]
  %v2716 = vld [vmem:[%s2675 + $0x140] sm:$0xff]
  %v2717 = vld [vmem:[%s2675 + $0x148] sm:$0xff]
  %v2718 = vld [vmem:[%s2675 + $0x150] sm:$0xff]
  %v2719 = vld [vmem:[%s2675 + $0x158] sm:$0xff]
  %v2720 = vld [vmem:[%s2675 + $0x160] sm:$0xff]
  %v2721 = vld [vmem:[%s2675 + $0x168] sm:$0xff]
  %v2722 = vld [vmem:[%s2675 + $0x170] sm:$0xff]
  %v2723 = vld [vmem:[%s2675 + $0x178] sm:$0xff]
  %v2724 = vld [vmem:[%s2675 + $0x180] sm:$0xff]
  %v2725 = vld [vmem:[%s2675 + $0x188] sm:$0xff]
  %v2726 = vld [vmem:[%s2675 + $0x190] sm:$0xff]
  %v2727 = vld [vmem:[%s2675 + $0x198] sm:$0xff]
  %v2728 = vld [vmem:[%s2675 + $0x1a0] sm:$0xff]
  %v2729 = vld [vmem:[%s2675 + $0x1a8] sm:$0xff]
  %v2730 = vld [vmem:[%s2675 + $0x1b0] sm:$0xff]
  %v2731 = vld [vmem:[%s2675 + $0x1b8] sm:$0xff]
  %v2732 = vld [vmem:[%s2675 + $0x1c0] sm:$0xff]
  %v2733 = vld [vmem:[%s2675 + $0x1c8] sm:$0xff]
  %v2734 = vld [vmem:[%s2675 + $0x1d0] sm:$0xff]
  %v2735 = vld [vmem:[%s2675 + $0x1d8] sm:$0xff]
  %v2736 = vld [vmem:[%s2675 + $0x1e0] sm:$0xff]
  %v2737 = vld [vmem:[%s2675 + $0x1e8] sm:$0xff]
  %v2738 = vld [vmem:[%s2675 + $0x1f0] sm:$0xff]
  %v2739 = vld [vmem:[%s2675 + $0x1f8] sm:$0xff]
  %v2740 = vld [vmem:[%s2675 + $0x200] sm:$0xff]
  %v2741 = vld [vmem:[%s2675 + $0x208] sm:$0xff]
  %v2742 = vld [vmem:[%s2675 + $0x210] sm:$0xff]
  %v2743 = vld [vmem:[%s2675 + $0x218] sm:$0xff]
  %v2744 = vld [vmem:[%s2675 + $0x220] sm:$0xff]
  %v2745 = vld [vmem:[%s2675 + $0x228] sm:$0xff]
  %v2746 = vld [vmem:[%s2675 + $0x230] sm:$0xff]
  %v2747 = vld [vmem:[%s2675 + $0x238] sm:$0xff]
  %v2748 = vld [vmem:[%s2675 + $0x240] sm:$0xff]
  %v2749 = vld [vmem:[%s2675 + $0x248] sm:$0xff]
  %v2750 = vld [vmem:[%s2675 + $0x250] sm:$0xff]
  %v2751 = vld [vmem:[%s2675 + $0x258] sm:$0xff]
  %v2752 = vld [vmem:[%s2675 + $0x260] sm:$0xff]
  %v2753 = vld [vmem:[%s2675 + $0x268] sm:$0xff]
  %v2754 = vld [vmem:[%s2675 + $0x270] sm:$0xff]
  %v2755 = vld [vmem:[%s2675 + $0x278] sm:$0xff]
  %v2756 = vcombine.low %v2643, %v2650
  %v2757 = vcombine.low %v2651, %v2666
  %v2758 = vcombine.low %v2673, %v2674
  %v2760 = vunpack.c.l.s4 1966171168
  %v2761 = vunpack.c.0.s8 %v2760
  %v2762 = vlaneseq
  %v2763 = vshrl.u32 %v2762, 7
  %v2764 = vsub.s32 %v2761, %v2763
  %v2765 = vrot.slane %v2756, %v2764
  %v2767 = vunpack.c.l.s4 1966171168
  %v2768 = vunpack.c.0.s8 %v2767
  %v2769 = vlaneseq
  %v2770 = vshrl.u32 %v2769, 7
  %v2771 = vsub.s32 %v2768, %v2770
  %v2772 = vrot.slane %v2757, %v2771
  %v2774 = vunpack.c.l.s4 1966171168
  %v2775 = vunpack.c.0.s8 %v2774
  %v2776 = vlaneseq
  %v2777 = vshrl.u32 %v2776, 7
  %v2778 = vsub.s32 %v2775, %v2777
  %v2779 = vrot.slane %v2758, %v2778
  %v2780 = vcombine.low %v2765, %v2772
  %v2782 = vunpack.c.l.s4 1966171168
  %v2783 = vunpack.c.0.s8 %v2782
  %v2784 = vlaneseq
  %v2785 = vshrl.u32 %v2784, 7
  %v2786 = vsub.s32 %v2783, %v2785
  %v2787 = vrot.slane %v2780, %v2786
  %v2789 = vunpack.c.l.s4 1966171168
  %v2790 = vunpack.c.0.s8 %v2789
  %v2791 = vlaneseq
  %v2792 = vshrl.u32 %v2791, 7
  %v2793 = vsub.s32 %v2790, %v2792
  %v2794 = vrot.slane %v2779, %v2793
  %v2795 = vcombine.low %v2787, %v2794
  %2797 = vmatprep.subr.mxu0 %v2677
  %2798 = vmatpush1.msra.mxu0 %v2676
  %2799 = vmatprep.subr.mxu0 %v2682
  %2800 = vmatpush1.msra.mxu0 %v2681
  %2801 = vmatprep.subr.mxu0 %v2687
  %2802 = vmatpush1.msra.mxu0 %v2686
  %2803 = vmatprep.subr.mxu0 %v2692
  %2804 = vmatpush1.msra.mxu0 %v2691
  %2805 = vmatprep.subr.mxu0 %v2697
  %2806 = vmatpush1.msra.mxu0 %v2696
  %2807 = vmatprep.subr.mxu0 %v2702
  %2808 = vmatpush1.msra.mxu0 %v2701
  %2809 = vmatprep.subr.mxu0 %v2707
  %2810 = vmatpush1.msra.mxu0 %v2706
  %2811 = vmatprep.subr.mxu0 %v2712
  %2812 = vmatpush1.msra.mxu0 %v2711
  %2813 = vmatprep.subr.mxu0 %v2717
  %2814 = vmatpush1.msra.mxu0 %v2716
  %2815 = vmatprep.subr.mxu0 %v2722
  %2816 = vmatpush1.msra.mxu0 %v2721
  %2817 = vmatprep.subr.mxu0 %v2727
  %2818 = vmatpush1.msra.mxu0 %v2726
  %2819 = vmatprep.subr.mxu0 %v2732
  %2820 = vmatpush1.msra.mxu0 %v2731
  %2821 = vmatprep.subr.mxu0 %v2737
  %2822 = vmatpush1.msra.mxu0 %v2736
  %2823 = vmatprep.subr.mxu0 %v2742
  %2824 = vmatpush1.msra.mxu0 %v2741
  %2825 = vmatprep.subr.mxu0 %v2747
  %2826 = vmatpush1.msra.mxu0 %v2746
  %2827 = vmatprep.subr.mxu0 %v2752
  %2828 = vmatpush1.msra.mxu0 %v2751
  %2829 = vmatprep.subr.mxu0 0.0
  %2830 = vmatpush1.msra.mxu0 0.0
  %2831 = vmatprep.subr.mxu0 0.0
  %2832 = vmatpush1.msra.mxu0 0.0
  %2833 = vmatprep.subr.mxu0 0.0
  %2834 = vmatpush1.msra.mxu0 0.0
  %2835 = vmatprep.subr.mxu0 0.0
  %2836 = vmatpush1.msra.mxu0 0.0
  %2837 = vmatprep.subr.mxu0 0.0
  %2838 = vmatpush1.msra.mxu0 0.0
  %2839 = vmatprep.subr.mxu0 0.0
  %2840 = vmatpush1.msra.mxu0 0.0
  %2841 = vmatprep.subr.mxu0 0.0
  %2842 = vmatpush1.msra.mxu0 0.0
  %2843 = vmatprep.subr.mxu0 0.0
  %2844 = vmatpush1.msra.mxu0 0.0
  %2845 = vmatprep.subr.mxu0 0.0
  %2846 = vmatpush1.msra.mxu0 0.0
  %2847 = vmatprep.subr.mxu0 0.0
  %2848 = vmatpush1.msra.mxu0 0.0
  %2849 = vmatprep.subr.mxu0 0.0
  %2850 = vmatpush1.msra.mxu0 0.0
  %2851 = vmatprep.subr.mxu0 0.0
  %2852 = vmatpush1.msra.mxu0 0.0
  %2853 = vmatprep.subr.mxu0 0.0
  %2854 = vmatpush1.msra.mxu0 0.0
  %2855 = vmatprep.subr.mxu0 0.0
  %2856 = vmatpush1.msra.mxu0 0.0
  %2857 = vmatprep.subr.mxu0 0.0
  %2858 = vmatpush1.msra.mxu0 0.0
  %2859 = vmatprep.subr.mxu0 0.0
  %2860 = vmatpush1.msra.mxu0 0.0
  %2861 = vmatprep.mubr.f32.mxu0 0.0
  %2862 = vmatmul.mubr.f32.gmra.mrb[0].mxu0 %v2795
  %v2863 = vpop.f32.mrb[0].mxu0
  %v2864 = vadd.f32 0.0, %v2863
  %v2865 = vpop.f32.mrb[0].mxu0
  %v2866 = vadd.f32 0.0, %v2865
  %2867 = vdwg.mxu0
  %2868 = vmatprep.subr.mxu0 %v2679
  %2869 = vmatpush1.msra.mxu0 %v2678
  %2870 = vmatprep.subr.mxu0 %v2684
  %2871 = vmatpush1.msra.mxu0 %v2683
  %2872 = vmatprep.subr.mxu0 %v2689
  %2873 = vmatpush1.msra.mxu0 %v2688
  %2874 = vmatprep.subr.mxu0 %v2694
  %2875 = vmatpush1.msra.mxu0 %v2693
  %2876 = vmatprep.subr.mxu0 %v2699
  %2877 = vmatpush1.msra.mxu0 %v2698
  %2878 = vmatprep.subr.mxu0 %v2704
  %2879 = vmatpush1.msra.mxu0 %v2703
  %2880 = vmatprep.subr.mxu0 %v2709
  %2881 = vmatpush1.msra.mxu0 %v2708
  %2882 = vmatprep.subr.mxu0 %v2714
  %2883 = vmatpush1.msra.mxu0 %v2713
  %2884 = vmatprep.subr.mxu0 %v2719
  %2885 = vmatpush1.msra.mxu0 %v2718
  %2886 = vmatprep.subr.mxu0 %v2724
  %2887 = vmatpush1.msra.mxu0 %v2723
  %2888 = vmatprep.subr.mxu0 %v2729
  %2889 = vmatpush1.msra.mxu0 %v2728
  %2890 = vmatprep.subr.mxu0 %v2734
  %2891 = vmatpush1.msra.mxu0 %v2733
  %2892 = vmatprep.subr.mxu0 %v2739
  %2893 = vmatpush1.msra.mxu0 %v2738
  %2894 = vmatprep.subr.mxu0 %v2744
  %2895 = vmatpush1.msra.mxu0 %v2743
  %2896 = vmatprep.subr.mxu0 %v2749
  %2897 = vmatpush1.msra.mxu0 %v2748
  %2898 = vmatprep.subr.mxu0 %v2754
  %2899 = vmatpush1.msra.mxu0 %v2753
  %2900 = vmatprep.subr.mxu0 0.0
  %2901 = vmatpush1.msra.mxu0 0.0
  %2902 = vmatprep.subr.mxu0 0.0
  %2903 = vmatpush1.msra.mxu0 0.0
  %2904 = vmatprep.subr.mxu0 0.0
  %2905 = vmatpush1.msra.mxu0 0.0
  %2906 = vmatprep.subr.mxu0 0.0
  %2907 = vmatpush1.msra.mxu0 0.0
  %2908 = vmatprep.subr.mxu0 0.0
  %2909 = vmatpush1.msra.mxu0 0.0
  %2910 = vmatprep.subr.mxu0 0.0
  %2911 = vmatpush1.msra.mxu0 0.0
  %2912 = vmatprep.subr.mxu0 0.0
  %2913 = vmatpush1.msra.mxu0 0.0
  %2914 = vmatprep.subr.mxu0 0.0
  %2915 = vmatpush1.msra.mxu0 0.0
  %2916 = vmatprep.subr.mxu0 0.0
  %2917 = vmatpush1.msra.mxu0 0.0
  %2918 = vmatprep.subr.mxu0 0.0
  %2919 = vmatpush1.msra.mxu0 0.0
  %2920 = vmatprep.subr.mxu0 0.0
  %2921 = vmatpush1.msra.mxu0 0.0
  %2922 = vmatprep.subr.mxu0 0.0
  %2923 = vmatpush1.msra.mxu0 0.0
  %2924 = vmatprep.subr.mxu0 0.0
  %2925 = vmatpush1.msra.mxu0 0.0
  %2926 = vmatprep.subr.mxu0 0.0
  %2927 = vmatpush1.msra.mxu0 0.0
  %2928 = vmatprep.subr.mxu0 0.0
  %2929 = vmatpush1.msra.mxu0 0.0
  %2930 = vmatprep.subr.mxu0 0.0
  %2931 = vmatpush1.msra.mxu0 0.0
  %2932 = vmatprep.mubr.f32.mxu0 0.0
  %2933 = vmatmul.mubr.f32.gmra.mrb[0].mxu0 %v2795
  %v2934 = vpop.f32.mrb[0].mxu0
  %v2935 = vadd.f32 0.0, %v2934
  %v2936 = vpop.f32.mrb[0].mxu0
  %v2937 = vadd.f32 0.0, %v2936
  %2938 = vdwg.mxu0
  %2939 = vmatprep.subr.mxu0 0.0
  %2940 = vmatpush1.msra.mxu0 %v2680
  %2941 = vmatprep.subr.mxu0 0.0
  %2942 = vmatpush1.msra.mxu0 %v2685
  %2943 = vmatprep.subr.mxu0 0.0
  %2944 = vmatpush1.msra.mxu0 %v2690
  %2945 = vmatprep.subr.mxu0 0.0
  %2946 = vmatpush1.msra.mxu0 %v2695
  %2947 = vmatprep.subr.mxu0 0.0
  %2948 = vmatpush1.msra.mxu0 %v2700
  %2949 = vmatprep.subr.mxu0 0.0
  %2950 = vmatpush1.msra.mxu0 %v2705
  %2951 = vmatprep.subr.mxu0 0.0
  %2952 = vmatpush1.msra.mxu0 %v2710
  %2953 = vmatprep.subr.mxu0 0.0
  %2954 = vmatpush1.msra.mxu0 %v2715
  %2955 = vmatprep.subr.mxu0 0.0
  %2956 = vmatpush1.msra.mxu0 %v2720
  %2957 = vmatprep.subr.mxu0 0.0
  %2958 = vmatpush1.msra.mxu0 %v2725
  %2959 = vmatprep.subr.mxu0 0.0
  %2960 = vmatpush1.msra.mxu0 %v2730
  %2961 = vmatprep.subr.mxu0 0.0
  %2962 = vmatpush1.msra.mxu0 %v2735
  %2963 = vmatprep.subr.mxu0 0.0
  %2964 = vmatpush1.msra.mxu0 %v2740
  %2965 = vmatprep.subr.mxu0 0.0
  %2966 = vmatpush1.msra.mxu0 %v2745
  %2967 = vmatprep.subr.mxu0 0.0
  %2968 = vmatpush1.msra.mxu0 %v2750
  %2969 = vmatprep.subr.mxu0 0.0
  %2970 = vmatpush1.msra.mxu0 %v2755
  %2971 = vmatprep.subr.mxu0 0.0
  %2972 = vmatpush1.msra.mxu0 0.0
  %2973 = vmatprep.subr.mxu0 0.0
  %2974 = vmatpush1.msra.mxu0 0.0
  %2975 = vmatprep.subr.mxu0 0.0
  %2976 = vmatpush1.msra.mxu0 0.0
  %2977 = vmatprep.subr.mxu0 0.0
  %2978 = vmatpush1.msra.mxu0 0.0
  %2979 = vmatprep.subr.mxu0 0.0
  %2980 = vmatpush1.msra.mxu0 0.0
  %2981 = vmatprep.subr.mxu0 0.0
  %2982 = vmatpush1.msra.mxu0 0.0
  %2983 = vmatprep.subr.mxu0 0.0
  %2984 = vmatpush1.msra.mxu0 0.0
  %2985 = vmatprep.subr.mxu0 0.0
  %2986 = vmatpush1.msra.mxu0 0.0
  %2987 = vmatprep.subr.mxu0 0.0
  %2988 = vmatpush1.msra.mxu0 0.0
  %2989 = vmatprep.subr.mxu0 0.0
  %2990 = vmatpush1.msra.mxu0 0.0
  %2991 = vmatprep.subr.mxu0 0.0
  %2992 = vmatpush1.msra.mxu0 0.0
  %2993 = vmatprep.subr.mxu0 0.0
  %2994 = vmatpush1.msra.mxu0 0.0
  %2995 = vmatprep.subr.mxu0 0.0
  %2996 = vmatpush1.msra.mxu0 0.0
  %2997 = vmatprep.subr.mxu0 0.0
  %2998 = vmatpush1.msra.mxu0 0.0
  %2999 = vmatprep.subr.mxu0 0.0
  %3000 = vmatpush1.msra.mxu0 0.0
  %3001 = vmatprep.subr.mxu0 0.0
  %3002 = vmatpush1.msra.mxu0 0.0
  %3003 = vmatprep.mubr.f32.mxu0 0.0
  %3004 = vmatmul.mubr.f32.gmra.mrb[0].mxu0 %v2795
  %v3005 = vpop.f32.mrb[0].mxu0
  %v3006 = vadd.f32 0.0, %v3005
  %v3007 = vpop.f32.mrb[0].mxu0
  %3008 = vdwg.mxu0
  %v3009 = vadd.f32 %v2618, %v2864
  %v3010 = vadd.f32 %v2619, %v2866
  %v3011 = vadd.f32 %v2620, %v2935
  %v3012 = vadd.f32 %v2621, %v2937
  %v3013 = vadd.f32 %v2622, %v3006
  %s3014 = scalar_lea.vmem [#allocation3], 6
  %v3015 = vld [vmem:[%s3014] ss:$3 sm:$0x7]
  %s3016 = scalar_lea.vmem [#allocation3], 22
  %v3017 = vld [vmem:[%s3016] ss:$3 sm:$0x7]
  %v3021 = vunpack.c.l.s4 1966171168
  %v3022 = vunpack.c.0.s8 %v3021
  %v3023 = vlaneseq
  %v3024 = vshrl.u32 %v3023, 7
  %v3025 = vsub.s32 %v3022, %v3024
  %v3026 = vrot.slane %v3015, %v3025
  %v3027 = vcombine.high %v3026, %v3026
  %v3029 = vunpack.c.l.s4 1966171168
  %v3030 = vunpack.c.0.s8 %v3029
  %v3031 = vlaneseq
  %v3032 = vshrl.u32 %v3031, 7
  %v3033 = vsub.s32 %v3030, %v3032
  %v3034 = vrot.slane %v3026, %v3033
  %v3036 = vunpack.c.l.s4 1966171168
  %v3037 = vunpack.c.0.s8 %v3036
  %v3038 = vlaneseq
  %v3039 = vshrl.u32 %v3038, 7
  %v3040 = vsub.s32 %v3037, %v3039
  %v3041 = vrot.slane %v3027, %v3040
  %v3042 = vcombine.high %v3034, %v3034
  %v3044 = vunpack.c.l.s4 1966171168
  %v3045 = vunpack.c.0.s8 %v3044
  %v3046 = vlaneseq
  %v3047 = vshrl.u32 %v3046, 7
  %v3048 = vsub.s32 %v3045, %v3047
  %v3049 = vrot.slane %v3017, %v3048
  %v3050 = vcombine.high %v3049, %v3049
  %v3052 = vunpack.c.l.s4 1966171168
  %v3053 = vunpack.c.0.s8 %v3052
  %v3054 = vlaneseq
  %v3055 = vshrl.u32 %v3054, 7
  %v3056 = vsub.s32 %v3053, %v3055
  %v3057 = vrot.slane %v3049, %v3056
  %v3059 = vunpack.c.l.s4 1966171168
  %v3060 = vunpack.c.0.s8 %v3059
  %v3061 = vlaneseq
  %v3062 = vshrl.u32 %v3061, 7
  %v3063 = vsub.s32 %v3060, %v3062
  %v3064 = vrot.slane %v3050, %v3063
  %v3065 = vcombine.high %v3057, %v3057
  %s3066 = scalar_lea.vmem %s5, 3840
  %v3067 = vld [vmem:[%s3066] sm:$0xff]
  %v3068 = vld [vmem:[%s3066 + $0x8] sm:$0xff]
  %v3069 = vld [vmem:[%s3066 + $0x10] sm:$0xff]
  %v3070 = vld [vmem:[%s3066 + $0x18] sm:$0xff]
  %v3071 = vld [vmem:[%s3066 + $0x20] sm:$0xff]
  %v3072 = vld [vmem:[%s3066 + $0x28] sm:$0xff]
  %v3073 = vld [vmem:[%s3066 + $0x30] sm:$0xff]
  %v3074 = vld [vmem:[%s3066 + $0x38] sm:$0xff]
  %v3075 = vld [vmem:[%s3066 + $0x40] sm:$0xff]
  %v3076 = vld [vmem:[%s3066 + $0x48] sm:$0xff]
  %v3077 = vld [vmem:[%s3066 + $0x50] sm:$0xff]
  %v3078 = vld [vmem:[%s3066 + $0x58] sm:$0xff]
  %v3079 = vld [vmem:[%s3066 + $0x60] sm:$0xff]
  %v3080 = vld [vmem:[%s3066 + $0x68] sm:$0xff]
  %v3081 = vld [vmem:[%s3066 + $0x70] sm:$0xff]
  %v3082 = vld [vmem:[%s3066 + $0x78] sm:$0xff]
  %v3083 = vld [vmem:[%s3066 + $0x80] sm:$0xff]
  %v3084 = vld [vmem:[%s3066 + $0x88] sm:$0xff]
  %v3085 = vld [vmem:[%s3066 + $0x90] sm:$0xff]
  %v3086 = vld [vmem:[%s3066 + $0x98] sm:$0xff]
  %v3087 = vld [vmem:[%s3066 + $0xa0] sm:$0xff]
  %v3088 = vld [vmem:[%s3066 + $0xa8] sm:$0xff]
  %v3089 = vld [vmem:[%s3066 + $0xb0] sm:$0xff]
  %v3090 = vld [vmem:[%s3066 + $0xb8] sm:$0xff]
  %v3091 = vld [vmem:[%s3066 + $0xc0] sm:$0xff]
  %v3092 = vld [vmem:[%s3066 + $0xc8] sm:$0xff]
  %v3093 = vld [vmem:[%s3066 + $0xd0] sm:$0xff]
  %v3094 = vld [vmem:[%s3066 + $0xd8] sm:$0xff]
  %v3095 = vld [vmem:[%s3066 + $0xe0] sm:$0xff]
  %v3096 = vld [vmem:[%s3066 + $0xe8] sm:$0xff]
  %v3097 = vld [vmem:[%s3066 + $0xf0] sm:$0xff]
  %v3098 = vld [vmem:[%s3066 + $0xf8] sm:$0xff]
  %v3099 = vld [vmem:[%s3066 + $0x100] sm:$0xff]
  %v3100 = vld [vmem:[%s3066 + $0x108] sm:$0xff]
  %v3101 = vld [vmem:[%s3066 + $0x110] sm:$0xff]
  %v3102 = vld [vmem:[%s3066 + $0x118] sm:$0xff]
  %v3103 = vld [vmem:[%s3066 + $0x120] sm:$0xff]
  %v3104 = vld [vmem:[%s3066 + $0x128] sm:$0xff]
  %v3105 = vld [vmem:[%s3066 + $0x130] sm:$0xff]
  %v3106 = vld [vmem:[%s3066 + $0x138] sm:$0xff]
  %v3107 = vld [vmem:[%s3066 + $0x140] sm:$0xff]
  %v3108 = vld [vmem:[%s3066 + $0x148] sm:$0xff]
  %v3109 = vld [vmem:[%s3066 + $0x150] sm:$0xff]
  %v3110 = vld [vmem:[%s3066 + $0x158] sm:$0xff]
  %v3111 = vld [vmem:[%s3066 + $0x160] sm:$0xff]
  %v3112 = vld [vmem:[%s3066 + $0x168] sm:$0xff]
  %v3113 = vld [vmem:[%s3066 + $0x170] sm:$0xff]
  %v3114 = vld [vmem:[%s3066 + $0x178] sm:$0xff]
  %v3115 = vld [vmem:[%s3066 + $0x180] sm:$0xff]
  %v3116 = vld [vmem:[%s3066 + $0x188] sm:$0xff]
  %v3117 = vld [vmem:[%s3066 + $0x190] sm:$0xff]
  %v3118 = vld [vmem:[%s3066 + $0x198] sm:$0xff]
  %v3119 = vld [vmem:[%s3066 + $0x1a0] sm:$0xff]
  %v3120 = vld [vmem:[%s3066 + $0x1a8] sm:$0xff]
  %v3121 = vld [vmem:[%s3066 + $0x1b0] sm:$0xff]
  %v3122 = vld [vmem:[%s3066 + $0x1b8] sm:$0xff]
  %v3123 = vld [vmem:[%s3066 + $0x1c0] sm:$0xff]
  %v3124 = vld [vmem:[%s3066 + $0x1c8] sm:$0xff]
  %v3125 = vld [vmem:[%s3066 + $0x1d0] sm:$0xff]
  %v3126 = vld [vmem:[%s3066 + $0x1d8] sm:$0xff]
  %v3127 = vld [vmem:[%s3066 + $0x1e0] sm:$0xff]
  %v3128 = vld [vmem:[%s3066 + $0x1e8] sm:$0xff]
  %v3129 = vld [vmem:[%s3066 + $0x1f0] sm:$0xff]
  %v3130 = vld [vmem:[%s3066 + $0x1f8] sm:$0xff]
  %v3131 = vld [vmem:[%s3066 + $0x200] sm:$0xff]
  %v3132 = vld [vmem:[%s3066 + $0x208] sm:$0xff]
  %v3133 = vld [vmem:[%s3066 + $0x210] sm:$0xff]
  %v3134 = vld [vmem:[%s3066 + $0x218] sm:$0xff]
  %v3135 = vld [vmem:[%s3066 + $0x220] sm:$0xff]
  %v3136 = vld [vmem:[%s3066 + $0x228] sm:$0xff]
  %v3137 = vld [vmem:[%s3066 + $0x230] sm:$0xff]
  %v3138 = vld [vmem:[%s3066 + $0x238] sm:$0xff]
  %v3139 = vld [vmem:[%s3066 + $0x240] sm:$0xff]
  %v3140 = vld [vmem:[%s3066 + $0x248] sm:$0xff]
  %v3141 = vld [vmem:[%s3066 + $0x250] sm:$0xff]
  %v3142 = vld [vmem:[%s3066 + $0x258] sm:$0xff]
  %v3143 = vld [vmem:[%s3066 + $0x260] sm:$0xff]
  %v3144 = vld [vmem:[%s3066 + $0x268] sm:$0xff]
  %v3145 = vld [vmem:[%s3066 + $0x270] sm:$0xff]
  %v3146 = vld [vmem:[%s3066 + $0x278] sm:$0xff]
  %v3147 = vcombine.low %v3034, %v3041
  %v3148 = vcombine.low %v3042, %v3057
  %v3149 = vcombine.low %v3064, %v3065
  %v3151 = vunpack.c.l.s4 1966171168
  %v3152 = vunpack.c.0.s8 %v3151
  %v3153 = vlaneseq
  %v3154 = vshrl.u32 %v3153, 7
  %v3155 = vsub.s32 %v3152, %v3154
  %v3156 = vrot.slane %v3147, %v3155
  %v3158 = vunpack.c.l.s4 1966171168
  %v3159 = vunpack.c.0.s8 %v3158
  %v3160 = vlaneseq
  %v3161 = vshrl.u32 %v3160, 7
  %v3162 = vsub.s32 %v3159, %v3161
  %v3163 = vrot.slane %v3148, %v3162
  %v3165 = vunpack.c.l.s4 1966171168
  %v3166 = vunpack.c.0.s8 %v3165
  %v3167 = vlaneseq
  %v3168 = vshrl.u32 %v3167, 7
  %v3169 = vsub.s32 %v3166, %v3168
  %v3170 = vrot.slane %v3149, %v3169
  %v3171 = vcombine.low %v3156, %v3163
  %v3173 = vunpack.c.l.s4 1966171168
  %v3174 = vunpack.c.0.s8 %v3173
  %v3175 = vlaneseq
  %v3176 = vshrl.u32 %v3175, 7
  %v3177 = vsub.s32 %v3174, %v3176
  %v3178 = vrot.slane %v3171, %v3177
  %v3180 = vunpack.c.l.s4 1966171168
  %v3181 = vunpack.c.0.s8 %v3180
  %v3182 = vlaneseq
  %v3183 = vshrl.u32 %v3182, 7
  %v3184 = vsub.s32 %v3181, %v3183
  %v3185 = vrot.slane %v3170, %v3184
  %v3186 = vcombine.low %v3178, %v3185
  %3188 = vmatprep.subr.mxu0 %v3068
  %3189 = vmatpush1.msra.mxu0 %v3067
  %3190 = vmatprep.subr.mxu0 %v3073
  %3191 = vmatpush1.msra.mxu0 %v3072
  %3192 = vmatprep.subr.mxu0 %v3078
  %3193 = vmatpush1.msra.mxu0 %v3077
  %3194 = vmatprep.subr.mxu0 %v3083
  %3195 = vmatpush1.msra.mxu0 %v3082
  %3196 = vmatprep.subr.mxu0 %v3088
  %3197 = vmatpush1.msra.mxu0 %v3087
  %3198 = vmatprep.subr.mxu0 %v3093
  %3199 = vmatpush1.msra.mxu0 %v3092
  %3200 = vmatprep.subr.mxu0 %v3098
  %3201 = vmatpush1.msra.mxu0 %v3097
  %3202 = vmatprep.subr.mxu0 %v3103
  %3203 = vmatpush1.msra.mxu0 %v3102
  %3204 = vmatprep.subr.mxu0 %v3108
  %3205 = vmatpush1.msra.mxu0 %v3107
  %3206 = vmatprep.subr.mxu0 %v3113
  %3207 = vmatpush1.msra.mxu0 %v3112
  %3208 = vmatprep.subr.mxu0 %v3118
  %3209 = vmatpush1.msra.mxu0 %v3117
  %3210 = vmatprep.subr.mxu0 %v3123
  %3211 = vmatpush1.msra.mxu0 %v3122
  %3212 = vmatprep.subr.mxu0 %v3128
  %3213 = vmatpush1.msra.mxu0 %v3127
  %3214 = vmatprep.subr.mxu0 %v3133
  %3215 = vmatpush1.msra.mxu0 %v3132
  %3216 = vmatprep.subr.mxu0 %v3138
  %3217 = vmatpush1.msra.mxu0 %v3137
  %3218 = vmatprep.subr.mxu0 %v3143
  %3219 = vmatpush1.msra.mxu0 %v3142
  %3220 = vmatprep.subr.mxu0 0.0
  %3221 = vmatpush1.msra.mxu0 0.0
  %3222 = vmatprep.subr.mxu0 0.0
  %3223 = vmatpush1.msra.mxu0 0.0
  %3224 = vmatprep.subr.mxu0 0.0
  %3225 = vmatpush1.msra.mxu0 0.0
  %3226 = vmatprep.subr.mxu0 0.0
  %3227 = vmatpush1.msra.mxu0 0.0
  %3228 = vmatprep.subr.mxu0 0.0
  %3229 = vmatpush1.msra.mxu0 0.0
  %3230 = vmatprep.subr.mxu0 0.0
  %3231 = vmatpush1.msra.mxu0 0.0
  %3232 = vmatprep.subr.mxu0 0.0
  %3233 = vmatpush1.msra.mxu0 0.0
  %3234 = vmatprep.subr.mxu0 0.0
  %3235 = vmatpush1.msra.mxu0 0.0
  %3236 = vmatprep.subr.mxu0 0.0
  %3237 = vmatpush1.msra.mxu0 0.0
  %3238 = vmatprep.subr.mxu0 0.0
  %3239 = vmatpush1.msra.mxu0 0.0
  %3240 = vmatprep.subr.mxu0 0.0
  %3241 = vmatpush1.msra.mxu0 0.0
  %3242 = vmatprep.subr.mxu0 0.0
  %3243 = vmatpush1.msra.mxu0 0.0
  %3244 = vmatprep.subr.mxu0 0.0
  %3245 = vmatpush1.msra.mxu0 0.0
  %3246 = vmatprep.subr.mxu0 0.0
  %3247 = vmatpush1.msra.mxu0 0.0
  %3248 = vmatprep.subr.mxu0 0.0
  %3249 = vmatpush1.msra.mxu0 0.0
  %3250 = vmatprep.subr.mxu0 0.0
  %3251 = vmatpush1.msra.mxu0 0.0
  %3252 = vmatprep.mubr.f32.mxu0 0.0
  %3253 = vmatmul.mubr.f32.gmra.mrb[0].mxu0 %v3186
  %v3254 = vpop.f32.mrb[0].mxu0
  %v3255 = vadd.f32 0.0, %v3254
  %v3256 = vpop.f32.mrb[0].mxu0
  %v3257 = vadd.f32 0.0, %v3256
  %3258 = vdwg.mxu0
  %3259 = vmatprep.subr.mxu0 %v3070
  %3260 = vmatpush1.msra.mxu0 %v3069
  %3261 = vmatprep.subr.mxu0 %v3075
  %3262 = vmatpush1.msra.mxu0 %v3074
  %3263 = vmatprep.subr.mxu0 %v3080
  %3264 = vmatpush1.msra.mxu0 %v3079
  %3265 = vmatprep.subr.mxu0 %v3085
  %3266 = vmatpush1.msra.mxu0 %v3084
  %3267 = vmatprep.subr.mxu0 %v3090
  %3268 = vmatpush1.msra.mxu0 %v3089
  %3269 = vmatprep.subr.mxu0 %v3095
  %3270 = vmatpush1.msra.mxu0 %v3094
  %3271 = vmatprep.subr.mxu0 %v3100
  %3272 = vmatpush1.msra.mxu0 %v3099
  %3273 = vmatprep.subr.mxu0 %v3105
  %3274 = vmatpush1.msra.mxu0 %v3104
  %3275 = vmatprep.subr.mxu0 %v3110
  %3276 = vmatpush1.msra.mxu0 %v3109
  %3277 = vmatprep.subr.mxu0 %v3115
  %3278 = vmatpush1.msra.mxu0 %v3114
  %3279 = vmatprep.subr.mxu0 %v3120
  %3280 = vmatpush1.msra.mxu0 %v3119
  %3281 = vmatprep.subr.mxu0 %v3125
  %3282 = vmatpush1.msra.mxu0 %v3124
  %3283 = vmatprep.subr.mxu0 %v3130
  %3284 = vmatpush1.msra.mxu0 %v3129
  %3285 = vmatprep.subr.mxu0 %v3135
  %3286 = vmatpush1.msra.mxu0 %v3134
  %3287 = vmatprep.subr.mxu0 %v3140
  %3288 = vmatpush1.msra.mxu0 %v3139
  %3289 = vmatprep.subr.mxu0 %v3145
  %3290 = vmatpush1.msra.mxu0 %v3144
  %3291 = vmatprep.subr.mxu0 0.0
  %3292 = vmatpush1.msra.mxu0 0.0
  %3293 = vmatprep.subr.mxu0 0.0
  %3294 = vmatpush1.msra.mxu0 0.0
  %3295 = vmatprep.subr.mxu0 0.0
  %3296 = vmatpush1.msra.mxu0 0.0
  %3297 = vmatprep.subr.mxu0 0.0
  %3298 = vmatpush1.msra.mxu0 0.0
  %3299 = vmatprep.subr.mxu0 0.0
  %3300 = vmatpush1.msra.mxu0 0.0
  %3301 = vmatprep.subr.mxu0 0.0
  %3302 = vmatpush1.msra.mxu0 0.0
  %3303 = vmatprep.subr.mxu0 0.0
  %3304 = vmatpush1.msra.mxu0 0.0
  %3305 = vmatprep.subr.mxu0 0.0
  %3306 = vmatpush1.msra.mxu0 0.0
  %3307 = vmatprep.subr.mxu0 0.0
  %3308 = vmatpush1.msra.mxu0 0.0
  %3309 = vmatprep.subr.mxu0 0.0
  %3310 = vmatpush1.msra.mxu0 0.0
  %3311 = vmatprep.subr.mxu0 0.0
  %3312 = vmatpush1.msra.mxu0 0.0
  %3313 = vmatprep.subr.mxu0 0.0
  %3314 = vmatpush1.msra.mxu0 0.0
  %3315 = vmatprep.subr.mxu0 0.0
  %3316 = vmatpush1.msra.mxu0 0.0
  %3317 = vmatprep.subr.mxu0 0.0
  %3318 = vmatpush1.msra.mxu0 0.0
  %3319 = vmatprep.subr.mxu0 0.0
  %3320 = vmatpush1.msra.mxu0 0.0
  %3321 = vmatprep.subr.mxu0 0.0
  %3322 = vmatpush1.msra.mxu0 0.0
  %3323 = vmatprep.mubr.f32.mxu0 0.0
  %3324 = vmatmul.mubr.f32.gmra.mrb[0].mxu0 %v3186
  %v3325 = vpop.f32.mrb[0].mxu0
  %v3326 = vadd.f32 0.0, %v3325
  %v3327 = vpop.f32.mrb[0].mxu0
  %v3328 = vadd.f32 0.0, %v3327
  %3329 = vdwg.mxu0
  %3330 = vmatprep.subr.mxu0 0.0
  %3331 = vmatpush1.msra.mxu0 %v3071
  %3332 = vmatprep.subr.mxu0 0.0
  %3333 = vmatpush1.msra.mxu0 %v3076
  %3334 = vmatprep.subr.mxu0 0.0
  %3335 = vmatpush1.msra.mxu0 %v3081
  %3336 = vmatprep.subr.mxu0 0.0
  %3337 = vmatpush1.msra.mxu0 %v3086
  %3338 = vmatprep.subr.mxu0 0.0
  %3339 = vmatpush1.msra.mxu0 %v3091
  %3340 = vmatprep.subr.mxu0 0.0
  %3341 = vmatpush1.msra.mxu0 %v3096
  %3342 = vmatprep.subr.mxu0 0.0
  %3343 = vmatpush1.msra.mxu0 %v3101
  %3344 = vmatprep.subr.mxu0 0.0
  %3345 = vmatpush1.msra.mxu0 %v3106
  %3346 = vmatprep.subr.mxu0 0.0
  %3347 = vmatpush1.msra.mxu0 %v3111
  %3348 = vmatprep.subr.mxu0 0.0
  %3349 = vmatpush1.msra.mxu0 %v3116
  %3350 = vmatprep.subr.mxu0 0.0
  %3351 = vmatpush1.msra.mxu0 %v3121
  %3352 = vmatprep.subr.mxu0 0.0
  %3353 = vmatpush1.msra.mxu0 %v3126
  %3354 = vmatprep.subr.mxu0 0.0
  %3355 = vmatpush1.msra.mxu0 %v3131
  %3356 = vmatprep.subr.mxu0 0.0
  %3357 = vmatpush1.msra.mxu0 %v3136
  %3358 = vmatprep.subr.mxu0 0.0
  %3359 = vmatpush1.msra.mxu0 %v3141
  %3360 = vmatprep.subr.mxu0 0.0
  %3361 = vmatpush1.msra.mxu0 %v3146
  %3362 = vmatprep.subr.mxu0 0.0
  %3363 = vmatpush1.msra.mxu0 0.0
  %3364 = vmatprep.subr.mxu0 0.0
  %3365 = vmatpush1.msra.mxu0 0.0
  %3366 = vmatprep.subr.mxu0 0.0
  %3367 = vmatpush1.msra.mxu0 0.0
  %3368 = vmatprep.subr.mxu0 0.0
  %3369 = vmatpush1.msra.mxu0 0.0
  %3370 = vmatprep.subr.mxu0 0.0
  %3371 = vmatpush1.msra.mxu0 0.0
  %3372 = vmatprep.subr.mxu0 0.0
  %3373 = vmatpush1.msra.mxu0 0.0
  %3374 = vmatprep.subr.mxu0 0.0
  %3375 = vmatpush1.msra.mxu0 0.0
  %3376 = vmatprep.subr.mxu0 0.0
  %3377 = vmatpush1.msra.mxu0 0.0
  %3378 = vmatprep.subr.mxu0 0.0
  %3379 = vmatpush1.msra.mxu0 0.0
  %3380 = vmatprep.subr.mxu0 0.0
  %3381 = vmatpush1.msra.mxu0 0.0
  %3382 = vmatprep.subr.mxu0 0.0
  %3383 = vmatpush1.msra.mxu0 0.0
  %3384 = vmatprep.subr.mxu0 0.0
  %3385 = vmatpush1.msra.mxu0 0.0
  %3386 = vmatprep.subr.mxu0 0.0
  %3387 = vmatpush1.msra.mxu0 0.0
  %3388 = vmatprep.subr.mxu0 0.0
  %3389 = vmatpush1.msra.mxu0 0.0
  %3390 = vmatprep.subr.mxu0 0.0
  %3391 = vmatpush1.msra.mxu0 0.0
  %3392 = vmatprep.subr.mxu0 0.0
  %3393 = vmatpush1.msra.mxu0 0.0
  %3394 = vmatprep.mubr.f32.mxu0 0.0
  %3395 = vmatmul.mubr.f32.gmra.mrb[0].mxu0 %v3186
  %v3396 = vpop.f32.mrb[0].mxu0
  %v3397 = vadd.f32 0.0, %v3396
  %v3398 = vpop.f32.mrb[0].mxu0
  %3399 = vdwg.mxu0
  %v3400 = vadd.f32 %v3009, %v3255
  %v3401 = vadd.f32 %v3010, %v3257
  %v3402 = vadd.f32 %v3011, %v3326
  %v3403 = vadd.f32 %v3012, %v3328
  %v3404 = vadd.f32 %v3013, %v3397
  %v3405 = vmax.f32 %v3400, 0.0
  %v3406 = vmax.f32 %v3401, 0.0
  %v3407 = vmax.f32 %v3402, 0.0
  %v3408 = vmax.f32 %v3403, 0.0
  %v3409 = vmax.f32 %v3404, 0.0
  %v3415 = vcombine.low %v3405, %v3406
  %v3416 = vcombine.high %v3405, %v3406
  %v3417 = vcombine.low %v3407, %v3408
  %v3418 = vcombine.high %v3407, %v3408
  %v3419 = vcombine.high %v3409, %v3409
  %v3421 = vunpack.c.l.s4 1966171168
  %v3422 = vunpack.c.0.s8 %v3421
  %v3423 = vlaneseq
  %v3424 = vshrl.u32 %v3423, 7
  %v3425 = vsub.s32 %v3422, %v3424
  %v3426 = vrot.slane %v3415, %v3425
  %v3428 = vunpack.c.l.s4 1966171168
  %v3429 = vunpack.c.0.s8 %v3428
  %v3430 = vlaneseq
  %v3431 = vshrl.u32 %v3430, 7
  %v3432 = vsub.s32 %v3429, %v3431
  %v3433 = vrot.slane %v3416, %v3432
  %v3435 = vunpack.c.l.s4 1966171168
  %v3436 = vunpack.c.0.s8 %v3435
  %v3437 = vlaneseq
  %v3438 = vshrl.u32 %v3437, 7
  %v3439 = vsub.s32 %v3436, %v3438
  %v3440 = vrot.slane %v3417, %v3439
  %v3442 = vunpack.c.l.s4 1966171168
  %v3443 = vunpack.c.0.s8 %v3442
  %v3444 = vlaneseq
  %v3445 = vshrl.u32 %v3444, 7
  %v3446 = vsub.s32 %v3443, %v3445
  %v3447 = vrot.slane %v3418, %v3446
  %v3449 = vunpack.c.l.s4 1966171168
  %v3450 = vunpack.c.0.s8 %v3449
  %v3451 = vlaneseq
  %v3452 = vshrl.u32 %v3451, 7
  %v3453 = vsub.s32 %v3450, %v3452
  %v3454 = vrot.slane %v3409, %v3453
  %v3456 = vunpack.c.l.s4 1966171168
  %v3457 = vunpack.c.0.s8 %v3456
  %v3458 = vlaneseq
  %v3459 = vshrl.u32 %v3458, 7
  %v3460 = vsub.s32 %v3457, %v3459
  %v3461 = vrot.slane %v3419, %v3460
  %v3462 = vcombine.low %v3426, %v3440
  %v3463 = vcombine.high %v3426, %v3440
  %v3464 = vcombine.low %v3433, %v3447
  %v3465 = vcombine.high %v3433, %v3447
  %v3466 = vcombine.high %v3454, %v3454
  %v3467 = vcombine.high %v3461, %v3461
  %v3469 = vunpack.c.l.s4 1966171168
  %v3470 = vunpack.c.0.s8 %v3469
  %v3471 = vlaneseq
  %v3472 = vshrl.u32 %v3471, 7
  %v3473 = vsub.s32 %v3470, %v3472
  %v3474 = vrot.slane %v3462, %v3473
  %v3476 = vunpack.c.l.s4 1966171168
  %v3477 = vunpack.c.0.s8 %v3476
  %v3478 = vlaneseq
  %v3479 = vshrl.u32 %v3478, 7
  %v3480 = vsub.s32 %v3477, %v3479
  %v3481 = vrot.slane %v3464, %v3480
  %v3483 = vunpack.c.l.s4 1966171168
  %v3484 = vunpack.c.0.s8 %v3483
  %v3485 = vlaneseq
  %v3486 = vshrl.u32 %v3485, 7
  %v3487 = vsub.s32 %v3484, %v3486
  %v3488 = vrot.slane %v3463, %v3487
  %v3490 = vunpack.c.l.s4 1966171168
  %v3491 = vunpack.c.0.s8 %v3490
  %v3492 = vlaneseq
  %v3493 = vshrl.u32 %v3492, 7
  %v3494 = vsub.s32 %v3491, %v3493
  %v3495 = vrot.slane %v3465, %v3494
  %v3497 = vunpack.c.l.s4 1966171168
  %v3498 = vunpack.c.0.s8 %v3497
  %v3499 = vlaneseq
  %v3500 = vshrl.u32 %v3499, 7
  %v3501 = vsub.s32 %v3498, %v3500
  %v3502 = vrot.slane %v3454, %v3501
  %v3504 = vunpack.c.l.s4 1966171168
  %v3505 = vunpack.c.0.s8 %v3504
  %v3506 = vlaneseq
  %v3507 = vshrl.u32 %v3506, 7
  %v3508 = vsub.s32 %v3505, %v3507
  %v3509 = vrot.slane %v3461, %v3508
  %v3511 = vunpack.c.l.s4 1966171168
  %v3512 = vunpack.c.0.s8 %v3511
  %v3513 = vlaneseq
  %v3514 = vshrl.u32 %v3513, 7
  %v3515 = vsub.s32 %v3512, %v3514
  %v3516 = vrot.slane %v3466, %v3515
  %v3518 = vunpack.c.l.s4 1966171168
  %v3519 = vunpack.c.0.s8 %v3518
  %v3520 = vlaneseq
  %v3521 = vshrl.u32 %v3520, 7
  %v3522 = vsub.s32 %v3519, %v3521
  %v3523 = vrot.slane %v3467, %v3522
  %v3524 = vcombine.low %v3474, %v3502
  %v3525 = vcombine.high %v3474, %v3502
  %v3526 = vcombine.low %v3481, %v3509
  %v3527 = vcombine.low %v3488, %v3516
  %v3528 = vcombine.high %v3488, %v3516
  %v3529 = vcombine.low %v3495, %v3523
  %v3530 = vcombine.low %v3524, %v3525
  %v3531 = vcombine.high %v3524, %v3525
  %v3532 = vcombine.high %v3527, %v3527
  %v3534 = vunpack.c.l.s4 1935823168
  %v3535 = vunpack.c.0.s8 %v3534
  %v3536 = vlaneseq
  %v3537 = vshrl.u32 %v3536, 7
  %v3538 = vsub.s32 %v3535, %v3537
  %v3539 = vrot.slane %v3530, %v3538
  %v3541 = vunpack.c.l.s4 1935823168
  %v3542 = vunpack.c.0.s8 %v3541
  %v3543 = vlaneseq
  %v3544 = vshrl.u32 %v3543, 7
  %v3545 = vsub.s32 %v3542, %v3544
  %v3546 = vrot.slane %v3527, %v3545
  %v3548 = vunpack.c.l.s4 1935823168
  %v3549 = vunpack.c.0.s8 %v3548
  %v3550 = vlaneseq
  %v3551 = vshrl.u32 %v3550, 7
  %v3552 = vsub.s32 %v3549, %v3551
  %v3553 = vrot.slane %v3531, %v3552
  %v3555 = vunpack.c.l.s4 1935823168
  %v3556 = vunpack.c.0.s8 %v3555
  %v3557 = vlaneseq
  %v3558 = vshrl.u32 %v3557, 7
  %v3559 = vsub.s32 %v3556, %v3558
  %v3560 = vrot.slane %v3532, %v3559
  %v3561 = vcombine.low %v3539, %v3546
  %v3562 = vcombine.high %v3539, %v3546
  %v3563 = vcombine.low %v3553, %v3560
  %v3565 = vunpack.c.l.s4 1935823168
  %v3566 = vunpack.c.0.s8 %v3565
  %v3567 = vlaneseq
  %v3568 = vshrl.u32 %v3567, 7
  %v3569 = vsub.s32 %v3566, %v3568
  %v3570 = vrot.slane %v3561, %v3569
  %v3572 = vunpack.c.l.s4 1935823168
  %v3573 = vunpack.c.0.s8 %v3572
  %v3574 = vlaneseq
  %v3575 = vshrl.u32 %v3574, 7
  %v3576 = vsub.s32 %v3573, %v3575
  %v3577 = vrot.slane %v3562, %v3576
  %v3579 = vunpack.c.l.s4 1935823168
  %v3580 = vunpack.c.0.s8 %v3579
  %v3581 = vlaneseq
  %v3582 = vshrl.u32 %v3581, 7
  %v3583 = vsub.s32 %v3580, %v3582
  %v3584 = vrot.slane %v3563, %v3583
  %v3585 = vcombine.low %v3528, %v3529
  %v3586 = vcombine.high %v3528, %v3529
  %v3587 = vcombine.high %v3526, %v3526
  %v3589 = vunpack.c.l.s4 1935823168
  %v3590 = vunpack.c.0.s8 %v3589
  %v3591 = vlaneseq
  %v3592 = vshrl.u32 %v3591, 7
  %v3593 = vsub.s32 %v3590, %v3592
  %v3594 = vrot.slane %v3585, %v3593
  %v3596 = vunpack.c.l.s4 1935823168
  %v3597 = vunpack.c.0.s8 %v3596
  %v3598 = vlaneseq
  %v3599 = vshrl.u32 %v3598, 7
  %v3600 = vsub.s32 %v3597, %v3599
  %v3601 = vrot.slane %v3526, %v3600
  %v3603 = vunpack.c.l.s4 1935823168
  %v3604 = vunpack.c.0.s8 %v3603
  %v3605 = vlaneseq
  %v3606 = vshrl.u32 %v3605, 7
  %v3607 = vsub.s32 %v3604, %v3606
  %v3608 = vrot.slane %v3586, %v3607
  %v3610 = vunpack.c.l.s4 1935823168
  %v3611 = vunpack.c.0.s8 %v3610
  %v3612 = vlaneseq
  %v3613 = vshrl.u32 %v3612, 7
  %v3614 = vsub.s32 %v3611, %v3613
  %v3615 = vrot.slane %v3587, %v3614
  %v3616 = vcombine.low %v3594, %v3601
  %v3617 = vcombine.high %v3594, %v3601
  %v3618 = vcombine.low %v3608, %v3615
  %v3620 = vunpack.c.l.s4 1935823168
  %v3621 = vunpack.c.0.s8 %v3620
  %v3622 = vlaneseq
  %v3623 = vshrl.u32 %v3622, 7
  %v3624 = vsub.s32 %v3621, %v3623
  %v3625 = vrot.slane %v3616, %v3624
  %v3627 = vunpack.c.l.s4 1935823168
  %v3628 = vunpack.c.0.s8 %v3627
  %v3629 = vlaneseq
  %v3630 = vshrl.u32 %v3629, 7
  %v3631 = vsub.s32 %v3628, %v3630
  %v3632 = vrot.slane %v3617, %v3631
  %v3634 = vunpack.c.l.s4 1935823168
  %v3635 = vunpack.c.0.s8 %v3634
  %v3636 = vlaneseq
  %v3637 = vshrl.u32 %v3636, 7
  %v3638 = vsub.s32 %v3635, %v3637
  %v3639 = vrot.slane %v3618, %v3638
  %3646 = vst [vmem:[%s7] sm:$0x77] %v3570
  %3647 = vst [vmem:[%s7 + $0x8] sm:$0x77] %v3577
  %vm3648 = vcmask 92160
  %3649 = vst.msk [vmem:[%s7 + $0x10] sm:$0x7] %vm3648, %v3584
  %3650 = vst [vmem:[%s7 + $0x14] sm:$0x77] %v3625
  %3651 = vst [vmem:[%s7 + $0x1c] sm:$0x77] %v3632
  %3652 = vst.msk [vmem:[%s7 + $0x24] sm:$0x7] %vm3648, %v3639
  // Predicated region
  $region30: #{forward.2} parent=0 // pred_check
    _
  $region31: #{forward.2} parent=0 // pred_check_branch
    %3654 = sbr.rel (0) target = $region33
  $region32: #{forward.2} parent=0 // pred_region
    _
  $region33: #{forward.2} parent=0 // pred_fallthru
    _
  // Predicated region
  $region34: #{forward.2} parent=0 // pred_check
    _
  $region35: #{forward.2} parent=0 // pred_check_branch
    %3656 = sbr.rel (0) target = $region37
  $region36: #{forward.2} parent=0 // pred_region
    _
  $region37: #{forward.2} parent=0 // pred_fallthru
    _

</llo_original>
